<compile_context>
chip_gen: v7x
topology: tpu7x:2x2x1
jax: 0.10.0
libtpu: 0.0.40
codegen_flags: <defaults>
</compile_context>

<pallas_src>
import jax
import jax.numpy as jnp
from jax.experimental import pallas as pl
from jax.experimental.pallas import tpu as pltpu


def _round_up(x, m):
    return ((x + m - 1) // m) * m


def mlp_kernel(x_ref, w1_ref, b1_ref, w2_ref, b2_ref, w3_ref, b3_ref, o_ref):
    # Layer 1: Linear(896 -> 1024)  (K zero-padded from 784), bias + ReLU in f32.
    h1 = jnp.dot(x_ref[...], w1_ref[...], preferred_element_type=jnp.float32)
    h1 = jnp.maximum(h1 + b1_ref[...], 0.0).astype(jnp.bfloat16)
    # Layer 2: Linear(1024 -> 1024) + ReLU
    h2 = jnp.dot(h1, w2_ref[...], preferred_element_type=jnp.float32)
    h2 = jnp.maximum(h2 + b2_ref[...], 0.0).astype(jnp.bfloat16)
    # Layer 3: Linear(1024 -> 128)  (N zero-padded from num_outputs), no activation.
    out = jnp.dot(h2, w3_ref[...], preferred_element_type=jnp.float32)
    o_ref[...] = (out + b3_ref[...]).astype(o_ref.dtype)


def mlp_forward(x_nchw, params, num_outputs):
    """x_nchw: [B, C, H, W] with C*H*W == 784. Returns [B, num_outputs] (f32)."""
    w1, b1, w2, b2, w3, b3 = params  # f32, weights in [in, out] layout, biases [1, out]
    B = x_nchw.shape[0]
    x = x_nchw.reshape(B, -1)  # nn.Flatten()
    K = x.shape[1]
    assert K == 784, f"expected 784 features, got {K}"
    H = w1.shape[1]  # 1024

    K_pad = _round_up(K, 128)                  # 896: lane-aligned contraction
    N_pad = _round_up(max(num_outputs, 1), 128)  # 128: lane-dense final layer / stores

    # Batch tiling: TB rows per grid step, pad B so TB divides it (padded rows are
    # zeros and get sliced off at the end).
    TB = 256
    if B <= TB:
        B_pad = max(_round_up(B, 16), 16)      # >=16 sublanes for bf16 tiles
        TB = B_pad
    else:
        B_pad = _round_up(B, TB)

    # Pad + cast operands: bf16 weights/activations, f32 biases.
    x_p = jnp.zeros((B_pad, K_pad), jnp.bfloat16).at[:B, :K].set(x.astype(jnp.bfloat16))
    w1_p = jnp.zeros((K_pad, H), jnp.bfloat16).at[:K, :].set(w1.astype(jnp.bfloat16))
    w2_p = w2.astype(jnp.bfloat16)
    w3_p = jnp.zeros((H, N_pad), jnp.bfloat16).at[:, :num_outputs].set(w3.astype(jnp.bfloat16))
    b1_p = b1.astype(jnp.float32)
    b2_p = b2.astype(jnp.float32)
    b3_p = jnp.zeros((1, N_pad), jnp.float32).at[:, :num_outputs].set(b3.astype(jnp.float32))

    grid = (B_pad // TB,)
    flops = 2 * B_pad * (K_pad * H + H * H + H * N_pad)
    bytes_accessed = (
        2 * (x_p.size + w1_p.size + w2_p.size + w3_p.size)          # bf16 operands
        + 4 * (b1_p.size + b2_p.size + b3_p.size)                   # f32 biases
        + 4 * B_pad * N_pad                                         # f32 output
    )

    out = pl.pallas_call(
        mlp_kernel,
        out_shape=jax.ShapeDtypeStruct((B_pad, N_pad), jnp.float32),
        grid=grid,
        in_specs=[
            pl.BlockSpec((TB, K_pad), lambda i: (i, 0)),     # x: streamed per batch tile
            pl.BlockSpec((K_pad, H), lambda i: (0, 0)),      # w1: resident
            pl.BlockSpec((1, H), lambda i: (0, 0)),          # b1: resident
            pl.BlockSpec((H, H), lambda i: (0, 0)),          # w2: resident
            pl.BlockSpec((1, H), lambda i: (0, 0)),          # b2: resident
            pl.BlockSpec((H, N_pad), lambda i: (0, 0)),      # w3: resident
            pl.BlockSpec((1, N_pad), lambda i: (0, 0)),      # b3: resident
        ],
        out_specs=pl.BlockSpec((TB, N_pad), lambda i: (i, 0)),
        compiler_params=pltpu.CompilerParams(
            dimension_semantics=("parallel",),
            vmem_limit_bytes=32 << 20,
        ),
        cost_estimate=pl.CostEstimate(
            flops=flops, transcendentals=0, bytes_accessed=bytes_accessed
        ),
    )(x_p, w1_p, b1_p, w2_p, b2_p, w3_p, b3_p)

    return out[:B, :num_outputs]


def init_params(key, num_outputs):
    """Deterministic init mirroring PyTorch Linear default (uniform +/- 1/sqrt(fan_in)).
    Weights stored as [in_features, out_features] (transpose of PyTorch's [out, in])."""
    dims = [(784, 1024), (1024, 1024), (1024, num_outputs)]
    params = []
    for fan_in, fan_out in dims:
        key, kw, kb = jax.random.split(key, 3)
        bound = 1.0 / jnp.sqrt(jnp.float32(fan_in))
        w = jax.random.uniform(kw, (fan_in, fan_out), jnp.float32, -bound, bound)
        b = jax.random.uniform(kb, (1, fan_out), jnp.float32, -bound, bound)
        params.extend([w, b])
    return tuple(params)


def mlp_reference(x_nchw, params):
    """Plain-JAX reference mirroring the kernel's dtype flow (bf16 weights/activations,
    f32 accumulation, f32 biases) so it checks the kernel, not the quantization choice."""
    w1, b1, w2, b2, w3, b3 = params
    x = x_nchw.reshape(x_nchw.shape[0], -1).astype(jnp.bfloat16)
    h1 = jnp.dot(x, w1.astype(jnp.bfloat16), preferred_element_type=jnp.float32) + b1
    h1 = jnp.maximum(h1, 0.0).astype(jnp.bfloat16)
    h2 = jnp.dot(h1, w2.astype(jnp.bfloat16), preferred_element_type=jnp.float32) + b2
    h2 = jnp.maximum(h2, 0.0).astype(jnp.bfloat16)
    return jnp.dot(h2, w3.astype(jnp.bfloat16), preferred_element_type=jnp.float32) + b3


if __name__ == "__main__":
    num_outputs = 10
    key = jax.random.PRNGKey(0)
    key, kx = jax.random.split(key)
    # MNIST-style input implied by Linear(784, ...): [B, 1, 28, 28]
    x = jax.random.normal(kx, (2, 1, 28, 28), jnp.float32)
    params = init_params(key, num_outputs)

    out = mlp_forward(x, params, num_outputs)
    out = jax.block_until_ready(out)
    assert out.shape == (2, num_outputs)

    ref = mlp_reference(x, params)
    assert jnp.allclose(out, ref, atol=2e-2, rtol=2e-2), "mismatch vs reference"
    print("KERNEL_OK")
</pallas_src>

<mosaic_0001>
module attributes {stable_mosaic.version = 11 : i64} {
  func.func @mlp_kernel(%arg0: i32, %arg1: memref<16x896xbf16, #tpu.memory_space<vmem>>, %arg2: memref<896x1024xbf16, #tpu.memory_space<vmem>>, %arg3: memref<1x1024xf32, #tpu.memory_space<vmem>>, %arg4: memref<1024x1024xbf16, #tpu.memory_space<vmem>>, %arg5: memref<1x1024xf32, #tpu.memory_space<vmem>>, %arg6: memref<1024x128xbf16, #tpu.memory_space<vmem>>, %arg7: memref<1x128xf32, #tpu.memory_space<vmem>>, %arg8: memref<16x128xf32, #tpu.memory_space<vmem>>) attributes {dimension_semantics = [#tpu.dimension_semantics<parallel>], iteration_bounds = array<i64: 1>, scalar_prefetch = 0 : i64, scratch_operands = 0 : i64, tpu.core_type = #tpu.core_type<tc>, window_params = [{transform_indices = @transform_0, window_bounds = array<i64: 16, 896>}, {pipeline_mode = #tpu.pipeline_mode<synchronous>, transform_indices = @transform_1, window_bounds = array<i64: 896, 1024>}, {pipeline_mode = #tpu.pipeline_mode<synchronous>, transform_indices = @transform_2, window_bounds = array<i64: 1, 1024>}, {pipeline_mode = #tpu.pipeline_mode<synchronous>, transform_indices = @transform_3, window_bounds = array<i64: 1024, 1024>}, {pipeline_mode = #tpu.pipeline_mode<synchronous>, transform_indices = @transform_4, window_bounds = array<i64: 1, 1024>}, {pipeline_mode = #tpu.pipeline_mode<synchronous>, transform_indices = @transform_5, window_bounds = array<i64: 1024, 128>}, {pipeline_mode = #tpu.pipeline_mode<synchronous>, transform_indices = @transform_6, window_bounds = array<i64: 1, 128>}, {transform_indices = @transform_7, window_bounds = array<i64: 16, 128>}]} {
    %c0 = arith.constant 0 : index
    %c0_0 = arith.constant 0 : index
    %0 = vector.load %arg1[%c0, %c0_0] : memref<16x896xbf16, #tpu.memory_space<vmem>>, vector<16x896xbf16>
    %c0_1 = arith.constant 0 : index
    %c0_2 = arith.constant 0 : index
    %1 = vector.load %arg2[%c0_1, %c0_2] : memref<896x1024xbf16, #tpu.memory_space<vmem>>, vector<896x1024xbf16>
    %cst = arith.constant dense<0.000000e+00> : vector<16x1024xf32>
    %2 = tpu.matmul %0, %1, %cst {dimension_numbers = #tpu.dot_dimension_numbers<[1], [0], [0], [1], [0, 0, 1, 1], [], []>} : vector<16x896xbf16>, vector<896x1024xbf16>, vector<16x1024xf32> -> vector<16x1024xf32>
    %c0_3 = arith.constant 0 : index
    %c0_4 = arith.constant 0 : index
    %3 = vector.load %arg3[%c0_3, %c0_4] : memref<1x1024xf32, #tpu.memory_space<vmem>>, vector<1x1024xf32>
    %4 = vector.broadcast %3 : vector<1x1024xf32> to vector<16x1024xf32>
    %5 = arith.addf %2, %4 : vector<16x1024xf32>
    %cst_5 = arith.constant 0.000000e+00 : f32
    %6 = vector.broadcast %cst_5 : f32 to vector<16x1024xf32>
    %7 = arith.maximumf %5, %6 : vector<16x1024xf32>
    %8 = arith.truncf %7 : vector<16x1024xf32> to vector<16x1024xbf16>
    %c0_6 = arith.constant 0 : index
    %c0_7 = arith.constant 0 : index
    %9 = vector.load %arg4[%c0_6, %c0_7] : memref<1024x1024xbf16, #tpu.memory_space<vmem>>, vector<1024x1024xbf16>
    %cst_8 = arith.constant dense<0.000000e+00> : vector<16x1024xf32>
    %10 = tpu.matmul %8, %9, %cst_8 {dimension_numbers = #tpu.dot_dimension_numbers<[1], [0], [0], [1], [0, 0, 1, 1], [], []>} : vector<16x1024xbf16>, vector<1024x1024xbf16>, vector<16x1024xf32> -> vector<16x1024xf32>
    %c0_9 = arith.constant 0 : index
    %c0_10 = arith.constant 0 : index
    %11 = vector.load %arg5[%c0_9, %c0_10] : memref<1x1024xf32, #tpu.memory_space<vmem>>, vector<1x1024xf32>
    %12 = vector.broadcast %11 : vector<1x1024xf32> to vector<16x1024xf32>
    %13 = arith.addf %10, %12 : vector<16x1024xf32>
    %cst_11 = arith.constant 0.000000e+00 : f32
    %14 = vector.broadcast %cst_11 : f32 to vector<16x1024xf32>
    %15 = arith.maximumf %13, %14 : vector<16x1024xf32>
    %16 = arith.truncf %15 : vector<16x1024xf32> to vector<16x1024xbf16>
    %c0_12 = arith.constant 0 : index
    %c0_13 = arith.constant 0 : index
    %17 = vector.load %arg6[%c0_12, %c0_13] : memref<1024x128xbf16, #tpu.memory_space<vmem>>, vector<1024x128xbf16>
    %cst_14 = arith.constant dense<0.000000e+00> : vector<16x128xf32>
    %18 = tpu.matmul %16, %17, %cst_14 {dimension_numbers = #tpu.dot_dimension_numbers<[1], [0], [0], [1], [0, 0, 1, 1], [], []>} : vector<16x1024xbf16>, vector<1024x128xbf16>, vector<16x128xf32> -> vector<16x128xf32>
    %c0_15 = arith.constant 0 : index
    %c0_16 = arith.constant 0 : index
    %19 = vector.load %arg7[%c0_15, %c0_16] : memref<1x128xf32, #tpu.memory_space<vmem>>, vector<1x128xf32>
    %20 = vector.broadcast %19 : vector<1x128xf32> to vector<16x128xf32>
    %21 = arith.addf %18, %20 : vector<16x128xf32>
    %c0_17 = arith.constant 0 : index
    %c0_18 = arith.constant 0 : index
    %22 = vector.load %arg8[%c0_17, %c0_18] : memref<16x128xf32, #tpu.memory_space<vmem>>, vector<16x128xf32>
    tpu.vector_store %arg8[%c0_17, %c0_18], %21 {strides = array<i32>} : memref<16x128xf32, #tpu.memory_space<vmem>>, vector<16x128xf32>,
    return
  }
  func.func @transform_0(%arg0: i32) -> (i32, i32) {
    %c0_i32 = arith.constant 0 : i32
    %c0_i32_0 = arith.constant 0 : i32
    return %arg0, %c0_i32 : i32, i32
  }
  func.func @transform_1(%arg0: i32) -> (i32, i32) {
    %c0_i32 = arith.constant 0 : i32
    %c0_i32_0 = arith.constant 0 : i32
    %c0_i32_1 = arith.constant 0 : i32
    return %c0_i32, %c0_i32_0 : i32, i32
  }
  func.func @transform_2(%arg0: i32) -> (i32, i32) {
    %c0_i32 = arith.constant 0 : i32
    %c0_i32_0 = arith.constant 0 : i32
    %c0_i32_1 = arith.constant 0 : i32
    return %c0_i32, %c0_i32_0 : i32, i32
  }
  func.func @transform_3(%arg0: i32) -> (i32, i32) {
    %c0_i32 = arith.constant 0 : i32
    %c0_i32_0 = arith.constant 0 : i32
    %c0_i32_1 = arith.constant 0 : i32
    return %c0_i32, %c0_i32_0 : i32, i32
  }
  func.func @transform_4(%arg0: i32) -> (i32, i32) {
    %c0_i32 = arith.constant 0 : i32
    %c0_i32_0 = arith.constant 0 : i32
    %c0_i32_1 = arith.constant 0 : i32
    return %c0_i32, %c0_i32_0 : i32, i32
  }
  func.func @transform_5(%arg0: i32) -> (i32, i32) {
    %c0_i32 = arith.constant 0 : i32
    %c0_i32_0 = arith.constant 0 : i32
    %c0_i32_1 = arith.constant 0 : i32
    return %c0_i32, %c0_i32_0 : i32, i32
  }
  func.func @transform_6(%arg0: i32) -> (i32, i32) {
    %c0_i32 = arith.constant 0 : i32
    %c0_i32_0 = arith.constant 0 : i32
    %c0_i32_1 = arith.constant 0 : i32
    return %c0_i32, %c0_i32_0 : i32, i32
  }
  func.func @transform_7(%arg0: i32) -> (i32, i32) {
    %c0_i32 = arith.constant 0 : i32
    %c0_i32_0 = arith.constant 0 : i32
    return %arg0, %c0_i32 : i32, i32
  }
}

</mosaic_0001>

<llo_original>
// kernel: tpu_custom_call.1
$region0: #{tpu_custom_call.1}
  #allocation0 [shape = 'u32[]', space=smem, size = 0x4, offset = 0x4, fixed_abs, tag = 'smem constant byte address 0x4 - core index']
  #allocation1 [shape = 'u32[144,128]{1,0:T(1,128)}', space=vmem, size = 0x12000, scoped, tag = 'internal scratch']
  %s0 = inlined_call_operand.hbm [shape: bf16[16,896], index: 0, kind: input, shape index: {}]
  %s1 = inlined_call_operand.hbm [shape: bf16[896,1024], index: 1, kind: input, shape index: {}]
  %s2 = inlined_call_operand.hbm [shape: f32[1,1024], index: 2, kind: input, shape index: {}]
  %s3 = inlined_call_operand.hbm [shape: bf16[1024,1024], index: 3, kind: input, shape index: {}]
  %s4 = inlined_call_operand.hbm [shape: f32[1,1024], index: 4, kind: input, shape index: {}]
  %s5 = inlined_call_operand.hbm [shape: bf16[1024,128], index: 5, kind: input, shape index: {}]
  %s6 = inlined_call_operand.hbm [shape: f32[1,128], index: 6, kind: input, shape index: {}]
  %s7 = inlined_call_operand.hbm [shape: f32[16,128], index: 7, kind: output, shape index: {}]
  %s8 = sld [smem:[#allocation0]]
  $region66: #{tpu_custom_call.1} parent=0
    _
  %s10 = ssub.s32 1, %s8
  %s11 = scalar_select 0, %s10, %s8
  $region1: #{tpu_custom_call.1} parent=0
    #allocation2 [shape = 'u8[28672]{0}', space=vmem, size = 0x7000, scoped, tag = 'input window, operand 0, single buffered']
    #allocation3 [shape = 's32[1]{0}', space=sflag, size = 0x4, scoped, tag = 'scoped memory for tpu_custom_call.1']
    #allocation4 [shape = 's32[1]{0}', space=sflag, size = 0x4, scoped, tag = 'scoped memory for tpu_custom_call.1']
    #allocation5 [shape = 'u8[1835008]{0}', space=vmem, size = 0x1c0000, scoped, tag = 'input window, operand 1, single buffered']
    #allocation6 [shape = 's32[1]{0}', space=sflag, size = 0x4, scoped, tag = 'scoped memory for tpu_custom_call.1']
    #allocation7 [shape = 'u8[4096]{0}', space=vmem, size = 0x1000, scoped, tag = 'input window, operand 2, single buffered']
    #allocation8 [shape = 'u8[2097152]{0}', space=vmem, size = 0x200000, scoped, tag = 'input window, operand 3, single buffered']
    #allocation9 [shape = 's32[1]{0}', space=sflag, size = 0x4, scoped, tag = 'scoped memory for tpu_custom_call.1']
    #allocation10 [shape = 'u8[4096]{0}', space=vmem, size = 0x1000, scoped, tag = 'input window, operand 4, single buffered']
    #allocation11 [shape = 'u8[262144]{0}', space=vmem, size = 0x40000, scoped, tag = 'input window, operand 5, single buffered']
    #allocation12 [shape = 's32[1]{0}', space=sflag, size = 0x4, scoped, tag = 'scoped memory for tpu_custom_call.1']
    #allocation13 [shape = 'u8[512]{0}', space=vmem, size = 0x400, scoped, tag = 'input window, operand 6, single buffered']
    #allocation14 [shape = 'u8[8192]{0}', space=vmem, size = 0x2000, scoped, tag = 'output window, operand 0, single buffered']
    %12 = vsyncpa [#allocation3], 0
    %13 = vsyncpa [#allocation6], 0
    %14 = vsyncpa [#allocation9], 0
    %15 = vsyncpa [#allocation12], 0
    %16 = vsyncpa [#allocation4], 0
    // Predicated region
    $region2: #{tpu_custom_call.1} parent=1 // pred_check
      _
    $region3: #{tpu_custom_call.1} parent=1 // pred_check_branch
      %18 = sbr.rel (0) target = $region5
    $region4: #{tpu_custom_call.1} parent=1 // pred_region
      %s20 = ssub.s32 896, 896
      %21 = vsyncadd [#allocation3], %s20
      %s22 = sshll.u32 [#allocation2], 4
      %s23 = int_to_ptr.vmem [resolvable:$true] %s22
      %28 = dma.hbm_to_vmem [thread:$0]  %s0, 896, %s23, [#allocation3], 448, 448, 28
    $region5: #{tpu_custom_call.1} parent=1 // pred_fallthru
      _
    // Predicated region
    $region6: #{tpu_custom_call.1} parent=1 // pred_check
      _
    $region7: #{tpu_custom_call.1} parent=1 // pred_check_branch
      %30 = sbr.rel (0) target = $region9
    $region8: #{tpu_custom_call.1} parent=1 // pred_region
      %s32 = ssub.s32 57344, 57344
      %33 = vsyncadd [#allocation6], %s32
      %s34 = sshll.u32 [#allocation5], 4
      %s35 = int_to_ptr.vmem [resolvable:$true] %s34
      %40 = dma.hbm_to_vmem [thread:$0]  %s1, 57344, %s35, [#allocation6], 512, 512, 32
    $region9: #{tpu_custom_call.1} parent=1 // pred_fallthru
      _
    // Predicated region
    $region10: #{tpu_custom_call.1} parent=1 // pred_check
      _
    $region11: #{tpu_custom_call.1} parent=1 // pred_check_branch
      %42 = sbr.rel (0) target = $region13
    $region12: #{tpu_custom_call.1} parent=1 // pred_region
      %s44 = ssub.s32 128, 128
      %45 = vsyncadd [#allocation6], %s44
      %s47 = sshll.u32 [#allocation7], 4
      %s48 = int_to_ptr.vmem [resolvable:$true] %s47
      %50 = dma.hbm_to_vmem [thread:$0]  %s2, 128, %s48, [#allocation6]
    $region13: #{tpu_custom_call.1} parent=1 // pred_fallthru
      _
    // Predicated region
    $region14: #{tpu_custom_call.1} parent=1 // pred_check
      _
    $region15: #{tpu_custom_call.1} parent=1 // pred_check_branch
      %52 = sbr.rel (0) target = $region17
    $region16: #{tpu_custom_call.1} parent=1 // pred_region
      %s54 = ssub.s32 65536, 65536
      %55 = vsyncadd [#allocation9], %s54
      %s56 = sshll.u32 [#allocation8], 4
      %s57 = int_to_ptr.vmem [resolvable:$true] %s56
      %62 = dma.hbm_to_vmem [thread:$0]  %s3, 65536, %s57, [#allocation9], 512, 512, 32
    $region17: #{tpu_custom_call.1} parent=1 // pred_fallthru
      _
    // Predicated region
    $region18: #{tpu_custom_call.1} parent=1 // pred_check
      _
    $region19: #{tpu_custom_call.1} parent=1 // pred_check_branch
      %64 = sbr.rel (0) target = $region21
    $region20: #{tpu_custom_call.1} parent=1 // pred_region
      %s66 = ssub.s32 128, 128
      %67 = vsyncadd [#allocation9], %s66
      %s69 = sshll.u32 [#allocation10], 4
      %s70 = int_to_ptr.vmem [resolvable:$true] %s69
      %72 = dma.hbm_to_vmem [thread:$0]  %s4, 128, %s70, [#allocation9]
    $region21: #{tpu_custom_call.1} parent=1 // pred_fallthru
      _
    // Predicated region
    $region22: #{tpu_custom_call.1} parent=1 // pred_check
      _
    $region23: #{tpu_custom_call.1} parent=1 // pred_check_branch
      %74 = sbr.rel (0) target = $region25
    $region24: #{tpu_custom_call.1} parent=1 // pred_region
      %s76 = ssub.s32 8192, 8192
      %77 = vsyncadd [#allocation12], %s76
      %s78 = sshll.u32 [#allocation11], 4
      %s79 = int_to_ptr.vmem [resolvable:$true] %s78
      %84 = dma.hbm_to_vmem [thread:$0]  %s5, 8192, %s79, [#allocation12], 64, 64, 4
    $region25: #{tpu_custom_call.1} parent=1 // pred_fallthru
      _
    // Predicated region
    $region26: #{tpu_custom_call.1} parent=1 // pred_check
      _
    $region27: #{tpu_custom_call.1} parent=1 // pred_check_branch
      %86 = sbr.rel (0) target = $region29
    $region28: #{tpu_custom_call.1} parent=1 // pred_region
      %s88 = ssub.s32 16, 16
      %89 = vsyncadd [#allocation12], %s88
      %s91 = sshll.u32 [#allocation13], 4
      %s92 = int_to_ptr.vmem [resolvable:$true] %s91
      %94 = dma.hbm_to_vmem [thread:$0]  %s6, 16, %s92, [#allocation12]
    $region29: #{tpu_custom_call.1} parent=1 // pred_fallthru
      _
    // Predicated region
    $region30: #{tpu_custom_call.1} parent=1 // pred_check
      _
    $region31: #{tpu_custom_call.1} parent=1 // pred_check_branch
      %96 = sbr.rel (0) target = $region33
    $region32: #{tpu_custom_call.1} parent=1 // pred_region
      %97 = dma.done [#allocation3], 896
    $region33: #{tpu_custom_call.1} parent=1 // pred_fallthru
      _
    // Predicated region
    $region34: #{tpu_custom_call.1} parent=1 // pred_check
      _
    $region35: #{tpu_custom_call.1} parent=1 // pred_check_branch
      %99 = sbr.rel (0) target = $region37
    $region36: #{tpu_custom_call.1} parent=1 // pred_region
      %100 = dma.done [#allocation6], 57344
    $region37: #{tpu_custom_call.1} parent=1 // pred_fallthru
      _
    // Predicated region
    $region38: #{tpu_custom_call.1} parent=1 // pred_check
      _
    $region39: #{tpu_custom_call.1} parent=1 // pred_check_branch
      %102 = sbr.rel (0) target = $region41
    $region40: #{tpu_custom_call.1} parent=1 // pred_region
      %103 = dma.done [#allocation6], 128
    $region41: #{tpu_custom_call.1} parent=1 // pred_fallthru
      _
    // Predicated region
    $region42: #{tpu_custom_call.1} parent=1 // pred_check
      _
    $region43: #{tpu_custom_call.1} parent=1 // pred_check_branch
      %105 = sbr.rel (0) target = $region45
    $region44: #{tpu_custom_call.1} parent=1 // pred_region
      %106 = dma.done [#allocation9], 65536
    $region45: #{tpu_custom_call.1} parent=1 // pred_fallthru
      _
    // Predicated region
    $region46: #{tpu_custom_call.1} parent=1 // pred_check
      _
    $region47: #{tpu_custom_call.1} parent=1 // pred_check_branch
      %108 = sbr.rel (0) target = $region49
    $region48: #{tpu_custom_call.1} parent=1 // pred_region
      %109 = dma.done [#allocation9], 128
    $region49: #{tpu_custom_call.1} parent=1 // pred_fallthru
      _
    // Predicated region
    $region50: #{tpu_custom_call.1} parent=1 // pred_check
      _
    $region51: #{tpu_custom_call.1} parent=1 // pred_check_branch
      %111 = sbr.rel (0) target = $region53
    $region52: #{tpu_custom_call.1} parent=1 // pred_region
      %112 = dma.done [#allocation12], 8192
    $region53: #{tpu_custom_call.1} parent=1 // pred_fallthru
      _
    // Predicated region
    $region54: #{tpu_custom_call.1} parent=1 // pred_check
      _
    $region55: #{tpu_custom_call.1} parent=1 // pred_check_branch
      %114 = sbr.rel (0) target = $region57
    $region56: #{tpu_custom_call.1} parent=1 // pred_region
      %115 = dma.done [#allocation12], 16
    $region57: #{tpu_custom_call.1} parent=1 // pred_fallthru
      _
    %v117 = vld [vmem:[#allocation2] sm:$0xff]
    %v118 = vld [vmem:[#allocation2 + $0x8] sm:$0xff]
    %v119 = vld [vmem:[#allocation2 + $0x10] sm:$0xff]
    %v120 = vld [vmem:[#allocation2 + $0x18] sm:$0xf]
    %v121 = vld [vmem:[#allocation2 + $0x1c] sm:$0xff]
    %v122 = vld [vmem:[#allocation2 + $0x24] sm:$0xff]
    %v123 = vld [vmem:[#allocation2 + $0x2c] sm:$0xff]
    %v124 = vld [vmem:[#allocation2 + $0x34] sm:$0xf]
    %v125 = vld [vmem:[#allocation5] sm:$0xff]
    %v126 = vld [vmem:[#allocation5 + $0x8] sm:$0xff]
    %v127 = vld [vmem:[#allocation5 + $0x10] sm:$0xff]
    %v128 = vld [vmem:[#allocation5 + $0x18] sm:$0xff]
    %v129 = vld [vmem:[#allocation5 + $0x20] sm:$0xff]
    %v130 = vld [vmem:[#allocation5 + $0x28] sm:$0xff]
    %v131 = vld [vmem:[#allocation5 + $0x30] sm:$0xff]
    %v132 = vld [vmem:[#allocation5 + $0x38] sm:$0xff]
    %v133 = vld [vmem:[#allocation5 + $0x40] sm:$0xff]
    %v134 = vld [vmem:[#allocation5 + $0x48] sm:$0xff]
    %v135 = vld [vmem:[#allocation5 + $0x50] sm:$0xff]
    %v136 = vld [vmem:[#allocation5 + $0x58] sm:$0xff]
    %v137 = vld [vmem:[#allocation5 + $0x60] sm:$0xff]
    %v138 = vld [vmem:[#allocation5 + $0x68] sm:$0xff]
    %v139 = vld [vmem:[#allocation5 + $0x70] sm:$0xff]
    %v140 = vld [vmem:[#allocation5 + $0x78] sm:$0xff]
    %v141 = vld [vmem:[#allocation5 + $0x80] sm:$0xff]
    %v142 = vld [vmem:[#allocation5 + $0x88] sm:$0xff]
    %v143 = vld [vmem:[#allocation5 + $0x90] sm:$0xff]
    %v144 = vld [vmem:[#allocation5 + $0x98] sm:$0xff]
    %v145 = vld [vmem:[#allocation5 + $0xa0] sm:$0xff]
    %v146 = vld [vmem:[#allocation5 + $0xa8] sm:$0xff]
    %v147 = vld [vmem:[#allocation5 + $0xb0] sm:$0xff]
    %v148 = vld [vmem:[#allocation5 + $0xb8] sm:$0xff]
    %v149 = vld [vmem:[#allocation5 + $0xc0] sm:$0xff]
    %v150 = vld [vmem:[#allocation5 + $0xc8] sm:$0xff]
    %v151 = vld [vmem:[#allocation5 + $0xd0] sm:$0xff]
    %v152 = vld [vmem:[#allocation5 + $0xd8] sm:$0xff]
    %v153 = vld [vmem:[#allocation5 + $0xe0] sm:$0xff]
    %v154 = vld [vmem:[#allocation5 + $0xe8] sm:$0xff]
    %v155 = vld [vmem:[#allocation5 + $0xf0] sm:$0xff]
    %v156 = vld [vmem:[#allocation5 + $0xf8] sm:$0xff]
    %v157 = vld [vmem:[#allocation5 + $0x100] sm:$0xff]
    %v158 = vld [vmem:[#allocation5 + $0x108] sm:$0xff]
    %v159 = vld [vmem:[#allocation5 + $0x110] sm:$0xff]
    %v160 = vld [vmem:[#allocation5 + $0x118] sm:$0xff]
    %v161 = vld [vmem:[#allocation5 + $0x120] sm:$0xff]
    %v162 = vld [vmem:[#allocation5 + $0x128] sm:$0xff]
    %v163 = vld [vmem:[#allocation5 + $0x130] sm:$0xff]
    %v164 = vld [vmem:[#allocation5 + $0x138] sm:$0xff]
    %v165 = vld [vmem:[#allocation5 + $0x140] sm:$0xff]
    %v166 = vld [vmem:[#allocation5 + $0x148] sm:$0xff]
    %v167 = vld [vmem:[#allocation5 + $0x150] sm:$0xff]
    %v168 = vld [vmem:[#allocation5 + $0x158] sm:$0xff]
    %v169 = vld [vmem:[#allocation5 + $0x160] sm:$0xff]
    %v170 = vld [vmem:[#allocation5 + $0x168] sm:$0xff]
    %v171 = vld [vmem:[#allocation5 + $0x170] sm:$0xff]
    %v172 = vld [vmem:[#allocation5 + $0x178] sm:$0xff]
    %v173 = vld [vmem:[#allocation5 + $0x180] sm:$0xff]
    %v174 = vld [vmem:[#allocation5 + $0x188] sm:$0xff]
    %v175 = vld [vmem:[#allocation5 + $0x190] sm:$0xff]
    %v176 = vld [vmem:[#allocation5 + $0x198] sm:$0xff]
    %v177 = vld [vmem:[#allocation5 + $0x1a0] sm:$0xff]
    %v178 = vld [vmem:[#allocation5 + $0x1a8] sm:$0xff]
    %v179 = vld [vmem:[#allocation5 + $0x1b0] sm:$0xff]
    %v180 = vld [vmem:[#allocation5 + $0x1b8] sm:$0xff]
    %v181 = vld [vmem:[#allocation5 + $0x1c0] sm:$0xff]
    %v182 = vld [vmem:[#allocation5 + $0x1c8] sm:$0xff]
    %v183 = vld [vmem:[#allocation5 + $0x1d0] sm:$0xff]
    %v184 = vld [vmem:[#allocation5 + $0x1d8] sm:$0xff]
    %v185 = vld [vmem:[#allocation5 + $0x1e0] sm:$0xff]
    %v186 = vld [vmem:[#allocation5 + $0x1e8] sm:$0xff]
    %v187 = vld [vmem:[#allocation5 + $0x1f0] sm:$0xff]
    %v188 = vld [vmem:[#allocation5 + $0x1f8] sm:$0xff]
    %v189 = vld [vmem:[#allocation5 + $0x200] sm:$0xff]
    %v190 = vld [vmem:[#allocation5 + $0x208] sm:$0xff]
    %v191 = vld [vmem:[#allocation5 + $0x210] sm:$0xff]
    %v192 = vld [vmem:[#allocation5 + $0x218] sm:$0xff]
    %v193 = vld [vmem:[#allocation5 + $0x220] sm:$0xff]
    %v194 = vld [vmem:[#allocation5 + $0x228] sm:$0xff]
    %v195 = vld [vmem:[#allocation5 + $0x230] sm:$0xff]
    %v196 = vld [vmem:[#allocation5 + $0x238] sm:$0xff]
    %v197 = vld [vmem:[#allocation5 + $0x240] sm:$0xff]
    %v198 = vld [vmem:[#allocation5 + $0x248] sm:$0xff]
    %v199 = vld [vmem:[#allocation5 + $0x250] sm:$0xff]
    %v200 = vld [vmem:[#allocation5 + $0x258] sm:$0xff]
    %v201 = vld [vmem:[#allocation5 + $0x260] sm:$0xff]
    %v202 = vld [vmem:[#allocation5 + $0x268] sm:$0xff]
    %v203 = vld [vmem:[#allocation5 + $0x270] sm:$0xff]
    %v204 = vld [vmem:[#allocation5 + $0x278] sm:$0xff]
    %v205 = vld [vmem:[#allocation5 + $0x280] sm:$0xff]
    %v206 = vld [vmem:[#allocation5 + $0x288] sm:$0xff]
    %v207 = vld [vmem:[#allocation5 + $0x290] sm:$0xff]
    %v208 = vld [vmem:[#allocation5 + $0x298] sm:$0xff]
    %v209 = vld [vmem:[#allocation5 + $0x2a0] sm:$0xff]
    %v210 = vld [vmem:[#allocation5 + $0x2a8] sm:$0xff]
    %v211 = vld [vmem:[#allocation5 + $0x2b0] sm:$0xff]
    %v212 = vld [vmem:[#allocation5 + $0x2b8] sm:$0xff]
    %v213 = vld [vmem:[#allocation5 + $0x2c0] sm:$0xff]
    %v214 = vld [vmem:[#allocation5 + $0x2c8] sm:$0xff]
    %v215 = vld [vmem:[#allocation5 + $0x2d0] sm:$0xff]
    %v216 = vld [vmem:[#allocation5 + $0x2d8] sm:$0xff]
    %v217 = vld [vmem:[#allocation5 + $0x2e0] sm:$0xff]
    %v218 = vld [vmem:[#allocation5 + $0x2e8] sm:$0xff]
    %v219 = vld [vmem:[#allocation5 + $0x2f0] sm:$0xff]
    %v220 = vld [vmem:[#allocation5 + $0x2f8] sm:$0xff]
    %v221 = vld [vmem:[#allocation5 + $0x300] sm:$0xff]
    %v222 = vld [vmem:[#allocation5 + $0x308] sm:$0xff]
    %v223 = vld [vmem:[#allocation5 + $0x310] sm:$0xff]
    %v224 = vld [vmem:[#allocation5 + $0x318] sm:$0xff]
    %v225 = vld [vmem:[#allocation5 + $0x320] sm:$0xff]
    %v226 = vld [vmem:[#allocation5 + $0x328] sm:$0xff]
    %v227 = vld [vmem:[#allocation5 + $0x330] sm:$0xff]
    %v228 = vld [vmem:[#allocation5 + $0x338] sm:$0xff]
    %v229 = vld [vmem:[#allocation5 + $0x340] sm:$0xff]
    %v230 = vld [vmem:[#allocation5 + $0x348] sm:$0xff]
    %v231 = vld [vmem:[#allocation5 + $0x350] sm:$0xff]
    %v232 = vld [vmem:[#allocation5 + $0x358] sm:$0xff]
    %v233 = vld [vmem:[#allocation5 + $0x360] sm:$0xff]
    %v234 = vld [vmem:[#allocation5 + $0x368] sm:$0xff]
    %v235 = vld [vmem:[#allocation5 + $0x370] sm:$0xff]
    %v236 = vld [vmem:[#allocation5 + $0x378] sm:$0xff]
    %v237 = vld [vmem:[#allocation5 + $0x380] sm:$0xff]
    %v238 = vld [vmem:[#allocation5 + $0x388] sm:$0xff]
    %v239 = vld [vmem:[#allocation5 + $0x390] sm:$0xff]
    %v240 = vld [vmem:[#allocation5 + $0x398] sm:$0xff]
    %v241 = vld [vmem:[#allocation5 + $0x3a0] sm:$0xff]
    %v242 = vld [vmem:[#allocation5 + $0x3a8] sm:$0xff]
    %v243 = vld [vmem:[#allocation5 + $0x3b0] sm:$0xff]
    %v244 = vld [vmem:[#allocation5 + $0x3b8] sm:$0xff]
    %v245 = vld [vmem:[#allocation5 + $0x3c0] sm:$0xff]
    %v246 = vld [vmem:[#allocation5 + $0x3c8] sm:$0xff]
    %v247 = vld [vmem:[#allocation5 + $0x3d0] sm:$0xff]
    %v248 = vld [vmem:[#allocation5 + $0x3d8] sm:$0xff]
    %v249 = vld [vmem:[#allocation5 + $0x3e0] sm:$0xff]
    %v250 = vld [vmem:[#allocation5 + $0x3e8] sm:$0xff]
    %v251 = vld [vmem:[#allocation5 + $0x3f0] sm:$0xff]
    %v252 = vld [vmem:[#allocation5 + $0x3f8] sm:$0xff]
    %v253 = vld [vmem:[#allocation5 + $0x400] sm:$0xff]
    %v254 = vld [vmem:[#allocation5 + $0x408] sm:$0xff]
    %v255 = vld [vmem:[#allocation5 + $0x410] sm:$0xff]
    %v256 = vld [vmem:[#allocation5 + $0x418] sm:$0xff]
    %v257 = vld [vmem:[#allocation5 + $0x420] sm:$0xff]
    %v258 = vld [vmem:[#allocation5 + $0x428] sm:$0xff]
    %v259 = vld [vmem:[#allocation5 + $0x430] sm:$0xff]
    %v260 = vld [vmem:[#allocation5 + $0x438] sm:$0xff]
    %v261 = vld [vmem:[#allocation5 + $0x440] sm:$0xff]
    %v262 = vld [vmem:[#allocation5 + $0x448] sm:$0xff]
    %v263 = vld [vmem:[#allocation5 + $0x450] sm:$0xff]
    %v264 = vld [vmem:[#allocation5 + $0x458] sm:$0xff]
    %v265 = vld [vmem:[#allocation5 + $0x460] sm:$0xff]
    %v266 = vld [vmem:[#allocation5 + $0x468] sm:$0xff]
    %v267 = vld [vmem:[#allocation5 + $0x470] sm:$0xff]
    %v268 = vld [vmem:[#allocation5 + $0x478] sm:$0xff]
    %v269 = vld [vmem:[#allocation5 + $0x480] sm:$0xff]
    %v270 = vld [vmem:[#allocation5 + $0x488] sm:$0xff]
    %v271 = vld [vmem:[#allocation5 + $0x490] sm:$0xff]
    %v272 = vld [vmem:[#allocation5 + $0x498] sm:$0xff]
    %v273 = vld [vmem:[#allocation5 + $0x4a0] sm:$0xff]
    %v274 = vld [vmem:[#allocation5 + $0x4a8] sm:$0xff]
    %v275 = vld [vmem:[#allocation5 + $0x4b0] sm:$0xff]
    %v276 = vld [vmem:[#allocation5 + $0x4b8] sm:$0xff]
    %v277 = vld [vmem:[#allocation5 + $0x4c0] sm:$0xff]
    %v278 = vld [vmem:[#allocation5 + $0x4c8] sm:$0xff]
    %v279 = vld [vmem:[#allocation5 + $0x4d0] sm:$0xff]
    %v280 = vld [vmem:[#allocation5 + $0x4d8] sm:$0xff]
    %v281 = vld [vmem:[#allocation5 + $0x4e0] sm:$0xff]
    %v282 = vld [vmem:[#allocation5 + $0x4e8] sm:$0xff]
    %v283 = vld [vmem:[#allocation5 + $0x4f0] sm:$0xff]
    %v284 = vld [vmem:[#allocation5 + $0x4f8] sm:$0xff]
    %v285 = vld [vmem:[#allocation5 + $0x500] sm:$0xff]
    %v286 = vld [vmem:[#allocation5 + $0x508] sm:$0xff]
    %v287 = vld [vmem:[#allocation5 + $0x510] sm:$0xff]
    %v288 = vld [vmem:[#allocation5 + $0x518] sm:$0xff]
    %v289 = vld [vmem:[#allocation5 + $0x520] sm:$0xff]
    %v290 = vld [vmem:[#allocation5 + $0x528] sm:$0xff]
    %v291 = vld [vmem:[#allocation5 + $0x530] sm:$0xff]
    %v292 = vld [vmem:[#allocation5 + $0x538] sm:$0xff]
    %v293 = vld [vmem:[#allocation5 + $0x540] sm:$0xff]
    %v294 = vld [vmem:[#allocation5 + $0x548] sm:$0xff]
    %v295 = vld [vmem:[#allocation5 + $0x550] sm:$0xff]
    %v296 = vld [vmem:[#allocation5 + $0x558] sm:$0xff]
    %v297 = vld [vmem:[#allocation5 + $0x560] sm:$0xff]
    %v298 = vld [vmem:[#allocation5 + $0x568] sm:$0xff]
    %v299 = vld [vmem:[#allocation5 + $0x570] sm:$0xff]
    %v300 = vld [vmem:[#allocation5 + $0x578] sm:$0xff]
    %v301 = vld [vmem:[#allocation5 + $0x580] sm:$0xff]
    %v302 = vld [vmem:[#allocation5 + $0x588] sm:$0xff]
    %v303 = vld [vmem:[#allocation5 + $0x590] sm:$0xff]
    %v304 = vld [vmem:[#allocation5 + $0x598] sm:$0xff]
    %v305 = vld [vmem:[#allocation5 + $0x5a0] sm:$0xff]
    %v306 = vld [vmem:[#allocation5 + $0x5a8] sm:$0xff]
    %v307 = vld [vmem:[#allocation5 + $0x5b0] sm:$0xff]
    %v308 = vld [vmem:[#allocation5 + $0x5b8] sm:$0xff]
    %v309 = vld [vmem:[#allocation5 + $0x5c0] sm:$0xff]
    %v310 = vld [vmem:[#allocation5 + $0x5c8] sm:$0xff]
    %v311 = vld [vmem:[#allocation5 + $0x5d0] sm:$0xff]
    %v312 = vld [vmem:[#allocation5 + $0x5d8] sm:$0xff]
    %v313 = vld [vmem:[#allocation5 + $0x5e0] sm:$0xff]
    %v314 = vld [vmem:[#allocation5 + $0x5e8] sm:$0xff]
    %v315 = vld [vmem:[#allocation5 + $0x5f0] sm:$0xff]
    %v316 = vld [vmem:[#allocation5 + $0x5f8] sm:$0xff]
    %v317 = vld [vmem:[#allocation5 + $0x600] sm:$0xff]
    %v318 = vld [vmem:[#allocation5 + $0x608] sm:$0xff]
    %v319 = vld [vmem:[#allocation5 + $0x610] sm:$0xff]
    %v320 = vld [vmem:[#allocation5 + $0x618] sm:$0xff]
    %v321 = vld [vmem:[#allocation5 + $0x620] sm:$0xff]
    %v322 = vld [vmem:[#allocation5 + $0x628] sm:$0xff]
    %v323 = vld [vmem:[#allocation5 + $0x630] sm:$0xff]
    %v324 = vld [vmem:[#allocation5 + $0x638] sm:$0xff]
    %v325 = vld [vmem:[#allocation5 + $0x640] sm:$0xff]
    %v326 = vld [vmem:[#allocation5 + $0x648] sm:$0xff]
    %v327 = vld [vmem:[#allocation5 + $0x650] sm:$0xff]
    %v328 = vld [vmem:[#allocation5 + $0x658] sm:$0xff]
    %v329 = vld [vmem:[#allocation5 + $0x660] sm:$0xff]
    %v330 = vld [vmem:[#allocation5 + $0x668] sm:$0xff]
    %v331 = vld [vmem:[#allocation5 + $0x670] sm:$0xff]
    %v332 = vld [vmem:[#allocation5 + $0x678] sm:$0xff]
    %v333 = vld [vmem:[#allocation5 + $0x680] sm:$0xff]
    %v334 = vld [vmem:[#allocation5 + $0x688] sm:$0xff]
    %v335 = vld [vmem:[#allocation5 + $0x690] sm:$0xff]
    %v336 = vld [vmem:[#allocation5 + $0x698] sm:$0xff]
    %v337 = vld [vmem:[#allocation5 + $0x6a0] sm:$0xff]
    %v338 = vld [vmem:[#allocation5 + $0x6a8] sm:$0xff]
    %v339 = vld [vmem:[#allocation5 + $0x6b0] sm:$0xff]
    %v340 = vld [vmem:[#allocation5 + $0x6b8] sm:$0xff]
    %v341 = vld [vmem:[#allocation5 + $0x6c0] sm:$0xff]
    %v342 = vld [vmem:[#allocation5 + $0x6c8] sm:$0xff]
    %v343 = vld [vmem:[#allocation5 + $0x6d0] sm:$0xff]
    %v344 = vld [vmem:[#allocation5 + $0x6d8] sm:$0xff]
    %v345 = vld [vmem:[#allocation5 + $0x6e0] sm:$0xff]
    %v346 = vld [vmem:[#allocation5 + $0x6e8] sm:$0xff]
    %v347 = vld [vmem:[#allocation5 + $0x6f0] sm:$0xff]
    %v348 = vld [vmem:[#allocation5 + $0x6f8] sm:$0xff]
    %v349 = vld [vmem:[#allocation5 + $0x700] sm:$0xff]
    %v350 = vld [vmem:[#allocation5 + $0x708] sm:$0xff]
    %v351 = vld [vmem:[#allocation5 + $0x710] sm:$0xff]
    %v352 = vld [vmem:[#allocation5 + $0x718] sm:$0xff]
    %v353 = vld [vmem:[#allocation5 + $0x720] sm:$0xff]
    %v354 = vld [vmem:[#allocation5 + $0x728] sm:$0xff]
    %v355 = vld [vmem:[#allocation5 + $0x730] sm:$0xff]
    %v356 = vld [vmem:[#allocation5 + $0x738] sm:$0xff]
    %v357 = vld [vmem:[#allocation5 + $0x740] sm:$0xff]
    %v358 = vld [vmem:[#allocation5 + $0x748] sm:$0xff]
    %v359 = vld [vmem:[#allocation5 + $0x750] sm:$0xff]
    %v360 = vld [vmem:[#allocation5 + $0x758] sm:$0xff]
    %v361 = vld [vmem:[#allocation5 + $0x760] sm:$0xff]
    %v362 = vld [vmem:[#allocation5 + $0x768] sm:$0xff]
    %v363 = vld [vmem:[#allocation5 + $0x770] sm:$0xff]
    %v364 = vld [vmem:[#allocation5 + $0x778] sm:$0xff]
    %v365 = vld [vmem:[#allocation5 + $0x780] sm:$0xff]
    %v366 = vld [vmem:[#allocation5 + $0x788] sm:$0xff]
    %v367 = vld [vmem:[#allocation5 + $0x790] sm:$0xff]
    %v368 = vld [vmem:[#allocation5 + $0x798] sm:$0xff]
    %v369 = vld [vmem:[#allocation5 + $0x7a0] sm:$0xff]
    %v370 = vld [vmem:[#allocation5 + $0x7a8] sm:$0xff]
    %v371 = vld [vmem:[#allocation5 + $0x7b0] sm:$0xff]
    %v372 = vld [vmem:[#allocation5 + $0x7b8] sm:$0xff]
    %v373 = vld [vmem:[#allocation5 + $0x7c0] sm:$0xff]
    %v374 = vld [vmem:[#allocation5 + $0x7c8] sm:$0xff]
    %v375 = vld [vmem:[#allocation5 + $0x7d0] sm:$0xff]
    %v376 = vld [vmem:[#allocation5 + $0x7d8] sm:$0xff]
    %v377 = vld [vmem:[#allocation5 + $0x7e0] sm:$0xff]
    %v378 = vld [vmem:[#allocation5 + $0x7e8] sm:$0xff]
    %v379 = vld [vmem:[#allocation5 + $0x7f0] sm:$0xff]
    %v380 = vld [vmem:[#allocation5 + $0x7f8] sm:$0xff]
    %v381 = vld [vmem:[#allocation5 + $0x800] sm:$0xff]
    %v382 = vld [vmem:[#allocation5 + $0x808] sm:$0xff]
    %v383 = vld [vmem:[#allocation5 + $0x810] sm:$0xff]
    %v384 = vld [vmem:[#allocation5 + $0x818] sm:$0xff]
    %v385 = vld [vmem:[#allocation5 + $0x820] sm:$0xff]
    %v386 = vld [vmem:[#allocation5 + $0x828] sm:$0xff]
    %v387 = vld [vmem:[#allocation5 + $0x830] sm:$0xff]
    %v388 = vld [vmem:[#allocation5 + $0x838] sm:$0xff]
    %v389 = vld [vmem:[#allocation5 + $0x840] sm:$0xff]
    %v390 = vld [vmem:[#allocation5 + $0x848] sm:$0xff]
    %v391 = vld [vmem:[#allocation5 + $0x850] sm:$0xff]
    %v392 = vld [vmem:[#allocation5 + $0x858] sm:$0xff]
    %v393 = vld [vmem:[#allocation5 + $0x860] sm:$0xff]
    %v394 = vld [vmem:[#allocation5 + $0x868] sm:$0xff]
    %v395 = vld [vmem:[#allocation5 + $0x870] sm:$0xff]
    %v396 = vld [vmem:[#allocation5 + $0x878] sm:$0xff]
    %v397 = vld [vmem:[#allocation5 + $0x880] sm:$0xff]
    %v398 = vld [vmem:[#allocation5 + $0x888] sm:$0xff]
    %v399 = vld [vmem:[#allocation5 + $0x890] sm:$0xff]
    %v400 = vld [vmem:[#allocation5 + $0x898] sm:$0xff]
    %v401 = vld [vmem:[#allocation5 + $0x8a0] sm:$0xff]
    %v402 = vld [vmem:[#allocation5 + $0x8a8] sm:$0xff]
    %v403 = vld [vmem:[#allocation5 + $0x8b0] sm:$0xff]
    %v404 = vld [vmem:[#allocation5 + $0x8b8] sm:$0xff]
    %v405 = vld [vmem:[#allocation5 + $0x8c0] sm:$0xff]
    %v406 = vld [vmem:[#allocation5 + $0x8c8] sm:$0xff]
    %v407 = vld [vmem:[#allocation5 + $0x8d0] sm:$0xff]
    %v408 = vld [vmem:[#allocation5 + $0x8d8] sm:$0xff]
    %v409 = vld [vmem:[#allocation5 + $0x8e0] sm:$0xff]
    %v410 = vld [vmem:[#allocation5 + $0x8e8] sm:$0xff]
    %v411 = vld [vmem:[#allocation5 + $0x8f0] sm:$0xff]
    %v412 = vld [vmem:[#allocation5 + $0x8f8] sm:$0xff]
    %v413 = vld [vmem:[#allocation5 + $0x900] sm:$0xff]
    %v414 = vld [vmem:[#allocation5 + $0x908] sm:$0xff]
    %v415 = vld [vmem:[#allocation5 + $0x910] sm:$0xff]
    %v416 = vld [vmem:[#allocation5 + $0x918] sm:$0xff]
    %v417 = vld [vmem:[#allocation5 + $0x920] sm:$0xff]
    %v418 = vld [vmem:[#allocation5 + $0x928] sm:$0xff]
    %v419 = vld [vmem:[#allocation5 + $0x930] sm:$0xff]
    %v420 = vld [vmem:[#allocation5 + $0x938] sm:$0xff]
    %v421 = vld [vmem:[#allocation5 + $0x940] sm:$0xff]
    %v422 = vld [vmem:[#allocation5 + $0x948] sm:$0xff]
    %v423 = vld [vmem:[#allocation5 + $0x950] sm:$0xff]
    %v424 = vld [vmem:[#allocation5 + $0x958] sm:$0xff]
    %v425 = vld [vmem:[#allocation5 + $0x960] sm:$0xff]
    %v426 = vld [vmem:[#allocation5 + $0x968] sm:$0xff]
    %v427 = vld [vmem:[#allocation5 + $0x970] sm:$0xff]
    %v428 = vld [vmem:[#allocation5 + $0x978] sm:$0xff]
    %v429 = vld [vmem:[#allocation5 + $0x980] sm:$0xff]
    %v430 = vld [vmem:[#allocation5 + $0x988] sm:$0xff]
    %v431 = vld [vmem:[#allocation5 + $0x990] sm:$0xff]
    %v432 = vld [vmem:[#allocation5 + $0x998] sm:$0xff]
    %v433 = vld [vmem:[#allocation5 + $0x9a0] sm:$0xff]
    %v434 = vld [vmem:[#allocation5 + $0x9a8] sm:$0xff]
    %v435 = vld [vmem:[#allocation5 + $0x9b0] sm:$0xff]
    %v436 = vld [vmem:[#allocation5 + $0x9b8] sm:$0xff]
    %v437 = vld [vmem:[#allocation5 + $0x9c0] sm:$0xff]
    %v438 = vld [vmem:[#allocation5 + $0x9c8] sm:$0xff]
    %v439 = vld [vmem:[#allocation5 + $0x9d0] sm:$0xff]
    %v440 = vld [vmem:[#allocation5 + $0x9d8] sm:$0xff]
    %v441 = vld [vmem:[#allocation5 + $0x9e0] sm:$0xff]
    %v442 = vld [vmem:[#allocation5 + $0x9e8] sm:$0xff]
    %v443 = vld [vmem:[#allocation5 + $0x9f0] sm:$0xff]
    %v444 = vld [vmem:[#allocation5 + $0x9f8] sm:$0xff]
    %v445 = vld [vmem:[#allocation5 + $0xa00] sm:$0xff]
    %v446 = vld [vmem:[#allocation5 + $0xa08] sm:$0xff]
    %v447 = vld [vmem:[#allocation5 + $0xa10] sm:$0xff]
    %v448 = vld [vmem:[#allocation5 + $0xa18] sm:$0xff]
    %v449 = vld [vmem:[#allocation5 + $0xa20] sm:$0xff]
    %v450 = vld [vmem:[#allocation5 + $0xa28] sm:$0xff]
    %v451 = vld [vmem:[#allocation5 + $0xa30] sm:$0xff]
    %v452 = vld [vmem:[#allocation5 + $0xa38] sm:$0xff]
    %v453 = vld [vmem:[#allocation5 + $0xa40] sm:$0xff]
    %v454 = vld [vmem:[#allocation5 + $0xa48] sm:$0xff]
    %v455 = vld [vmem:[#allocation5 + $0xa50] sm:$0xff]
    %v456 = vld [vmem:[#allocation5 + $0xa58] sm:$0xff]
    %v457 = vld [vmem:[#allocation5 + $0xa60] sm:$0xff]
    %v458 = vld [vmem:[#allocation5 + $0xa68] sm:$0xff]
    %v459 = vld [vmem:[#allocation5 + $0xa70] sm:$0xff]
    %v460 = vld [vmem:[#allocation5 + $0xa78] sm:$0xff]
    %v461 = vld [vmem:[#allocation5 + $0xa80] sm:$0xff]
    %v462 = vld [vmem:[#allocation5 + $0xa88] sm:$0xff]
    %v463 = vld [vmem:[#allocation5 + $0xa90] sm:$0xff]
    %v464 = vld [vmem:[#allocation5 + $0xa98] sm:$0xff]
    %v465 = vld [vmem:[#allocation5 + $0xaa0] sm:$0xff]
    %v466 = vld [vmem:[#allocation5 + $0xaa8] sm:$0xff]
    %v467 = vld [vmem:[#allocation5 + $0xab0] sm:$0xff]
    %v468 = vld [vmem:[#allocation5 + $0xab8] sm:$0xff]
    %v469 = vld [vmem:[#allocation5 + $0xac0] sm:$0xff]
    %v470 = vld [vmem:[#allocation5 + $0xac8] sm:$0xff]
    %v471 = vld [vmem:[#allocation5 + $0xad0] sm:$0xff]
    %v472 = vld [vmem:[#allocation5 + $0xad8] sm:$0xff]
    %v473 = vld [vmem:[#allocation5 + $0xae0] sm:$0xff]
    %v474 = vld [vmem:[#allocation5 + $0xae8] sm:$0xff]
    %v475 = vld [vmem:[#allocation5 + $0xaf0] sm:$0xff]
    %v476 = vld [vmem:[#allocation5 + $0xaf8] sm:$0xff]
    %v477 = vld [vmem:[#allocation5 + $0xb00] sm:$0xff]
    %v478 = vld [vmem:[#allocation5 + $0xb08] sm:$0xff]
    %v479 = vld [vmem:[#allocation5 + $0xb10] sm:$0xff]
    %v480 = vld [vmem:[#allocation5 + $0xb18] sm:$0xff]
    %v481 = vld [vmem:[#allocation5 + $0xb20] sm:$0xff]
    %v482 = vld [vmem:[#allocation5 + $0xb28] sm:$0xff]
    %v483 = vld [vmem:[#allocation5 + $0xb30] sm:$0xff]
    %v484 = vld [vmem:[#allocation5 + $0xb38] sm:$0xff]
    %v485 = vld [vmem:[#allocation5 + $0xb40] sm:$0xff]
    %v486 = vld [vmem:[#allocation5 + $0xb48] sm:$0xff]
    %v487 = vld [vmem:[#allocation5 + $0xb50] sm:$0xff]
    %v488 = vld [vmem:[#allocation5 + $0xb58] sm:$0xff]
    %v489 = vld [vmem:[#allocation5 + $0xb60] sm:$0xff]
    %v490 = vld [vmem:[#allocation5 + $0xb68] sm:$0xff]
    %v491 = vld [vmem:[#allocation5 + $0xb70] sm:$0xff]
    %v492 = vld [vmem:[#allocation5 + $0xb78] sm:$0xff]
    %v493 = vld [vmem:[#allocation5 + $0xb80] sm:$0xff]
    %v494 = vld [vmem:[#allocation5 + $0xb88] sm:$0xff]
    %v495 = vld [vmem:[#allocation5 + $0xb90] sm:$0xff]
    %v496 = vld [vmem:[#allocation5 + $0xb98] sm:$0xff]
    %v497 = vld [vmem:[#allocation5 + $0xba0] sm:$0xff]
    %v498 = vld [vmem:[#allocation5 + $0xba8] sm:$0xff]
    %v499 = vld [vmem:[#allocation5 + $0xbb0] sm:$0xff]
    %v500 = vld [vmem:[#allocation5 + $0xbb8] sm:$0xff]
    %v501 = vld [vmem:[#allocation5 + $0xbc0] sm:$0xff]
    %v502 = vld [vmem:[#allocation5 + $0xbc8] sm:$0xff]
    %v503 = vld [vmem:[#allocation5 + $0xbd0] sm:$0xff]
    %v504 = vld [vmem:[#allocation5 + $0xbd8] sm:$0xff]
    %v505 = vld [vmem:[#allocation5 + $0xbe0] sm:$0xff]
    %v506 = vld [vmem:[#allocation5 + $0xbe8] sm:$0xff]
    %v507 = vld [vmem:[#allocation5 + $0xbf0] sm:$0xff]
    %v508 = vld [vmem:[#allocation5 + $0xbf8] sm:$0xff]
    %v509 = vld [vmem:[#allocation5 + $0xc00] sm:$0xff]
    %v510 = vld [vmem:[#allocation5 + $0xc08] sm:$0xff]
    %v511 = vld [vmem:[#allocation5 + $0xc10] sm:$0xff]
    %v512 = vld [vmem:[#allocation5 + $0xc18] sm:$0xff]
    %v513 = vld [vmem:[#allocation5 + $0xc20] sm:$0xff]
    %v514 = vld [vmem:[#allocation5 + $0xc28] sm:$0xff]
    %v515 = vld [vmem:[#allocation5 + $0xc30] sm:$0xff]
    %v516 = vld [vmem:[#allocation5 + $0xc38] sm:$0xff]
    %v517 = vld [vmem:[#allocation5 + $0xc40] sm:$0xff]
    %v518 = vld [vmem:[#allocation5 + $0xc48] sm:$0xff]
    %v519 = vld [vmem:[#allocation5 + $0xc50] sm:$0xff]
    %v520 = vld [vmem:[#allocation5 + $0xc58] sm:$0xff]
    %v521 = vld [vmem:[#allocation5 + $0xc60] sm:$0xff]
    %v522 = vld [vmem:[#allocation5 + $0xc68] sm:$0xff]
    %v523 = vld [vmem:[#allocation5 + $0xc70] sm:$0xff]
    %v524 = vld [vmem:[#allocation5 + $0xc78] sm:$0xff]
    %v525 = vld [vmem:[#allocation5 + $0xc80] sm:$0xff]
    %v526 = vld [vmem:[#allocation5 + $0xc88] sm:$0xff]
    %v527 = vld [vmem:[#allocation5 + $0xc90] sm:$0xff]
    %v528 = vld [vmem:[#allocation5 + $0xc98] sm:$0xff]
    %v529 = vld [vmem:[#allocation5 + $0xca0] sm:$0xff]
    %v530 = vld [vmem:[#allocation5 + $0xca8] sm:$0xff]
    %v531 = vld [vmem:[#allocation5 + $0xcb0] sm:$0xff]
    %v532 = vld [vmem:[#allocation5 + $0xcb8] sm:$0xff]
    %v533 = vld [vmem:[#allocation5 + $0xcc0] sm:$0xff]
    %v534 = vld [vmem:[#allocation5 + $0xcc8] sm:$0xff]
    %v535 = vld [vmem:[#allocation5 + $0xcd0] sm:$0xff]
    %v536 = vld [vmem:[#allocation5 + $0xcd8] sm:$0xff]
    %v537 = vld [vmem:[#allocation5 + $0xce0] sm:$0xff]
    %v538 = vld [vmem:[#allocation5 + $0xce8] sm:$0xff]
    %v539 = vld [vmem:[#allocation5 + $0xcf0] sm:$0xff]
    %v540 = vld [vmem:[#allocation5 + $0xcf8] sm:$0xff]
    %v541 = vld [vmem:[#allocation5 + $0xd00] sm:$0xff]
    %v542 = vld [vmem:[#allocation5 + $0xd08] sm:$0xff]
    %v543 = vld [vmem:[#allocation5 + $0xd10] sm:$0xff]
    %v544 = vld [vmem:[#allocation5 + $0xd18] sm:$0xff]
    %v545 = vld [vmem:[#allocation5 + $0xd20] sm:$0xff]
    %v546 = vld [vmem:[#allocation5 + $0xd28] sm:$0xff]
    %v547 = vld [vmem:[#allocation5 + $0xd30] sm:$0xff]
    %v548 = vld [vmem:[#allocation5 + $0xd38] sm:$0xff]
    %v549 = vld [vmem:[#allocation5 + $0xd40] sm:$0xff]
    %v550 = vld [vmem:[#allocation5 + $0xd48] sm:$0xff]
    %v551 = vld [vmem:[#allocation5 + $0xd50] sm:$0xff]
    %v552 = vld [vmem:[#allocation5 + $0xd58] sm:$0xff]
    %v553 = vld [vmem:[#allocation5 + $0xd60] sm:$0xff]
    %v554 = vld [vmem:[#allocation5 + $0xd68] sm:$0xff]
    %v555 = vld [vmem:[#allocation5 + $0xd70] sm:$0xff]
    %v556 = vld [vmem:[#allocation5 + $0xd78] sm:$0xff]
    %v557 = vld [vmem:[#allocation5 + $0xd80] sm:$0xff]
    %v558 = vld [vmem:[#allocation5 + $0xd88] sm:$0xff]
    %v559 = vld [vmem:[#allocation5 + $0xd90] sm:$0xff]
    %v560 = vld [vmem:[#allocation5 + $0xd98] sm:$0xff]
    %v561 = vld [vmem:[#allocation5 + $0xda0] sm:$0xff]
    %v562 = vld [vmem:[#allocation5 + $0xda8] sm:$0xff]
    %v563 = vld [vmem:[#allocation5 + $0xdb0] sm:$0xff]
    %v564 = vld [vmem:[#allocation5 + $0xdb8] sm:$0xff]
    %v565 = vld [vmem:[#allocation5 + $0xdc0] sm:$0xff]
    %v566 = vld [vmem:[#allocation5 + $0xdc8] sm:$0xff]
    %v567 = vld [vmem:[#allocation5 + $0xdd0] sm:$0xff]
    %v568 = vld [vmem:[#allocation5 + $0xdd8] sm:$0xff]
    %v569 = vld [vmem:[#allocation5 + $0xde0] sm:$0xff]
    %v570 = vld [vmem:[#allocation5 + $0xde8] sm:$0xff]
    %v571 = vld [vmem:[#allocation5 + $0xdf0] sm:$0xff]
    %v572 = vld [vmem:[#allocation5 + $0xdf8] sm:$0xff]
    %v573 = vld [vmem:[#allocation7] sm:$0xff]
    %v575 = vlaneseq
    %v576 = vshrl.u32 %v575, 7
    %v577 = vsub.s32 0, %v576
    %v578 = vrot.slane %v573, %v577
    %v579 = vlaneseq
    %v580 = vshrl.u32 %v579, 7
    %v581 = vsub.s32 1, %v580
    %v582 = vrot.slane %v573, %v581
    %v583 = vlaneseq
    %v584 = vshrl.u32 %v583, 7
    %v585 = vsub.s32 2, %v584
    %v586 = vrot.slane %v573, %v585
    %v587 = vlaneseq
    %v588 = vshrl.u32 %v587, 7
    %v589 = vsub.s32 3, %v588
    %v590 = vrot.slane %v573, %v589
    %v591 = vlaneseq
    %v592 = vshrl.u32 %v591, 7
    %v593 = vsub.s32 4, %v592
    %v594 = vrot.slane %v573, %v593
    %v595 = vlaneseq
    %v596 = vshrl.u32 %v595, 7
    %v597 = vsub.s32 5, %v596
    %v598 = vrot.slane %v573, %v597
    %v599 = vlaneseq
    %v600 = vshrl.u32 %v599, 7
    %v601 = vsub.s32 6, %v600
    %v602 = vrot.slane %v573, %v601
    %v603 = vlaneseq
    %v604 = vshrl.u32 %v603, 7
    %v605 = vsub.s32 7, %v604
    %v606 = vrot.slane %v573, %v605
    %v623 = vunpack.c.l.b16 %v117
    %v624 = vunpack.c.h.b16 %v117
    %v625 = vunpack.c.l.b16 %v118
    %v626 = vunpack.c.h.b16 %v118
    %v627 = vunpack.c.l.b16 %v119
    %v628 = vunpack.c.h.b16 %v119
    %v629 = vunpack.c.l.b16 %v120
    %v630 = vunpack.c.l.b16 %v121
    %v631 = vunpack.c.h.b16 %v121
    %v632 = vunpack.c.l.b16 %v122
    %v633 = vunpack.c.h.b16 %v122
    %v634 = vunpack.c.l.b16 %v123
    %v635 = vunpack.c.h.b16 %v123
    %v636 = vunpack.c.l.b16 %v124
    %v637 = vpack.c.b16 %v630, %v623
    %v638 = vpack.c.b16 %v631, %v624
    %v639 = vpack.c.b16 %v632, %v625
    %v640 = vpack.c.b16 %v633, %v626
    %v641 = vpack.c.b16 %v634, %v627
    %v642 = vpack.c.b16 %v635, %v628
    %v643 = vpack.c.b16 %v636, %v629
    %v1099 = vunpack.c.l.b16 %v125
    %v1100 = vunpack.c.h.b16 %v125
    %v1101 = vunpack.c.l.b16 %v126
    %v1102 = vunpack.c.h.b16 %v126
    %v1103 = vunpack.c.l.b16 %v127
    %v1104 = vunpack.c.h.b16 %v127
    %v1105 = vunpack.c.l.b16 %v128
    %v1106 = vunpack.c.h.b16 %v128
    %v1107 = vunpack.c.l.b16 %v129
    %v1108 = vunpack.c.h.b16 %v129
    %v1109 = vunpack.c.l.b16 %v130
    %v1110 = vunpack.c.h.b16 %v130
    %v1111 = vunpack.c.l.b16 %v131
    %v1112 = vunpack.c.h.b16 %v131
    %v1113 = vunpack.c.l.b16 %v132
    %v1114 = vunpack.c.h.b16 %v132
    %v1115 = vunpack.c.l.b16 %v133
    %v1116 = vunpack.c.h.b16 %v133
    %v1117 = vunpack.c.l.b16 %v134
    %v1118 = vunpack.c.h.b16 %v134
    %v1119 = vunpack.c.l.b16 %v135
    %v1120 = vunpack.c.h.b16 %v135
    %v1121 = vunpack.c.l.b16 %v136
    %v1122 = vunpack.c.h.b16 %v136
    %v1123 = vunpack.c.l.b16 %v137
    %v1124 = vunpack.c.h.b16 %v137
    %v1125 = vunpack.c.l.b16 %v138
    %v1126 = vunpack.c.h.b16 %v138
    %v1127 = vunpack.c.l.b16 %v139
    %v1128 = vunpack.c.h.b16 %v139
    %v1129 = vunpack.c.l.b16 %v140
    %v1130 = vunpack.c.h.b16 %v140
    %v1131 = vunpack.c.l.b16 %v141
    %v1132 = vunpack.c.h.b16 %v141
    %v1133 = vunpack.c.l.b16 %v142
    %v1134 = vunpack.c.h.b16 %v142
    %v1135 = vunpack.c.l.b16 %v143
    %v1136 = vunpack.c.h.b16 %v143
    %v1137 = vunpack.c.l.b16 %v144
    %v1138 = vunpack.c.h.b16 %v144
    %v1139 = vunpack.c.l.b16 %v145
    %v1140 = vunpack.c.h.b16 %v145
    %v1141 = vunpack.c.l.b16 %v146
    %v1142 = vunpack.c.h.b16 %v146
    %v1143 = vunpack.c.l.b16 %v147
    %v1144 = vunpack.c.h.b16 %v147
    %v1145 = vunpack.c.l.b16 %v148
    %v1146 = vunpack.c.h.b16 %v148
    %v1147 = vunpack.c.l.b16 %v149
    %v1148 = vunpack.c.h.b16 %v149
    %v1149 = vunpack.c.l.b16 %v150
    %v1150 = vunpack.c.h.b16 %v150
    %v1151 = vunpack.c.l.b16 %v151
    %v1152 = vunpack.c.h.b16 %v151
    %v1153 = vunpack.c.l.b16 %v152
    %v1154 = vunpack.c.h.b16 %v152
    %v1155 = vunpack.c.l.b16 %v153
    %v1156 = vunpack.c.h.b16 %v153
    %v1157 = vunpack.c.l.b16 %v154
    %v1158 = vunpack.c.h.b16 %v154
    %v1159 = vunpack.c.l.b16 %v155
    %v1160 = vunpack.c.h.b16 %v155
    %v1161 = vunpack.c.l.b16 %v156
    %v1162 = vunpack.c.h.b16 %v156
    %v1163 = vunpack.c.l.b16 %v157
    %v1164 = vunpack.c.h.b16 %v157
    %v1165 = vunpack.c.l.b16 %v158
    %v1166 = vunpack.c.h.b16 %v158
    %v1167 = vunpack.c.l.b16 %v159
    %v1168 = vunpack.c.h.b16 %v159
    %v1169 = vunpack.c.l.b16 %v160
    %v1170 = vunpack.c.h.b16 %v160
    %v1171 = vunpack.c.l.b16 %v161
    %v1172 = vunpack.c.h.b16 %v161
    %v1173 = vunpack.c.l.b16 %v162
    %v1174 = vunpack.c.h.b16 %v162
    %v1175 = vunpack.c.l.b16 %v163
    %v1176 = vunpack.c.h.b16 %v163
    %v1177 = vunpack.c.l.b16 %v164
    %v1178 = vunpack.c.h.b16 %v164
    %v1179 = vunpack.c.l.b16 %v165
    %v1180 = vunpack.c.h.b16 %v165
    %v1181 = vunpack.c.l.b16 %v166
    %v1182 = vunpack.c.h.b16 %v166
    %v1183 = vunpack.c.l.b16 %v167
    %v1184 = vunpack.c.h.b16 %v167
    %v1185 = vunpack.c.l.b16 %v168
    %v1186 = vunpack.c.h.b16 %v168
    %v1187 = vunpack.c.l.b16 %v169
    %v1188 = vunpack.c.h.b16 %v169
    %v1189 = vunpack.c.l.b16 %v170
    %v1190 = vunpack.c.h.b16 %v170
    %v1191 = vunpack.c.l.b16 %v171
    %v1192 = vunpack.c.h.b16 %v171
    %v1193 = vunpack.c.l.b16 %v172
    %v1194 = vunpack.c.h.b16 %v172
    %v1195 = vunpack.c.l.b16 %v173
    %v1196 = vunpack.c.h.b16 %v173
    %v1197 = vunpack.c.l.b16 %v174
    %v1198 = vunpack.c.h.b16 %v174
    %v1199 = vunpack.c.l.b16 %v175
    %v1200 = vunpack.c.h.b16 %v175
    %v1201 = vunpack.c.l.b16 %v176
    %v1202 = vunpack.c.h.b16 %v176
    %v1203 = vunpack.c.l.b16 %v177
    %v1204 = vunpack.c.h.b16 %v177
    %v1205 = vunpack.c.l.b16 %v178
    %v1206 = vunpack.c.h.b16 %v178
    %v1207 = vunpack.c.l.b16 %v179
    %v1208 = vunpack.c.h.b16 %v179
    %v1209 = vunpack.c.l.b16 %v180
    %v1210 = vunpack.c.h.b16 %v180
    %v1211 = vunpack.c.l.b16 %v181
    %v1212 = vunpack.c.h.b16 %v181
    %v1213 = vunpack.c.l.b16 %v182
    %v1214 = vunpack.c.h.b16 %v182
    %v1215 = vunpack.c.l.b16 %v183
    %v1216 = vunpack.c.h.b16 %v183
    %v1217 = vunpack.c.l.b16 %v184
    %v1218 = vunpack.c.h.b16 %v184
    %v1219 = vunpack.c.l.b16 %v185
    %v1220 = vunpack.c.h.b16 %v185
    %v1221 = vunpack.c.l.b16 %v186
    %v1222 = vunpack.c.h.b16 %v186
    %v1223 = vunpack.c.l.b16 %v187
    %v1224 = vunpack.c.h.b16 %v187
    %v1225 = vunpack.c.l.b16 %v188
    %v1226 = vunpack.c.h.b16 %v188
    %v1227 = vunpack.c.l.b16 %v189
    %v1228 = vunpack.c.h.b16 %v189
    %v1229 = vunpack.c.l.b16 %v190
    %v1230 = vunpack.c.h.b16 %v190
    %v1231 = vunpack.c.l.b16 %v191
    %v1232 = vunpack.c.h.b16 %v191
    %v1233 = vunpack.c.l.b16 %v192
    %v1234 = vunpack.c.h.b16 %v192
    %v1235 = vunpack.c.l.b16 %v193
    %v1236 = vunpack.c.h.b16 %v193
    %v1237 = vunpack.c.l.b16 %v194
    %v1238 = vunpack.c.h.b16 %v194
    %v1239 = vunpack.c.l.b16 %v195
    %v1240 = vunpack.c.h.b16 %v195
    %v1241 = vunpack.c.l.b16 %v196
    %v1242 = vunpack.c.h.b16 %v196
    %v1243 = vunpack.c.l.b16 %v197
    %v1244 = vunpack.c.h.b16 %v197
    %v1245 = vunpack.c.l.b16 %v198
    %v1246 = vunpack.c.h.b16 %v198
    %v1247 = vunpack.c.l.b16 %v199
    %v1248 = vunpack.c.h.b16 %v199
    %v1249 = vunpack.c.l.b16 %v200
    %v1250 = vunpack.c.h.b16 %v200
    %v1251 = vunpack.c.l.b16 %v201
    %v1252 = vunpack.c.h.b16 %v201
    %v1253 = vunpack.c.l.b16 %v202
    %v1254 = vunpack.c.h.b16 %v202
    %v1255 = vunpack.c.l.b16 %v203
    %v1256 = vunpack.c.h.b16 %v203
    %v1257 = vunpack.c.l.b16 %v204
    %v1258 = vunpack.c.h.b16 %v204
    %v1259 = vunpack.c.l.b16 %v205
    %v1260 = vunpack.c.h.b16 %v205
    %v1261 = vunpack.c.l.b16 %v206
    %v1262 = vunpack.c.h.b16 %v206
    %v1263 = vunpack.c.l.b16 %v207
    %v1264 = vunpack.c.h.b16 %v207
    %v1265 = vunpack.c.l.b16 %v208
    %v1266 = vunpack.c.h.b16 %v208
    %v1267 = vunpack.c.l.b16 %v209
    %v1268 = vunpack.c.h.b16 %v209
    %v1269 = vunpack.c.l.b16 %v210
    %v1270 = vunpack.c.h.b16 %v210
    %v1271 = vunpack.c.l.b16 %v211
    %v1272 = vunpack.c.h.b16 %v211
    %v1273 = vunpack.c.l.b16 %v212
    %v1274 = vunpack.c.h.b16 %v212
    %v1275 = vunpack.c.l.b16 %v213
    %v1276 = vunpack.c.h.b16 %v213
    %v1277 = vunpack.c.l.b16 %v214
    %v1278 = vunpack.c.h.b16 %v214
    %v1279 = vunpack.c.l.b16 %v215
    %v1280 = vunpack.c.h.b16 %v215
    %v1281 = vunpack.c.l.b16 %v216
    %v1282 = vunpack.c.h.b16 %v216
    %v1283 = vunpack.c.l.b16 %v217
    %v1284 = vunpack.c.h.b16 %v217
    %v1285 = vunpack.c.l.b16 %v218
    %v1286 = vunpack.c.h.b16 %v218
    %v1287 = vunpack.c.l.b16 %v219
    %v1288 = vunpack.c.h.b16 %v219
    %v1289 = vunpack.c.l.b16 %v220
    %v1290 = vunpack.c.h.b16 %v220
    %v1291 = vunpack.c.l.b16 %v221
    %v1292 = vunpack.c.h.b16 %v221
    %v1293 = vunpack.c.l.b16 %v222
    %v1294 = vunpack.c.h.b16 %v222
    %v1295 = vunpack.c.l.b16 %v223
    %v1296 = vunpack.c.h.b16 %v223
    %v1297 = vunpack.c.l.b16 %v224
    %v1298 = vunpack.c.h.b16 %v224
    %v1299 = vunpack.c.l.b16 %v225
    %v1300 = vunpack.c.h.b16 %v225
    %v1301 = vunpack.c.l.b16 %v226
    %v1302 = vunpack.c.h.b16 %v226
    %v1303 = vunpack.c.l.b16 %v227
    %v1304 = vunpack.c.h.b16 %v227
    %v1305 = vunpack.c.l.b16 %v228
    %v1306 = vunpack.c.h.b16 %v228
    %v1307 = vunpack.c.l.b16 %v229
    %v1308 = vunpack.c.h.b16 %v229
    %v1309 = vunpack.c.l.b16 %v230
    %v1310 = vunpack.c.h.b16 %v230
    %v1311 = vunpack.c.l.b16 %v231
    %v1312 = vunpack.c.h.b16 %v231
    %v1313 = vunpack.c.l.b16 %v232
    %v1314 = vunpack.c.h.b16 %v232
    %v1315 = vunpack.c.l.b16 %v233
    %v1316 = vunpack.c.h.b16 %v233
    %v1317 = vunpack.c.l.b16 %v234
    %v1318 = vunpack.c.h.b16 %v234
    %v1319 = vunpack.c.l.b16 %v235
    %v1320 = vunpack.c.h.b16 %v235
    %v1321 = vunpack.c.l.b16 %v236
    %v1322 = vunpack.c.h.b16 %v236
    %v1323 = vunpack.c.l.b16 %v237
    %v1324 = vunpack.c.h.b16 %v237
    %v1325 = vunpack.c.l.b16 %v238
    %v1326 = vunpack.c.h.b16 %v238
    %v1327 = vunpack.c.l.b16 %v239
    %v1328 = vunpack.c.h.b16 %v239
    %v1329 = vunpack.c.l.b16 %v240
    %v1330 = vunpack.c.h.b16 %v240
    %v1331 = vunpack.c.l.b16 %v241
    %v1332 = vunpack.c.h.b16 %v241
    %v1333 = vunpack.c.l.b16 %v242
    %v1334 = vunpack.c.h.b16 %v242
    %v1335 = vunpack.c.l.b16 %v243
    %v1336 = vunpack.c.h.b16 %v243
    %v1337 = vunpack.c.l.b16 %v244
    %v1338 = vunpack.c.h.b16 %v244
    %v1339 = vunpack.c.l.b16 %v245
    %v1340 = vunpack.c.h.b16 %v245
    %v1341 = vunpack.c.l.b16 %v246
    %v1342 = vunpack.c.h.b16 %v246
    %v1343 = vunpack.c.l.b16 %v247
    %v1344 = vunpack.c.h.b16 %v247
    %v1345 = vunpack.c.l.b16 %v248
    %v1346 = vunpack.c.h.b16 %v248
    %v1347 = vunpack.c.l.b16 %v249
    %v1348 = vunpack.c.h.b16 %v249
    %v1349 = vunpack.c.l.b16 %v250
    %v1350 = vunpack.c.h.b16 %v250
    %v1351 = vunpack.c.l.b16 %v251
    %v1352 = vunpack.c.h.b16 %v251
    %v1353 = vunpack.c.l.b16 %v252
    %v1354 = vunpack.c.h.b16 %v252
    %v1355 = vunpack.c.l.b16 %v253
    %v1356 = vunpack.c.h.b16 %v253
    %v1357 = vunpack.c.l.b16 %v254
    %v1358 = vunpack.c.h.b16 %v254
    %v1359 = vunpack.c.l.b16 %v255
    %v1360 = vunpack.c.h.b16 %v255
    %v1361 = vunpack.c.l.b16 %v256
    %v1362 = vunpack.c.h.b16 %v256
    %v1363 = vunpack.c.l.b16 %v257
    %v1364 = vunpack.c.h.b16 %v257
    %v1365 = vunpack.c.l.b16 %v258
    %v1366 = vunpack.c.h.b16 %v258
    %v1367 = vunpack.c.l.b16 %v259
    %v1368 = vunpack.c.h.b16 %v259
    %v1369 = vunpack.c.l.b16 %v260
    %v1370 = vunpack.c.h.b16 %v260
    %v1371 = vunpack.c.l.b16 %v261
    %v1372 = vunpack.c.h.b16 %v261
    %v1373 = vunpack.c.l.b16 %v262
    %v1374 = vunpack.c.h.b16 %v262
    %v1375 = vunpack.c.l.b16 %v263
    %v1376 = vunpack.c.h.b16 %v263
    %v1377 = vunpack.c.l.b16 %v264
    %v1378 = vunpack.c.h.b16 %v264
    %v1379 = vunpack.c.l.b16 %v265
    %v1380 = vunpack.c.h.b16 %v265
    %v1381 = vunpack.c.l.b16 %v266
    %v1382 = vunpack.c.h.b16 %v266
    %v1383 = vunpack.c.l.b16 %v267
    %v1384 = vunpack.c.h.b16 %v267
    %v1385 = vunpack.c.l.b16 %v268
    %v1386 = vunpack.c.h.b16 %v268
    %v1387 = vunpack.c.l.b16 %v269
    %v1388 = vunpack.c.h.b16 %v269
    %v1389 = vunpack.c.l.b16 %v270
    %v1390 = vunpack.c.h.b16 %v270
    %v1391 = vunpack.c.l.b16 %v271
    %v1392 = vunpack.c.h.b16 %v271
    %v1393 = vunpack.c.l.b16 %v272
    %v1394 = vunpack.c.h.b16 %v272
    %v1395 = vunpack.c.l.b16 %v273
    %v1396 = vunpack.c.h.b16 %v273
    %v1397 = vunpack.c.l.b16 %v274
    %v1398 = vunpack.c.h.b16 %v274
    %v1399 = vunpack.c.l.b16 %v275
    %v1400 = vunpack.c.h.b16 %v275
    %v1401 = vunpack.c.l.b16 %v276
    %v1402 = vunpack.c.h.b16 %v276
    %v1403 = vunpack.c.l.b16 %v277
    %v1404 = vunpack.c.h.b16 %v277
    %v1405 = vunpack.c.l.b16 %v278
    %v1406 = vunpack.c.h.b16 %v278
    %v1407 = vunpack.c.l.b16 %v279
    %v1408 = vunpack.c.h.b16 %v279
    %v1409 = vunpack.c.l.b16 %v280
    %v1410 = vunpack.c.h.b16 %v280
    %v1411 = vunpack.c.l.b16 %v281
    %v1412 = vunpack.c.h.b16 %v281
    %v1413 = vunpack.c.l.b16 %v282
    %v1414 = vunpack.c.h.b16 %v282
    %v1415 = vunpack.c.l.b16 %v283
    %v1416 = vunpack.c.h.b16 %v283
    %v1417 = vunpack.c.l.b16 %v284
    %v1418 = vunpack.c.h.b16 %v284
    %v1419 = vunpack.c.l.b16 %v285
    %v1420 = vunpack.c.h.b16 %v285
    %v1421 = vunpack.c.l.b16 %v286
    %v1422 = vunpack.c.h.b16 %v286
    %v1423 = vunpack.c.l.b16 %v287
    %v1424 = vunpack.c.h.b16 %v287
    %v1425 = vunpack.c.l.b16 %v288
    %v1426 = vunpack.c.h.b16 %v288
    %v1427 = vunpack.c.l.b16 %v289
    %v1428 = vunpack.c.h.b16 %v289
    %v1429 = vunpack.c.l.b16 %v290
    %v1430 = vunpack.c.h.b16 %v290
    %v1431 = vunpack.c.l.b16 %v291
    %v1432 = vunpack.c.h.b16 %v291
    %v1433 = vunpack.c.l.b16 %v292
    %v1434 = vunpack.c.h.b16 %v292
    %v1435 = vunpack.c.l.b16 %v293
    %v1436 = vunpack.c.h.b16 %v293
    %v1437 = vunpack.c.l.b16 %v294
    %v1438 = vunpack.c.h.b16 %v294
    %v1439 = vunpack.c.l.b16 %v295
    %v1440 = vunpack.c.h.b16 %v295
    %v1441 = vunpack.c.l.b16 %v296
    %v1442 = vunpack.c.h.b16 %v296
    %v1443 = vunpack.c.l.b16 %v297
    %v1444 = vunpack.c.h.b16 %v297
    %v1445 = vunpack.c.l.b16 %v298
    %v1446 = vunpack.c.h.b16 %v298
    %v1447 = vunpack.c.l.b16 %v299
    %v1448 = vunpack.c.h.b16 %v299
    %v1449 = vunpack.c.l.b16 %v300
    %v1450 = vunpack.c.h.b16 %v300
    %v1451 = vunpack.c.l.b16 %v301
    %v1452 = vunpack.c.h.b16 %v301
    %v1453 = vunpack.c.l.b16 %v302
    %v1454 = vunpack.c.h.b16 %v302
    %v1455 = vunpack.c.l.b16 %v303
    %v1456 = vunpack.c.h.b16 %v303
    %v1457 = vunpack.c.l.b16 %v304
    %v1458 = vunpack.c.h.b16 %v304
    %v1459 = vunpack.c.l.b16 %v305
    %v1460 = vunpack.c.h.b16 %v305
    %v1461 = vunpack.c.l.b16 %v306
    %v1462 = vunpack.c.h.b16 %v306
    %v1463 = vunpack.c.l.b16 %v307
    %v1464 = vunpack.c.h.b16 %v307
    %v1465 = vunpack.c.l.b16 %v308
    %v1466 = vunpack.c.h.b16 %v308
    %v1467 = vunpack.c.l.b16 %v309
    %v1468 = vunpack.c.h.b16 %v309
    %v1469 = vunpack.c.l.b16 %v310
    %v1470 = vunpack.c.h.b16 %v310
    %v1471 = vunpack.c.l.b16 %v311
    %v1472 = vunpack.c.h.b16 %v311
    %v1473 = vunpack.c.l.b16 %v312
    %v1474 = vunpack.c.h.b16 %v312
    %v1475 = vunpack.c.l.b16 %v313
    %v1476 = vunpack.c.h.b16 %v313
    %v1477 = vunpack.c.l.b16 %v314
    %v1478 = vunpack.c.h.b16 %v314
    %v1479 = vunpack.c.l.b16 %v315
    %v1480 = vunpack.c.h.b16 %v315
    %v1481 = vunpack.c.l.b16 %v316
    %v1482 = vunpack.c.h.b16 %v316
    %v1483 = vunpack.c.l.b16 %v317
    %v1484 = vunpack.c.h.b16 %v317
    %v1485 = vunpack.c.l.b16 %v318
    %v1486 = vunpack.c.h.b16 %v318
    %v1487 = vunpack.c.l.b16 %v319
    %v1488 = vunpack.c.h.b16 %v319
    %v1489 = vunpack.c.l.b16 %v320
    %v1490 = vunpack.c.h.b16 %v320
    %v1491 = vunpack.c.l.b16 %v321
    %v1492 = vunpack.c.h.b16 %v321
    %v1493 = vunpack.c.l.b16 %v322
    %v1494 = vunpack.c.h.b16 %v322
    %v1495 = vunpack.c.l.b16 %v323
    %v1496 = vunpack.c.h.b16 %v323
    %v1497 = vunpack.c.l.b16 %v324
    %v1498 = vunpack.c.h.b16 %v324
    %v1499 = vunpack.c.l.b16 %v325
    %v1500 = vunpack.c.h.b16 %v325
    %v1501 = vunpack.c.l.b16 %v326
    %v1502 = vunpack.c.h.b16 %v326
    %v1503 = vunpack.c.l.b16 %v327
    %v1504 = vunpack.c.h.b16 %v327
    %v1505 = vunpack.c.l.b16 %v328
    %v1506 = vunpack.c.h.b16 %v328
    %v1507 = vunpack.c.l.b16 %v329
    %v1508 = vunpack.c.h.b16 %v329
    %v1509 = vunpack.c.l.b16 %v330
    %v1510 = vunpack.c.h.b16 %v330
    %v1511 = vunpack.c.l.b16 %v331
    %v1512 = vunpack.c.h.b16 %v331
    %v1513 = vunpack.c.l.b16 %v332
    %v1514 = vunpack.c.h.b16 %v332
    %v1515 = vunpack.c.l.b16 %v333
    %v1516 = vunpack.c.h.b16 %v333
    %v1517 = vunpack.c.l.b16 %v334
    %v1518 = vunpack.c.h.b16 %v334
    %v1519 = vunpack.c.l.b16 %v335
    %v1520 = vunpack.c.h.b16 %v335
    %v1521 = vunpack.c.l.b16 %v336
    %v1522 = vunpack.c.h.b16 %v336
    %v1523 = vunpack.c.l.b16 %v337
    %v1524 = vunpack.c.h.b16 %v337
    %v1525 = vunpack.c.l.b16 %v338
    %v1526 = vunpack.c.h.b16 %v338
    %v1527 = vunpack.c.l.b16 %v339
    %v1528 = vunpack.c.h.b16 %v339
    %v1529 = vunpack.c.l.b16 %v340
    %v1530 = vunpack.c.h.b16 %v340
    %v1531 = vunpack.c.l.b16 %v341
    %v1532 = vunpack.c.h.b16 %v341
    %v1533 = vunpack.c.l.b16 %v342
    %v1534 = vunpack.c.h.b16 %v342
    %v1535 = vunpack.c.l.b16 %v343
    %v1536 = vunpack.c.h.b16 %v343
    %v1537 = vunpack.c.l.b16 %v344
    %v1538 = vunpack.c.h.b16 %v344
    %v1539 = vunpack.c.l.b16 %v345
    %v1540 = vunpack.c.h.b16 %v345
    %v1541 = vunpack.c.l.b16 %v346
    %v1542 = vunpack.c.h.b16 %v346
    %v1543 = vunpack.c.l.b16 %v347
    %v1544 = vunpack.c.h.b16 %v347
    %v1545 = vunpack.c.l.b16 %v348
    %v1546 = vunpack.c.h.b16 %v348
    %v1547 = vunpack.c.l.b16 %v349
    %v1548 = vunpack.c.h.b16 %v349
    %v1549 = vunpack.c.l.b16 %v350
    %v1550 = vunpack.c.h.b16 %v350
    %v1551 = vunpack.c.l.b16 %v351
    %v1552 = vunpack.c.h.b16 %v351
    %v1553 = vunpack.c.l.b16 %v352
    %v1554 = vunpack.c.h.b16 %v352
    %v1555 = vunpack.c.l.b16 %v353
    %v1556 = vunpack.c.h.b16 %v353
    %v1557 = vunpack.c.l.b16 %v354
    %v1558 = vunpack.c.h.b16 %v354
    %v1559 = vunpack.c.l.b16 %v355
    %v1560 = vunpack.c.h.b16 %v355
    %v1561 = vunpack.c.l.b16 %v356
    %v1562 = vunpack.c.h.b16 %v356
    %v1563 = vunpack.c.l.b16 %v357
    %v1564 = vunpack.c.h.b16 %v357
    %v1565 = vunpack.c.l.b16 %v358
    %v1566 = vunpack.c.h.b16 %v358
    %v1567 = vunpack.c.l.b16 %v359
    %v1568 = vunpack.c.h.b16 %v359
    %v1569 = vunpack.c.l.b16 %v360
    %v1570 = vunpack.c.h.b16 %v360
    %v1571 = vunpack.c.l.b16 %v361
    %v1572 = vunpack.c.h.b16 %v361
    %v1573 = vunpack.c.l.b16 %v362
    %v1574 = vunpack.c.h.b16 %v362
    %v1575 = vunpack.c.l.b16 %v363
    %v1576 = vunpack.c.h.b16 %v363
    %v1577 = vunpack.c.l.b16 %v364
    %v1578 = vunpack.c.h.b16 %v364
    %v1579 = vunpack.c.l.b16 %v365
    %v1580 = vunpack.c.h.b16 %v365
    %v1581 = vunpack.c.l.b16 %v366
    %v1582 = vunpack.c.h.b16 %v366
    %v1583 = vunpack.c.l.b16 %v367
    %v1584 = vunpack.c.h.b16 %v367
    %v1585 = vunpack.c.l.b16 %v368
    %v1586 = vunpack.c.h.b16 %v368
    %v1587 = vunpack.c.l.b16 %v369
    %v1588 = vunpack.c.h.b16 %v369
    %v1589 = vunpack.c.l.b16 %v370
    %v1590 = vunpack.c.h.b16 %v370
    %v1591 = vunpack.c.l.b16 %v371
    %v1592 = vunpack.c.h.b16 %v371
    %v1593 = vunpack.c.l.b16 %v372
    %v1594 = vunpack.c.h.b16 %v372
    %v1595 = vunpack.c.l.b16 %v373
    %v1596 = vunpack.c.h.b16 %v373
    %v1597 = vunpack.c.l.b16 %v374
    %v1598 = vunpack.c.h.b16 %v374
    %v1599 = vunpack.c.l.b16 %v375
    %v1600 = vunpack.c.h.b16 %v375
    %v1601 = vunpack.c.l.b16 %v376
    %v1602 = vunpack.c.h.b16 %v376
    %v1603 = vunpack.c.l.b16 %v377
    %v1604 = vunpack.c.h.b16 %v377
    %v1605 = vunpack.c.l.b16 %v378
    %v1606 = vunpack.c.h.b16 %v378
    %v1607 = vunpack.c.l.b16 %v379
    %v1608 = vunpack.c.h.b16 %v379
    %v1609 = vunpack.c.l.b16 %v380
    %v1610 = vunpack.c.h.b16 %v380
    %v1611 = vunpack.c.l.b16 %v381
    %v1612 = vunpack.c.h.b16 %v381
    %v1613 = vunpack.c.l.b16 %v382
    %v1614 = vunpack.c.h.b16 %v382
    %v1615 = vunpack.c.l.b16 %v383
    %v1616 = vunpack.c.h.b16 %v383
    %v1617 = vunpack.c.l.b16 %v384
    %v1618 = vunpack.c.h.b16 %v384
    %v1619 = vunpack.c.l.b16 %v385
    %v1620 = vunpack.c.h.b16 %v385
    %v1621 = vunpack.c.l.b16 %v386
    %v1622 = vunpack.c.h.b16 %v386
    %v1623 = vunpack.c.l.b16 %v387
    %v1624 = vunpack.c.h.b16 %v387
    %v1625 = vunpack.c.l.b16 %v388
    %v1626 = vunpack.c.h.b16 %v388
    %v1627 = vunpack.c.l.b16 %v389
    %v1628 = vunpack.c.h.b16 %v389
    %v1629 = vunpack.c.l.b16 %v390
    %v1630 = vunpack.c.h.b16 %v390
    %v1631 = vunpack.c.l.b16 %v391
    %v1632 = vunpack.c.h.b16 %v391
    %v1633 = vunpack.c.l.b16 %v392
    %v1634 = vunpack.c.h.b16 %v392
    %v1635 = vunpack.c.l.b16 %v393
    %v1636 = vunpack.c.h.b16 %v393
    %v1637 = vunpack.c.l.b16 %v394
    %v1638 = vunpack.c.h.b16 %v394
    %v1639 = vunpack.c.l.b16 %v395
    %v1640 = vunpack.c.h.b16 %v395
    %v1641 = vunpack.c.l.b16 %v396
    %v1642 = vunpack.c.h.b16 %v396
    %v1643 = vunpack.c.l.b16 %v397
    %v1644 = vunpack.c.h.b16 %v397
    %v1645 = vunpack.c.l.b16 %v398
    %v1646 = vunpack.c.h.b16 %v398
    %v1647 = vunpack.c.l.b16 %v399
    %v1648 = vunpack.c.h.b16 %v399
    %v1649 = vunpack.c.l.b16 %v400
    %v1650 = vunpack.c.h.b16 %v400
    %v1651 = vunpack.c.l.b16 %v401
    %v1652 = vunpack.c.h.b16 %v401
    %v1653 = vunpack.c.l.b16 %v402
    %v1654 = vunpack.c.h.b16 %v402
    %v1655 = vunpack.c.l.b16 %v403
    %v1656 = vunpack.c.h.b16 %v403
    %v1657 = vunpack.c.l.b16 %v404
    %v1658 = vunpack.c.h.b16 %v404
    %v1659 = vunpack.c.l.b16 %v405
    %v1660 = vunpack.c.h.b16 %v405
    %v1661 = vunpack.c.l.b16 %v406
    %v1662 = vunpack.c.h.b16 %v406
    %v1663 = vunpack.c.l.b16 %v407
    %v1664 = vunpack.c.h.b16 %v407
    %v1665 = vunpack.c.l.b16 %v408
    %v1666 = vunpack.c.h.b16 %v408
    %v1667 = vunpack.c.l.b16 %v409
    %v1668 = vunpack.c.h.b16 %v409
    %v1669 = vunpack.c.l.b16 %v410
    %v1670 = vunpack.c.h.b16 %v410
    %v1671 = vunpack.c.l.b16 %v411
    %v1672 = vunpack.c.h.b16 %v411
    %v1673 = vunpack.c.l.b16 %v412
    %v1674 = vunpack.c.h.b16 %v412
    %v1675 = vunpack.c.l.b16 %v413
    %v1676 = vunpack.c.h.b16 %v413
    %v1677 = vunpack.c.l.b16 %v414
    %v1678 = vunpack.c.h.b16 %v414
    %v1679 = vunpack.c.l.b16 %v415
    %v1680 = vunpack.c.h.b16 %v415
    %v1681 = vunpack.c.l.b16 %v416
    %v1682 = vunpack.c.h.b16 %v416
    %v1683 = vunpack.c.l.b16 %v417
    %v1684 = vunpack.c.h.b16 %v417
    %v1685 = vunpack.c.l.b16 %v418
    %v1686 = vunpack.c.h.b16 %v418
    %v1687 = vunpack.c.l.b16 %v419
    %v1688 = vunpack.c.h.b16 %v419
    %v1689 = vunpack.c.l.b16 %v420
    %v1690 = vunpack.c.h.b16 %v420
    %v1691 = vunpack.c.l.b16 %v421
    %v1692 = vunpack.c.h.b16 %v421
    %v1693 = vunpack.c.l.b16 %v422
    %v1694 = vunpack.c.h.b16 %v422
    %v1695 = vunpack.c.l.b16 %v423
    %v1696 = vunpack.c.h.b16 %v423
    %v1697 = vunpack.c.l.b16 %v424
    %v1698 = vunpack.c.h.b16 %v424
    %v1699 = vunpack.c.l.b16 %v425
    %v1700 = vunpack.c.h.b16 %v425
    %v1701 = vunpack.c.l.b16 %v426
    %v1702 = vunpack.c.h.b16 %v426
    %v1703 = vunpack.c.l.b16 %v427
    %v1704 = vunpack.c.h.b16 %v427
    %v1705 = vunpack.c.l.b16 %v428
    %v1706 = vunpack.c.h.b16 %v428
    %v1707 = vunpack.c.l.b16 %v429
    %v1708 = vunpack.c.h.b16 %v429
    %v1709 = vunpack.c.l.b16 %v430
    %v1710 = vunpack.c.h.b16 %v430
    %v1711 = vunpack.c.l.b16 %v431
    %v1712 = vunpack.c.h.b16 %v431
    %v1713 = vunpack.c.l.b16 %v432
    %v1714 = vunpack.c.h.b16 %v432
    %v1715 = vunpack.c.l.b16 %v433
    %v1716 = vunpack.c.h.b16 %v433
    %v1717 = vunpack.c.l.b16 %v434
    %v1718 = vunpack.c.h.b16 %v434
    %v1719 = vunpack.c.l.b16 %v435
    %v1720 = vunpack.c.h.b16 %v435
    %v1721 = vunpack.c.l.b16 %v436
    %v1722 = vunpack.c.h.b16 %v436
    %v1723 = vunpack.c.l.b16 %v437
    %v1724 = vunpack.c.h.b16 %v437
    %v1725 = vunpack.c.l.b16 %v438
    %v1726 = vunpack.c.h.b16 %v438
    %v1727 = vunpack.c.l.b16 %v439
    %v1728 = vunpack.c.h.b16 %v439
    %v1729 = vunpack.c.l.b16 %v440
    %v1730 = vunpack.c.h.b16 %v440
    %v1731 = vunpack.c.l.b16 %v441
    %v1732 = vunpack.c.h.b16 %v441
    %v1733 = vunpack.c.l.b16 %v442
    %v1734 = vunpack.c.h.b16 %v442
    %v1735 = vunpack.c.l.b16 %v443
    %v1736 = vunpack.c.h.b16 %v443
    %v1737 = vunpack.c.l.b16 %v444
    %v1738 = vunpack.c.h.b16 %v444
    %v1739 = vunpack.c.l.b16 %v445
    %v1740 = vunpack.c.h.b16 %v445
    %v1741 = vunpack.c.l.b16 %v446
    %v1742 = vunpack.c.h.b16 %v446
    %v1743 = vunpack.c.l.b16 %v447
    %v1744 = vunpack.c.h.b16 %v447
    %v1745 = vunpack.c.l.b16 %v448
    %v1746 = vunpack.c.h.b16 %v448
    %v1747 = vunpack.c.l.b16 %v449
    %v1748 = vunpack.c.h.b16 %v449
    %v1749 = vunpack.c.l.b16 %v450
    %v1750 = vunpack.c.h.b16 %v450
    %v1751 = vunpack.c.l.b16 %v451
    %v1752 = vunpack.c.h.b16 %v451
    %v1753 = vunpack.c.l.b16 %v452
    %v1754 = vunpack.c.h.b16 %v452
    %v1755 = vunpack.c.l.b16 %v453
    %v1756 = vunpack.c.h.b16 %v453
    %v1757 = vunpack.c.l.b16 %v454
    %v1758 = vunpack.c.h.b16 %v454
    %v1759 = vunpack.c.l.b16 %v455
    %v1760 = vunpack.c.h.b16 %v455
    %v1761 = vunpack.c.l.b16 %v456
    %v1762 = vunpack.c.h.b16 %v456
    %v1763 = vunpack.c.l.b16 %v457
    %v1764 = vunpack.c.h.b16 %v457
    %v1765 = vunpack.c.l.b16 %v458
    %v1766 = vunpack.c.h.b16 %v458
    %v1767 = vunpack.c.l.b16 %v459
    %v1768 = vunpack.c.h.b16 %v459
    %v1769 = vunpack.c.l.b16 %v460
    %v1770 = vunpack.c.h.b16 %v460
    %v1771 = vunpack.c.l.b16 %v461
    %v1772 = vunpack.c.h.b16 %v461
    %v1773 = vunpack.c.l.b16 %v462
    %v1774 = vunpack.c.h.b16 %v462
    %v1775 = vunpack.c.l.b16 %v463
    %v1776 = vunpack.c.h.b16 %v463
    %v1777 = vunpack.c.l.b16 %v464
    %v1778 = vunpack.c.h.b16 %v464
    %v1779 = vunpack.c.l.b16 %v465
    %v1780 = vunpack.c.h.b16 %v465
    %v1781 = vunpack.c.l.b16 %v466
    %v1782 = vunpack.c.h.b16 %v466
    %v1783 = vunpack.c.l.b16 %v467
    %v1784 = vunpack.c.h.b16 %v467
    %v1785 = vunpack.c.l.b16 %v468
    %v1786 = vunpack.c.h.b16 %v468
    %v1787 = vunpack.c.l.b16 %v469
    %v1788 = vunpack.c.h.b16 %v469
    %v1789 = vunpack.c.l.b16 %v470
    %v1790 = vunpack.c.h.b16 %v470
    %v1791 = vunpack.c.l.b16 %v471
    %v1792 = vunpack.c.h.b16 %v471
    %v1793 = vunpack.c.l.b16 %v472
    %v1794 = vunpack.c.h.b16 %v472
    %v1795 = vunpack.c.l.b16 %v473
    %v1796 = vunpack.c.h.b16 %v473
    %v1797 = vunpack.c.l.b16 %v474
    %v1798 = vunpack.c.h.b16 %v474
    %v1799 = vunpack.c.l.b16 %v475
    %v1800 = vunpack.c.h.b16 %v475
    %v1801 = vunpack.c.l.b16 %v476
    %v1802 = vunpack.c.h.b16 %v476
    %v1803 = vunpack.c.l.b16 %v477
    %v1804 = vunpack.c.h.b16 %v477
    %v1805 = vunpack.c.l.b16 %v478
    %v1806 = vunpack.c.h.b16 %v478
    %v1807 = vunpack.c.l.b16 %v479
    %v1808 = vunpack.c.h.b16 %v479
    %v1809 = vunpack.c.l.b16 %v480
    %v1810 = vunpack.c.h.b16 %v480
    %v1811 = vunpack.c.l.b16 %v481
    %v1812 = vunpack.c.h.b16 %v481
    %v1813 = vunpack.c.l.b16 %v482
    %v1814 = vunpack.c.h.b16 %v482
    %v1815 = vunpack.c.l.b16 %v483
    %v1816 = vunpack.c.h.b16 %v483
    %v1817 = vunpack.c.l.b16 %v484
    %v1818 = vunpack.c.h.b16 %v484
    %v1819 = vunpack.c.l.b16 %v485
    %v1820 = vunpack.c.h.b16 %v485
    %v1821 = vunpack.c.l.b16 %v486
    %v1822 = vunpack.c.h.b16 %v486
    %v1823 = vunpack.c.l.b16 %v487
    %v1824 = vunpack.c.h.b16 %v487
    %v1825 = vunpack.c.l.b16 %v488
    %v1826 = vunpack.c.h.b16 %v488
    %v1827 = vunpack.c.l.b16 %v489
    %v1828 = vunpack.c.h.b16 %v489
    %v1829 = vunpack.c.l.b16 %v490
    %v1830 = vunpack.c.h.b16 %v490
    %v1831 = vunpack.c.l.b16 %v491
    %v1832 = vunpack.c.h.b16 %v491
    %v1833 = vunpack.c.l.b16 %v492
    %v1834 = vunpack.c.h.b16 %v492
    %v1835 = vunpack.c.l.b16 %v493
    %v1836 = vunpack.c.h.b16 %v493
    %v1837 = vunpack.c.l.b16 %v494
    %v1838 = vunpack.c.h.b16 %v494
    %v1839 = vunpack.c.l.b16 %v495
    %v1840 = vunpack.c.h.b16 %v495
    %v1841 = vunpack.c.l.b16 %v496
    %v1842 = vunpack.c.h.b16 %v496
    %v1843 = vunpack.c.l.b16 %v497
    %v1844 = vunpack.c.h.b16 %v497
    %v1845 = vunpack.c.l.b16 %v498
    %v1846 = vunpack.c.h.b16 %v498
    %v1847 = vunpack.c.l.b16 %v499
    %v1848 = vunpack.c.h.b16 %v499
    %v1849 = vunpack.c.l.b16 %v500
    %v1850 = vunpack.c.h.b16 %v500
    %v1851 = vunpack.c.l.b16 %v501
    %v1852 = vunpack.c.h.b16 %v501
    %v1853 = vunpack.c.l.b16 %v502
    %v1854 = vunpack.c.h.b16 %v502
    %v1855 = vunpack.c.l.b16 %v503
    %v1856 = vunpack.c.h.b16 %v503
    %v1857 = vunpack.c.l.b16 %v504
    %v1858 = vunpack.c.h.b16 %v504
    %v1859 = vunpack.c.l.b16 %v505
    %v1860 = vunpack.c.h.b16 %v505
    %v1861 = vunpack.c.l.b16 %v506
    %v1862 = vunpack.c.h.b16 %v506
    %v1863 = vunpack.c.l.b16 %v507
    %v1864 = vunpack.c.h.b16 %v507
    %v1865 = vunpack.c.l.b16 %v508
    %v1866 = vunpack.c.h.b16 %v508
    %v1867 = vunpack.c.l.b16 %v509
    %v1868 = vunpack.c.h.b16 %v509
    %v1869 = vunpack.c.l.b16 %v510
    %v1870 = vunpack.c.h.b16 %v510
    %v1871 = vunpack.c.l.b16 %v511
    %v1872 = vunpack.c.h.b16 %v511
    %v1873 = vunpack.c.l.b16 %v512
    %v1874 = vunpack.c.h.b16 %v512
    %v1875 = vunpack.c.l.b16 %v513
    %v1876 = vunpack.c.h.b16 %v513
    %v1877 = vunpack.c.l.b16 %v514
    %v1878 = vunpack.c.h.b16 %v514
    %v1879 = vunpack.c.l.b16 %v515
    %v1880 = vunpack.c.h.b16 %v515
    %v1881 = vunpack.c.l.b16 %v516
    %v1882 = vunpack.c.h.b16 %v516
    %v1883 = vunpack.c.l.b16 %v517
    %v1884 = vunpack.c.h.b16 %v517
    %v1885 = vunpack.c.l.b16 %v518
    %v1886 = vunpack.c.h.b16 %v518
    %v1887 = vunpack.c.l.b16 %v519
    %v1888 = vunpack.c.h.b16 %v519
    %v1889 = vunpack.c.l.b16 %v520
    %v1890 = vunpack.c.h.b16 %v520
    %v1891 = vunpack.c.l.b16 %v521
    %v1892 = vunpack.c.h.b16 %v521
    %v1893 = vunpack.c.l.b16 %v522
    %v1894 = vunpack.c.h.b16 %v522
    %v1895 = vunpack.c.l.b16 %v523
    %v1896 = vunpack.c.h.b16 %v523
    %v1897 = vunpack.c.l.b16 %v524
    %v1898 = vunpack.c.h.b16 %v524
    %v1899 = vunpack.c.l.b16 %v525
    %v1900 = vunpack.c.h.b16 %v525
    %v1901 = vunpack.c.l.b16 %v526
    %v1902 = vunpack.c.h.b16 %v526
    %v1903 = vunpack.c.l.b16 %v527
    %v1904 = vunpack.c.h.b16 %v527
    %v1905 = vunpack.c.l.b16 %v528
    %v1906 = vunpack.c.h.b16 %v528
    %v1907 = vunpack.c.l.b16 %v529
    %v1908 = vunpack.c.h.b16 %v529
    %v1909 = vunpack.c.l.b16 %v530
    %v1910 = vunpack.c.h.b16 %v530
    %v1911 = vunpack.c.l.b16 %v531
    %v1912 = vunpack.c.h.b16 %v531
    %v1913 = vunpack.c.l.b16 %v532
    %v1914 = vunpack.c.h.b16 %v532
    %v1915 = vunpack.c.l.b16 %v533
    %v1916 = vunpack.c.h.b16 %v533
    %v1917 = vunpack.c.l.b16 %v534
    %v1918 = vunpack.c.h.b16 %v534
    %v1919 = vunpack.c.l.b16 %v535
    %v1920 = vunpack.c.h.b16 %v535
    %v1921 = vunpack.c.l.b16 %v536
    %v1922 = vunpack.c.h.b16 %v536
    %v1923 = vunpack.c.l.b16 %v537
    %v1924 = vunpack.c.h.b16 %v537
    %v1925 = vunpack.c.l.b16 %v538
    %v1926 = vunpack.c.h.b16 %v538
    %v1927 = vunpack.c.l.b16 %v539
    %v1928 = vunpack.c.h.b16 %v539
    %v1929 = vunpack.c.l.b16 %v540
    %v1930 = vunpack.c.h.b16 %v540
    %v1931 = vunpack.c.l.b16 %v541
    %v1932 = vunpack.c.h.b16 %v541
    %v1933 = vunpack.c.l.b16 %v542
    %v1934 = vunpack.c.h.b16 %v542
    %v1935 = vunpack.c.l.b16 %v543
    %v1936 = vunpack.c.h.b16 %v543
    %v1937 = vunpack.c.l.b16 %v544
    %v1938 = vunpack.c.h.b16 %v544
    %v1939 = vunpack.c.l.b16 %v545
    %v1940 = vunpack.c.h.b16 %v545
    %v1941 = vunpack.c.l.b16 %v546
    %v1942 = vunpack.c.h.b16 %v546
    %v1943 = vunpack.c.l.b16 %v547
    %v1944 = vunpack.c.h.b16 %v547
    %v1945 = vunpack.c.l.b16 %v548
    %v1946 = vunpack.c.h.b16 %v548
    %v1947 = vunpack.c.l.b16 %v549
    %v1948 = vunpack.c.h.b16 %v549
    %v1949 = vunpack.c.l.b16 %v550
    %v1950 = vunpack.c.h.b16 %v550
    %v1951 = vunpack.c.l.b16 %v551
    %v1952 = vunpack.c.h.b16 %v551
    %v1953 = vunpack.c.l.b16 %v552
    %v1954 = vunpack.c.h.b16 %v552
    %v1955 = vunpack.c.l.b16 %v553
    %v1956 = vunpack.c.h.b16 %v553
    %v1957 = vunpack.c.l.b16 %v554
    %v1958 = vunpack.c.h.b16 %v554
    %v1959 = vunpack.c.l.b16 %v555
    %v1960 = vunpack.c.h.b16 %v555
    %v1961 = vunpack.c.l.b16 %v556
    %v1962 = vunpack.c.h.b16 %v556
    %v1963 = vunpack.c.l.b16 %v557
    %v1964 = vunpack.c.h.b16 %v557
    %v1965 = vunpack.c.l.b16 %v558
    %v1966 = vunpack.c.h.b16 %v558
    %v1967 = vunpack.c.l.b16 %v559
    %v1968 = vunpack.c.h.b16 %v559
    %v1969 = vunpack.c.l.b16 %v560
    %v1970 = vunpack.c.h.b16 %v560
    %v1971 = vunpack.c.l.b16 %v561
    %v1972 = vunpack.c.h.b16 %v561
    %v1973 = vunpack.c.l.b16 %v562
    %v1974 = vunpack.c.h.b16 %v562
    %v1975 = vunpack.c.l.b16 %v563
    %v1976 = vunpack.c.h.b16 %v563
    %v1977 = vunpack.c.l.b16 %v564
    %v1978 = vunpack.c.h.b16 %v564
    %v1979 = vunpack.c.l.b16 %v565
    %v1980 = vunpack.c.h.b16 %v565
    %v1981 = vunpack.c.l.b16 %v566
    %v1982 = vunpack.c.h.b16 %v566
    %v1983 = vunpack.c.l.b16 %v567
    %v1984 = vunpack.c.h.b16 %v567
    %v1985 = vunpack.c.l.b16 %v568
    %v1986 = vunpack.c.h.b16 %v568
    %v1987 = vunpack.c.l.b16 %v569
    %v1988 = vunpack.c.h.b16 %v569
    %v1989 = vunpack.c.l.b16 %v570
    %v1990 = vunpack.c.h.b16 %v570
    %v1991 = vunpack.c.l.b16 %v571
    %v1992 = vunpack.c.h.b16 %v571
    %v1993 = vunpack.c.l.b16 %v572
    %v1994 = vunpack.c.h.b16 %v572
    %v1995 = vpack.c.b16 %v1107, %v1099
    %v1996 = vpack.c.b16 %v1108, %v1100
    %v1997 = vpack.c.b16 %v1109, %v1101
    %v1998 = vpack.c.b16 %v1110, %v1102
    %v1999 = vpack.c.b16 %v1111, %v1103
    %v2000 = vpack.c.b16 %v1112, %v1104
    %v2001 = vpack.c.b16 %v1113, %v1105
    %v2002 = vpack.c.b16 %v1114, %v1106
    %v2003 = vpack.c.b16 %v1123, %v1115
    %v2004 = vpack.c.b16 %v1124, %v1116
    %v2005 = vpack.c.b16 %v1125, %v1117
    %v2006 = vpack.c.b16 %v1126, %v1118
    %v2007 = vpack.c.b16 %v1127, %v1119
    %v2008 = vpack.c.b16 %v1128, %v1120
    %v2009 = vpack.c.b16 %v1129, %v1121
    %v2010 = vpack.c.b16 %v1130, %v1122
    %v2011 = vpack.c.b16 %v1139, %v1131
    %v2012 = vpack.c.b16 %v1140, %v1132
    %v2013 = vpack.c.b16 %v1141, %v1133
    %v2014 = vpack.c.b16 %v1142, %v1134
    %v2015 = vpack.c.b16 %v1143, %v1135
    %v2016 = vpack.c.b16 %v1144, %v1136
    %v2017 = vpack.c.b16 %v1145, %v1137
    %v2018 = vpack.c.b16 %v1146, %v1138
    %v2019 = vpack.c.b16 %v1155, %v1147
    %v2020 = vpack.c.b16 %v1156, %v1148
    %v2021 = vpack.c.b16 %v1157, %v1149
    %v2022 = vpack.c.b16 %v1158, %v1150
    %v2023 = vpack.c.b16 %v1159, %v1151
    %v2024 = vpack.c.b16 %v1160, %v1152
    %v2025 = vpack.c.b16 %v1161, %v1153
    %v2026 = vpack.c.b16 %v1162, %v1154
    %v2027 = vpack.c.b16 %v1171, %v1163
    %v2028 = vpack.c.b16 %v1172, %v1164
    %v2029 = vpack.c.b16 %v1173, %v1165
    %v2030 = vpack.c.b16 %v1174, %v1166
    %v2031 = vpack.c.b16 %v1175, %v1167
    %v2032 = vpack.c.b16 %v1176, %v1168
    %v2033 = vpack.c.b16 %v1177, %v1169
    %v2034 = vpack.c.b16 %v1178, %v1170
    %v2035 = vpack.c.b16 %v1187, %v1179
    %v2036 = vpack.c.b16 %v1188, %v1180
    %v2037 = vpack.c.b16 %v1189, %v1181
    %v2038 = vpack.c.b16 %v1190, %v1182
    %v2039 = vpack.c.b16 %v1191, %v1183
    %v2040 = vpack.c.b16 %v1192, %v1184
    %v2041 = vpack.c.b16 %v1193, %v1185
    %v2042 = vpack.c.b16 %v1194, %v1186
    %v2043 = vpack.c.b16 %v1203, %v1195
    %v2044 = vpack.c.b16 %v1204, %v1196
    %v2045 = vpack.c.b16 %v1205, %v1197
    %v2046 = vpack.c.b16 %v1206, %v1198
    %v2047 = vpack.c.b16 %v1207, %v1199
    %v2048 = vpack.c.b16 %v1208, %v1200
    %v2049 = vpack.c.b16 %v1209, %v1201
    %v2050 = vpack.c.b16 %v1210, %v1202
    %v2051 = vpack.c.b16 %v1219, %v1211
    %v2052 = vpack.c.b16 %v1220, %v1212
    %v2053 = vpack.c.b16 %v1221, %v1213
    %v2054 = vpack.c.b16 %v1222, %v1214
    %v2055 = vpack.c.b16 %v1223, %v1215
    %v2056 = vpack.c.b16 %v1224, %v1216
    %v2057 = vpack.c.b16 %v1225, %v1217
    %v2058 = vpack.c.b16 %v1226, %v1218
    %v2059 = vpack.c.b16 %v1235, %v1227
    %v2060 = vpack.c.b16 %v1236, %v1228
    %v2061 = vpack.c.b16 %v1237, %v1229
    %v2062 = vpack.c.b16 %v1238, %v1230
    %v2063 = vpack.c.b16 %v1239, %v1231
    %v2064 = vpack.c.b16 %v1240, %v1232
    %v2065 = vpack.c.b16 %v1241, %v1233
    %v2066 = vpack.c.b16 %v1242, %v1234
    %v2067 = vpack.c.b16 %v1251, %v1243
    %v2068 = vpack.c.b16 %v1252, %v1244
    %v2069 = vpack.c.b16 %v1253, %v1245
    %v2070 = vpack.c.b16 %v1254, %v1246
    %v2071 = vpack.c.b16 %v1255, %v1247
    %v2072 = vpack.c.b16 %v1256, %v1248
    %v2073 = vpack.c.b16 %v1257, %v1249
    %v2074 = vpack.c.b16 %v1258, %v1250
    %v2075 = vpack.c.b16 %v1267, %v1259
    %v2076 = vpack.c.b16 %v1268, %v1260
    %v2077 = vpack.c.b16 %v1269, %v1261
    %v2078 = vpack.c.b16 %v1270, %v1262
    %v2079 = vpack.c.b16 %v1271, %v1263
    %v2080 = vpack.c.b16 %v1272, %v1264
    %v2081 = vpack.c.b16 %v1273, %v1265
    %v2082 = vpack.c.b16 %v1274, %v1266
    %v2083 = vpack.c.b16 %v1283, %v1275
    %v2084 = vpack.c.b16 %v1284, %v1276
    %v2085 = vpack.c.b16 %v1285, %v1277
    %v2086 = vpack.c.b16 %v1286, %v1278
    %v2087 = vpack.c.b16 %v1287, %v1279
    %v2088 = vpack.c.b16 %v1288, %v1280
    %v2089 = vpack.c.b16 %v1289, %v1281
    %v2090 = vpack.c.b16 %v1290, %v1282
    %v2091 = vpack.c.b16 %v1299, %v1291
    %v2092 = vpack.c.b16 %v1300, %v1292
    %v2093 = vpack.c.b16 %v1301, %v1293
    %v2094 = vpack.c.b16 %v1302, %v1294
    %v2095 = vpack.c.b16 %v1303, %v1295
    %v2096 = vpack.c.b16 %v1304, %v1296
    %v2097 = vpack.c.b16 %v1305, %v1297
    %v2098 = vpack.c.b16 %v1306, %v1298
    %v2099 = vpack.c.b16 %v1315, %v1307
    %v2100 = vpack.c.b16 %v1316, %v1308
    %v2101 = vpack.c.b16 %v1317, %v1309
    %v2102 = vpack.c.b16 %v1318, %v1310
    %v2103 = vpack.c.b16 %v1319, %v1311
    %v2104 = vpack.c.b16 %v1320, %v1312
    %v2105 = vpack.c.b16 %v1321, %v1313
    %v2106 = vpack.c.b16 %v1322, %v1314
    %v2107 = vpack.c.b16 %v1331, %v1323
    %v2108 = vpack.c.b16 %v1332, %v1324
    %v2109 = vpack.c.b16 %v1333, %v1325
    %v2110 = vpack.c.b16 %v1334, %v1326
    %v2111 = vpack.c.b16 %v1335, %v1327
    %v2112 = vpack.c.b16 %v1336, %v1328
    %v2113 = vpack.c.b16 %v1337, %v1329
    %v2114 = vpack.c.b16 %v1338, %v1330
    %v2115 = vpack.c.b16 %v1347, %v1339
    %v2116 = vpack.c.b16 %v1348, %v1340
    %v2117 = vpack.c.b16 %v1349, %v1341
    %v2118 = vpack.c.b16 %v1350, %v1342
    %v2119 = vpack.c.b16 %v1351, %v1343
    %v2120 = vpack.c.b16 %v1352, %v1344
    %v2121 = vpack.c.b16 %v1353, %v1345
    %v2122 = vpack.c.b16 %v1354, %v1346
    %v2123 = vpack.c.b16 %v1363, %v1355
    %v2124 = vpack.c.b16 %v1364, %v1356
    %v2125 = vpack.c.b16 %v1365, %v1357
    %v2126 = vpack.c.b16 %v1366, %v1358
    %v2127 = vpack.c.b16 %v1367, %v1359
    %v2128 = vpack.c.b16 %v1368, %v1360
    %v2129 = vpack.c.b16 %v1369, %v1361
    %v2130 = vpack.c.b16 %v1370, %v1362
    %v2131 = vpack.c.b16 %v1379, %v1371
    %v2132 = vpack.c.b16 %v1380, %v1372
    %v2133 = vpack.c.b16 %v1381, %v1373
    %v2134 = vpack.c.b16 %v1382, %v1374
    %v2135 = vpack.c.b16 %v1383, %v1375
    %v2136 = vpack.c.b16 %v1384, %v1376
    %v2137 = vpack.c.b16 %v1385, %v1377
    %v2138 = vpack.c.b16 %v1386, %v1378
    %v2139 = vpack.c.b16 %v1395, %v1387
    %v2140 = vpack.c.b16 %v1396, %v1388
    %v2141 = vpack.c.b16 %v1397, %v1389
    %v2142 = vpack.c.b16 %v1398, %v1390
    %v2143 = vpack.c.b16 %v1399, %v1391
    %v2144 = vpack.c.b16 %v1400, %v1392
    %v2145 = vpack.c.b16 %v1401, %v1393
    %v2146 = vpack.c.b16 %v1402, %v1394
    %v2147 = vpack.c.b16 %v1411, %v1403
    %v2148 = vpack.c.b16 %v1412, %v1404
    %v2149 = vpack.c.b16 %v1413, %v1405
    %v2150 = vpack.c.b16 %v1414, %v1406
    %v2151 = vpack.c.b16 %v1415, %v1407
    %v2152 = vpack.c.b16 %v1416, %v1408
    %v2153 = vpack.c.b16 %v1417, %v1409
    %v2154 = vpack.c.b16 %v1418, %v1410
    %v2155 = vpack.c.b16 %v1427, %v1419
    %v2156 = vpack.c.b16 %v1428, %v1420
    %v2157 = vpack.c.b16 %v1429, %v1421
    %v2158 = vpack.c.b16 %v1430, %v1422
    %v2159 = vpack.c.b16 %v1431, %v1423
    %v2160 = vpack.c.b16 %v1432, %v1424
    %v2161 = vpack.c.b16 %v1433, %v1425
    %v2162 = vpack.c.b16 %v1434, %v1426
    %v2163 = vpack.c.b16 %v1443, %v1435
    %v2164 = vpack.c.b16 %v1444, %v1436
    %v2165 = vpack.c.b16 %v1445, %v1437
    %v2166 = vpack.c.b16 %v1446, %v1438
    %v2167 = vpack.c.b16 %v1447, %v1439
    %v2168 = vpack.c.b16 %v1448, %v1440
    %v2169 = vpack.c.b16 %v1449, %v1441
    %v2170 = vpack.c.b16 %v1450, %v1442
    %v2171 = vpack.c.b16 %v1459, %v1451
    %v2172 = vpack.c.b16 %v1460, %v1452
    %v2173 = vpack.c.b16 %v1461, %v1453
    %v2174 = vpack.c.b16 %v1462, %v1454
    %v2175 = vpack.c.b16 %v1463, %v1455
    %v2176 = vpack.c.b16 %v1464, %v1456
    %v2177 = vpack.c.b16 %v1465, %v1457
    %v2178 = vpack.c.b16 %v1466, %v1458
    %v2179 = vpack.c.b16 %v1475, %v1467
    %v2180 = vpack.c.b16 %v1476, %v1468
    %v2181 = vpack.c.b16 %v1477, %v1469
    %v2182 = vpack.c.b16 %v1478, %v1470
    %v2183 = vpack.c.b16 %v1479, %v1471
    %v2184 = vpack.c.b16 %v1480, %v1472
    %v2185 = vpack.c.b16 %v1481, %v1473
    %v2186 = vpack.c.b16 %v1482, %v1474
    %v2187 = vpack.c.b16 %v1491, %v1483
    %v2188 = vpack.c.b16 %v1492, %v1484
    %v2189 = vpack.c.b16 %v1493, %v1485
    %v2190 = vpack.c.b16 %v1494, %v1486
    %v2191 = vpack.c.b16 %v1495, %v1487
    %v2192 = vpack.c.b16 %v1496, %v1488
    %v2193 = vpack.c.b16 %v1497, %v1489
    %v2194 = vpack.c.b16 %v1498, %v1490
    %v2195 = vpack.c.b16 %v1507, %v1499
    %v2196 = vpack.c.b16 %v1508, %v1500
    %v2197 = vpack.c.b16 %v1509, %v1501
    %v2198 = vpack.c.b16 %v1510, %v1502
    %v2199 = vpack.c.b16 %v1511, %v1503
    %v2200 = vpack.c.b16 %v1512, %v1504
    %v2201 = vpack.c.b16 %v1513, %v1505
    %v2202 = vpack.c.b16 %v1514, %v1506
    %v2203 = vpack.c.b16 %v1523, %v1515
    %v2204 = vpack.c.b16 %v1524, %v1516
    %v2205 = vpack.c.b16 %v1525, %v1517
    %v2206 = vpack.c.b16 %v1526, %v1518
    %v2207 = vpack.c.b16 %v1527, %v1519
    %v2208 = vpack.c.b16 %v1528, %v1520
    %v2209 = vpack.c.b16 %v1529, %v1521
    %v2210 = vpack.c.b16 %v1530, %v1522
    %v2211 = vpack.c.b16 %v1539, %v1531
    %v2212 = vpack.c.b16 %v1540, %v1532
    %v2213 = vpack.c.b16 %v1541, %v1533
    %v2214 = vpack.c.b16 %v1542, %v1534
    %v2215 = vpack.c.b16 %v1543, %v1535
    %v2216 = vpack.c.b16 %v1544, %v1536
    %v2217 = vpack.c.b16 %v1545, %v1537
    %v2218 = vpack.c.b16 %v1546, %v1538
    %v2219 = vpack.c.b16 %v1555, %v1547
    %v2220 = vpack.c.b16 %v1556, %v1548
    %v2221 = vpack.c.b16 %v1557, %v1549
    %v2222 = vpack.c.b16 %v1558, %v1550
    %v2223 = vpack.c.b16 %v1559, %v1551
    %v2224 = vpack.c.b16 %v1560, %v1552
    %v2225 = vpack.c.b16 %v1561, %v1553
    %v2226 = vpack.c.b16 %v1562, %v1554
    %v2227 = vpack.c.b16 %v1571, %v1563
    %v2228 = vpack.c.b16 %v1572, %v1564
    %v2229 = vpack.c.b16 %v1573, %v1565
    %v2230 = vpack.c.b16 %v1574, %v1566
    %v2231 = vpack.c.b16 %v1575, %v1567
    %v2232 = vpack.c.b16 %v1576, %v1568
    %v2233 = vpack.c.b16 %v1577, %v1569
    %v2234 = vpack.c.b16 %v1578, %v1570
    %v2235 = vpack.c.b16 %v1587, %v1579
    %v2236 = vpack.c.b16 %v1588, %v1580
    %v2237 = vpack.c.b16 %v1589, %v1581
    %v2238 = vpack.c.b16 %v1590, %v1582
    %v2239 = vpack.c.b16 %v1591, %v1583
    %v2240 = vpack.c.b16 %v1592, %v1584
    %v2241 = vpack.c.b16 %v1593, %v1585
    %v2242 = vpack.c.b16 %v1594, %v1586
    %v2243 = vpack.c.b16 %v1603, %v1595
    %v2244 = vpack.c.b16 %v1604, %v1596
    %v2245 = vpack.c.b16 %v1605, %v1597
    %v2246 = vpack.c.b16 %v1606, %v1598
    %v2247 = vpack.c.b16 %v1607, %v1599
    %v2248 = vpack.c.b16 %v1608, %v1600
    %v2249 = vpack.c.b16 %v1609, %v1601
    %v2250 = vpack.c.b16 %v1610, %v1602
    %v2251 = vpack.c.b16 %v1619, %v1611
    %v2252 = vpack.c.b16 %v1620, %v1612
    %v2253 = vpack.c.b16 %v1621, %v1613
    %v2254 = vpack.c.b16 %v1622, %v1614
    %v2255 = vpack.c.b16 %v1623, %v1615
    %v2256 = vpack.c.b16 %v1624, %v1616
    %v2257 = vpack.c.b16 %v1625, %v1617
    %v2258 = vpack.c.b16 %v1626, %v1618
    %v2259 = vpack.c.b16 %v1635, %v1627
    %v2260 = vpack.c.b16 %v1636, %v1628
    %v2261 = vpack.c.b16 %v1637, %v1629
    %v2262 = vpack.c.b16 %v1638, %v1630
    %v2263 = vpack.c.b16 %v1639, %v1631
    %v2264 = vpack.c.b16 %v1640, %v1632
    %v2265 = vpack.c.b16 %v1641, %v1633
    %v2266 = vpack.c.b16 %v1642, %v1634
    %v2267 = vpack.c.b16 %v1651, %v1643
    %v2268 = vpack.c.b16 %v1652, %v1644
    %v2269 = vpack.c.b16 %v1653, %v1645
    %v2270 = vpack.c.b16 %v1654, %v1646
    %v2271 = vpack.c.b16 %v1655, %v1647
    %v2272 = vpack.c.b16 %v1656, %v1648
    %v2273 = vpack.c.b16 %v1657, %v1649
    %v2274 = vpack.c.b16 %v1658, %v1650
    %v2275 = vpack.c.b16 %v1667, %v1659
    %v2276 = vpack.c.b16 %v1668, %v1660
    %v2277 = vpack.c.b16 %v1669, %v1661
    %v2278 = vpack.c.b16 %v1670, %v1662
    %v2279 = vpack.c.b16 %v1671, %v1663
    %v2280 = vpack.c.b16 %v1672, %v1664
    %v2281 = vpack.c.b16 %v1673, %v1665
    %v2282 = vpack.c.b16 %v1674, %v1666
    %v2283 = vpack.c.b16 %v1683, %v1675
    %v2284 = vpack.c.b16 %v1684, %v1676
    %v2285 = vpack.c.b16 %v1685, %v1677
    %v2286 = vpack.c.b16 %v1686, %v1678
    %v2287 = vpack.c.b16 %v1687, %v1679
    %v2288 = vpack.c.b16 %v1688, %v1680
    %v2289 = vpack.c.b16 %v1689, %v1681
    %v2290 = vpack.c.b16 %v1690, %v1682
    %v2291 = vpack.c.b16 %v1699, %v1691
    %v2292 = vpack.c.b16 %v1700, %v1692
    %v2293 = vpack.c.b16 %v1701, %v1693
    %v2294 = vpack.c.b16 %v1702, %v1694
    %v2295 = vpack.c.b16 %v1703, %v1695
    %v2296 = vpack.c.b16 %v1704, %v1696
    %v2297 = vpack.c.b16 %v1705, %v1697
    %v2298 = vpack.c.b16 %v1706, %v1698
    %v2299 = vpack.c.b16 %v1715, %v1707
    %v2300 = vpack.c.b16 %v1716, %v1708
    %v2301 = vpack.c.b16 %v1717, %v1709
    %v2302 = vpack.c.b16 %v1718, %v1710
    %v2303 = vpack.c.b16 %v1719, %v1711
    %v2304 = vpack.c.b16 %v1720, %v1712
    %v2305 = vpack.c.b16 %v1721, %v1713
    %v2306 = vpack.c.b16 %v1722, %v1714
    %v2307 = vpack.c.b16 %v1731, %v1723
    %v2308 = vpack.c.b16 %v1732, %v1724
    %v2309 = vpack.c.b16 %v1733, %v1725
    %v2310 = vpack.c.b16 %v1734, %v1726
    %v2311 = vpack.c.b16 %v1735, %v1727
    %v2312 = vpack.c.b16 %v1736, %v1728
    %v2313 = vpack.c.b16 %v1737, %v1729
    %v2314 = vpack.c.b16 %v1738, %v1730
    %v2315 = vpack.c.b16 %v1747, %v1739
    %v2316 = vpack.c.b16 %v1748, %v1740
    %v2317 = vpack.c.b16 %v1749, %v1741
    %v2318 = vpack.c.b16 %v1750, %v1742
    %v2319 = vpack.c.b16 %v1751, %v1743
    %v2320 = vpack.c.b16 %v1752, %v1744
    %v2321 = vpack.c.b16 %v1753, %v1745
    %v2322 = vpack.c.b16 %v1754, %v1746
    %v2323 = vpack.c.b16 %v1763, %v1755
    %v2324 = vpack.c.b16 %v1764, %v1756
    %v2325 = vpack.c.b16 %v1765, %v1757
    %v2326 = vpack.c.b16 %v1766, %v1758
    %v2327 = vpack.c.b16 %v1767, %v1759
    %v2328 = vpack.c.b16 %v1768, %v1760
    %v2329 = vpack.c.b16 %v1769, %v1761
    %v2330 = vpack.c.b16 %v1770, %v1762
    %v2331 = vpack.c.b16 %v1779, %v1771
    %v2332 = vpack.c.b16 %v1780, %v1772
    %v2333 = vpack.c.b16 %v1781, %v1773
    %v2334 = vpack.c.b16 %v1782, %v1774
    %v2335 = vpack.c.b16 %v1783, %v1775
    %v2336 = vpack.c.b16 %v1784, %v1776
    %v2337 = vpack.c.b16 %v1785, %v1777
    %v2338 = vpack.c.b16 %v1786, %v1778
    %v2339 = vpack.c.b16 %v1795, %v1787
    %v2340 = vpack.c.b16 %v1796, %v1788
    %v2341 = vpack.c.b16 %v1797, %v1789
    %v2342 = vpack.c.b16 %v1798, %v1790
    %v2343 = vpack.c.b16 %v1799, %v1791
    %v2344 = vpack.c.b16 %v1800, %v1792
    %v2345 = vpack.c.b16 %v1801, %v1793
    %v2346 = vpack.c.b16 %v1802, %v1794
    %v2347 = vpack.c.b16 %v1811, %v1803
    %v2348 = vpack.c.b16 %v1812, %v1804
    %v2349 = vpack.c.b16 %v1813, %v1805
    %v2350 = vpack.c.b16 %v1814, %v1806
    %v2351 = vpack.c.b16 %v1815, %v1807
    %v2352 = vpack.c.b16 %v1816, %v1808
    %v2353 = vpack.c.b16 %v1817, %v1809
    %v2354 = vpack.c.b16 %v1818, %v1810
    %v2355 = vpack.c.b16 %v1827, %v1819
    %v2356 = vpack.c.b16 %v1828, %v1820
    %v2357 = vpack.c.b16 %v1829, %v1821
    %v2358 = vpack.c.b16 %v1830, %v1822
    %v2359 = vpack.c.b16 %v1831, %v1823
    %v2360 = vpack.c.b16 %v1832, %v1824
    %v2361 = vpack.c.b16 %v1833, %v1825
    %v2362 = vpack.c.b16 %v1834, %v1826
    %v2363 = vpack.c.b16 %v1843, %v1835
    %v2364 = vpack.c.b16 %v1844, %v1836
    %v2365 = vpack.c.b16 %v1845, %v1837
    %v2366 = vpack.c.b16 %v1846, %v1838
    %v2367 = vpack.c.b16 %v1847, %v1839
    %v2368 = vpack.c.b16 %v1848, %v1840
    %v2369 = vpack.c.b16 %v1849, %v1841
    %v2370 = vpack.c.b16 %v1850, %v1842
    %v2371 = vpack.c.b16 %v1859, %v1851
    %v2372 = vpack.c.b16 %v1860, %v1852
    %v2373 = vpack.c.b16 %v1861, %v1853
    %v2374 = vpack.c.b16 %v1862, %v1854
    %v2375 = vpack.c.b16 %v1863, %v1855
    %v2376 = vpack.c.b16 %v1864, %v1856
    %v2377 = vpack.c.b16 %v1865, %v1857
    %v2378 = vpack.c.b16 %v1866, %v1858
    %v2379 = vpack.c.b16 %v1875, %v1867
    %v2380 = vpack.c.b16 %v1876, %v1868
    %v2381 = vpack.c.b16 %v1877, %v1869
    %v2382 = vpack.c.b16 %v1878, %v1870
    %v2383 = vpack.c.b16 %v1879, %v1871
    %v2384 = vpack.c.b16 %v1880, %v1872
    %v2385 = vpack.c.b16 %v1881, %v1873
    %v2386 = vpack.c.b16 %v1882, %v1874
    %v2387 = vpack.c.b16 %v1891, %v1883
    %v2388 = vpack.c.b16 %v1892, %v1884
    %v2389 = vpack.c.b16 %v1893, %v1885
    %v2390 = vpack.c.b16 %v1894, %v1886
    %v2391 = vpack.c.b16 %v1895, %v1887
    %v2392 = vpack.c.b16 %v1896, %v1888
    %v2393 = vpack.c.b16 %v1897, %v1889
    %v2394 = vpack.c.b16 %v1898, %v1890
    %v2395 = vpack.c.b16 %v1907, %v1899
    %v2396 = vpack.c.b16 %v1908, %v1900
    %v2397 = vpack.c.b16 %v1909, %v1901
    %v2398 = vpack.c.b16 %v1910, %v1902
    %v2399 = vpack.c.b16 %v1911, %v1903
    %v2400 = vpack.c.b16 %v1912, %v1904
    %v2401 = vpack.c.b16 %v1913, %v1905
    %v2402 = vpack.c.b16 %v1914, %v1906
    %v2403 = vpack.c.b16 %v1923, %v1915
    %v2404 = vpack.c.b16 %v1924, %v1916
    %v2405 = vpack.c.b16 %v1925, %v1917
    %v2406 = vpack.c.b16 %v1926, %v1918
    %v2407 = vpack.c.b16 %v1927, %v1919
    %v2408 = vpack.c.b16 %v1928, %v1920
    %v2409 = vpack.c.b16 %v1929, %v1921
    %v2410 = vpack.c.b16 %v1930, %v1922
    %v2411 = vpack.c.b16 %v1939, %v1931
    %v2412 = vpack.c.b16 %v1940, %v1932
    %v2413 = vpack.c.b16 %v1941, %v1933
    %v2414 = vpack.c.b16 %v1942, %v1934
    %v2415 = vpack.c.b16 %v1943, %v1935
    %v2416 = vpack.c.b16 %v1944, %v1936
    %v2417 = vpack.c.b16 %v1945, %v1937
    %v2418 = vpack.c.b16 %v1946, %v1938
    %v2419 = vpack.c.b16 %v1955, %v1947
    %v2420 = vpack.c.b16 %v1956, %v1948
    %v2421 = vpack.c.b16 %v1957, %v1949
    %v2422 = vpack.c.b16 %v1958, %v1950
    %v2423 = vpack.c.b16 %v1959, %v1951
    %v2424 = vpack.c.b16 %v1960, %v1952
    %v2425 = vpack.c.b16 %v1961, %v1953
    %v2426 = vpack.c.b16 %v1962, %v1954
    %v2427 = vpack.c.b16 %v1971, %v1963
    %v2428 = vpack.c.b16 %v1972, %v1964
    %v2429 = vpack.c.b16 %v1973, %v1965
    %v2430 = vpack.c.b16 %v1974, %v1966
    %v2431 = vpack.c.b16 %v1975, %v1967
    %v2432 = vpack.c.b16 %v1976, %v1968
    %v2433 = vpack.c.b16 %v1977, %v1969
    %v2434 = vpack.c.b16 %v1978, %v1970
    %v2435 = vpack.c.b16 %v1987, %v1979
    %v2436 = vpack.c.b16 %v1988, %v1980
    %v2437 = vpack.c.b16 %v1989, %v1981
    %v2438 = vpack.c.b16 %v1990, %v1982
    %v2439 = vpack.c.b16 %v1991, %v1983
    %v2440 = vpack.c.b16 %v1992, %v1984
    %v2441 = vpack.c.b16 %v1993, %v1985
    %v2442 = vpack.c.b16 %v1994, %v1986
    %2891 = vmatprep.subr.bf16.mxu0 %v1996
    %2892 = vmatpush1.bf16.msra.mxu0 %v1995
    %2893 = vmatprep.subr.bf16.mxu0 %v2004
    %2894 = vmatpush1.bf16.msra.mxu0 %v2003
    %2895 = vmatprep.subr.bf16.mxu0 %v2012
    %2896 = vmatpush1.bf16.msra.mxu0 %v2011
    %2897 = vmatprep.subr.bf16.mxu0 %v2020
    %2898 = vmatpush1.bf16.msra.mxu0 %v2019
    %2899 = vmatprep.subr.bf16.mxu0 %v2028
    %2900 = vmatpush1.bf16.msra.mxu0 %v2027
    %2901 = vmatprep.subr.bf16.mxu0 %v2036
    %2902 = vmatpush1.bf16.msra.mxu0 %v2035
    %2903 = vmatprep.subr.bf16.mxu0 %v2044
    %2904 = vmatpush1.bf16.msra.mxu0 %v2043
    %2905 = vmatprep.subr.bf16.mxu0 %v2052
    %2906 = vmatpush1.bf16.msra.mxu0 %v2051
    %2907 = vmatprep.subr.bf16.mxu0 %v2060
    %2908 = vmatpush1.bf16.msra.mxu0 %v2059
    %2909 = vmatprep.subr.bf16.mxu0 %v2068
    %2910 = vmatpush1.bf16.msra.mxu0 %v2067
    %2911 = vmatprep.subr.bf16.mxu0 %v2076
    %2912 = vmatpush1.bf16.msra.mxu0 %v2075
    %2913 = vmatprep.subr.bf16.mxu0 %v2084
    %2914 = vmatpush1.bf16.msra.mxu0 %v2083
    %2915 = vmatprep.subr.bf16.mxu0 %v2092
    %2916 = vmatpush1.bf16.msra.mxu0 %v2091
    %2917 = vmatprep.subr.bf16.mxu0 %v2100
    %2918 = vmatpush1.bf16.msra.mxu0 %v2099
    %2919 = vmatprep.subr.bf16.mxu0 %v2108
    %2920 = vmatpush1.bf16.msra.mxu0 %v2107
    %2921 = vmatprep.subr.bf16.mxu0 %v2116
    %2922 = vmatpush1.bf16.msra.mxu0 %v2115
    %2923 = vmatprep.mubr.bf16.mxu0 %v638
    %2924 = vmatmul.mubr.bf16.gmra.mrb[0].mxu0 %v637
    %v2925 = vpop.f32.mrb[0].mxu0
    %v2926 = vadd.f32 %v578, %v2925
    %v2927 = vpop.f32.mrb[0].mxu0
    %v2928 = vadd.f32 %v582, %v2927
    %v2929 = vpop.f32.mrb[0].mxu0
    %v2930 = vadd.f32 %v578, %v2929
    %v2931 = vpop.f32.mrb[0].mxu0
    %v2932 = vadd.f32 %v582, %v2931
    %2933 = vdwg.mxu0
    %2934 = vmatprep.subr.bf16.mxu0 %v2124
    %2935 = vmatpush1.bf16.msra.mxu0 %v2123
    %2936 = vmatprep.subr.bf16.mxu0 %v2132
    %2937 = vmatpush1.bf16.msra.mxu0 %v2131
    %2938 = vmatprep.subr.bf16.mxu0 %v2140
    %2939 = vmatpush1.bf16.msra.mxu0 %v2139
    %2940 = vmatprep.subr.bf16.mxu0 %v2148
    %2941 = vmatpush1.bf16.msra.mxu0 %v2147
    %2942 = vmatprep.subr.bf16.mxu0 %v2156
    %2943 = vmatpush1.bf16.msra.mxu0 %v2155
    %2944 = vmatprep.subr.bf16.mxu0 %v2164
    %2945 = vmatpush1.bf16.msra.mxu0 %v2163
    %2946 = vmatprep.subr.bf16.mxu0 %v2172
    %2947 = vmatpush1.bf16.msra.mxu0 %v2171
    %2948 = vmatprep.subr.bf16.mxu0 %v2180
    %2949 = vmatpush1.bf16.msra.mxu0 %v2179
    %2950 = vmatprep.subr.bf16.mxu0 %v2188
    %2951 = vmatpush1.bf16.msra.mxu0 %v2187
    %2952 = vmatprep.subr.bf16.mxu0 %v2196
    %2953 = vmatpush1.bf16.msra.mxu0 %v2195
    %2954 = vmatprep.subr.bf16.mxu0 %v2204
    %2955 = vmatpush1.bf16.msra.mxu0 %v2203
    %2956 = vmatprep.subr.bf16.mxu0 %v2212
    %2957 = vmatpush1.bf16.msra.mxu0 %v2211
    %2958 = vmatprep.subr.bf16.mxu0 %v2220
    %2959 = vmatpush1.bf16.msra.mxu0 %v2219
    %2960 = vmatprep.subr.bf16.mxu0 %v2228
    %2961 = vmatpush1.bf16.msra.mxu0 %v2227
    %2962 = vmatprep.subr.bf16.mxu0 %v2236
    %2963 = vmatpush1.bf16.msra.mxu0 %v2235
    %2964 = vmatprep.subr.bf16.mxu0 %v2244
    %2965 = vmatpush1.bf16.msra.mxu0 %v2243
    %2966 = vmatprep.mubr.bf16.mxu0 %v640
    %2967 = vmatmul.mubr.bf16.gmra.mrb[0].mxu0 %v639
    %v2968 = vpop.f32.mrb[0].mxu0
    %v2969 = vadd.f32 %v2926, %v2968
    %v2970 = vpop.f32.mrb[0].mxu0
    %v2971 = vadd.f32 %v2928, %v2970
    %v2972 = vpop.f32.mrb[0].mxu0
    %v2973 = vadd.f32 %v2930, %v2972
    %v2974 = vpop.f32.mrb[0].mxu0
    %v2975 = vadd.f32 %v2932, %v2974
    %2976 = vdwg.mxu0
    %2977 = vmatprep.subr.bf16.mxu0 %v2252
    %2978 = vmatpush1.bf16.msra.mxu0 %v2251
    %2979 = vmatprep.subr.bf16.mxu0 %v2260
    %2980 = vmatpush1.bf16.msra.mxu0 %v2259
    %2981 = vmatprep.subr.bf16.mxu0 %v2268
    %2982 = vmatpush1.bf16.msra.mxu0 %v2267
    %2983 = vmatprep.subr.bf16.mxu0 %v2276
    %2984 = vmatpush1.bf16.msra.mxu0 %v2275
    %2985 = vmatprep.subr.bf16.mxu0 %v2284
    %2986 = vmatpush1.bf16.msra.mxu0 %v2283
    %2987 = vmatprep.subr.bf16.mxu0 %v2292
    %2988 = vmatpush1.bf16.msra.mxu0 %v2291
    %2989 = vmatprep.subr.bf16.mxu0 %v2300
    %2990 = vmatpush1.bf16.msra.mxu0 %v2299
    %2991 = vmatprep.subr.bf16.mxu0 %v2308
    %2992 = vmatpush1.bf16.msra.mxu0 %v2307
    %2993 = vmatprep.subr.bf16.mxu0 %v2316
    %2994 = vmatpush1.bf16.msra.mxu0 %v2315
    %2995 = vmatprep.subr.bf16.mxu0 %v2324
    %2996 = vmatpush1.bf16.msra.mxu0 %v2323
    %2997 = vmatprep.subr.bf16.mxu0 %v2332
    %2998 = vmatpush1.bf16.msra.mxu0 %v2331
    %2999 = vmatprep.subr.bf16.mxu0 %v2340
    %3000 = vmatpush1.bf16.msra.mxu0 %v2339
    %3001 = vmatprep.subr.bf16.mxu0 %v2348
    %3002 = vmatpush1.bf16.msra.mxu0 %v2347
    %3003 = vmatprep.subr.bf16.mxu0 %v2356
    %3004 = vmatpush1.bf16.msra.mxu0 %v2355
    %3005 = vmatprep.subr.bf16.mxu0 %v2364
    %3006 = vmatpush1.bf16.msra.mxu0 %v2363
    %3007 = vmatprep.subr.bf16.mxu0 %v2372
    %3008 = vmatpush1.bf16.msra.mxu0 %v2371
    %3009 = vmatprep.mubr.bf16.mxu0 %v642
    %3010 = vmatmul.mubr.bf16.gmra.mrb[0].mxu0 %v641
    %v3011 = vpop.f32.mrb[0].mxu0
    %v3012 = vadd.f32 %v2969, %v3011
    %v3013 = vpop.f32.mrb[0].mxu0
    %v3014 = vadd.f32 %v2971, %v3013
    %v3015 = vpop.f32.mrb[0].mxu0
    %v3016 = vadd.f32 %v2973, %v3015
    %v3017 = vpop.f32.mrb[0].mxu0
    %v3018 = vadd.f32 %v2975, %v3017
    %3019 = vdwg.mxu0
    %3020 = vmatprep.subr.bf16.mxu0 %v2380
    %3021 = vmatpush1.bf16.msra.mxu0 %v2379
    %3022 = vmatprep.subr.bf16.mxu0 %v2388
    %3023 = vmatpush1.bf16.msra.mxu0 %v2387
    %3024 = vmatprep.subr.bf16.mxu0 %v2396
    %3025 = vmatpush1.bf16.msra.mxu0 %v2395
    %3026 = vmatprep.subr.bf16.mxu0 %v2404
    %3027 = vmatpush1.bf16.msra.mxu0 %v2403
    %3028 = vmatprep.subr.bf16.mxu0 %v2412
    %3029 = vmatpush1.bf16.msra.mxu0 %v2411
    %3030 = vmatprep.subr.bf16.mxu0 %v2420
    %3031 = vmatpush1.bf16.msra.mxu0 %v2419
    %3032 = vmatprep.subr.bf16.mxu0 %v2428
    %3033 = vmatpush1.bf16.msra.mxu0 %v2427
    %3034 = vmatprep.subr.bf16.mxu0 %v2436
    %3035 = vmatpush1.bf16.msra.mxu0 %v2435
    %3036 = vmatprep.subr.bf16.mxu0 0
    %3037 = vmatpush1.bf16.msra.mxu0 0
    %3038 = vmatprep.subr.bf16.mxu0 0
    %3039 = vmatpush1.bf16.msra.mxu0 0
    %3040 = vmatprep.subr.bf16.mxu0 0
    %3041 = vmatpush1.bf16.msra.mxu0 0
    %3042 = vmatprep.subr.bf16.mxu0 0
    %3043 = vmatpush1.bf16.msra.mxu0 0
    %3044 = vmatprep.subr.bf16.mxu0 0
    %3045 = vmatpush1.bf16.msra.mxu0 0
    %3046 = vmatprep.subr.bf16.mxu0 0
    %3047 = vmatpush1.bf16.msra.mxu0 0
    %3048 = vmatprep.subr.bf16.mxu0 0
    %3049 = vmatpush1.bf16.msra.mxu0 0
    %3050 = vmatprep.subr.bf16.mxu0 0
    %3051 = vmatpush1.bf16.msra.mxu0 0
    %3052 = vmatprep.mubr.bf16.mxu0 0
    %3053 = vmatmul.mubr.bf16.gmra.mrb[0].mxu0 %v643
    %v3054 = vpop.f32.mrb[0].mxu0
    %v3055 = vadd.f32 %v3012, %v3054
    %v3056 = vpop.f32.mrb[0].mxu0
    %v3057 = vadd.f32 %v3014, %v3056
    %v3058 = vpop.f32.mrb[0].mxu0
    %v3059 = vadd.f32 %v3016, %v3058
    %v3060 = vpop.f32.mrb[0].mxu0
    %v3061 = vadd.f32 %v3018, %v3060
    %3062 = vdwg.mxu0
    %3063 = vmatprep.subr.bf16.mxu0 %v1998
    %3064 = vmatpush1.bf16.msra.mxu0 %v1997
    %3065 = vmatprep.subr.bf16.mxu0 %v2006
    %3066 = vmatpush1.bf16.msra.mxu0 %v2005
    %3067 = vmatprep.subr.bf16.mxu0 %v2014
    %3068 = vmatpush1.bf16.msra.mxu0 %v2013
    %3069 = vmatprep.subr.bf16.mxu0 %v2022
    %3070 = vmatpush1.bf16.msra.mxu0 %v2021
    %3071 = vmatprep.subr.bf16.mxu0 %v2030
    %3072 = vmatpush1.bf16.msra.mxu0 %v2029
    %3073 = vmatprep.subr.bf16.mxu0 %v2038
    %3074 = vmatpush1.bf16.msra.mxu0 %v2037
    %3075 = vmatprep.subr.bf16.mxu0 %v2046
    %3076 = vmatpush1.bf16.msra.mxu0 %v2045
    %3077 = vmatprep.subr.bf16.mxu0 %v2054
    %3078 = vmatpush1.bf16.msra.mxu0 %v2053
    %3079 = vmatprep.subr.bf16.mxu0 %v2062
    %3080 = vmatpush1.bf16.msra.mxu0 %v2061
    %3081 = vmatprep.subr.bf16.mxu0 %v2070
    %3082 = vmatpush1.bf16.msra.mxu0 %v2069
    %3083 = vmatprep.subr.bf16.mxu0 %v2078
    %3084 = vmatpush1.bf16.msra.mxu0 %v2077
    %3085 = vmatprep.subr.bf16.mxu0 %v2086
    %3086 = vmatpush1.bf16.msra.mxu0 %v2085
    %3087 = vmatprep.subr.bf16.mxu0 %v2094
    %3088 = vmatpush1.bf16.msra.mxu0 %v2093
    %3089 = vmatprep.subr.bf16.mxu0 %v2102
    %3090 = vmatpush1.bf16.msra.mxu0 %v2101
    %3091 = vmatprep.subr.bf16.mxu0 %v2110
    %3092 = vmatpush1.bf16.msra.mxu0 %v2109
    %3093 = vmatprep.subr.bf16.mxu0 %v2118
    %3094 = vmatpush1.bf16.msra.mxu0 %v2117
    %3095 = vmatprep.mubr.bf16.mxu0 %v638
    %3096 = vmatmul.mubr.bf16.gmra.mrb[0].mxu0 %v637
    %v3097 = vpop.f32.mrb[0].mxu0
    %v3098 = vadd.f32 %v586, %v3097
    %v3099 = vpop.f32.mrb[0].mxu0
    %v3100 = vadd.f32 %v590, %v3099
    %v3101 = vpop.f32.mrb[0].mxu0
    %v3102 = vadd.f32 %v586, %v3101
    %v3103 = vpop.f32.mrb[0].mxu0
    %v3104 = vadd.f32 %v590, %v3103
    %3105 = vdwg.mxu0
    %3106 = vmatprep.subr.bf16.mxu0 %v2126
    %3107 = vmatpush1.bf16.msra.mxu0 %v2125
    %3108 = vmatprep.subr.bf16.mxu0 %v2134
    %3109 = vmatpush1.bf16.msra.mxu0 %v2133
    %3110 = vmatprep.subr.bf16.mxu0 %v2142
    %3111 = vmatpush1.bf16.msra.mxu0 %v2141
    %3112 = vmatprep.subr.bf16.mxu0 %v2150
    %3113 = vmatpush1.bf16.msra.mxu0 %v2149
    %3114 = vmatprep.subr.bf16.mxu0 %v2158
    %3115 = vmatpush1.bf16.msra.mxu0 %v2157
    %3116 = vmatprep.subr.bf16.mxu0 %v2166
    %3117 = vmatpush1.bf16.msra.mxu0 %v2165
    %3118 = vmatprep.subr.bf16.mxu0 %v2174
    %3119 = vmatpush1.bf16.msra.mxu0 %v2173
    %3120 = vmatprep.subr.bf16.mxu0 %v2182
    %3121 = vmatpush1.bf16.msra.mxu0 %v2181
    %3122 = vmatprep.subr.bf16.mxu0 %v2190
    %3123 = vmatpush1.bf16.msra.mxu0 %v2189
    %3124 = vmatprep.subr.bf16.mxu0 %v2198
    %3125 = vmatpush1.bf16.msra.mxu0 %v2197
    %3126 = vmatprep.subr.bf16.mxu0 %v2206
    %3127 = vmatpush1.bf16.msra.mxu0 %v2205
    %3128 = vmatprep.subr.bf16.mxu0 %v2214
    %3129 = vmatpush1.bf16.msra.mxu0 %v2213
    %3130 = vmatprep.subr.bf16.mxu0 %v2222
    %3131 = vmatpush1.bf16.msra.mxu0 %v2221
    %3132 = vmatprep.subr.bf16.mxu0 %v2230
    %3133 = vmatpush1.bf16.msra.mxu0 %v2229
    %3134 = vmatprep.subr.bf16.mxu0 %v2238
    %3135 = vmatpush1.bf16.msra.mxu0 %v2237
    %3136 = vmatprep.subr.bf16.mxu0 %v2246
    %3137 = vmatpush1.bf16.msra.mxu0 %v2245
    %3138 = vmatprep.mubr.bf16.mxu0 %v640
    %3139 = vmatmul.mubr.bf16.gmra.mrb[0].mxu0 %v639
    %v3140 = vpop.f32.mrb[0].mxu0
    %v3141 = vadd.f32 %v3098, %v3140
    %v3142 = vpop.f32.mrb[0].mxu0
    %v3143 = vadd.f32 %v3100, %v3142
    %v3144 = vpop.f32.mrb[0].mxu0
    %v3145 = vadd.f32 %v3102, %v3144
    %v3146 = vpop.f32.mrb[0].mxu0
    %v3147 = vadd.f32 %v3104, %v3146
    %3148 = vdwg.mxu0
    %3149 = vmatprep.subr.bf16.mxu0 %v2254
    %3150 = vmatpush1.bf16.msra.mxu0 %v2253
    %3151 = vmatprep.subr.bf16.mxu0 %v2262
    %3152 = vmatpush1.bf16.msra.mxu0 %v2261
    %3153 = vmatprep.subr.bf16.mxu0 %v2270
    %3154 = vmatpush1.bf16.msra.mxu0 %v2269
    %3155 = vmatprep.subr.bf16.mxu0 %v2278
    %3156 = vmatpush1.bf16.msra.mxu0 %v2277
    %3157 = vmatprep.subr.bf16.mxu0 %v2286
    %3158 = vmatpush1.bf16.msra.mxu0 %v2285
    %3159 = vmatprep.subr.bf16.mxu0 %v2294
    %3160 = vmatpush1.bf16.msra.mxu0 %v2293
    %3161 = vmatprep.subr.bf16.mxu0 %v2302
    %3162 = vmatpush1.bf16.msra.mxu0 %v2301
    %3163 = vmatprep.subr.bf16.mxu0 %v2310
    %3164 = vmatpush1.bf16.msra.mxu0 %v2309
    %3165 = vmatprep.subr.bf16.mxu0 %v2318
    %3166 = vmatpush1.bf16.msra.mxu0 %v2317
    %3167 = vmatprep.subr.bf16.mxu0 %v2326
    %3168 = vmatpush1.bf16.msra.mxu0 %v2325
    %3169 = vmatprep.subr.bf16.mxu0 %v2334
    %3170 = vmatpush1.bf16.msra.mxu0 %v2333
    %3171 = vmatprep.subr.bf16.mxu0 %v2342
    %3172 = vmatpush1.bf16.msra.mxu0 %v2341
    %3173 = vmatprep.subr.bf16.mxu0 %v2350
    %3174 = vmatpush1.bf16.msra.mxu0 %v2349
    %3175 = vmatprep.subr.bf16.mxu0 %v2358
    %3176 = vmatpush1.bf16.msra.mxu0 %v2357
    %3177 = vmatprep.subr.bf16.mxu0 %v2366
    %3178 = vmatpush1.bf16.msra.mxu0 %v2365
    %3179 = vmatprep.subr.bf16.mxu0 %v2374
    %3180 = vmatpush1.bf16.msra.mxu0 %v2373
    %3181 = vmatprep.mubr.bf16.mxu0 %v642
    %3182 = vmatmul.mubr.bf16.gmra.mrb[0].mxu0 %v641
    %v3183 = vpop.f32.mrb[0].mxu0
    %v3184 = vadd.f32 %v3141, %v3183
    %v3185 = vpop.f32.mrb[0].mxu0
    %v3186 = vadd.f32 %v3143, %v3185
    %v3187 = vpop.f32.mrb[0].mxu0
    %v3188 = vadd.f32 %v3145, %v3187
    %v3189 = vpop.f32.mrb[0].mxu0
    %v3190 = vadd.f32 %v3147, %v3189
    %3191 = vdwg.mxu0
    %3192 = vmatprep.subr.bf16.mxu0 %v2382
    %3193 = vmatpush1.bf16.msra.mxu0 %v2381
    %3194 = vmatprep.subr.bf16.mxu0 %v2390
    %3195 = vmatpush1.bf16.msra.mxu0 %v2389
    %3196 = vmatprep.subr.bf16.mxu0 %v2398
    %3197 = vmatpush1.bf16.msra.mxu0 %v2397
    %3198 = vmatprep.subr.bf16.mxu0 %v2406
    %3199 = vmatpush1.bf16.msra.mxu0 %v2405
    %3200 = vmatprep.subr.bf16.mxu0 %v2414
    %3201 = vmatpush1.bf16.msra.mxu0 %v2413
    %3202 = vmatprep.subr.bf16.mxu0 %v2422
    %3203 = vmatpush1.bf16.msra.mxu0 %v2421
    %3204 = vmatprep.subr.bf16.mxu0 %v2430
    %3205 = vmatpush1.bf16.msra.mxu0 %v2429
    %3206 = vmatprep.subr.bf16.mxu0 %v2438
    %3207 = vmatpush1.bf16.msra.mxu0 %v2437
    %3208 = vmatprep.subr.bf16.mxu0 0
    %3209 = vmatpush1.bf16.msra.mxu0 0
    %3210 = vmatprep.subr.bf16.mxu0 0
    %3211 = vmatpush1.bf16.msra.mxu0 0
    %3212 = vmatprep.subr.bf16.mxu0 0
    %3213 = vmatpush1.bf16.msra.mxu0 0
    %3214 = vmatprep.subr.bf16.mxu0 0
    %3215 = vmatpush1.bf16.msra.mxu0 0
    %3216 = vmatprep.subr.bf16.mxu0 0
    %3217 = vmatpush1.bf16.msra.mxu0 0
    %3218 = vmatprep.subr.bf16.mxu0 0
    %3219 = vmatpush1.bf16.msra.mxu0 0
    %3220 = vmatprep.subr.bf16.mxu0 0
    %3221 = vmatpush1.bf16.msra.mxu0 0
    %3222 = vmatprep.subr.bf16.mxu0 0
    %3223 = vmatpush1.bf16.msra.mxu0 0
    %3224 = vmatprep.mubr.bf16.mxu0 0
    %3225 = vmatmul.mubr.bf16.gmra.mrb[0].mxu0 %v643
    %v3226 = vpop.f32.mrb[0].mxu0
    %v3227 = vadd.f32 %v3184, %v3226
    %v3228 = vpop.f32.mrb[0].mxu0
    %v3229 = vadd.f32 %v3186, %v3228
    %v3230 = vpop.f32.mrb[0].mxu0
    %v3231 = vadd.f32 %v3188, %v3230
    %v3232 = vpop.f32.mrb[0].mxu0
    %v3233 = vadd.f32 %v3190, %v3232
    %3234 = vdwg.mxu0
    %3235 = vmatprep.subr.bf16.mxu0 %v2000
    %3236 = vmatpush1.bf16.msra.mxu0 %v1999
    %3237 = vmatprep.subr.bf16.mxu0 %v2008
    %3238 = vmatpush1.bf16.msra.mxu0 %v2007
    %3239 = vmatprep.subr.bf16.mxu0 %v2016
    %3240 = vmatpush1.bf16.msra.mxu0 %v2015
    %3241 = vmatprep.subr.bf16.mxu0 %v2024
    %3242 = vmatpush1.bf16.msra.mxu0 %v2023
    %3243 = vmatprep.subr.bf16.mxu0 %v2032
    %3244 = vmatpush1.bf16.msra.mxu0 %v2031
    %3245 = vmatprep.subr.bf16.mxu0 %v2040
    %3246 = vmatpush1.bf16.msra.mxu0 %v2039
    %3247 = vmatprep.subr.bf16.mxu0 %v2048
    %3248 = vmatpush1.bf16.msra.mxu0 %v2047
    %3249 = vmatprep.subr.bf16.mxu0 %v2056
    %3250 = vmatpush1.bf16.msra.mxu0 %v2055
    %3251 = vmatprep.subr.bf16.mxu0 %v2064
    %3252 = vmatpush1.bf16.msra.mxu0 %v2063
    %3253 = vmatprep.subr.bf16.mxu0 %v2072
    %3254 = vmatpush1.bf16.msra.mxu0 %v2071
    %3255 = vmatprep.subr.bf16.mxu0 %v2080
    %3256 = vmatpush1.bf16.msra.mxu0 %v2079
    %3257 = vmatprep.subr.bf16.mxu0 %v2088
    %3258 = vmatpush1.bf16.msra.mxu0 %v2087
    %3259 = vmatprep.subr.bf16.mxu0 %v2096
    %3260 = vmatpush1.bf16.msra.mxu0 %v2095
    %3261 = vmatprep.subr.bf16.mxu0 %v2104
    %3262 = vmatpush1.bf16.msra.mxu0 %v2103
    %3263 = vmatprep.subr.bf16.mxu0 %v2112
    %3264 = vmatpush1.bf16.msra.mxu0 %v2111
    %3265 = vmatprep.subr.bf16.mxu0 %v2120
    %3266 = vmatpush1.bf16.msra.mxu0 %v2119
    %3267 = vmatprep.mubr.bf16.mxu0 %v638
    %3268 = vmatmul.mubr.bf16.gmra.mrb[0].mxu0 %v637
    %v3269 = vpop.f32.mrb[0].mxu0
    %v3270 = vadd.f32 %v594, %v3269
    %v3271 = vpop.f32.mrb[0].mxu0
    %v3272 = vadd.f32 %v598, %v3271
    %v3273 = vpop.f32.mrb[0].mxu0
    %v3274 = vadd.f32 %v594, %v3273
    %v3275 = vpop.f32.mrb[0].mxu0
    %v3276 = vadd.f32 %v598, %v3275
    %3277 = vdwg.mxu0
    %3278 = vmatprep.subr.bf16.mxu0 %v2128
    %3279 = vmatpush1.bf16.msra.mxu0 %v2127
    %3280 = vmatprep.subr.bf16.mxu0 %v2136
    %3281 = vmatpush1.bf16.msra.mxu0 %v2135
    %3282 = vmatprep.subr.bf16.mxu0 %v2144
    %3283 = vmatpush1.bf16.msra.mxu0 %v2143
    %3284 = vmatprep.subr.bf16.mxu0 %v2152
    %3285 = vmatpush1.bf16.msra.mxu0 %v2151
    %3286 = vmatprep.subr.bf16.mxu0 %v2160
    %3287 = vmatpush1.bf16.msra.mxu0 %v2159
    %3288 = vmatprep.subr.bf16.mxu0 %v2168
    %3289 = vmatpush1.bf16.msra.mxu0 %v2167
    %3290 = vmatprep.subr.bf16.mxu0 %v2176
    %3291 = vmatpush1.bf16.msra.mxu0 %v2175
    %3292 = vmatprep.subr.bf16.mxu0 %v2184
    %3293 = vmatpush1.bf16.msra.mxu0 %v2183
    %3294 = vmatprep.subr.bf16.mxu0 %v2192
    %3295 = vmatpush1.bf16.msra.mxu0 %v2191
    %3296 = vmatprep.subr.bf16.mxu0 %v2200
    %3297 = vmatpush1.bf16.msra.mxu0 %v2199
    %3298 = vmatprep.subr.bf16.mxu0 %v2208
    %3299 = vmatpush1.bf16.msra.mxu0 %v2207
    %3300 = vmatprep.subr.bf16.mxu0 %v2216
    %3301 = vmatpush1.bf16.msra.mxu0 %v2215
    %3302 = vmatprep.subr.bf16.mxu0 %v2224
    %3303 = vmatpush1.bf16.msra.mxu0 %v2223
    %3304 = vmatprep.subr.bf16.mxu0 %v2232
    %3305 = vmatpush1.bf16.msra.mxu0 %v2231
    %3306 = vmatprep.subr.bf16.mxu0 %v2240
    %3307 = vmatpush1.bf16.msra.mxu0 %v2239
    %3308 = vmatprep.subr.bf16.mxu0 %v2248
    %3309 = vmatpush1.bf16.msra.mxu0 %v2247
    %3310 = vmatprep.mubr.bf16.mxu0 %v640
    %3311 = vmatmul.mubr.bf16.gmra.mrb[0].mxu0 %v639
    %v3312 = vpop.f32.mrb[0].mxu0
    %v3313 = vadd.f32 %v3270, %v3312
    %v3314 = vpop.f32.mrb[0].mxu0
    %v3315 = vadd.f32 %v3272, %v3314
    %v3316 = vpop.f32.mrb[0].mxu0
    %v3317 = vadd.f32 %v3274, %v3316
    %v3318 = vpop.f32.mrb[0].mxu0
    %v3319 = vadd.f32 %v3276, %v3318
    %3320 = vdwg.mxu0
    %3321 = vmatprep.subr.bf16.mxu0 %v2256
    %3322 = vmatpush1.bf16.msra.mxu0 %v2255
    %3323 = vmatprep.subr.bf16.mxu0 %v2264
    %3324 = vmatpush1.bf16.msra.mxu0 %v2263
    %3325 = vmatprep.subr.bf16.mxu0 %v2272
    %3326 = vmatpush1.bf16.msra.mxu0 %v2271
    %3327 = vmatprep.subr.bf16.mxu0 %v2280
    %3328 = vmatpush1.bf16.msra.mxu0 %v2279
    %3329 = vmatprep.subr.bf16.mxu0 %v2288
    %3330 = vmatpush1.bf16.msra.mxu0 %v2287
    %3331 = vmatprep.subr.bf16.mxu0 %v2296
    %3332 = vmatpush1.bf16.msra.mxu0 %v2295
    %3333 = vmatprep.subr.bf16.mxu0 %v2304
    %3334 = vmatpush1.bf16.msra.mxu0 %v2303
    %3335 = vmatprep.subr.bf16.mxu0 %v2312
    %3336 = vmatpush1.bf16.msra.mxu0 %v2311
    %3337 = vmatprep.subr.bf16.mxu0 %v2320
    %3338 = vmatpush1.bf16.msra.mxu0 %v2319
    %3339 = vmatprep.subr.bf16.mxu0 %v2328
    %3340 = vmatpush1.bf16.msra.mxu0 %v2327
    %3341 = vmatprep.subr.bf16.mxu0 %v2336
    %3342 = vmatpush1.bf16.msra.mxu0 %v2335
    %3343 = vmatprep.subr.bf16.mxu0 %v2344
    %3344 = vmatpush1.bf16.msra.mxu0 %v2343
    %3345 = vmatprep.subr.bf16.mxu0 %v2352
    %3346 = vmatpush1.bf16.msra.mxu0 %v2351
    %3347 = vmatprep.subr.bf16.mxu0 %v2360
    %3348 = vmatpush1.bf16.msra.mxu0 %v2359
    %3349 = vmatprep.subr.bf16.mxu0 %v2368
    %3350 = vmatpush1.bf16.msra.mxu0 %v2367
    %3351 = vmatprep.subr.bf16.mxu0 %v2376
    %3352 = vmatpush1.bf16.msra.mxu0 %v2375
    %3353 = vmatprep.mubr.bf16.mxu0 %v642
    %3354 = vmatmul.mubr.bf16.gmra.mrb[0].mxu0 %v641
    %v3355 = vpop.f32.mrb[0].mxu0
    %v3356 = vadd.f32 %v3313, %v3355
    %v3357 = vpop.f32.mrb[0].mxu0
    %v3358 = vadd.f32 %v3315, %v3357
    %v3359 = vpop.f32.mrb[0].mxu0
    %v3360 = vadd.f32 %v3317, %v3359
    %v3361 = vpop.f32.mrb[0].mxu0
    %v3362 = vadd.f32 %v3319, %v3361
    %3363 = vdwg.mxu0
    %3364 = vmatprep.subr.bf16.mxu0 %v2384
    %3365 = vmatpush1.bf16.msra.mxu0 %v2383
    %3366 = vmatprep.subr.bf16.mxu0 %v2392
    %3367 = vmatpush1.bf16.msra.mxu0 %v2391
    %3368 = vmatprep.subr.bf16.mxu0 %v2400
    %3369 = vmatpush1.bf16.msra.mxu0 %v2399
    %3370 = vmatprep.subr.bf16.mxu0 %v2408
    %3371 = vmatpush1.bf16.msra.mxu0 %v2407
    %3372 = vmatprep.subr.bf16.mxu0 %v2416
    %3373 = vmatpush1.bf16.msra.mxu0 %v2415
    %3374 = vmatprep.subr.bf16.mxu0 %v2424
    %3375 = vmatpush1.bf16.msra.mxu0 %v2423
    %3376 = vmatprep.subr.bf16.mxu0 %v2432
    %3377 = vmatpush1.bf16.msra.mxu0 %v2431
    %3378 = vmatprep.subr.bf16.mxu0 %v2440
    %3379 = vmatpush1.bf16.msra.mxu0 %v2439
    %3380 = vmatprep.subr.bf16.mxu0 0
    %3381 = vmatpush1.bf16.msra.mxu0 0
    %3382 = vmatprep.subr.bf16.mxu0 0
    %3383 = vmatpush1.bf16.msra.mxu0 0
    %3384 = vmatprep.subr.bf16.mxu0 0
    %3385 = vmatpush1.bf16.msra.mxu0 0
    %3386 = vmatprep.subr.bf16.mxu0 0
    %3387 = vmatpush1.bf16.msra.mxu0 0
    %3388 = vmatprep.subr.bf16.mxu0 0
    %3389 = vmatpush1.bf16.msra.mxu0 0
    %3390 = vmatprep.subr.bf16.mxu0 0
    %3391 = vmatpush1.bf16.msra.mxu0 0
    %3392 = vmatprep.subr.bf16.mxu0 0
    %3393 = vmatpush1.bf16.msra.mxu0 0
    %3394 = vmatprep.subr.bf16.mxu0 0
    %3395 = vmatpush1.bf16.msra.mxu0 0
    %3396 = vmatprep.mubr.bf16.mxu0 0
    %3397 = vmatmul.mubr.bf16.gmra.mrb[0].mxu0 %v643
    %v3398 = vpop.f32.mrb[0].mxu0
    %v3399 = vadd.f32 %v3356, %v3398
    %v3400 = vpop.f32.mrb[0].mxu0
    %v3401 = vadd.f32 %v3358, %v3400
    %v3402 = vpop.f32.mrb[0].mxu0
    %v3403 = vadd.f32 %v3360, %v3402
    %v3404 = vpop.f32.mrb[0].mxu0
    %v3405 = vadd.f32 %v3362, %v3404
    %3406 = vdwg.mxu0
    %3407 = vmatprep.subr.bf16.mxu0 %v2002
    %3408 = vmatpush1.bf16.msra.mxu0 %v2001
    %3409 = vmatprep.subr.bf16.mxu0 %v2010
    %3410 = vmatpush1.bf16.msra.mxu0 %v2009
    %3411 = vmatprep.subr.bf16.mxu0 %v2018
    %3412 = vmatpush1.bf16.msra.mxu0 %v2017
    %3413 = vmatprep.subr.bf16.mxu0 %v2026
    %3414 = vmatpush1.bf16.msra.mxu0 %v2025
    %3415 = vmatprep.subr.bf16.mxu0 %v2034
    %3416 = vmatpush1.bf16.msra.mxu0 %v2033
    %3417 = vmatprep.subr.bf16.mxu0 %v2042
    %3418 = vmatpush1.bf16.msra.mxu0 %v2041
    %3419 = vmatprep.subr.bf16.mxu0 %v2050
    %3420 = vmatpush1.bf16.msra.mxu0 %v2049
    %3421 = vmatprep.subr.bf16.mxu0 %v2058
    %3422 = vmatpush1.bf16.msra.mxu0 %v2057
    %3423 = vmatprep.subr.bf16.mxu0 %v2066
    %3424 = vmatpush1.bf16.msra.mxu0 %v2065
    %3425 = vmatprep.subr.bf16.mxu0 %v2074
    %3426 = vmatpush1.bf16.msra.mxu0 %v2073
    %3427 = vmatprep.subr.bf16.mxu0 %v2082
    %3428 = vmatpush1.bf16.msra.mxu0 %v2081
    %3429 = vmatprep.subr.bf16.mxu0 %v2090
    %3430 = vmatpush1.bf16.msra.mxu0 %v2089
    %3431 = vmatprep.subr.bf16.mxu0 %v2098
    %3432 = vmatpush1.bf16.msra.mxu0 %v2097
    %3433 = vmatprep.subr.bf16.mxu0 %v2106
    %3434 = vmatpush1.bf16.msra.mxu0 %v2105
    %3435 = vmatprep.subr.bf16.mxu0 %v2114
    %3436 = vmatpush1.bf16.msra.mxu0 %v2113
    %3437 = vmatprep.subr.bf16.mxu0 %v2122
    %3438 = vmatpush1.bf16.msra.mxu0 %v2121
    %3439 = vmatprep.mubr.bf16.mxu0 %v638
    %3440 = vmatmul.mubr.bf16.gmra.mrb[0].mxu0 %v637
    %v3441 = vpop.f32.mrb[0].mxu0
    %v3442 = vadd.f32 %v602, %v3441
    %v3443 = vpop.f32.mrb[0].mxu0
    %v3444 = vadd.f32 %v606, %v3443
    %v3445 = vpop.f32.mrb[0].mxu0
    %v3446 = vadd.f32 %v602, %v3445
    %v3447 = vpop.f32.mrb[0].mxu0
    %v3448 = vadd.f32 %v606, %v3447
    %3449 = vdwg.mxu0
    %3450 = vmatprep.subr.bf16.mxu0 %v2130
    %3451 = vmatpush1.bf16.msra.mxu0 %v2129
    %3452 = vmatprep.subr.bf16.mxu0 %v2138
    %3453 = vmatpush1.bf16.msra.mxu0 %v2137
    %3454 = vmatprep.subr.bf16.mxu0 %v2146
    %3455 = vmatpush1.bf16.msra.mxu0 %v2145
    %3456 = vmatprep.subr.bf16.mxu0 %v2154
    %3457 = vmatpush1.bf16.msra.mxu0 %v2153
    %3458 = vmatprep.subr.bf16.mxu0 %v2162
    %3459 = vmatpush1.bf16.msra.mxu0 %v2161
    %3460 = vmatprep.subr.bf16.mxu0 %v2170
    %3461 = vmatpush1.bf16.msra.mxu0 %v2169
    %3462 = vmatprep.subr.bf16.mxu0 %v2178
    %3463 = vmatpush1.bf16.msra.mxu0 %v2177
    %3464 = vmatprep.subr.bf16.mxu0 %v2186
    %3465 = vmatpush1.bf16.msra.mxu0 %v2185
    %3466 = vmatprep.subr.bf16.mxu0 %v2194
    %3467 = vmatpush1.bf16.msra.mxu0 %v2193
    %3468 = vmatprep.subr.bf16.mxu0 %v2202
    %3469 = vmatpush1.bf16.msra.mxu0 %v2201
    %3470 = vmatprep.subr.bf16.mxu0 %v2210
    %3471 = vmatpush1.bf16.msra.mxu0 %v2209
    %3472 = vmatprep.subr.bf16.mxu0 %v2218
    %3473 = vmatpush1.bf16.msra.mxu0 %v2217
    %3474 = vmatprep.subr.bf16.mxu0 %v2226
    %3475 = vmatpush1.bf16.msra.mxu0 %v2225
    %3476 = vmatprep.subr.bf16.mxu0 %v2234
    %3477 = vmatpush1.bf16.msra.mxu0 %v2233
    %3478 = vmatprep.subr.bf16.mxu0 %v2242
    %3479 = vmatpush1.bf16.msra.mxu0 %v2241
    %3480 = vmatprep.subr.bf16.mxu0 %v2250
    %3481 = vmatpush1.bf16.msra.mxu0 %v2249
    %3482 = vmatprep.mubr.bf16.mxu0 %v640
    %3483 = vmatmul.mubr.bf16.gmra.mrb[0].mxu0 %v639
    %v3484 = vpop.f32.mrb[0].mxu0
    %v3485 = vadd.f32 %v3442, %v3484
    %v3486 = vpop.f32.mrb[0].mxu0
    %v3487 = vadd.f32 %v3444, %v3486
    %v3488 = vpop.f32.mrb[0].mxu0
    %v3489 = vadd.f32 %v3446, %v3488
    %v3490 = vpop.f32.mrb[0].mxu0
    %v3491 = vadd.f32 %v3448, %v3490
    %3492 = vdwg.mxu0
    %3493 = vmatprep.subr.bf16.mxu0 %v2258
    %3494 = vmatpush1.bf16.msra.mxu0 %v2257
    %3495 = vmatprep.subr.bf16.mxu0 %v2266
    %3496 = vmatpush1.bf16.msra.mxu0 %v2265
    %3497 = vmatprep.subr.bf16.mxu0 %v2274
    %3498 = vmatpush1.bf16.msra.mxu0 %v2273
    %3499 = vmatprep.subr.bf16.mxu0 %v2282
    %3500 = vmatpush1.bf16.msra.mxu0 %v2281
    %3501 = vmatprep.subr.bf16.mxu0 %v2290
    %3502 = vmatpush1.bf16.msra.mxu0 %v2289
    %3503 = vmatprep.subr.bf16.mxu0 %v2298
    %3504 = vmatpush1.bf16.msra.mxu0 %v2297
    %3505 = vmatprep.subr.bf16.mxu0 %v2306
    %3506 = vmatpush1.bf16.msra.mxu0 %v2305
    %3507 = vmatprep.subr.bf16.mxu0 %v2314
    %3508 = vmatpush1.bf16.msra.mxu0 %v2313
    %3509 = vmatprep.subr.bf16.mxu0 %v2322
    %3510 = vmatpush1.bf16.msra.mxu0 %v2321
    %3511 = vmatprep.subr.bf16.mxu0 %v2330
    %3512 = vmatpush1.bf16.msra.mxu0 %v2329
    %3513 = vmatprep.subr.bf16.mxu0 %v2338
    %3514 = vmatpush1.bf16.msra.mxu0 %v2337
    %3515 = vmatprep.subr.bf16.mxu0 %v2346
    %3516 = vmatpush1.bf16.msra.mxu0 %v2345
    %3517 = vmatprep.subr.bf16.mxu0 %v2354
    %3518 = vmatpush1.bf16.msra.mxu0 %v2353
    %3519 = vmatprep.subr.bf16.mxu0 %v2362
    %3520 = vmatpush1.bf16.msra.mxu0 %v2361
    %3521 = vmatprep.subr.bf16.mxu0 %v2370
    %3522 = vmatpush1.bf16.msra.mxu0 %v2369
    %3523 = vmatprep.subr.bf16.mxu0 %v2378
    %3524 = vmatpush1.bf16.msra.mxu0 %v2377
    %3525 = vmatprep.mubr.bf16.mxu0 %v642
    %3526 = vmatmul.mubr.bf16.gmra.mrb[0].mxu0 %v641
    %v3527 = vpop.f32.mrb[0].mxu0
    %v3528 = vadd.f32 %v3485, %v3527
    %v3529 = vpop.f32.mrb[0].mxu0
    %v3530 = vadd.f32 %v3487, %v3529
    %v3531 = vpop.f32.mrb[0].mxu0
    %v3532 = vadd.f32 %v3489, %v3531
    %v3533 = vpop.f32.mrb[0].mxu0
    %v3534 = vadd.f32 %v3491, %v3533
    %3535 = vdwg.mxu0
    %3536 = vmatprep.subr.bf16.mxu0 %v2386
    %3537 = vmatpush1.bf16.msra.mxu0 %v2385
    %3538 = vmatprep.subr.bf16.mxu0 %v2394
    %3539 = vmatpush1.bf16.msra.mxu0 %v2393
    %3540 = vmatprep.subr.bf16.mxu0 %v2402
    %3541 = vmatpush1.bf16.msra.mxu0 %v2401
    %3542 = vmatprep.subr.bf16.mxu0 %v2410
    %3543 = vmatpush1.bf16.msra.mxu0 %v2409
    %3544 = vmatprep.subr.bf16.mxu0 %v2418
    %3545 = vmatpush1.bf16.msra.mxu0 %v2417
    %3546 = vmatprep.subr.bf16.mxu0 %v2426
    %3547 = vmatpush1.bf16.msra.mxu0 %v2425
    %3548 = vmatprep.subr.bf16.mxu0 %v2434
    %3549 = vmatpush1.bf16.msra.mxu0 %v2433
    %3550 = vmatprep.subr.bf16.mxu0 %v2442
    %3551 = vmatpush1.bf16.msra.mxu0 %v2441
    %3552 = vmatprep.subr.bf16.mxu0 0
    %3553 = vmatpush1.bf16.msra.mxu0 0
    %3554 = vmatprep.subr.bf16.mxu0 0
    %3555 = vmatpush1.bf16.msra.mxu0 0
    %3556 = vmatprep.subr.bf16.mxu0 0
    %3557 = vmatpush1.bf16.msra.mxu0 0
    %3558 = vmatprep.subr.bf16.mxu0 0
    %3559 = vmatpush1.bf16.msra.mxu0 0
    %3560 = vmatprep.subr.bf16.mxu0 0
    %3561 = vmatpush1.bf16.msra.mxu0 0
    %3562 = vmatprep.subr.bf16.mxu0 0
    %3563 = vmatpush1.bf16.msra.mxu0 0
    %3564 = vmatprep.subr.bf16.mxu0 0
    %3565 = vmatpush1.bf16.msra.mxu0 0
    %3566 = vmatprep.subr.bf16.mxu0 0
    %3567 = vmatpush1.bf16.msra.mxu0 0
    %3568 = vmatprep.mubr.bf16.mxu0 0
    %3569 = vmatmul.mubr.bf16.gmra.mrb[0].mxu0 %v643
    %v3570 = vpop.f32.mrb[0].mxu0
    %v3571 = vadd.f32 %v3528, %v3570
    %v3572 = vpop.f32.mrb[0].mxu0
    %v3573 = vadd.f32 %v3530, %v3572
    %v3574 = vpop.f32.mrb[0].mxu0
    %v3575 = vadd.f32 %v3532, %v3574
    %v3576 = vpop.f32.mrb[0].mxu0
    %v3577 = vadd.f32 %v3534, %v3576
    %3578 = vdwg.mxu0
    %v3579 = vmax.f32 %v3055, 0.0
    %v3580 = vmax.f32 %v3057, 0.0
    %v3581 = vmax.f32 %v3227, 0.0
    %v3582 = vmax.f32 %v3229, 0.0
    %v3583 = vmax.f32 %v3399, 0.0
    %v3584 = vmax.f32 %v3401, 0.0
    %v3585 = vmax.f32 %v3571, 0.0
    %v3586 = vmax.f32 %v3573, 0.0
    %v3587 = vmax.f32 %v3059, 0.0
    %v3588 = vmax.f32 %v3061, 0.0
    %v3589 = vmax.f32 %v3231, 0.0
    %v3590 = vmax.f32 %v3233, 0.0
    %v3591 = vmax.f32 %v3403, 0.0
    %v3592 = vmax.f32 %v3405, 0.0
    %v3593 = vmax.f32 %v3575, 0.0
    %v3594 = vmax.f32 %v3577, 0.0
    %v3595 = vpack.c.bf16 %v3587, %v3579
    %v3596 = vpack.c.bf16 %v3588, %v3580
    %v3597 = vpack.c.bf16 %v3589, %v3581
    %v3598 = vpack.c.bf16 %v3590, %v3582
    %v3599 = vpack.c.bf16 %v3591, %v3583
    %v3600 = vpack.c.bf16 %v3592, %v3584
    %v3601 = vpack.c.bf16 %v3593, %v3585
    %v3602 = vpack.c.bf16 %v3594, %v3586
    %v3603 = vld [vmem:[#allocation8] sm:$0xff]
    %v3604 = vld [vmem:[#allocation8 + $0x8] sm:$0xff]
    %v3605 = vld [vmem:[#allocation8 + $0x10] sm:$0xff]
    %v3606 = vld [vmem:[#allocation8 + $0x18] sm:$0xff]
    %v3607 = vld [vmem:[#allocation8 + $0x20] sm:$0xff]
    %v3608 = vld [vmem:[#allocation8 + $0x28] sm:$0xff]
    %v3609 = vld [vmem:[#allocation8 + $0x30] sm:$0xff]
    %v3610 = vld [vmem:[#allocation8 + $0x38] sm:$0xff]
    %v3611 = vld [vmem:[#allocation8 + $0x40] sm:$0xff]
    %v3612 = vld [vmem:[#allocation8 + $0x48] sm:$0xff]
    %v3613 = vld [vmem:[#allocation8 + $0x50] sm:$0xff]
    %v3614 = vld [vmem:[#allocation8 + $0x58] sm:$0xff]
    %v3615 = vld [vmem:[#allocation8 + $0x60] sm:$0xff]
    %v3616 = vld [vmem:[#allocation8 + $0x68] sm:$0xff]
    %v3617 = vld [vmem:[#allocation8 + $0x70] sm:$0xff]
    %v3618 = vld [vmem:[#allocation8 + $0x78] sm:$0xff]
    %v3619 = vld [vmem:[#allocation8 + $0x80] sm:$0xff]
    %v3620 = vld [vmem:[#allocation8 + $0x88] sm:$0xff]
    %v3621 = vld [vmem:[#allocation8 + $0x90] sm:$0xff]
    %v3622 = vld [vmem:[#allocation8 + $0x98] sm:$0xff]
    %v3623 = vld [vmem:[#allocation8 + $0xa0] sm:$0xff]
    %v3624 = vld [vmem:[#allocation8 + $0xa8] sm:$0xff]
    %v3625 = vld [vmem:[#allocation8 + $0xb0] sm:$0xff]
    %v3626 = vld [vmem:[#allocation8 + $0xb8] sm:$0xff]
    %v3627 = vld [vmem:[#allocation8 + $0xc0] sm:$0xff]
    %v3628 = vld [vmem:[#allocation8 + $0xc8] sm:$0xff]
    %v3629 = vld [vmem:[#allocation8 + $0xd0] sm:$0xff]
    %v3630 = vld [vmem:[#allocation8 + $0xd8] sm:$0xff]
    %v3631 = vld [vmem:[#allocation8 + $0xe0] sm:$0xff]
    %v3632 = vld [vmem:[#allocation8 + $0xe8] sm:$0xff]
    %v3633 = vld [vmem:[#allocation8 + $0xf0] sm:$0xff]
    %v3634 = vld [vmem:[#allocation8 + $0xf8] sm:$0xff]
    %v3635 = vld [vmem:[#allocation8 + $0x100] sm:$0xff]
    %v3636 = vld [vmem:[#allocation8 + $0x108] sm:$0xff]
    %v3637 = vld [vmem:[#allocation8 + $0x110] sm:$0xff]
    %v3638 = vld [vmem:[#allocation8 + $0x118] sm:$0xff]
    %v3639 = vld [vmem:[#allocation8 + $0x120] sm:$0xff]
    %v3640 = vld [vmem:[#allocation8 + $0x128] sm:$0xff]
    %v3641 = vld [vmem:[#allocation8 + $0x130] sm:$0xff]
    %v3642 = vld [vmem:[#allocation8 + $0x138] sm:$0xff]
    %v3643 = vld [vmem:[#allocation8 + $0x140] sm:$0xff]
    %v3644 = vld [vmem:[#allocation8 + $0x148] sm:$0xff]
    %v3645 = vld [vmem:[#allocation8 + $0x150] sm:$0xff]
    %v3646 = vld [vmem:[#allocation8 + $0x158] sm:$0xff]
    %v3647 = vld [vmem:[#allocation8 + $0x160] sm:$0xff]
    %v3648 = vld [vmem:[#allocation8 + $0x168] sm:$0xff]
    %v3649 = vld [vmem:[#allocation8 + $0x170] sm:$0xff]
    %v3650 = vld [vmem:[#allocation8 + $0x178] sm:$0xff]
    %v3651 = vld [vmem:[#allocation8 + $0x180] sm:$0xff]
    %v3652 = vld [vmem:[#allocation8 + $0x188] sm:$0xff]
    %v3653 = vld [vmem:[#allocation8 + $0x190] sm:$0xff]
    %v3654 = vld [vmem:[#allocation8 + $0x198] sm:$0xff]
    %v3655 = vld [vmem:[#allocation8 + $0x1a0] sm:$0xff]
    %v3656 = vld [vmem:[#allocation8 + $0x1a8] sm:$0xff]
    %v3657 = vld [vmem:[#allocation8 + $0x1b0] sm:$0xff]
    %v3658 = vld [vmem:[#allocation8 + $0x1b8] sm:$0xff]
    %v3659 = vld [vmem:[#allocation8 + $0x1c0] sm:$0xff]
    %v3660 = vld [vmem:[#allocation8 + $0x1c8] sm:$0xff]
    %v3661 = vld [vmem:[#allocation8 + $0x1d0] sm:$0xff]
    %v3662 = vld [vmem:[#allocation8 + $0x1d8] sm:$0xff]
    %v3663 = vld [vmem:[#allocation8 + $0x1e0] sm:$0xff]
    %v3664 = vld [vmem:[#allocation8 + $0x1e8] sm:$0xff]
    %v3665 = vld [vmem:[#allocation8 + $0x1f0] sm:$0xff]
    %v3666 = vld [vmem:[#allocation8 + $0x1f8] sm:$0xff]
    %v3667 = vld [vmem:[#allocation8 + $0x200] sm:$0xff]
    %v3668 = vld [vmem:[#allocation8 + $0x208] sm:$0xff]
    %v3669 = vld [vmem:[#allocation8 + $0x210] sm:$0xff]
    %v3670 = vld [vmem:[#allocation8 + $0x218] sm:$0xff]
    %v3671 = vld [vmem:[#allocation8 + $0x220] sm:$0xff]
    %v3672 = vld [vmem:[#allocation8 + $0x228] sm:$0xff]
    %v3673 = vld [vmem:[#allocation8 + $0x230] sm:$0xff]
    %v3674 = vld [vmem:[#allocation8 + $0x238] sm:$0xff]
    %v3675 = vld [vmem:[#allocation8 + $0x240] sm:$0xff]
    %v3676 = vld [vmem:[#allocation8 + $0x248] sm:$0xff]
    %v3677 = vld [vmem:[#allocation8 + $0x250] sm:$0xff]
    %v3678 = vld [vmem:[#allocation8 + $0x258] sm:$0xff]
    %v3679 = vld [vmem:[#allocation8 + $0x260] sm:$0xff]
    %v3680 = vld [vmem:[#allocation8 + $0x268] sm:$0xff]
    %v3681 = vld [vmem:[#allocation8 + $0x270] sm:$0xff]
    %v3682 = vld [vmem:[#allocation8 + $0x278] sm:$0xff]
    %v3683 = vld [vmem:[#allocation8 + $0x280] sm:$0xff]
    %v3684 = vld [vmem:[#allocation8 + $0x288] sm:$0xff]
    %v3685 = vld [vmem:[#allocation8 + $0x290] sm:$0xff]
    %v3686 = vld [vmem:[#allocation8 + $0x298] sm:$0xff]
    %v3687 = vld [vmem:[#allocation8 + $0x2a0] sm:$0xff]
    %v3688 = vld [vmem:[#allocation8 + $0x2a8] sm:$0xff]
    %v3689 = vld [vmem:[#allocation8 + $0x2b0] sm:$0xff]
    %v3690 = vld [vmem:[#allocation8 + $0x2b8] sm:$0xff]
    %v3691 = vld [vmem:[#allocation8 + $0x2c0] sm:$0xff]
    %v3692 = vld [vmem:[#allocation8 + $0x2c8] sm:$0xff]
    %v3693 = vld [vmem:[#allocation8 + $0x2d0] sm:$0xff]
    %v3694 = vld [vmem:[#allocation8 + $0x2d8] sm:$0xff]
    %v3695 = vld [vmem:[#allocation8 + $0x2e0] sm:$0xff]
    %v3696 = vld [vmem:[#allocation8 + $0x2e8] sm:$0xff]
    %v3697 = vld [vmem:[#allocation8 + $0x2f0] sm:$0xff]
    %v3698 = vld [vmem:[#allocation8 + $0x2f8] sm:$0xff]
    %v3699 = vld [vmem:[#allocation8 + $0x300] sm:$0xff]
    %v3700 = vld [vmem:[#allocation8 + $0x308] sm:$0xff]
    %v3701 = vld [vmem:[#allocation8 + $0x310] sm:$0xff]
    %v3702 = vld [vmem:[#allocation8 + $0x318] sm:$0xff]
    %v3703 = vld [vmem:[#allocation8 + $0x320] sm:$0xff]
    %v3704 = vld [vmem:[#allocation8 + $0x328] sm:$0xff]
    %v3705 = vld [vmem:[#allocation8 + $0x330] sm:$0xff]
    %v3706 = vld [vmem:[#allocation8 + $0x338] sm:$0xff]
    %v3707 = vld [vmem:[#allocation8 + $0x340] sm:$0xff]
    %v3708 = vld [vmem:[#allocation8 + $0x348] sm:$0xff]
    %v3709 = vld [vmem:[#allocation8 + $0x350] sm:$0xff]
    %v3710 = vld [vmem:[#allocation8 + $0x358] sm:$0xff]
    %v3711 = vld [vmem:[#allocation8 + $0x360] sm:$0xff]
    %v3712 = vld [vmem:[#allocation8 + $0x368] sm:$0xff]
    %v3713 = vld [vmem:[#allocation8 + $0x370] sm:$0xff]
    %v3714 = vld [vmem:[#allocation8 + $0x378] sm:$0xff]
    %v3715 = vld [vmem:[#allocation8 + $0x380] sm:$0xff]
    %v3716 = vld [vmem:[#allocation8 + $0x388] sm:$0xff]
    %v3717 = vld [vmem:[#allocation8 + $0x390] sm:$0xff]
    %v3718 = vld [vmem:[#allocation8 + $0x398] sm:$0xff]
    %v3719 = vld [vmem:[#allocation8 + $0x3a0] sm:$0xff]
    %v3720 = vld [vmem:[#allocation8 + $0x3a8] sm:$0xff]
    %v3721 = vld [vmem:[#allocation8 + $0x3b0] sm:$0xff]
    %v3722 = vld [vmem:[#allocation8 + $0x3b8] sm:$0xff]
    %v3723 = vld [vmem:[#allocation8 + $0x3c0] sm:$0xff]
    %v3724 = vld [vmem:[#allocation8 + $0x3c8] sm:$0xff]
    %v3725 = vld [vmem:[#allocation8 + $0x3d0] sm:$0xff]
    %v3726 = vld [vmem:[#allocation8 + $0x3d8] sm:$0xff]
    %v3727 = vld [vmem:[#allocation8 + $0x3e0] sm:$0xff]
    %v3728 = vld [vmem:[#allocation8 + $0x3e8] sm:$0xff]
    %v3729 = vld [vmem:[#allocation8 + $0x3f0] sm:$0xff]
    %v3730 = vld [vmem:[#allocation8 + $0x3f8] sm:$0xff]
    %v3731 = vld [vmem:[#allocation8 + $0x400] sm:$0xff]
    %v3732 = vld [vmem:[#allocation8 + $0x408] sm:$0xff]
    %v3733 = vld [vmem:[#allocation8 + $0x410] sm:$0xff]
    %v3734 = vld [vmem:[#allocation8 + $0x418] sm:$0xff]
    %v3735 = vld [vmem:[#allocation8 + $0x420] sm:$0xff]
    %v3736 = vld [vmem:[#allocation8 + $0x428] sm:$0xff]
    %v3737 = vld [vmem:[#allocation8 + $0x430] sm:$0xff]
    %v3738 = vld [vmem:[#allocation8 + $0x438] sm:$0xff]
    %v3739 = vld [vmem:[#allocation8 + $0x440] sm:$0xff]
    %v3740 = vld [vmem:[#allocation8 + $0x448] sm:$0xff]
    %v3741 = vld [vmem:[#allocation8 + $0x450] sm:$0xff]
    %v3742 = vld [vmem:[#allocation8 + $0x458] sm:$0xff]
    %v3743 = vld [vmem:[#allocation8 + $0x460] sm:$0xff]
    %v3744 = vld [vmem:[#allocation8 + $0x468] sm:$0xff]
    %v3745 = vld [vmem:[#allocation8 + $0x470] sm:$0xff]
    %v3746 = vld [vmem:[#allocation8 + $0x478] sm:$0xff]
    %v3747 = vld [vmem:[#allocation8 + $0x480] sm:$0xff]
    %v3748 = vld [vmem:[#allocation8 + $0x488] sm:$0xff]
    %v3749 = vld [vmem:[#allocation8 + $0x490] sm:$0xff]
    %v3750 = vld [vmem:[#allocation8 + $0x498] sm:$0xff]
    %v3751 = vld [vmem:[#allocation8 + $0x4a0] sm:$0xff]
    %v3752 = vld [vmem:[#allocation8 + $0x4a8] sm:$0xff]
    %v3753 = vld [vmem:[#allocation8 + $0x4b0] sm:$0xff]
    %v3754 = vld [vmem:[#allocation8 + $0x4b8] sm:$0xff]
    %v3755 = vld [vmem:[#allocation8 + $0x4c0] sm:$0xff]
    %v3756 = vld [vmem:[#allocation8 + $0x4c8] sm:$0xff]
    %v3757 = vld [vmem:[#allocation8 + $0x4d0] sm:$0xff]
    %v3758 = vld [vmem:[#allocation8 + $0x4d8] sm:$0xff]
    %v3759 = vld [vmem:[#allocation8 + $0x4e0] sm:$0xff]
    %v3760 = vld [vmem:[#allocation8 + $0x4e8] sm:$0xff]
    %v3761 = vld [vmem:[#allocation8 + $0x4f0] sm:$0xff]
    %v3762 = vld [vmem:[#allocation8 + $0x4f8] sm:$0xff]
    %v3763 = vld [vmem:[#allocation8 + $0x500] sm:$0xff]
    %v3764 = vld [vmem:[#allocation8 + $0x508] sm:$0xff]
    %v3765 = vld [vmem:[#allocation8 + $0x510] sm:$0xff]
    %v3766 = vld [vmem:[#allocation8 + $0x518] sm:$0xff]
    %v3767 = vld [vmem:[#allocation8 + $0x520] sm:$0xff]
    %v3768 = vld [vmem:[#allocation8 + $0x528] sm:$0xff]
    %v3769 = vld [vmem:[#allocation8 + $0x530] sm:$0xff]
    %v3770 = vld [vmem:[#allocation8 + $0x538] sm:$0xff]
    %v3771 = vld [vmem:[#allocation8 + $0x540] sm:$0xff]
    %v3772 = vld [vmem:[#allocation8 + $0x548] sm:$0xff]
    %v3773 = vld [vmem:[#allocation8 + $0x550] sm:$0xff]
    %v3774 = vld [vmem:[#allocation8 + $0x558] sm:$0xff]
    %v3775 = vld [vmem:[#allocation8 + $0x560] sm:$0xff]
    %v3776 = vld [vmem:[#allocation8 + $0x568] sm:$0xff]
    %v3777 = vld [vmem:[#allocation8 + $0x570] sm:$0xff]
    %v3778 = vld [vmem:[#allocation8 + $0x578] sm:$0xff]
    %v3779 = vld [vmem:[#allocation8 + $0x580] sm:$0xff]
    %v3780 = vld [vmem:[#allocation8 + $0x588] sm:$0xff]
    %v3781 = vld [vmem:[#allocation8 + $0x590] sm:$0xff]
    %v3782 = vld [vmem:[#allocation8 + $0x598] sm:$0xff]
    %v3783 = vld [vmem:[#allocation8 + $0x5a0] sm:$0xff]
    %v3784 = vld [vmem:[#allocation8 + $0x5a8] sm:$0xff]
    %v3785 = vld [vmem:[#allocation8 + $0x5b0] sm:$0xff]
    %v3786 = vld [vmem:[#allocation8 + $0x5b8] sm:$0xff]
    %v3787 = vld [vmem:[#allocation8 + $0x5c0] sm:$0xff]
    %v3788 = vld [vmem:[#allocation8 + $0x5c8] sm:$0xff]
    %v3789 = vld [vmem:[#allocation8 + $0x5d0] sm:$0xff]
    %v3790 = vld [vmem:[#allocation8 + $0x5d8] sm:$0xff]
    %v3791 = vld [vmem:[#allocation8 + $0x5e0] sm:$0xff]
    %v3792 = vld [vmem:[#allocation8 + $0x5e8] sm:$0xff]
    %v3793 = vld [vmem:[#allocation8 + $0x5f0] sm:$0xff]
    %v3794 = vld [vmem:[#allocation8 + $0x5f8] sm:$0xff]
    %v3795 = vld [vmem:[#allocation8 + $0x600] sm:$0xff]
    %v3796 = vld [vmem:[#allocation8 + $0x608] sm:$0xff]
    %v3797 = vld [vmem:[#allocation8 + $0x610] sm:$0xff]
    %v3798 = vld [vmem:[#allocation8 + $0x618] sm:$0xff]
    %v3799 = vld [vmem:[#allocation8 + $0x620] sm:$0xff]
    %v3800 = vld [vmem:[#allocation8 + $0x628] sm:$0xff]
    %v3801 = vld [vmem:[#allocation8 + $0x630] sm:$0xff]
    %v3802 = vld [vmem:[#allocation8 + $0x638] sm:$0xff]
    %v3803 = vld [vmem:[#allocation8 + $0x640] sm:$0xff]
    %v3804 = vld [vmem:[#allocation8 + $0x648] sm:$0xff]
    %v3805 = vld [vmem:[#allocation8 + $0x650] sm:$0xff]
    %v3806 = vld [vmem:[#allocation8 + $0x658] sm:$0xff]
    %v3807 = vld [vmem:[#allocation8 + $0x660] sm:$0xff]
    %v3808 = vld [vmem:[#allocation8 + $0x668] sm:$0xff]
    %v3809 = vld [vmem:[#allocation8 + $0x670] sm:$0xff]
    %v3810 = vld [vmem:[#allocation8 + $0x678] sm:$0xff]
    %v3811 = vld [vmem:[#allocation8 + $0x680] sm:$0xff]
    %v3812 = vld [vmem:[#allocation8 + $0x688] sm:$0xff]
    %v3813 = vld [vmem:[#allocation8 + $0x690] sm:$0xff]
    %v3814 = vld [vmem:[#allocation8 + $0x698] sm:$0xff]
    %v3815 = vld [vmem:[#allocation8 + $0x6a0] sm:$0xff]
    %v3816 = vld [vmem:[#allocation8 + $0x6a8] sm:$0xff]
    %v3817 = vld [vmem:[#allocation8 + $0x6b0] sm:$0xff]
    %v3818 = vld [vmem:[#allocation8 + $0x6b8] sm:$0xff]
    %v3819 = vld [vmem:[#allocation8 + $0x6c0] sm:$0xff]
    %v3820 = vld [vmem:[#allocation8 + $0x6c8] sm:$0xff]
    %v3821 = vld [vmem:[#allocation8 + $0x6d0] sm:$0xff]
    %v3822 = vld [vmem:[#allocation8 + $0x6d8] sm:$0xff]
    %v3823 = vld [vmem:[#allocation8 + $0x6e0] sm:$0xff]
    %v3824 = vld [vmem:[#allocation8 + $0x6e8] sm:$0xff]
    %v3825 = vld [vmem:[#allocation8 + $0x6f0] sm:$0xff]
    %v3826 = vld [vmem:[#allocation8 + $0x6f8] sm:$0xff]
    %v3827 = vld [vmem:[#allocation8 + $0x700] sm:$0xff]
    %v3828 = vld [vmem:[#allocation8 + $0x708] sm:$0xff]
    %v3829 = vld [vmem:[#allocation8 + $0x710] sm:$0xff]
    %v3830 = vld [vmem:[#allocation8 + $0x718] sm:$0xff]
    %v3831 = vld [vmem:[#allocation8 + $0x720] sm:$0xff]
    %v3832 = vld [vmem:[#allocation8 + $0x728] sm:$0xff]
    %v3833 = vld [vmem:[#allocation8 + $0x730] sm:$0xff]
    %v3834 = vld [vmem:[#allocation8 + $0x738] sm:$0xff]
    %v3835 = vld [vmem:[#allocation8 + $0x740] sm:$0xff]
    %v3836 = vld [vmem:[#allocation8 + $0x748] sm:$0xff]
    %v3837 = vld [vmem:[#allocation8 + $0x750] sm:$0xff]
    %v3838 = vld [vmem:[#allocation8 + $0x758] sm:$0xff]
    %v3839 = vld [vmem:[#allocation8 + $0x760] sm:$0xff]
    %v3840 = vld [vmem:[#allocation8 + $0x768] sm:$0xff]
    %v3841 = vld [vmem:[#allocation8 + $0x770] sm:$0xff]
    %v3842 = vld [vmem:[#allocation8 + $0x778] sm:$0xff]
    %v3843 = vld [vmem:[#allocation8 + $0x780] sm:$0xff]
    %v3844 = vld [vmem:[#allocation8 + $0x788] sm:$0xff]
    %v3845 = vld [vmem:[#allocation8 + $0x790] sm:$0xff]
    %v3846 = vld [vmem:[#allocation8 + $0x798] sm:$0xff]
    %v3847 = vld [vmem:[#allocation8 + $0x7a0] sm:$0xff]
    %v3848 = vld [vmem:[#allocation8 + $0x7a8] sm:$0xff]
    %v3849 = vld [vmem:[#allocation8 + $0x7b0] sm:$0xff]
    %v3850 = vld [vmem:[#allocation8 + $0x7b8] sm:$0xff]
    %v3851 = vld [vmem:[#allocation8 + $0x7c0] sm:$0xff]
    %v3852 = vld [vmem:[#allocation8 + $0x7c8] sm:$0xff]
    %v3853 = vld [vmem:[#allocation8 + $0x7d0] sm:$0xff]
    %v3854 = vld [vmem:[#allocation8 + $0x7d8] sm:$0xff]
    %v3855 = vld [vmem:[#allocation8 + $0x7e0] sm:$0xff]
    %v3856 = vld [vmem:[#allocation8 + $0x7e8] sm:$0xff]
    %v3857 = vld [vmem:[#allocation8 + $0x7f0] sm:$0xff]
    %v3858 = vld [vmem:[#allocation8 + $0x7f8] sm:$0xff]
    %v3859 = vld [vmem:[#allocation8 + $0x800] sm:$0xff]
    %v3860 = vld [vmem:[#allocation8 + $0x808] sm:$0xff]
    %v3861 = vld [vmem:[#allocation8 + $0x810] sm:$0xff]
    %v3862 = vld [vmem:[#allocation8 + $0x818] sm:$0xff]
    %v3863 = vld [vmem:[#allocation8 + $0x820] sm:$0xff]
    %v3864 = vld [vmem:[#allocation8 + $0x828] sm:$0xff]
    %v3865 = vld [vmem:[#allocation8 + $0x830] sm:$0xff]
    %v3866 = vld [vmem:[#allocation8 + $0x838] sm:$0xff]
    %v3867 = vld [vmem:[#allocation8 + $0x840] sm:$0xff]
    %v3868 = vld [vmem:[#allocation8 + $0x848] sm:$0xff]
    %v3869 = vld [vmem:[#allocation8 + $0x850] sm:$0xff]
    %v3870 = vld [vmem:[#allocation8 + $0x858] sm:$0xff]
    %v3871 = vld [vmem:[#allocation8 + $0x860] sm:$0xff]
    %v3872 = vld [vmem:[#allocation8 + $0x868] sm:$0xff]
    %v3873 = vld [vmem:[#allocation8 + $0x870] sm:$0xff]
    %v3874 = vld [vmem:[#allocation8 + $0x878] sm:$0xff]
    %v3875 = vld [vmem:[#allocation8 + $0x880] sm:$0xff]
    %v3876 = vld [vmem:[#allocation8 + $0x888] sm:$0xff]
    %v3877 = vld [vmem:[#allocation8 + $0x890] sm:$0xff]
    %v3878 = vld [vmem:[#allocation8 + $0x898] sm:$0xff]
    %v3879 = vld [vmem:[#allocation8 + $0x8a0] sm:$0xff]
    %v3880 = vld [vmem:[#allocation8 + $0x8a8] sm:$0xff]
    %v3881 = vld [vmem:[#allocation8 + $0x8b0] sm:$0xff]
    %v3882 = vld [vmem:[#allocation8 + $0x8b8] sm:$0xff]
    %v3883 = vld [vmem:[#allocation8 + $0x8c0] sm:$0xff]
    %v3884 = vld [vmem:[#allocation8 + $0x8c8] sm:$0xff]
    %v3885 = vld [vmem:[#allocation8 + $0x8d0] sm:$0xff]
    %v3886 = vld [vmem:[#allocation8 + $0x8d8] sm:$0xff]
    %v3887 = vld [vmem:[#allocation8 + $0x8e0] sm:$0xff]
    %v3888 = vld [vmem:[#allocation8 + $0x8e8] sm:$0xff]
    %v3889 = vld [vmem:[#allocation8 + $0x8f0] sm:$0xff]
    %v3890 = vld [vmem:[#allocation8 + $0x8f8] sm:$0xff]
    %v3891 = vld [vmem:[#allocation8 + $0x900] sm:$0xff]
    %v3892 = vld [vmem:[#allocation8 + $0x908] sm:$0xff]
    %v3893 = vld [vmem:[#allocation8 + $0x910] sm:$0xff]
    %v3894 = vld [vmem:[#allocation8 + $0x918] sm:$0xff]
    %v3895 = vld [vmem:[#allocation8 + $0x920] sm:$0xff]
    %v3896 = vld [vmem:[#allocation8 + $0x928] sm:$0xff]
    %v3897 = vld [vmem:[#allocation8 + $0x930] sm:$0xff]
    %v3898 = vld [vmem:[#allocation8 + $0x938] sm:$0xff]
    %v3899 = vld [vmem:[#allocation8 + $0x940] sm:$0xff]
    %v3900 = vld [vmem:[#allocation8 + $0x948] sm:$0xff]
    %v3901 = vld [vmem:[#allocation8 + $0x950] sm:$0xff]
    %v3902 = vld [vmem:[#allocation8 + $0x958] sm:$0xff]
    %v3903 = vld [vmem:[#allocation8 + $0x960] sm:$0xff]
    %v3904 = vld [vmem:[#allocation8 + $0x968] sm:$0xff]
    %v3905 = vld [vmem:[#allocation8 + $0x970] sm:$0xff]
    %v3906 = vld [vmem:[#allocation8 + $0x978] sm:$0xff]
    %v3907 = vld [vmem:[#allocation8 + $0x980] sm:$0xff]
    %v3908 = vld [vmem:[#allocation8 + $0x988] sm:$0xff]
    %v3909 = vld [vmem:[#allocation8 + $0x990] sm:$0xff]
    %v3910 = vld [vmem:[#allocation8 + $0x998] sm:$0xff]
    %v3911 = vld [vmem:[#allocation8 + $0x9a0] sm:$0xff]
    %v3912 = vld [vmem:[#allocation8 + $0x9a8] sm:$0xff]
    %v3913 = vld [vmem:[#allocation8 + $0x9b0] sm:$0xff]
    %v3914 = vld [vmem:[#allocation8 + $0x9b8] sm:$0xff]
    %v3915 = vld [vmem:[#allocation8 + $0x9c0] sm:$0xff]
    %v3916 = vld [vmem:[#allocation8 + $0x9c8] sm:$0xff]
    %v3917 = vld [vmem:[#allocation8 + $0x9d0] sm:$0xff]
    %v3918 = vld [vmem:[#allocation8 + $0x9d8] sm:$0xff]
    %v3919 = vld [vmem:[#allocation8 + $0x9e0] sm:$0xff]
    %v3920 = vld [vmem:[#allocation8 + $0x9e8] sm:$0xff]
    %v3921 = vld [vmem:[#allocation8 + $0x9f0] sm:$0xff]
    %v3922 = vld [vmem:[#allocation8 + $0x9f8] sm:$0xff]
    %v3923 = vld [vmem:[#allocation8 + $0xa00] sm:$0xff]
    %v3924 = vld [vmem:[#allocation8 + $0xa08] sm:$0xff]
    %v3925 = vld [vmem:[#allocation8 + $0xa10] sm:$0xff]
    %v3926 = vld [vmem:[#allocation8 + $0xa18] sm:$0xff]
    %v3927 = vld [vmem:[#allocation8 + $0xa20] sm:$0xff]
    %v3928 = vld [vmem:[#allocation8 + $0xa28] sm:$0xff]
    %v3929 = vld [vmem:[#allocation8 + $0xa30] sm:$0xff]
    %v3930 = vld [vmem:[#allocation8 + $0xa38] sm:$0xff]
    %v3931 = vld [vmem:[#allocation8 + $0xa40] sm:$0xff]
    %v3932 = vld [vmem:[#allocation8 + $0xa48] sm:$0xff]
    %v3933 = vld [vmem:[#allocation8 + $0xa50] sm:$0xff]
    %v3934 = vld [vmem:[#allocation8 + $0xa58] sm:$0xff]
    %v3935 = vld [vmem:[#allocation8 + $0xa60] sm:$0xff]
    %v3936 = vld [vmem:[#allocation8 + $0xa68] sm:$0xff]
    %v3937 = vld [vmem:[#allocation8 + $0xa70] sm:$0xff]
    %v3938 = vld [vmem:[#allocation8 + $0xa78] sm:$0xff]
    %v3939 = vld [vmem:[#allocation8 + $0xa80] sm:$0xff]
    %v3940 = vld [vmem:[#allocation8 + $0xa88] sm:$0xff]
    %v3941 = vld [vmem:[#allocation8 + $0xa90] sm:$0xff]
    %v3942 = vld [vmem:[#allocation8 + $0xa98] sm:$0xff]
    %v3943 = vld [vmem:[#allocation8 + $0xaa0] sm:$0xff]
    %v3944 = vld [vmem:[#allocation8 + $0xaa8] sm:$0xff]
    %v3945 = vld [vmem:[#allocation8 + $0xab0] sm:$0xff]
    %v3946 = vld [vmem:[#allocation8 + $0xab8] sm:$0xff]
    %v3947 = vld [vmem:[#allocation8 + $0xac0] sm:$0xff]
    %v3948 = vld [vmem:[#allocation8 + $0xac8] sm:$0xff]
    %v3949 = vld [vmem:[#allocation8 + $0xad0] sm:$0xff]
    %v3950 = vld [vmem:[#allocation8 + $0xad8] sm:$0xff]
    %v3951 = vld [vmem:[#allocation8 + $0xae0] sm:$0xff]
    %v3952 = vld [vmem:[#allocation8 + $0xae8] sm:$0xff]
    %v3953 = vld [vmem:[#allocation8 + $0xaf0] sm:$0xff]
    %v3954 = vld [vmem:[#allocation8 + $0xaf8] sm:$0xff]
    %v3955 = vld [vmem:[#allocation8 + $0xb00] sm:$0xff]
    %v3956 = vld [vmem:[#allocation8 + $0xb08] sm:$0xff]
    %v3957 = vld [vmem:[#allocation8 + $0xb10] sm:$0xff]
    %v3958 = vld [vmem:[#allocation8 + $0xb18] sm:$0xff]
    %v3959 = vld [vmem:[#allocation8 + $0xb20] sm:$0xff]
    %v3960 = vld [vmem:[#allocation8 + $0xb28] sm:$0xff]
    %v3961 = vld [vmem:[#allocation8 + $0xb30] sm:$0xff]
    %v3962 = vld [vmem:[#allocation8 + $0xb38] sm:$0xff]
    %v3963 = vld [vmem:[#allocation8 + $0xb40] sm:$0xff]
    %v3964 = vld [vmem:[#allocation8 + $0xb48] sm:$0xff]
    %v3965 = vld [vmem:[#allocation8 + $0xb50] sm:$0xff]
    %v3966 = vld [vmem:[#allocation8 + $0xb58] sm:$0xff]
    %v3967 = vld [vmem:[#allocation8 + $0xb60] sm:$0xff]
    %v3968 = vld [vmem:[#allocation8 + $0xb68] sm:$0xff]
    %v3969 = vld [vmem:[#allocation8 + $0xb70] sm:$0xff]
    %v3970 = vld [vmem:[#allocation8 + $0xb78] sm:$0xff]
    %v3971 = vld [vmem:[#allocation8 + $0xb80] sm:$0xff]
    %v3972 = vld [vmem:[#allocation8 + $0xb88] sm:$0xff]
    %v3973 = vld [vmem:[#allocation8 + $0xb90] sm:$0xff]
    %v3974 = vld [vmem:[#allocation8 + $0xb98] sm:$0xff]
    %v3975 = vld [vmem:[#allocation8 + $0xba0] sm:$0xff]
    %v3976 = vld [vmem:[#allocation8 + $0xba8] sm:$0xff]
    %v3977 = vld [vmem:[#allocation8 + $0xbb0] sm:$0xff]
    %v3978 = vld [vmem:[#allocation8 + $0xbb8] sm:$0xff]
    %v3979 = vld [vmem:[#allocation8 + $0xbc0] sm:$0xff]
    %v3980 = vld [vmem:[#allocation8 + $0xbc8] sm:$0xff]
    %v3981 = vld [vmem:[#allocation8 + $0xbd0] sm:$0xff]
    %v3982 = vld [vmem:[#allocation8 + $0xbd8] sm:$0xff]
    %v3983 = vld [vmem:[#allocation8 + $0xbe0] sm:$0xff]
    %v3984 = vld [vmem:[#allocation8 + $0xbe8] sm:$0xff]
    %v3985 = vld [vmem:[#allocation8 + $0xbf0] sm:$0xff]
    %v3986 = vld [vmem:[#allocation8 + $0xbf8] sm:$0xff]
    %v3987 = vld [vmem:[#allocation8 + $0xc00] sm:$0xff]
    %v3988 = vld [vmem:[#allocation8 + $0xc08] sm:$0xff]
    %v3989 = vld [vmem:[#allocation8 + $0xc10] sm:$0xff]
    %v3990 = vld [vmem:[#allocation8 + $0xc18] sm:$0xff]
    %v3991 = vld [vmem:[#allocation8 + $0xc20] sm:$0xff]
    %v3992 = vld [vmem:[#allocation8 + $0xc28] sm:$0xff]
    %v3993 = vld [vmem:[#allocation8 + $0xc30] sm:$0xff]
    %v3994 = vld [vmem:[#allocation8 + $0xc38] sm:$0xff]
    %v3995 = vld [vmem:[#allocation8 + $0xc40] sm:$0xff]
    %v3996 = vld [vmem:[#allocation8 + $0xc48] sm:$0xff]
    %v3997 = vld [vmem:[#allocation8 + $0xc50] sm:$0xff]
    %v3998 = vld [vmem:[#allocation8 + $0xc58] sm:$0xff]
    %v3999 = vld [vmem:[#allocation8 + $0xc60] sm:$0xff]
    %v4000 = vld [vmem:[#allocation8 + $0xc68] sm:$0xff]
    %v4001 = vld [vmem:[#allocation8 + $0xc70] sm:$0xff]
    %v4002 = vld [vmem:[#allocation8 + $0xc78] sm:$0xff]
    %v4003 = vld [vmem:[#allocation8 + $0xc80] sm:$0xff]
    %v4004 = vld [vmem:[#allocation8 + $0xc88] sm:$0xff]
    %v4005 = vld [vmem:[#allocation8 + $0xc90] sm:$0xff]
    %v4006 = vld [vmem:[#allocation8 + $0xc98] sm:$0xff]
    %v4007 = vld [vmem:[#allocation8 + $0xca0] sm:$0xff]
    %v4008 = vld [vmem:[#allocation8 + $0xca8] sm:$0xff]
    %v4009 = vld [vmem:[#allocation8 + $0xcb0] sm:$0xff]
    %v4010 = vld [vmem:[#allocation8 + $0xcb8] sm:$0xff]
    %v4011 = vld [vmem:[#allocation8 + $0xcc0] sm:$0xff]
    %v4012 = vld [vmem:[#allocation8 + $0xcc8] sm:$0xff]
    %v4013 = vld [vmem:[#allocation8 + $0xcd0] sm:$0xff]
    %v4014 = vld [vmem:[#allocation8 + $0xcd8] sm:$0xff]
    %v4015 = vld [vmem:[#allocation8 + $0xce0] sm:$0xff]
    %v4016 = vld [vmem:[#allocation8 + $0xce8] sm:$0xff]
    %v4017 = vld [vmem:[#allocation8 + $0xcf0] sm:$0xff]
    %v4018 = vld [vmem:[#allocation8 + $0xcf8] sm:$0xff]
    %v4019 = vld [vmem:[#allocation8 + $0xd00] sm:$0xff]
    %v4020 = vld [vmem:[#allocation8 + $0xd08] sm:$0xff]
    %v4021 = vld [vmem:[#allocation8 + $0xd10] sm:$0xff]
    %v4022 = vld [vmem:[#allocation8 + $0xd18] sm:$0xff]
    %v4023 = vld [vmem:[#allocation8 + $0xd20] sm:$0xff]
    %v4024 = vld [vmem:[#allocation8 + $0xd28] sm:$0xff]
    %v4025 = vld [vmem:[#allocation8 + $0xd30] sm:$0xff]
    %v4026 = vld [vmem:[#allocation8 + $0xd38] sm:$0xff]
    %v4027 = vld [vmem:[#allocation8 + $0xd40] sm:$0xff]
    %v4028 = vld [vmem:[#allocation8 + $0xd48] sm:$0xff]
    %v4029 = vld [vmem:[#allocation8 + $0xd50] sm:$0xff]
    %v4030 = vld [vmem:[#allocation8 + $0xd58] sm:$0xff]
    %v4031 = vld [vmem:[#allocation8 + $0xd60] sm:$0xff]
    %v4032 = vld [vmem:[#allocation8 + $0xd68] sm:$0xff]
    %v4033 = vld [vmem:[#allocation8 + $0xd70] sm:$0xff]
    %v4034 = vld [vmem:[#allocation8 + $0xd78] sm:$0xff]
    %v4035 = vld [vmem:[#allocation8 + $0xd80] sm:$0xff]
    %v4036 = vld [vmem:[#allocation8 + $0xd88] sm:$0xff]
    %v4037 = vld [vmem:[#allocation8 + $0xd90] sm:$0xff]
    %v4038 = vld [vmem:[#allocation8 + $0xd98] sm:$0xff]
    %v4039 = vld [vmem:[#allocation8 + $0xda0] sm:$0xff]
    %v4040 = vld [vmem:[#allocation8 + $0xda8] sm:$0xff]
    %v4041 = vld [vmem:[#allocation8 + $0xdb0] sm:$0xff]
    %v4042 = vld [vmem:[#allocation8 + $0xdb8] sm:$0xff]
    %v4043 = vld [vmem:[#allocation8 + $0xdc0] sm:$0xff]
    %v4044 = vld [vmem:[#allocation8 + $0xdc8] sm:$0xff]
    %v4045 = vld [vmem:[#allocation8 + $0xdd0] sm:$0xff]
    %v4046 = vld [vmem:[#allocation8 + $0xdd8] sm:$0xff]
    %v4047 = vld [vmem:[#allocation8 + $0xde0] sm:$0xff]
    %v4048 = vld [vmem:[#allocation8 + $0xde8] sm:$0xff]
    %v4049 = vld [vmem:[#allocation8 + $0xdf0] sm:$0xff]
    %v4050 = vld [vmem:[#allocation8 + $0xdf8] sm:$0xff]
    %v4051 = vld [vmem:[#allocation8 + $0xe00] sm:$0xff]
    %v4052 = vld [vmem:[#allocation8 + $0xe08] sm:$0xff]
    %v4053 = vld [vmem:[#allocation8 + $0xe10] sm:$0xff]
    %v4054 = vld [vmem:[#allocation8 + $0xe18] sm:$0xff]
    %v4055 = vld [vmem:[#allocation8 + $0xe20] sm:$0xff]
    %v4056 = vld [vmem:[#allocation8 + $0xe28] sm:$0xff]
    %v4057 = vld [vmem:[#allocation8 + $0xe30] sm:$0xff]
    %v4058 = vld [vmem:[#allocation8 + $0xe38] sm:$0xff]
    %v4059 = vld [vmem:[#allocation8 + $0xe40] sm:$0xff]
    %v4060 = vld [vmem:[#allocation8 + $0xe48] sm:$0xff]
    %v4061 = vld [vmem:[#allocation8 + $0xe50] sm:$0xff]
    %v4062 = vld [vmem:[#allocation8 + $0xe58] sm:$0xff]
    %v4063 = vld [vmem:[#allocation8 + $0xe60] sm:$0xff]
    %v4064 = vld [vmem:[#allocation8 + $0xe68] sm:$0xff]
    %v4065 = vld [vmem:[#allocation8 + $0xe70] sm:$0xff]
    %v4066 = vld [vmem:[#allocation8 + $0xe78] sm:$0xff]
    %v4067 = vld [vmem:[#allocation8 + $0xe80] sm:$0xff]
    %v4068 = vld [vmem:[#allocation8 + $0xe88] sm:$0xff]
    %v4069 = vld [vmem:[#allocation8 + $0xe90] sm:$0xff]
    %v4070 = vld [vmem:[#allocation8 + $0xe98] sm:$0xff]
    %v4071 = vld [vmem:[#allocation8 + $0xea0] sm:$0xff]
    %v4072 = vld [vmem:[#allocation8 + $0xea8] sm:$0xff]
    %v4073 = vld [vmem:[#allocation8 + $0xeb0] sm:$0xff]
    %v4074 = vld [vmem:[#allocation8 + $0xeb8] sm:$0xff]
    %v4075 = vld [vmem:[#allocation8 + $0xec0] sm:$0xff]
    %v4076 = vld [vmem:[#allocation8 + $0xec8] sm:$0xff]
    %v4077 = vld [vmem:[#allocation8 + $0xed0] sm:$0xff]
    %v4078 = vld [vmem:[#allocation8 + $0xed8] sm:$0xff]
    %v4079 = vld [vmem:[#allocation8 + $0xee0] sm:$0xff]
    %v4080 = vld [vmem:[#allocation8 + $0xee8] sm:$0xff]
    %v4081 = vld [vmem:[#allocation8 + $0xef0] sm:$0xff]
    %v4082 = vld [vmem:[#allocation8 + $0xef8] sm:$0xff]
    %v4083 = vld [vmem:[#allocation8 + $0xf00] sm:$0xff]
    %v4084 = vld [vmem:[#allocation8 + $0xf08] sm:$0xff]
    %v4085 = vld [vmem:[#allocation8 + $0xf10] sm:$0xff]
    %v4086 = vld [vmem:[#allocation8 + $0xf18] sm:$0xff]
    %v4087 = vld [vmem:[#allocation8 + $0xf20] sm:$0xff]
    %v4088 = vld [vmem:[#allocation8 + $0xf28] sm:$0xff]
    %v4089 = vld [vmem:[#allocation8 + $0xf30] sm:$0xff]
    %v4090 = vld [vmem:[#allocation8 + $0xf38] sm:$0xff]
    %v4091 = vld [vmem:[#allocation8 + $0xf40] sm:$0xff]
    %v4092 = vld [vmem:[#allocation8 + $0xf48] sm:$0xff]
    %v4093 = vld [vmem:[#allocation8 + $0xf50] sm:$0xff]
    %v4094 = vld [vmem:[#allocation8 + $0xf58] sm:$0xff]
    %v4095 = vld [vmem:[#allocation8 + $0xf60] sm:$0xff]
    %v4096 = vld [vmem:[#allocation8 + $0xf68] sm:$0xff]
    %v4097 = vld [vmem:[#allocation8 + $0xf70] sm:$0xff]
    %v4098 = vld [vmem:[#allocation8 + $0xf78] sm:$0xff]
    %v4099 = vld [vmem:[#allocation8 + $0xf80] sm:$0xff]
    %v4100 = vld [vmem:[#allocation8 + $0xf88] sm:$0xff]
    %v4101 = vld [vmem:[#allocation8 + $0xf90] sm:$0xff]
    %v4102 = vld [vmem:[#allocation8 + $0xf98] sm:$0xff]
    %v4103 = vld [vmem:[#allocation8 + $0xfa0] sm:$0xff]
    %v4104 = vld [vmem:[#allocation8 + $0xfa8] sm:$0xff]
    %v4105 = vld [vmem:[#allocation8 + $0xfb0] sm:$0xff]
    %v4106 = vld [vmem:[#allocation8 + $0xfb8] sm:$0xff]
    %v4107 = vld [vmem:[#allocation8 + $0xfc0] sm:$0xff]
    %v4108 = vld [vmem:[#allocation8 + $0xfc8] sm:$0xff]
    %v4109 = vld [vmem:[#allocation8 + $0xfd0] sm:$0xff]
    %v4110 = vld [vmem:[#allocation8 + $0xfd8] sm:$0xff]
    %v4111 = vld [vmem:[#allocation8 + $0xfe0] sm:$0xff]
    %v4112 = vld [vmem:[#allocation8 + $0xfe8] sm:$0xff]
    %v4113 = vld [vmem:[#allocation8 + $0xff0] sm:$0xff]
    %v4114 = vld [vmem:[#allocation8 + $0xff8] sm:$0xff]
    %v4115 = vld [vmem:[#allocation10] sm:$0xff]
    %v4117 = vlaneseq
    %v4118 = vshrl.u32 %v4117, 7
    %v4119 = vsub.s32 0, %v4118
    %v4120 = vrot.slane %v4115, %v4119
    %v4121 = vlaneseq
    %v4122 = vshrl.u32 %v4121, 7
    %v4123 = vsub.s32 1, %v4122
    %v4124 = vrot.slane %v4115, %v4123
    %v4125 = vlaneseq
    %v4126 = vshrl.u32 %v4125, 7
    %v4127 = vsub.s32 2, %v4126
    %v4128 = vrot.slane %v4115, %v4127
    %v4129 = vlaneseq
    %v4130 = vshrl.u32 %v4129, 7
    %v4131 = vsub.s32 3, %v4130
    %v4132 = vrot.slane %v4115, %v4131
    %v4133 = vlaneseq
    %v4134 = vshrl.u32 %v4133, 7
    %v4135 = vsub.s32 4, %v4134
    %v4136 = vrot.slane %v4115, %v4135
    %v4137 = vlaneseq
    %v4138 = vshrl.u32 %v4137, 7
    %v4139 = vsub.s32 5, %v4138
    %v4140 = vrot.slane %v4115, %v4139
    %v4141 = vlaneseq
    %v4142 = vshrl.u32 %v4141, 7
    %v4143 = vsub.s32 6, %v4142
    %v4144 = vrot.slane %v4115, %v4143
    %v4145 = vlaneseq
    %v4146 = vshrl.u32 %v4145, 7
    %v4147 = vsub.s32 7, %v4146
    %v4148 = vrot.slane %v4115, %v4147
    %v4669 = vunpack.c.l.b16 %v3603
    %v4670 = vunpack.c.h.b16 %v3603
    %v4671 = vunpack.c.l.b16 %v3604
    %v4672 = vunpack.c.h.b16 %v3604
    %v4673 = vunpack.c.l.b16 %v3605
    %v4674 = vunpack.c.h.b16 %v3605
    %v4675 = vunpack.c.l.b16 %v3606
    %v4676 = vunpack.c.h.b16 %v3606
    %v4677 = vunpack.c.l.b16 %v3607
    %v4678 = vunpack.c.h.b16 %v3607
    %v4679 = vunpack.c.l.b16 %v3608
    %v4680 = vunpack.c.h.b16 %v3608
    %v4681 = vunpack.c.l.b16 %v3609
    %v4682 = vunpack.c.h.b16 %v3609
    %v4683 = vunpack.c.l.b16 %v3610
    %v4684 = vunpack.c.h.b16 %v3610
    %v4685 = vunpack.c.l.b16 %v3611
    %v4686 = vunpack.c.h.b16 %v3611
    %v4687 = vunpack.c.l.b16 %v3612
    %v4688 = vunpack.c.h.b16 %v3612
    %v4689 = vunpack.c.l.b16 %v3613
    %v4690 = vunpack.c.h.b16 %v3613
    %v4691 = vunpack.c.l.b16 %v3614
    %v4692 = vunpack.c.h.b16 %v3614
    %v4693 = vunpack.c.l.b16 %v3615
    %v4694 = vunpack.c.h.b16 %v3615
    %v4695 = vunpack.c.l.b16 %v3616
    %v4696 = vunpack.c.h.b16 %v3616
    %v4697 = vunpack.c.l.b16 %v3617
    %v4698 = vunpack.c.h.b16 %v3617
    %v4699 = vunpack.c.l.b16 %v3618
    %v4700 = vunpack.c.h.b16 %v3618
    %v4701 = vunpack.c.l.b16 %v3619
    %v4702 = vunpack.c.h.b16 %v3619
    %v4703 = vunpack.c.l.b16 %v3620
    %v4704 = vunpack.c.h.b16 %v3620
    %v4705 = vunpack.c.l.b16 %v3621
    %v4706 = vunpack.c.h.b16 %v3621
    %v4707 = vunpack.c.l.b16 %v3622
    %v4708 = vunpack.c.h.b16 %v3622
    %v4709 = vunpack.c.l.b16 %v3623
    %v4710 = vunpack.c.h.b16 %v3623
    %v4711 = vunpack.c.l.b16 %v3624
    %v4712 = vunpack.c.h.b16 %v3624
    %v4713 = vunpack.c.l.b16 %v3625
    %v4714 = vunpack.c.h.b16 %v3625
    %v4715 = vunpack.c.l.b16 %v3626
    %v4716 = vunpack.c.h.b16 %v3626
    %v4717 = vunpack.c.l.b16 %v3627
    %v4718 = vunpack.c.h.b16 %v3627
    %v4719 = vunpack.c.l.b16 %v3628
    %v4720 = vunpack.c.h.b16 %v3628
    %v4721 = vunpack.c.l.b16 %v3629
    %v4722 = vunpack.c.h.b16 %v3629
    %v4723 = vunpack.c.l.b16 %v3630
    %v4724 = vunpack.c.h.b16 %v3630
    %v4725 = vunpack.c.l.b16 %v3631
    %v4726 = vunpack.c.h.b16 %v3631
    %v4727 = vunpack.c.l.b16 %v3632
    %v4728 = vunpack.c.h.b16 %v3632
    %v4729 = vunpack.c.l.b16 %v3633
    %v4730 = vunpack.c.h.b16 %v3633
    %v4731 = vunpack.c.l.b16 %v3634
    %v4732 = vunpack.c.h.b16 %v3634
    %v4733 = vunpack.c.l.b16 %v3635
    %v4734 = vunpack.c.h.b16 %v3635
    %v4735 = vunpack.c.l.b16 %v3636
    %v4736 = vunpack.c.h.b16 %v3636
    %v4737 = vunpack.c.l.b16 %v3637
    %v4738 = vunpack.c.h.b16 %v3637
    %v4739 = vunpack.c.l.b16 %v3638
    %v4740 = vunpack.c.h.b16 %v3638
    %v4741 = vunpack.c.l.b16 %v3639
    %v4742 = vunpack.c.h.b16 %v3639
    %v4743 = vunpack.c.l.b16 %v3640
    %v4744 = vunpack.c.h.b16 %v3640
    %v4745 = vunpack.c.l.b16 %v3641
    %v4746 = vunpack.c.h.b16 %v3641
    %v4747 = vunpack.c.l.b16 %v3642
    %v4748 = vunpack.c.h.b16 %v3642
    %v4749 = vunpack.c.l.b16 %v3643
    %v4750 = vunpack.c.h.b16 %v3643
    %v4751 = vunpack.c.l.b16 %v3644
    %v4752 = vunpack.c.h.b16 %v3644
    %v4753 = vunpack.c.l.b16 %v3645
    %v4754 = vunpack.c.h.b16 %v3645
    %v4755 = vunpack.c.l.b16 %v3646
    %v4756 = vunpack.c.h.b16 %v3646
    %v4757 = vunpack.c.l.b16 %v3647
    %v4758 = vunpack.c.h.b16 %v3647
    %v4759 = vunpack.c.l.b16 %v3648
    %v4760 = vunpack.c.h.b16 %v3648
    %v4761 = vunpack.c.l.b16 %v3649
    %v4762 = vunpack.c.h.b16 %v3649
    %v4763 = vunpack.c.l.b16 %v3650
    %v4764 = vunpack.c.h.b16 %v3650
    %v4765 = vunpack.c.l.b16 %v3651
    %v4766 = vunpack.c.h.b16 %v3651
    %v4767 = vunpack.c.l.b16 %v3652
    %v4768 = vunpack.c.h.b16 %v3652
    %v4769 = vunpack.c.l.b16 %v3653
    %v4770 = vunpack.c.h.b16 %v3653
    %v4771 = vunpack.c.l.b16 %v3654
    %v4772 = vunpack.c.h.b16 %v3654
    %v4773 = vunpack.c.l.b16 %v3655
    %v4774 = vunpack.c.h.b16 %v3655
    %v4775 = vunpack.c.l.b16 %v3656
    %v4776 = vunpack.c.h.b16 %v3656
    %v4777 = vunpack.c.l.b16 %v3657
    %v4778 = vunpack.c.h.b16 %v3657
    %v4779 = vunpack.c.l.b16 %v3658
    %v4780 = vunpack.c.h.b16 %v3658
    %v4781 = vunpack.c.l.b16 %v3659
    %v4782 = vunpack.c.h.b16 %v3659
    %v4783 = vunpack.c.l.b16 %v3660
    %v4784 = vunpack.c.h.b16 %v3660
    %v4785 = vunpack.c.l.b16 %v3661
    %v4786 = vunpack.c.h.b16 %v3661
    %v4787 = vunpack.c.l.b16 %v3662
    %v4788 = vunpack.c.h.b16 %v3662
    %v4789 = vunpack.c.l.b16 %v3663
    %v4790 = vunpack.c.h.b16 %v3663
    %v4791 = vunpack.c.l.b16 %v3664
    %v4792 = vunpack.c.h.b16 %v3664
    %v4793 = vunpack.c.l.b16 %v3665
    %v4794 = vunpack.c.h.b16 %v3665
    %v4795 = vunpack.c.l.b16 %v3666
    %v4796 = vunpack.c.h.b16 %v3666
    %v4797 = vunpack.c.l.b16 %v3667
    %v4798 = vunpack.c.h.b16 %v3667
    %v4799 = vunpack.c.l.b16 %v3668
    %v4800 = vunpack.c.h.b16 %v3668
    %v4801 = vunpack.c.l.b16 %v3669
    %v4802 = vunpack.c.h.b16 %v3669
    %v4803 = vunpack.c.l.b16 %v3670
    %v4804 = vunpack.c.h.b16 %v3670
    %v4805 = vunpack.c.l.b16 %v3671
    %v4806 = vunpack.c.h.b16 %v3671
    %v4807 = vunpack.c.l.b16 %v3672
    %v4808 = vunpack.c.h.b16 %v3672
    %v4809 = vunpack.c.l.b16 %v3673
    %v4810 = vunpack.c.h.b16 %v3673
    %v4811 = vunpack.c.l.b16 %v3674
    %v4812 = vunpack.c.h.b16 %v3674
    %v4813 = vunpack.c.l.b16 %v3675
    %v4814 = vunpack.c.h.b16 %v3675
    %v4815 = vunpack.c.l.b16 %v3676
    %v4816 = vunpack.c.h.b16 %v3676
    %v4817 = vunpack.c.l.b16 %v3677
    %v4818 = vunpack.c.h.b16 %v3677
    %v4819 = vunpack.c.l.b16 %v3678
    %v4820 = vunpack.c.h.b16 %v3678
    %v4821 = vunpack.c.l.b16 %v3679
    %v4822 = vunpack.c.h.b16 %v3679
    %v4823 = vunpack.c.l.b16 %v3680
    %v4824 = vunpack.c.h.b16 %v3680
    %v4825 = vunpack.c.l.b16 %v3681
    %v4826 = vunpack.c.h.b16 %v3681
    %v4827 = vunpack.c.l.b16 %v3682
    %v4828 = vunpack.c.h.b16 %v3682
    %v4829 = vunpack.c.l.b16 %v3683
    %v4830 = vunpack.c.h.b16 %v3683
    %v4831 = vunpack.c.l.b16 %v3684
    %v4832 = vunpack.c.h.b16 %v3684
    %v4833 = vunpack.c.l.b16 %v3685
    %v4834 = vunpack.c.h.b16 %v3685
    %v4835 = vunpack.c.l.b16 %v3686
    %v4836 = vunpack.c.h.b16 %v3686
    %v4837 = vunpack.c.l.b16 %v3687
    %v4838 = vunpack.c.h.b16 %v3687
    %v4839 = vunpack.c.l.b16 %v3688
    %v4840 = vunpack.c.h.b16 %v3688
    %v4841 = vunpack.c.l.b16 %v3689
    %v4842 = vunpack.c.h.b16 %v3689
    %v4843 = vunpack.c.l.b16 %v3690
    %v4844 = vunpack.c.h.b16 %v3690
    %v4845 = vunpack.c.l.b16 %v3691
    %v4846 = vunpack.c.h.b16 %v3691
    %v4847 = vunpack.c.l.b16 %v3692
    %v4848 = vunpack.c.h.b16 %v3692
    %v4849 = vunpack.c.l.b16 %v3693
    %v4850 = vunpack.c.h.b16 %v3693
    %v4851 = vunpack.c.l.b16 %v3694
    %v4852 = vunpack.c.h.b16 %v3694
    %v4853 = vunpack.c.l.b16 %v3695
    %v4854 = vunpack.c.h.b16 %v3695
    %v4855 = vunpack.c.l.b16 %v3696
    %v4856 = vunpack.c.h.b16 %v3696
    %v4857 = vunpack.c.l.b16 %v3697
    %v4858 = vunpack.c.h.b16 %v3697
    %v4859 = vunpack.c.l.b16 %v3698
    %v4860 = vunpack.c.h.b16 %v3698
    %v4861 = vunpack.c.l.b16 %v3699
    %v4862 = vunpack.c.h.b16 %v3699
    %v4863 = vunpack.c.l.b16 %v3700
    %v4864 = vunpack.c.h.b16 %v3700
    %v4865 = vunpack.c.l.b16 %v3701
    %v4866 = vunpack.c.h.b16 %v3701
    %v4867 = vunpack.c.l.b16 %v3702
    %v4868 = vunpack.c.h.b16 %v3702
    %v4869 = vunpack.c.l.b16 %v3703
    %v4870 = vunpack.c.h.b16 %v3703
    %v4871 = vunpack.c.l.b16 %v3704
    %v4872 = vunpack.c.h.b16 %v3704
    %v4873 = vunpack.c.l.b16 %v3705
    %v4874 = vunpack.c.h.b16 %v3705
    %v4875 = vunpack.c.l.b16 %v3706
    %v4876 = vunpack.c.h.b16 %v3706
    %v4877 = vunpack.c.l.b16 %v3707
    %v4878 = vunpack.c.h.b16 %v3707
    %v4879 = vunpack.c.l.b16 %v3708
    %v4880 = vunpack.c.h.b16 %v3708
    %v4881 = vunpack.c.l.b16 %v3709
    %v4882 = vunpack.c.h.b16 %v3709
    %v4883 = vunpack.c.l.b16 %v3710
    %v4884 = vunpack.c.h.b16 %v3710
    %v4885 = vunpack.c.l.b16 %v3711
    %v4886 = vunpack.c.h.b16 %v3711
    %v4887 = vunpack.c.l.b16 %v3712
    %v4888 = vunpack.c.h.b16 %v3712
    %v4889 = vunpack.c.l.b16 %v3713
    %v4890 = vunpack.c.h.b16 %v3713
    %v4891 = vunpack.c.l.b16 %v3714
    %v4892 = vunpack.c.h.b16 %v3714
    %v4893 = vunpack.c.l.b16 %v3715
    %v4894 = vunpack.c.h.b16 %v3715
    %v4895 = vunpack.c.l.b16 %v3716
    %v4896 = vunpack.c.h.b16 %v3716
    %v4897 = vunpack.c.l.b16 %v3717
    %v4898 = vunpack.c.h.b16 %v3717
    %v4899 = vunpack.c.l.b16 %v3718
    %v4900 = vunpack.c.h.b16 %v3718
    %v4901 = vunpack.c.l.b16 %v3719
    %v4902 = vunpack.c.h.b16 %v3719
    %v4903 = vunpack.c.l.b16 %v3720
    %v4904 = vunpack.c.h.b16 %v3720
    %v4905 = vunpack.c.l.b16 %v3721
    %v4906 = vunpack.c.h.b16 %v3721
    %v4907 = vunpack.c.l.b16 %v3722
    %v4908 = vunpack.c.h.b16 %v3722
    %v4909 = vunpack.c.l.b16 %v3723
    %v4910 = vunpack.c.h.b16 %v3723
    %v4911 = vunpack.c.l.b16 %v3724
    %v4912 = vunpack.c.h.b16 %v3724
    %v4913 = vunpack.c.l.b16 %v3725
    %v4914 = vunpack.c.h.b16 %v3725
    %v4915 = vunpack.c.l.b16 %v3726
    %v4916 = vunpack.c.h.b16 %v3726
    %v4917 = vunpack.c.l.b16 %v3727
    %v4918 = vunpack.c.h.b16 %v3727
    %v4919 = vunpack.c.l.b16 %v3728
    %v4920 = vunpack.c.h.b16 %v3728
    %v4921 = vunpack.c.l.b16 %v3729
    %v4922 = vunpack.c.h.b16 %v3729
    %v4923 = vunpack.c.l.b16 %v3730
    %v4924 = vunpack.c.h.b16 %v3730
    %v4925 = vunpack.c.l.b16 %v3731
    %v4926 = vunpack.c.h.b16 %v3731
    %v4927 = vunpack.c.l.b16 %v3732
    %v4928 = vunpack.c.h.b16 %v3732
    %v4929 = vunpack.c.l.b16 %v3733
    %v4930 = vunpack.c.h.b16 %v3733
    %v4931 = vunpack.c.l.b16 %v3734
    %v4932 = vunpack.c.h.b16 %v3734
    %v4933 = vunpack.c.l.b16 %v3735
    %v4934 = vunpack.c.h.b16 %v3735
    %v4935 = vunpack.c.l.b16 %v3736
    %v4936 = vunpack.c.h.b16 %v3736
    %v4937 = vunpack.c.l.b16 %v3737
    %v4938 = vunpack.c.h.b16 %v3737
    %v4939 = vunpack.c.l.b16 %v3738
    %v4940 = vunpack.c.h.b16 %v3738
    %v4941 = vunpack.c.l.b16 %v3739
    %v4942 = vunpack.c.h.b16 %v3739
    %v4943 = vunpack.c.l.b16 %v3740
    %v4944 = vunpack.c.h.b16 %v3740
    %v4945 = vunpack.c.l.b16 %v3741
    %v4946 = vunpack.c.h.b16 %v3741
    %v4947 = vunpack.c.l.b16 %v3742
    %v4948 = vunpack.c.h.b16 %v3742
    %v4949 = vunpack.c.l.b16 %v3743
    %v4950 = vunpack.c.h.b16 %v3743
    %v4951 = vunpack.c.l.b16 %v3744
    %v4952 = vunpack.c.h.b16 %v3744
    %v4953 = vunpack.c.l.b16 %v3745
    %v4954 = vunpack.c.h.b16 %v3745
    %v4955 = vunpack.c.l.b16 %v3746
    %v4956 = vunpack.c.h.b16 %v3746
    %v4957 = vunpack.c.l.b16 %v3747
    %v4958 = vunpack.c.h.b16 %v3747
    %v4959 = vunpack.c.l.b16 %v3748
    %v4960 = vunpack.c.h.b16 %v3748
    %v4961 = vunpack.c.l.b16 %v3749
    %v4962 = vunpack.c.h.b16 %v3749
    %v4963 = vunpack.c.l.b16 %v3750
    %v4964 = vunpack.c.h.b16 %v3750
    %v4965 = vunpack.c.l.b16 %v3751
    %v4966 = vunpack.c.h.b16 %v3751
    %v4967 = vunpack.c.l.b16 %v3752
    %v4968 = vunpack.c.h.b16 %v3752
    %v4969 = vunpack.c.l.b16 %v3753
    %v4970 = vunpack.c.h.b16 %v3753
    %v4971 = vunpack.c.l.b16 %v3754
    %v4972 = vunpack.c.h.b16 %v3754
    %v4973 = vunpack.c.l.b16 %v3755
    %v4974 = vunpack.c.h.b16 %v3755
    %v4975 = vunpack.c.l.b16 %v3756
    %v4976 = vunpack.c.h.b16 %v3756
    %v4977 = vunpack.c.l.b16 %v3757
    %v4978 = vunpack.c.h.b16 %v3757
    %v4979 = vunpack.c.l.b16 %v3758
    %v4980 = vunpack.c.h.b16 %v3758
    %v4981 = vunpack.c.l.b16 %v3759
    %v4982 = vunpack.c.h.b16 %v3759
    %v4983 = vunpack.c.l.b16 %v3760
    %v4984 = vunpack.c.h.b16 %v3760
    %v4985 = vunpack.c.l.b16 %v3761
    %v4986 = vunpack.c.h.b16 %v3761
    %v4987 = vunpack.c.l.b16 %v3762
    %v4988 = vunpack.c.h.b16 %v3762
    %v4989 = vunpack.c.l.b16 %v3763
    %v4990 = vunpack.c.h.b16 %v3763
    %v4991 = vunpack.c.l.b16 %v3764
    %v4992 = vunpack.c.h.b16 %v3764
    %v4993 = vunpack.c.l.b16 %v3765
    %v4994 = vunpack.c.h.b16 %v3765
    %v4995 = vunpack.c.l.b16 %v3766
    %v4996 = vunpack.c.h.b16 %v3766
    %v4997 = vunpack.c.l.b16 %v3767
    %v4998 = vunpack.c.h.b16 %v3767
    %v4999 = vunpack.c.l.b16 %v3768
    %v5000 = vunpack.c.h.b16 %v3768
    %v5001 = vunpack.c.l.b16 %v3769
    %v5002 = vunpack.c.h.b16 %v3769
    %v5003 = vunpack.c.l.b16 %v3770
    %v5004 = vunpack.c.h.b16 %v3770
    %v5005 = vunpack.c.l.b16 %v3771
    %v5006 = vunpack.c.h.b16 %v3771
    %v5007 = vunpack.c.l.b16 %v3772
    %v5008 = vunpack.c.h.b16 %v3772
    %v5009 = vunpack.c.l.b16 %v3773
    %v5010 = vunpack.c.h.b16 %v3773
    %v5011 = vunpack.c.l.b16 %v3774
    %v5012 = vunpack.c.h.b16 %v3774
    %v5013 = vunpack.c.l.b16 %v3775
    %v5014 = vunpack.c.h.b16 %v3775
    %v5015 = vunpack.c.l.b16 %v3776
    %v5016 = vunpack.c.h.b16 %v3776
    %v5017 = vunpack.c.l.b16 %v3777
    %v5018 = vunpack.c.h.b16 %v3777
    %v5019 = vunpack.c.l.b16 %v3778
    %v5020 = vunpack.c.h.b16 %v3778
    %v5021 = vunpack.c.l.b16 %v3779
    %v5022 = vunpack.c.h.b16 %v3779
    %v5023 = vunpack.c.l.b16 %v3780
    %v5024 = vunpack.c.h.b16 %v3780
    %v5025 = vunpack.c.l.b16 %v3781
    %v5026 = vunpack.c.h.b16 %v3781
    %v5027 = vunpack.c.l.b16 %v3782
    %v5028 = vunpack.c.h.b16 %v3782
    %v5029 = vunpack.c.l.b16 %v3783
    %v5030 = vunpack.c.h.b16 %v3783
    %v5031 = vunpack.c.l.b16 %v3784
    %v5032 = vunpack.c.h.b16 %v3784
    %v5033 = vunpack.c.l.b16 %v3785
    %v5034 = vunpack.c.h.b16 %v3785
    %v5035 = vunpack.c.l.b16 %v3786
    %v5036 = vunpack.c.h.b16 %v3786
    %v5037 = vunpack.c.l.b16 %v3787
    %v5038 = vunpack.c.h.b16 %v3787
    %v5039 = vunpack.c.l.b16 %v3788
    %v5040 = vunpack.c.h.b16 %v3788
    %v5041 = vunpack.c.l.b16 %v3789
    %v5042 = vunpack.c.h.b16 %v3789
    %v5043 = vunpack.c.l.b16 %v3790
    %v5044 = vunpack.c.h.b16 %v3790
    %v5045 = vunpack.c.l.b16 %v3791
    %v5046 = vunpack.c.h.b16 %v3791
    %v5047 = vunpack.c.l.b16 %v3792
    %v5048 = vunpack.c.h.b16 %v3792
    %v5049 = vunpack.c.l.b16 %v3793
    %v5050 = vunpack.c.h.b16 %v3793
    %v5051 = vunpack.c.l.b16 %v3794
    %v5052 = vunpack.c.h.b16 %v3794
    %v5053 = vunpack.c.l.b16 %v3795
    %v5054 = vunpack.c.h.b16 %v3795
    %v5055 = vunpack.c.l.b16 %v3796
    %v5056 = vunpack.c.h.b16 %v3796
    %v5057 = vunpack.c.l.b16 %v3797
    %v5058 = vunpack.c.h.b16 %v3797
    %v5059 = vunpack.c.l.b16 %v3798
    %v5060 = vunpack.c.h.b16 %v3798
    %v5061 = vunpack.c.l.b16 %v3799
    %v5062 = vunpack.c.h.b16 %v3799
    %v5063 = vunpack.c.l.b16 %v3800
    %v5064 = vunpack.c.h.b16 %v3800
    %v5065 = vunpack.c.l.b16 %v3801
    %v5066 = vunpack.c.h.b16 %v3801
    %v5067 = vunpack.c.l.b16 %v3802
    %v5068 = vunpack.c.h.b16 %v3802
    %v5069 = vunpack.c.l.b16 %v3803
    %v5070 = vunpack.c.h.b16 %v3803
    %v5071 = vunpack.c.l.b16 %v3804
    %v5072 = vunpack.c.h.b16 %v3804
    %v5073 = vunpack.c.l.b16 %v3805
    %v5074 = vunpack.c.h.b16 %v3805
    %v5075 = vunpack.c.l.b16 %v3806
    %v5076 = vunpack.c.h.b16 %v3806
    %v5077 = vunpack.c.l.b16 %v3807
    %v5078 = vunpack.c.h.b16 %v3807
    %v5079 = vunpack.c.l.b16 %v3808
    %v5080 = vunpack.c.h.b16 %v3808
    %v5081 = vunpack.c.l.b16 %v3809
    %v5082 = vunpack.c.h.b16 %v3809
    %v5083 = vunpack.c.l.b16 %v3810
    %v5084 = vunpack.c.h.b16 %v3810
    %v5085 = vunpack.c.l.b16 %v3811
    %v5086 = vunpack.c.h.b16 %v3811
    %v5087 = vunpack.c.l.b16 %v3812
    %v5088 = vunpack.c.h.b16 %v3812
    %v5089 = vunpack.c.l.b16 %v3813
    %v5090 = vunpack.c.h.b16 %v3813
    %v5091 = vunpack.c.l.b16 %v3814
    %v5092 = vunpack.c.h.b16 %v3814
    %v5093 = vunpack.c.l.b16 %v3815
    %v5094 = vunpack.c.h.b16 %v3815
    %v5095 = vunpack.c.l.b16 %v3816
    %v5096 = vunpack.c.h.b16 %v3816
    %v5097 = vunpack.c.l.b16 %v3817
    %v5098 = vunpack.c.h.b16 %v3817
    %v5099 = vunpack.c.l.b16 %v3818
    %v5100 = vunpack.c.h.b16 %v3818
    %v5101 = vunpack.c.l.b16 %v3819
    %v5102 = vunpack.c.h.b16 %v3819
    %v5103 = vunpack.c.l.b16 %v3820
    %v5104 = vunpack.c.h.b16 %v3820
    %v5105 = vunpack.c.l.b16 %v3821
    %v5106 = vunpack.c.h.b16 %v3821
    %v5107 = vunpack.c.l.b16 %v3822
    %v5108 = vunpack.c.h.b16 %v3822
    %v5109 = vunpack.c.l.b16 %v3823
    %v5110 = vunpack.c.h.b16 %v3823
    %v5111 = vunpack.c.l.b16 %v3824
    %v5112 = vunpack.c.h.b16 %v3824
    %v5113 = vunpack.c.l.b16 %v3825
    %v5114 = vunpack.c.h.b16 %v3825
    %v5115 = vunpack.c.l.b16 %v3826
    %v5116 = vunpack.c.h.b16 %v3826
    %v5117 = vunpack.c.l.b16 %v3827
    %v5118 = vunpack.c.h.b16 %v3827
    %v5119 = vunpack.c.l.b16 %v3828
    %v5120 = vunpack.c.h.b16 %v3828
    %v5121 = vunpack.c.l.b16 %v3829
    %v5122 = vunpack.c.h.b16 %v3829
    %v5123 = vunpack.c.l.b16 %v3830
    %v5124 = vunpack.c.h.b16 %v3830
    %v5125 = vunpack.c.l.b16 %v3831
    %v5126 = vunpack.c.h.b16 %v3831
    %v5127 = vunpack.c.l.b16 %v3832
    %v5128 = vunpack.c.h.b16 %v3832
    %v5129 = vunpack.c.l.b16 %v3833
    %v5130 = vunpack.c.h.b16 %v3833
    %v5131 = vunpack.c.l.b16 %v3834
    %v5132 = vunpack.c.h.b16 %v3834
    %v5133 = vunpack.c.l.b16 %v3835
    %v5134 = vunpack.c.h.b16 %v3835
    %v5135 = vunpack.c.l.b16 %v3836
    %v5136 = vunpack.c.h.b16 %v3836
    %v5137 = vunpack.c.l.b16 %v3837
    %v5138 = vunpack.c.h.b16 %v3837
    %v5139 = vunpack.c.l.b16 %v3838
    %v5140 = vunpack.c.h.b16 %v3838
    %v5141 = vunpack.c.l.b16 %v3839
    %v5142 = vunpack.c.h.b16 %v3839
    %v5143 = vunpack.c.l.b16 %v3840
    %v5144 = vunpack.c.h.b16 %v3840
    %v5145 = vunpack.c.l.b16 %v3841
    %v5146 = vunpack.c.h.b16 %v3841
    %v5147 = vunpack.c.l.b16 %v3842
    %v5148 = vunpack.c.h.b16 %v3842
    %v5149 = vunpack.c.l.b16 %v3843
    %v5150 = vunpack.c.h.b16 %v3843
    %v5151 = vunpack.c.l.b16 %v3844
    %v5152 = vunpack.c.h.b16 %v3844
    %v5153 = vunpack.c.l.b16 %v3845
    %v5154 = vunpack.c.h.b16 %v3845
    %v5155 = vunpack.c.l.b16 %v3846
    %v5156 = vunpack.c.h.b16 %v3846
    %v5157 = vunpack.c.l.b16 %v3847
    %v5158 = vunpack.c.h.b16 %v3847
    %v5159 = vunpack.c.l.b16 %v3848
    %v5160 = vunpack.c.h.b16 %v3848
    %v5161 = vunpack.c.l.b16 %v3849
    %v5162 = vunpack.c.h.b16 %v3849
    %v5163 = vunpack.c.l.b16 %v3850
    %v5164 = vunpack.c.h.b16 %v3850
    %v5165 = vunpack.c.l.b16 %v3851
    %v5166 = vunpack.c.h.b16 %v3851
    %v5167 = vunpack.c.l.b16 %v3852
    %v5168 = vunpack.c.h.b16 %v3852
    %v5169 = vunpack.c.l.b16 %v3853
    %v5170 = vunpack.c.h.b16 %v3853
    %v5171 = vunpack.c.l.b16 %v3854
    %v5172 = vunpack.c.h.b16 %v3854
    %v5173 = vunpack.c.l.b16 %v3855
    %v5174 = vunpack.c.h.b16 %v3855
    %v5175 = vunpack.c.l.b16 %v3856
    %v5176 = vunpack.c.h.b16 %v3856
    %v5177 = vunpack.c.l.b16 %v3857
    %v5178 = vunpack.c.h.b16 %v3857
    %v5179 = vunpack.c.l.b16 %v3858
    %v5180 = vunpack.c.h.b16 %v3858
    %v5181 = vunpack.c.l.b16 %v3859
    %v5182 = vunpack.c.h.b16 %v3859
    %v5183 = vunpack.c.l.b16 %v3860
    %v5184 = vunpack.c.h.b16 %v3860
    %v5185 = vunpack.c.l.b16 %v3861
    %v5186 = vunpack.c.h.b16 %v3861
    %v5187 = vunpack.c.l.b16 %v3862
    %v5188 = vunpack.c.h.b16 %v3862
    %v5189 = vunpack.c.l.b16 %v3863
    %v5190 = vunpack.c.h.b16 %v3863
    %v5191 = vunpack.c.l.b16 %v3864
    %v5192 = vunpack.c.h.b16 %v3864
    %v5193 = vunpack.c.l.b16 %v3865
    %v5194 = vunpack.c.h.b16 %v3865
    %v5195 = vunpack.c.l.b16 %v3866
    %v5196 = vunpack.c.h.b16 %v3866
    %v5197 = vunpack.c.l.b16 %v3867
    %v5198 = vunpack.c.h.b16 %v3867
    %v5199 = vunpack.c.l.b16 %v3868
    %v5200 = vunpack.c.h.b16 %v3868
    %v5201 = vunpack.c.l.b16 %v3869
    %v5202 = vunpack.c.h.b16 %v3869
    %v5203 = vunpack.c.l.b16 %v3870
    %v5204 = vunpack.c.h.b16 %v3870
    %v5205 = vunpack.c.l.b16 %v3871
    %v5206 = vunpack.c.h.b16 %v3871
    %v5207 = vunpack.c.l.b16 %v3872
    %v5208 = vunpack.c.h.b16 %v3872
    %v5209 = vunpack.c.l.b16 %v3873
    %v5210 = vunpack.c.h.b16 %v3873
    %v5211 = vunpack.c.l.b16 %v3874
    %v5212 = vunpack.c.h.b16 %v3874
    %v5213 = vunpack.c.l.b16 %v3875
    %v5214 = vunpack.c.h.b16 %v3875
    %v5215 = vunpack.c.l.b16 %v3876
    %v5216 = vunpack.c.h.b16 %v3876
    %v5217 = vunpack.c.l.b16 %v3877
    %v5218 = vunpack.c.h.b16 %v3877
    %v5219 = vunpack.c.l.b16 %v3878
    %v5220 = vunpack.c.h.b16 %v3878
    %v5221 = vunpack.c.l.b16 %v3879
    %v5222 = vunpack.c.h.b16 %v3879
    %v5223 = vunpack.c.l.b16 %v3880
    %v5224 = vunpack.c.h.b16 %v3880
    %v5225 = vunpack.c.l.b16 %v3881
    %v5226 = vunpack.c.h.b16 %v3881
    %v5227 = vunpack.c.l.b16 %v3882
    %v5228 = vunpack.c.h.b16 %v3882
    %v5229 = vunpack.c.l.b16 %v3883
    %v5230 = vunpack.c.h.b16 %v3883
    %v5231 = vunpack.c.l.b16 %v3884
    %v5232 = vunpack.c.h.b16 %v3884
    %v5233 = vunpack.c.l.b16 %v3885
    %v5234 = vunpack.c.h.b16 %v3885
    %v5235 = vunpack.c.l.b16 %v3886
    %v5236 = vunpack.c.h.b16 %v3886
    %v5237 = vunpack.c.l.b16 %v3887
    %v5238 = vunpack.c.h.b16 %v3887
    %v5239 = vunpack.c.l.b16 %v3888
    %v5240 = vunpack.c.h.b16 %v3888
    %v5241 = vunpack.c.l.b16 %v3889
    %v5242 = vunpack.c.h.b16 %v3889
    %v5243 = vunpack.c.l.b16 %v3890
    %v5244 = vunpack.c.h.b16 %v3890
    %v5245 = vunpack.c.l.b16 %v3891
    %v5246 = vunpack.c.h.b16 %v3891
    %v5247 = vunpack.c.l.b16 %v3892
    %v5248 = vunpack.c.h.b16 %v3892
    %v5249 = vunpack.c.l.b16 %v3893
    %v5250 = vunpack.c.h.b16 %v3893
    %v5251 = vunpack.c.l.b16 %v3894
    %v5252 = vunpack.c.h.b16 %v3894
    %v5253 = vunpack.c.l.b16 %v3895
    %v5254 = vunpack.c.h.b16 %v3895
    %v5255 = vunpack.c.l.b16 %v3896
    %v5256 = vunpack.c.h.b16 %v3896
    %v5257 = vunpack.c.l.b16 %v3897
    %v5258 = vunpack.c.h.b16 %v3897
    %v5259 = vunpack.c.l.b16 %v3898
    %v5260 = vunpack.c.h.b16 %v3898
    %v5261 = vunpack.c.l.b16 %v3899
    %v5262 = vunpack.c.h.b16 %v3899
    %v5263 = vunpack.c.l.b16 %v3900
    %v5264 = vunpack.c.h.b16 %v3900
    %v5265 = vunpack.c.l.b16 %v3901
    %v5266 = vunpack.c.h.b16 %v3901
    %v5267 = vunpack.c.l.b16 %v3902
    %v5268 = vunpack.c.h.b16 %v3902
    %v5269 = vunpack.c.l.b16 %v3903
    %v5270 = vunpack.c.h.b16 %v3903
    %v5271 = vunpack.c.l.b16 %v3904
    %v5272 = vunpack.c.h.b16 %v3904
    %v5273 = vunpack.c.l.b16 %v3905
    %v5274 = vunpack.c.h.b16 %v3905
    %v5275 = vunpack.c.l.b16 %v3906
    %v5276 = vunpack.c.h.b16 %v3906
    %v5277 = vunpack.c.l.b16 %v3907
    %v5278 = vunpack.c.h.b16 %v3907
    %v5279 = vunpack.c.l.b16 %v3908
    %v5280 = vunpack.c.h.b16 %v3908
    %v5281 = vunpack.c.l.b16 %v3909
    %v5282 = vunpack.c.h.b16 %v3909
    %v5283 = vunpack.c.l.b16 %v3910
    %v5284 = vunpack.c.h.b16 %v3910
    %v5285 = vunpack.c.l.b16 %v3911
    %v5286 = vunpack.c.h.b16 %v3911
    %v5287 = vunpack.c.l.b16 %v3912
    %v5288 = vunpack.c.h.b16 %v3912
    %v5289 = vunpack.c.l.b16 %v3913
    %v5290 = vunpack.c.h.b16 %v3913
    %v5291 = vunpack.c.l.b16 %v3914
    %v5292 = vunpack.c.h.b16 %v3914
    %v5293 = vunpack.c.l.b16 %v3915
    %v5294 = vunpack.c.h.b16 %v3915
    %v5295 = vunpack.c.l.b16 %v3916
    %v5296 = vunpack.c.h.b16 %v3916
    %v5297 = vunpack.c.l.b16 %v3917
    %v5298 = vunpack.c.h.b16 %v3917
    %v5299 = vunpack.c.l.b16 %v3918
    %v5300 = vunpack.c.h.b16 %v3918
    %v5301 = vunpack.c.l.b16 %v3919
    %v5302 = vunpack.c.h.b16 %v3919
    %v5303 = vunpack.c.l.b16 %v3920
    %v5304 = vunpack.c.h.b16 %v3920
    %v5305 = vunpack.c.l.b16 %v3921
    %v5306 = vunpack.c.h.b16 %v3921
    %v5307 = vunpack.c.l.b16 %v3922
    %v5308 = vunpack.c.h.b16 %v3922
    %v5309 = vunpack.c.l.b16 %v3923
    %v5310 = vunpack.c.h.b16 %v3923
    %v5311 = vunpack.c.l.b16 %v3924
    %v5312 = vunpack.c.h.b16 %v3924
    %v5313 = vunpack.c.l.b16 %v3925
    %v5314 = vunpack.c.h.b16 %v3925
    %v5315 = vunpack.c.l.b16 %v3926
    %v5316 = vunpack.c.h.b16 %v3926
    %v5317 = vunpack.c.l.b16 %v3927
    %v5318 = vunpack.c.h.b16 %v3927
    %v5319 = vunpack.c.l.b16 %v3928
    %v5320 = vunpack.c.h.b16 %v3928
    %v5321 = vunpack.c.l.b16 %v3929
    %v5322 = vunpack.c.h.b16 %v3929
    %v5323 = vunpack.c.l.b16 %v3930
    %v5324 = vunpack.c.h.b16 %v3930
    %v5325 = vunpack.c.l.b16 %v3931
    %v5326 = vunpack.c.h.b16 %v3931
    %v5327 = vunpack.c.l.b16 %v3932
    %v5328 = vunpack.c.h.b16 %v3932
    %v5329 = vunpack.c.l.b16 %v3933
    %v5330 = vunpack.c.h.b16 %v3933
    %v5331 = vunpack.c.l.b16 %v3934
    %v5332 = vunpack.c.h.b16 %v3934
    %v5333 = vunpack.c.l.b16 %v3935
    %v5334 = vunpack.c.h.b16 %v3935
    %v5335 = vunpack.c.l.b16 %v3936
    %v5336 = vunpack.c.h.b16 %v3936
    %v5337 = vunpack.c.l.b16 %v3937
    %v5338 = vunpack.c.h.b16 %v3937
    %v5339 = vunpack.c.l.b16 %v3938
    %v5340 = vunpack.c.h.b16 %v3938
    %v5341 = vunpack.c.l.b16 %v3939
    %v5342 = vunpack.c.h.b16 %v3939
    %v5343 = vunpack.c.l.b16 %v3940
    %v5344 = vunpack.c.h.b16 %v3940
    %v5345 = vunpack.c.l.b16 %v3941
    %v5346 = vunpack.c.h.b16 %v3941
    %v5347 = vunpack.c.l.b16 %v3942
    %v5348 = vunpack.c.h.b16 %v3942
    %v5349 = vunpack.c.l.b16 %v3943
    %v5350 = vunpack.c.h.b16 %v3943
    %v5351 = vunpack.c.l.b16 %v3944
    %v5352 = vunpack.c.h.b16 %v3944
    %v5353 = vunpack.c.l.b16 %v3945
    %v5354 = vunpack.c.h.b16 %v3945
    %v5355 = vunpack.c.l.b16 %v3946
    %v5356 = vunpack.c.h.b16 %v3946
    %v5357 = vunpack.c.l.b16 %v3947
    %v5358 = vunpack.c.h.b16 %v3947
    %v5359 = vunpack.c.l.b16 %v3948
    %v5360 = vunpack.c.h.b16 %v3948
    %v5361 = vunpack.c.l.b16 %v3949
    %v5362 = vunpack.c.h.b16 %v3949
    %v5363 = vunpack.c.l.b16 %v3950
    %v5364 = vunpack.c.h.b16 %v3950
    %v5365 = vunpack.c.l.b16 %v3951
    %v5366 = vunpack.c.h.b16 %v3951
    %v5367 = vunpack.c.l.b16 %v3952
    %v5368 = vunpack.c.h.b16 %v3952
    %v5369 = vunpack.c.l.b16 %v3953
    %v5370 = vunpack.c.h.b16 %v3953
    %v5371 = vunpack.c.l.b16 %v3954
    %v5372 = vunpack.c.h.b16 %v3954
    %v5373 = vunpack.c.l.b16 %v3955
    %v5374 = vunpack.c.h.b16 %v3955
    %v5375 = vunpack.c.l.b16 %v3956
    %v5376 = vunpack.c.h.b16 %v3956
    %v5377 = vunpack.c.l.b16 %v3957
    %v5378 = vunpack.c.h.b16 %v3957
    %v5379 = vunpack.c.l.b16 %v3958
    %v5380 = vunpack.c.h.b16 %v3958
    %v5381 = vunpack.c.l.b16 %v3959
    %v5382 = vunpack.c.h.b16 %v3959
    %v5383 = vunpack.c.l.b16 %v3960
    %v5384 = vunpack.c.h.b16 %v3960
    %v5385 = vunpack.c.l.b16 %v3961
    %v5386 = vunpack.c.h.b16 %v3961
    %v5387 = vunpack.c.l.b16 %v3962
    %v5388 = vunpack.c.h.b16 %v3962
    %v5389 = vunpack.c.l.b16 %v3963
    %v5390 = vunpack.c.h.b16 %v3963
    %v5391 = vunpack.c.l.b16 %v3964
    %v5392 = vunpack.c.h.b16 %v3964
    %v5393 = vunpack.c.l.b16 %v3965
    %v5394 = vunpack.c.h.b16 %v3965
    %v5395 = vunpack.c.l.b16 %v3966
    %v5396 = vunpack.c.h.b16 %v3966
    %v5397 = vunpack.c.l.b16 %v3967
    %v5398 = vunpack.c.h.b16 %v3967
    %v5399 = vunpack.c.l.b16 %v3968
    %v5400 = vunpack.c.h.b16 %v3968
    %v5401 = vunpack.c.l.b16 %v3969
    %v5402 = vunpack.c.h.b16 %v3969
    %v5403 = vunpack.c.l.b16 %v3970
    %v5404 = vunpack.c.h.b16 %v3970
    %v5405 = vunpack.c.l.b16 %v3971
    %v5406 = vunpack.c.h.b16 %v3971
    %v5407 = vunpack.c.l.b16 %v3972
    %v5408 = vunpack.c.h.b16 %v3972
    %v5409 = vunpack.c.l.b16 %v3973
    %v5410 = vunpack.c.h.b16 %v3973
    %v5411 = vunpack.c.l.b16 %v3974
    %v5412 = vunpack.c.h.b16 %v3974
    %v5413 = vunpack.c.l.b16 %v3975
    %v5414 = vunpack.c.h.b16 %v3975
    %v5415 = vunpack.c.l.b16 %v3976
    %v5416 = vunpack.c.h.b16 %v3976
    %v5417 = vunpack.c.l.b16 %v3977
    %v5418 = vunpack.c.h.b16 %v3977
    %v5419 = vunpack.c.l.b16 %v3978
    %v5420 = vunpack.c.h.b16 %v3978
    %v5421 = vunpack.c.l.b16 %v3979
    %v5422 = vunpack.c.h.b16 %v3979
    %v5423 = vunpack.c.l.b16 %v3980
    %v5424 = vunpack.c.h.b16 %v3980
    %v5425 = vunpack.c.l.b16 %v3981
    %v5426 = vunpack.c.h.b16 %v3981
    %v5427 = vunpack.c.l.b16 %v3982
    %v5428 = vunpack.c.h.b16 %v3982
    %v5429 = vunpack.c.l.b16 %v3983
    %v5430 = vunpack.c.h.b16 %v3983
    %v5431 = vunpack.c.l.b16 %v3984
    %v5432 = vunpack.c.h.b16 %v3984
    %v5433 = vunpack.c.l.b16 %v3985
    %v5434 = vunpack.c.h.b16 %v3985
    %v5435 = vunpack.c.l.b16 %v3986
    %v5436 = vunpack.c.h.b16 %v3986
    %v5437 = vunpack.c.l.b16 %v3987
    %v5438 = vunpack.c.h.b16 %v3987
    %v5439 = vunpack.c.l.b16 %v3988
    %v5440 = vunpack.c.h.b16 %v3988
    %v5441 = vunpack.c.l.b16 %v3989
    %v5442 = vunpack.c.h.b16 %v3989
    %v5443 = vunpack.c.l.b16 %v3990
    %v5444 = vunpack.c.h.b16 %v3990
    %v5445 = vunpack.c.l.b16 %v3991
    %v5446 = vunpack.c.h.b16 %v3991
    %v5447 = vunpack.c.l.b16 %v3992
    %v5448 = vunpack.c.h.b16 %v3992
    %v5449 = vunpack.c.l.b16 %v3993
    %v5450 = vunpack.c.h.b16 %v3993
    %v5451 = vunpack.c.l.b16 %v3994
    %v5452 = vunpack.c.h.b16 %v3994
    %v5453 = vunpack.c.l.b16 %v3995
    %v5454 = vunpack.c.h.b16 %v3995
    %v5455 = vunpack.c.l.b16 %v3996
    %v5456 = vunpack.c.h.b16 %v3996
    %v5457 = vunpack.c.l.b16 %v3997
    %v5458 = vunpack.c.h.b16 %v3997
    %v5459 = vunpack.c.l.b16 %v3998
    %v5460 = vunpack.c.h.b16 %v3998
    %v5461 = vunpack.c.l.b16 %v3999
    %v5462 = vunpack.c.h.b16 %v3999
    %v5463 = vunpack.c.l.b16 %v4000
    %v5464 = vunpack.c.h.b16 %v4000
    %v5465 = vunpack.c.l.b16 %v4001
    %v5466 = vunpack.c.h.b16 %v4001
    %v5467 = vunpack.c.l.b16 %v4002
    %v5468 = vunpack.c.h.b16 %v4002
    %v5469 = vunpack.c.l.b16 %v4003
    %v5470 = vunpack.c.h.b16 %v4003
    %v5471 = vunpack.c.l.b16 %v4004
    %v5472 = vunpack.c.h.b16 %v4004
    %v5473 = vunpack.c.l.b16 %v4005
    %v5474 = vunpack.c.h.b16 %v4005
    %v5475 = vunpack.c.l.b16 %v4006
    %v5476 = vunpack.c.h.b16 %v4006
    %v5477 = vunpack.c.l.b16 %v4007
    %v5478 = vunpack.c.h.b16 %v4007
    %v5479 = vunpack.c.l.b16 %v4008
    %v5480 = vunpack.c.h.b16 %v4008
    %v5481 = vunpack.c.l.b16 %v4009
    %v5482 = vunpack.c.h.b16 %v4009
    %v5483 = vunpack.c.l.b16 %v4010
    %v5484 = vunpack.c.h.b16 %v4010
    %v5485 = vunpack.c.l.b16 %v4011
    %v5486 = vunpack.c.h.b16 %v4011
    %v5487 = vunpack.c.l.b16 %v4012
    %v5488 = vunpack.c.h.b16 %v4012
    %v5489 = vunpack.c.l.b16 %v4013
    %v5490 = vunpack.c.h.b16 %v4013
    %v5491 = vunpack.c.l.b16 %v4014
    %v5492 = vunpack.c.h.b16 %v4014
    %v5493 = vunpack.c.l.b16 %v4015
    %v5494 = vunpack.c.h.b16 %v4015
    %v5495 = vunpack.c.l.b16 %v4016
    %v5496 = vunpack.c.h.b16 %v4016
    %v5497 = vunpack.c.l.b16 %v4017
    %v5498 = vunpack.c.h.b16 %v4017
    %v5499 = vunpack.c.l.b16 %v4018
    %v5500 = vunpack.c.h.b16 %v4018
    %v5501 = vunpack.c.l.b16 %v4019
    %v5502 = vunpack.c.h.b16 %v4019
    %v5503 = vunpack.c.l.b16 %v4020
    %v5504 = vunpack.c.h.b16 %v4020
    %v5505 = vunpack.c.l.b16 %v4021
    %v5506 = vunpack.c.h.b16 %v4021
    %v5507 = vunpack.c.l.b16 %v4022
    %v5508 = vunpack.c.h.b16 %v4022
    %v5509 = vunpack.c.l.b16 %v4023
    %v5510 = vunpack.c.h.b16 %v4023
    %v5511 = vunpack.c.l.b16 %v4024
    %v5512 = vunpack.c.h.b16 %v4024
    %v5513 = vunpack.c.l.b16 %v4025
    %v5514 = vunpack.c.h.b16 %v4025
    %v5515 = vunpack.c.l.b16 %v4026
    %v5516 = vunpack.c.h.b16 %v4026
    %v5517 = vunpack.c.l.b16 %v4027
    %v5518 = vunpack.c.h.b16 %v4027
    %v5519 = vunpack.c.l.b16 %v4028
    %v5520 = vunpack.c.h.b16 %v4028
    %v5521 = vunpack.c.l.b16 %v4029
    %v5522 = vunpack.c.h.b16 %v4029
    %v5523 = vunpack.c.l.b16 %v4030
    %v5524 = vunpack.c.h.b16 %v4030
    %v5525 = vunpack.c.l.b16 %v4031
    %v5526 = vunpack.c.h.b16 %v4031
    %v5527 = vunpack.c.l.b16 %v4032
    %v5528 = vunpack.c.h.b16 %v4032
    %v5529 = vunpack.c.l.b16 %v4033
    %v5530 = vunpack.c.h.b16 %v4033
    %v5531 = vunpack.c.l.b16 %v4034
    %v5532 = vunpack.c.h.b16 %v4034
    %v5533 = vunpack.c.l.b16 %v4035
    %v5534 = vunpack.c.h.b16 %v4035
    %v5535 = vunpack.c.l.b16 %v4036
    %v5536 = vunpack.c.h.b16 %v4036
    %v5537 = vunpack.c.l.b16 %v4037
    %v5538 = vunpack.c.h.b16 %v4037
    %v5539 = vunpack.c.l.b16 %v4038
    %v5540 = vunpack.c.h.b16 %v4038
    %v5541 = vunpack.c.l.b16 %v4039
    %v5542 = vunpack.c.h.b16 %v4039
    %v5543 = vunpack.c.l.b16 %v4040
    %v5544 = vunpack.c.h.b16 %v4040
    %v5545 = vunpack.c.l.b16 %v4041
    %v5546 = vunpack.c.h.b16 %v4041
    %v5547 = vunpack.c.l.b16 %v4042
    %v5548 = vunpack.c.h.b16 %v4042
    %v5549 = vunpack.c.l.b16 %v4043
    %v5550 = vunpack.c.h.b16 %v4043
    %v5551 = vunpack.c.l.b16 %v4044
    %v5552 = vunpack.c.h.b16 %v4044
    %v5553 = vunpack.c.l.b16 %v4045
    %v5554 = vunpack.c.h.b16 %v4045
    %v5555 = vunpack.c.l.b16 %v4046
    %v5556 = vunpack.c.h.b16 %v4046
    %v5557 = vunpack.c.l.b16 %v4047
    %v5558 = vunpack.c.h.b16 %v4047
    %v5559 = vunpack.c.l.b16 %v4048
    %v5560 = vunpack.c.h.b16 %v4048
    %v5561 = vunpack.c.l.b16 %v4049
    %v5562 = vunpack.c.h.b16 %v4049
    %v5563 = vunpack.c.l.b16 %v4050
    %v5564 = vunpack.c.h.b16 %v4050
    %v5565 = vunpack.c.l.b16 %v4051
    %v5566 = vunpack.c.h.b16 %v4051
    %v5567 = vunpack.c.l.b16 %v4052
    %v5568 = vunpack.c.h.b16 %v4052
    %v5569 = vunpack.c.l.b16 %v4053
    %v5570 = vunpack.c.h.b16 %v4053
    %v5571 = vunpack.c.l.b16 %v4054
    %v5572 = vunpack.c.h.b16 %v4054
    %v5573 = vunpack.c.l.b16 %v4055
    %v5574 = vunpack.c.h.b16 %v4055
    %v5575 = vunpack.c.l.b16 %v4056
    %v5576 = vunpack.c.h.b16 %v4056
    %v5577 = vunpack.c.l.b16 %v4057
    %v5578 = vunpack.c.h.b16 %v4057
    %v5579 = vunpack.c.l.b16 %v4058
    %v5580 = vunpack.c.h.b16 %v4058
    %v5581 = vunpack.c.l.b16 %v4059
    %v5582 = vunpack.c.h.b16 %v4059
    %v5583 = vunpack.c.l.b16 %v4060
    %v5584 = vunpack.c.h.b16 %v4060
    %v5585 = vunpack.c.l.b16 %v4061
    %v5586 = vunpack.c.h.b16 %v4061
    %v5587 = vunpack.c.l.b16 %v4062
    %v5588 = vunpack.c.h.b16 %v4062
    %v5589 = vunpack.c.l.b16 %v4063
    %v5590 = vunpack.c.h.b16 %v4063
    %v5591 = vunpack.c.l.b16 %v4064
    %v5592 = vunpack.c.h.b16 %v4064
    %v5593 = vunpack.c.l.b16 %v4065
    %v5594 = vunpack.c.h.b16 %v4065
    %v5595 = vunpack.c.l.b16 %v4066
    %v5596 = vunpack.c.h.b16 %v4066
    %v5597 = vunpack.c.l.b16 %v4067
    %v5598 = vunpack.c.h.b16 %v4067
    %v5599 = vunpack.c.l.b16 %v4068
    %v5600 = vunpack.c.h.b16 %v4068
    %v5601 = vunpack.c.l.b16 %v4069
    %v5602 = vunpack.c.h.b16 %v4069
    %v5603 = vunpack.c.l.b16 %v4070
    %v5604 = vunpack.c.h.b16 %v4070
    %v5605 = vunpack.c.l.b16 %v4071
    %v5606 = vunpack.c.h.b16 %v4071
    %v5607 = vunpack.c.l.b16 %v4072
    %v5608 = vunpack.c.h.b16 %v4072
    %v5609 = vunpack.c.l.b16 %v4073
    %v5610 = vunpack.c.h.b16 %v4073
    %v5611 = vunpack.c.l.b16 %v4074
    %v5612 = vunpack.c.h.b16 %v4074
    %v5613 = vunpack.c.l.b16 %v4075
    %v5614 = vunpack.c.h.b16 %v4075
    %v5615 = vunpack.c.l.b16 %v4076
    %v5616 = vunpack.c.h.b16 %v4076
    %v5617 = vunpack.c.l.b16 %v4077
    %v5618 = vunpack.c.h.b16 %v4077
    %v5619 = vunpack.c.l.b16 %v4078
    %v5620 = vunpack.c.h.b16 %v4078
    %v5621 = vunpack.c.l.b16 %v4079
    %v5622 = vunpack.c.h.b16 %v4079
    %v5623 = vunpack.c.l.b16 %v4080
    %v5624 = vunpack.c.h.b16 %v4080
    %v5625 = vunpack.c.l.b16 %v4081
    %v5626 = vunpack.c.h.b16 %v4081
    %v5627 = vunpack.c.l.b16 %v4082
    %v5628 = vunpack.c.h.b16 %v4082
    %v5629 = vunpack.c.l.b16 %v4083
    %v5630 = vunpack.c.h.b16 %v4083
    %v5631 = vunpack.c.l.b16 %v4084
    %v5632 = vunpack.c.h.b16 %v4084
    %v5633 = vunpack.c.l.b16 %v4085
    %v5634 = vunpack.c.h.b16 %v4085
    %v5635 = vunpack.c.l.b16 %v4086
    %v5636 = vunpack.c.h.b16 %v4086
    %v5637 = vunpack.c.l.b16 %v4087
    %v5638 = vunpack.c.h.b16 %v4087
    %v5639 = vunpack.c.l.b16 %v4088
    %v5640 = vunpack.c.h.b16 %v4088
    %v5641 = vunpack.c.l.b16 %v4089
    %v5642 = vunpack.c.h.b16 %v4089
    %v5643 = vunpack.c.l.b16 %v4090
    %v5644 = vunpack.c.h.b16 %v4090
    %v5645 = vunpack.c.l.b16 %v4091
    %v5646 = vunpack.c.h.b16 %v4091
    %v5647 = vunpack.c.l.b16 %v4092
    %v5648 = vunpack.c.h.b16 %v4092
    %v5649 = vunpack.c.l.b16 %v4093
    %v5650 = vunpack.c.h.b16 %v4093
    %v5651 = vunpack.c.l.b16 %v4094
    %v5652 = vunpack.c.h.b16 %v4094
    %v5653 = vunpack.c.l.b16 %v4095
    %v5654 = vunpack.c.h.b16 %v4095
    %v5655 = vunpack.c.l.b16 %v4096
    %v5656 = vunpack.c.h.b16 %v4096
    %v5657 = vunpack.c.l.b16 %v4097
    %v5658 = vunpack.c.h.b16 %v4097
    %v5659 = vunpack.c.l.b16 %v4098
    %v5660 = vunpack.c.h.b16 %v4098
    %v5661 = vunpack.c.l.b16 %v4099
    %v5662 = vunpack.c.h.b16 %v4099
    %v5663 = vunpack.c.l.b16 %v4100
    %v5664 = vunpack.c.h.b16 %v4100
    %v5665 = vunpack.c.l.b16 %v4101
    %v5666 = vunpack.c.h.b16 %v4101
    %v5667 = vunpack.c.l.b16 %v4102
    %v5668 = vunpack.c.h.b16 %v4102
    %v5669 = vunpack.c.l.b16 %v4103
    %v5670 = vunpack.c.h.b16 %v4103
    %v5671 = vunpack.c.l.b16 %v4104
    %v5672 = vunpack.c.h.b16 %v4104
    %v5673 = vunpack.c.l.b16 %v4105
    %v5674 = vunpack.c.h.b16 %v4105
    %v5675 = vunpack.c.l.b16 %v4106
    %v5676 = vunpack.c.h.b16 %v4106
    %v5677 = vunpack.c.l.b16 %v4107
    %v5678 = vunpack.c.h.b16 %v4107
    %v5679 = vunpack.c.l.b16 %v4108
    %v5680 = vunpack.c.h.b16 %v4108
    %v5681 = vunpack.c.l.b16 %v4109
    %v5682 = vunpack.c.h.b16 %v4109
    %v5683 = vunpack.c.l.b16 %v4110
    %v5684 = vunpack.c.h.b16 %v4110
    %v5685 = vunpack.c.l.b16 %v4111
    %v5686 = vunpack.c.h.b16 %v4111
    %v5687 = vunpack.c.l.b16 %v4112
    %v5688 = vunpack.c.h.b16 %v4112
    %v5689 = vunpack.c.l.b16 %v4113
    %v5690 = vunpack.c.h.b16 %v4113
    %v5691 = vunpack.c.l.b16 %v4114
    %v5692 = vunpack.c.h.b16 %v4114
    %v5693 = vpack.c.b16 %v4677, %v4669
    %v5694 = vpack.c.b16 %v4678, %v4670
    %v5695 = vpack.c.b16 %v4679, %v4671
    %v5696 = vpack.c.b16 %v4680, %v4672
    %v5697 = vpack.c.b16 %v4681, %v4673
    %v5698 = vpack.c.b16 %v4682, %v4674
    %v5699 = vpack.c.b16 %v4683, %v4675
    %v5700 = vpack.c.b16 %v4684, %v4676
    %v5701 = vpack.c.b16 %v4693, %v4685
    %v5702 = vpack.c.b16 %v4694, %v4686
    %v5703 = vpack.c.b16 %v4695, %v4687
    %v5704 = vpack.c.b16 %v4696, %v4688
    %v5705 = vpack.c.b16 %v4697, %v4689
    %v5706 = vpack.c.b16 %v4698, %v4690
    %v5707 = vpack.c.b16 %v4699, %v4691
    %v5708 = vpack.c.b16 %v4700, %v4692
    %v5709 = vpack.c.b16 %v4709, %v4701
    %v5710 = vpack.c.b16 %v4710, %v4702
    %v5711 = vpack.c.b16 %v4711, %v4703
    %v5712 = vpack.c.b16 %v4712, %v4704
    %v5713 = vpack.c.b16 %v4713, %v4705
    %v5714 = vpack.c.b16 %v4714, %v4706
    %v5715 = vpack.c.b16 %v4715, %v4707
    %v5716 = vpack.c.b16 %v4716, %v4708
    %v5717 = vpack.c.b16 %v4725, %v4717
    %v5718 = vpack.c.b16 %v4726, %v4718
    %v5719 = vpack.c.b16 %v4727, %v4719
    %v5720 = vpack.c.b16 %v4728, %v4720
    %v5721 = vpack.c.b16 %v4729, %v4721
    %v5722 = vpack.c.b16 %v4730, %v4722
    %v5723 = vpack.c.b16 %v4731, %v4723
    %v5724 = vpack.c.b16 %v4732, %v4724
    %v5725 = vpack.c.b16 %v4741, %v4733
    %v5726 = vpack.c.b16 %v4742, %v4734
    %v5727 = vpack.c.b16 %v4743, %v4735
    %v5728 = vpack.c.b16 %v4744, %v4736
    %v5729 = vpack.c.b16 %v4745, %v4737
    %v5730 = vpack.c.b16 %v4746, %v4738
    %v5731 = vpack.c.b16 %v4747, %v4739
    %v5732 = vpack.c.b16 %v4748, %v4740
    %v5733 = vpack.c.b16 %v4757, %v4749
    %v5734 = vpack.c.b16 %v4758, %v4750
    %v5735 = vpack.c.b16 %v4759, %v4751
    %v5736 = vpack.c.b16 %v4760, %v4752
    %v5737 = vpack.c.b16 %v4761, %v4753
    %v5738 = vpack.c.b16 %v4762, %v4754
    %v5739 = vpack.c.b16 %v4763, %v4755
    %v5740 = vpack.c.b16 %v4764, %v4756
    %v5741 = vpack.c.b16 %v4773, %v4765
    %v5742 = vpack.c.b16 %v4774, %v4766
    %v5743 = vpack.c.b16 %v4775, %v4767
    %v5744 = vpack.c.b16 %v4776, %v4768
    %v5745 = vpack.c.b16 %v4777, %v4769
    %v5746 = vpack.c.b16 %v4778, %v4770
    %v5747 = vpack.c.b16 %v4779, %v4771
    %v5748 = vpack.c.b16 %v4780, %v4772
    %v5749 = vpack.c.b16 %v4789, %v4781
    %v5750 = vpack.c.b16 %v4790, %v4782
    %v5751 = vpack.c.b16 %v4791, %v4783
    %v5752 = vpack.c.b16 %v4792, %v4784
    %v5753 = vpack.c.b16 %v4793, %v4785
    %v5754 = vpack.c.b16 %v4794, %v4786
    %v5755 = vpack.c.b16 %v4795, %v4787
    %v5756 = vpack.c.b16 %v4796, %v4788
    %v5757 = vpack.c.b16 %v4805, %v4797
    %v5758 = vpack.c.b16 %v4806, %v4798
    %v5759 = vpack.c.b16 %v4807, %v4799
    %v5760 = vpack.c.b16 %v4808, %v4800
    %v5761 = vpack.c.b16 %v4809, %v4801
    %v5762 = vpack.c.b16 %v4810, %v4802
    %v5763 = vpack.c.b16 %v4811, %v4803
    %v5764 = vpack.c.b16 %v4812, %v4804
    %v5765 = vpack.c.b16 %v4821, %v4813
    %v5766 = vpack.c.b16 %v4822, %v4814
    %v5767 = vpack.c.b16 %v4823, %v4815
    %v5768 = vpack.c.b16 %v4824, %v4816
    %v5769 = vpack.c.b16 %v4825, %v4817
    %v5770 = vpack.c.b16 %v4826, %v4818
    %v5771 = vpack.c.b16 %v4827, %v4819
    %v5772 = vpack.c.b16 %v4828, %v4820
    %v5773 = vpack.c.b16 %v4837, %v4829
    %v5774 = vpack.c.b16 %v4838, %v4830
    %v5775 = vpack.c.b16 %v4839, %v4831
    %v5776 = vpack.c.b16 %v4840, %v4832
    %v5777 = vpack.c.b16 %v4841, %v4833
    %v5778 = vpack.c.b16 %v4842, %v4834
    %v5779 = vpack.c.b16 %v4843, %v4835
    %v5780 = vpack.c.b16 %v4844, %v4836
    %v5781 = vpack.c.b16 %v4853, %v4845
    %v5782 = vpack.c.b16 %v4854, %v4846
    %v5783 = vpack.c.b16 %v4855, %v4847
    %v5784 = vpack.c.b16 %v4856, %v4848
    %v5785 = vpack.c.b16 %v4857, %v4849
    %v5786 = vpack.c.b16 %v4858, %v4850
    %v5787 = vpack.c.b16 %v4859, %v4851
    %v5788 = vpack.c.b16 %v4860, %v4852
    %v5789 = vpack.c.b16 %v4869, %v4861
    %v5790 = vpack.c.b16 %v4870, %v4862
    %v5791 = vpack.c.b16 %v4871, %v4863
    %v5792 = vpack.c.b16 %v4872, %v4864
    %v5793 = vpack.c.b16 %v4873, %v4865
    %v5794 = vpack.c.b16 %v4874, %v4866
    %v5795 = vpack.c.b16 %v4875, %v4867
    %v5796 = vpack.c.b16 %v4876, %v4868
    %v5797 = vpack.c.b16 %v4885, %v4877
    %v5798 = vpack.c.b16 %v4886, %v4878
    %v5799 = vpack.c.b16 %v4887, %v4879
    %v5800 = vpack.c.b16 %v4888, %v4880
    %v5801 = vpack.c.b16 %v4889, %v4881
    %v5802 = vpack.c.b16 %v4890, %v4882
    %v5803 = vpack.c.b16 %v4891, %v4883
    %v5804 = vpack.c.b16 %v4892, %v4884
    %v5805 = vpack.c.b16 %v4901, %v4893
    %v5806 = vpack.c.b16 %v4902, %v4894
    %v5807 = vpack.c.b16 %v4903, %v4895
    %v5808 = vpack.c.b16 %v4904, %v4896
    %v5809 = vpack.c.b16 %v4905, %v4897
    %v5810 = vpack.c.b16 %v4906, %v4898
    %v5811 = vpack.c.b16 %v4907, %v4899
    %v5812 = vpack.c.b16 %v4908, %v4900
    %v5813 = vpack.c.b16 %v4917, %v4909
    %v5814 = vpack.c.b16 %v4918, %v4910
    %v5815 = vpack.c.b16 %v4919, %v4911
    %v5816 = vpack.c.b16 %v4920, %v4912
    %v5817 = vpack.c.b16 %v4921, %v4913
    %v5818 = vpack.c.b16 %v4922, %v4914
    %v5819 = vpack.c.b16 %v4923, %v4915
    %v5820 = vpack.c.b16 %v4924, %v4916
    %v5821 = vpack.c.b16 %v4933, %v4925
    %v5822 = vpack.c.b16 %v4934, %v4926
    %v5823 = vpack.c.b16 %v4935, %v4927
    %v5824 = vpack.c.b16 %v4936, %v4928
    %v5825 = vpack.c.b16 %v4937, %v4929
    %v5826 = vpack.c.b16 %v4938, %v4930
    %v5827 = vpack.c.b16 %v4939, %v4931
    %v5828 = vpack.c.b16 %v4940, %v4932
    %v5829 = vpack.c.b16 %v4949, %v4941
    %v5830 = vpack.c.b16 %v4950, %v4942
    %v5831 = vpack.c.b16 %v4951, %v4943
    %v5832 = vpack.c.b16 %v4952, %v4944
    %v5833 = vpack.c.b16 %v4953, %v4945
    %v5834 = vpack.c.b16 %v4954, %v4946
    %v5835 = vpack.c.b16 %v4955, %v4947
    %v5836 = vpack.c.b16 %v4956, %v4948
    %v5837 = vpack.c.b16 %v4965, %v4957
    %v5838 = vpack.c.b16 %v4966, %v4958
    %v5839 = vpack.c.b16 %v4967, %v4959
    %v5840 = vpack.c.b16 %v4968, %v4960
    %v5841 = vpack.c.b16 %v4969, %v4961
    %v5842 = vpack.c.b16 %v4970, %v4962
    %v5843 = vpack.c.b16 %v4971, %v4963
    %v5844 = vpack.c.b16 %v4972, %v4964
    %v5845 = vpack.c.b16 %v4981, %v4973
    %v5846 = vpack.c.b16 %v4982, %v4974
    %v5847 = vpack.c.b16 %v4983, %v4975
    %v5848 = vpack.c.b16 %v4984, %v4976
    %v5849 = vpack.c.b16 %v4985, %v4977
    %v5850 = vpack.c.b16 %v4986, %v4978
    %v5851 = vpack.c.b16 %v4987, %v4979
    %v5852 = vpack.c.b16 %v4988, %v4980
    %v5853 = vpack.c.b16 %v4997, %v4989
    %v5854 = vpack.c.b16 %v4998, %v4990
    %v5855 = vpack.c.b16 %v4999, %v4991
    %v5856 = vpack.c.b16 %v5000, %v4992
    %v5857 = vpack.c.b16 %v5001, %v4993
    %v5858 = vpack.c.b16 %v5002, %v4994
    %v5859 = vpack.c.b16 %v5003, %v4995
    %v5860 = vpack.c.b16 %v5004, %v4996
    %v5861 = vpack.c.b16 %v5013, %v5005
    %v5862 = vpack.c.b16 %v5014, %v5006
    %v5863 = vpack.c.b16 %v5015, %v5007
    %v5864 = vpack.c.b16 %v5016, %v5008
    %v5865 = vpack.c.b16 %v5017, %v5009
    %v5866 = vpack.c.b16 %v5018, %v5010
    %v5867 = vpack.c.b16 %v5019, %v5011
    %v5868 = vpack.c.b16 %v5020, %v5012
    %v5869 = vpack.c.b16 %v5029, %v5021
    %v5870 = vpack.c.b16 %v5030, %v5022
    %v5871 = vpack.c.b16 %v5031, %v5023
    %v5872 = vpack.c.b16 %v5032, %v5024
    %v5873 = vpack.c.b16 %v5033, %v5025
    %v5874 = vpack.c.b16 %v5034, %v5026
    %v5875 = vpack.c.b16 %v5035, %v5027
    %v5876 = vpack.c.b16 %v5036, %v5028
    %v5877 = vpack.c.b16 %v5045, %v5037
    %v5878 = vpack.c.b16 %v5046, %v5038
    %v5879 = vpack.c.b16 %v5047, %v5039
    %v5880 = vpack.c.b16 %v5048, %v5040
    %v5881 = vpack.c.b16 %v5049, %v5041
    %v5882 = vpack.c.b16 %v5050, %v5042
    %v5883 = vpack.c.b16 %v5051, %v5043
    %v5884 = vpack.c.b16 %v5052, %v5044
    %v5885 = vpack.c.b16 %v5061, %v5053
    %v5886 = vpack.c.b16 %v5062, %v5054
    %v5887 = vpack.c.b16 %v5063, %v5055
    %v5888 = vpack.c.b16 %v5064, %v5056
    %v5889 = vpack.c.b16 %v5065, %v5057
    %v5890 = vpack.c.b16 %v5066, %v5058
    %v5891 = vpack.c.b16 %v5067, %v5059
    %v5892 = vpack.c.b16 %v5068, %v5060
    %v5893 = vpack.c.b16 %v5077, %v5069
    %v5894 = vpack.c.b16 %v5078, %v5070
    %v5895 = vpack.c.b16 %v5079, %v5071
    %v5896 = vpack.c.b16 %v5080, %v5072
    %v5897 = vpack.c.b16 %v5081, %v5073
    %v5898 = vpack.c.b16 %v5082, %v5074
    %v5899 = vpack.c.b16 %v5083, %v5075
    %v5900 = vpack.c.b16 %v5084, %v5076
    %v5901 = vpack.c.b16 %v5093, %v5085
    %v5902 = vpack.c.b16 %v5094, %v5086
    %v5903 = vpack.c.b16 %v5095, %v5087
    %v5904 = vpack.c.b16 %v5096, %v5088
    %v5905 = vpack.c.b16 %v5097, %v5089
    %v5906 = vpack.c.b16 %v5098, %v5090
    %v5907 = vpack.c.b16 %v5099, %v5091
    %v5908 = vpack.c.b16 %v5100, %v5092
    %v5909 = vpack.c.b16 %v5109, %v5101
    %v5910 = vpack.c.b16 %v5110, %v5102
    %v5911 = vpack.c.b16 %v5111, %v5103
    %v5912 = vpack.c.b16 %v5112, %v5104
    %v5913 = vpack.c.b16 %v5113, %v5105
    %v5914 = vpack.c.b16 %v5114, %v5106
    %v5915 = vpack.c.b16 %v5115, %v5107
    %v5916 = vpack.c.b16 %v5116, %v5108
    %v5917 = vpack.c.b16 %v5125, %v5117
    %v5918 = vpack.c.b16 %v5126, %v5118
    %v5919 = vpack.c.b16 %v5127, %v5119
    %v5920 = vpack.c.b16 %v5128, %v5120
    %v5921 = vpack.c.b16 %v5129, %v5121
    %v5922 = vpack.c.b16 %v5130, %v5122
    %v5923 = vpack.c.b16 %v5131, %v5123
    %v5924 = vpack.c.b16 %v5132, %v5124
    %v5925 = vpack.c.b16 %v5141, %v5133
    %v5926 = vpack.c.b16 %v5142, %v5134
    %v5927 = vpack.c.b16 %v5143, %v5135
    %v5928 = vpack.c.b16 %v5144, %v5136
    %v5929 = vpack.c.b16 %v5145, %v5137
    %v5930 = vpack.c.b16 %v5146, %v5138
    %v5931 = vpack.c.b16 %v5147, %v5139
    %v5932 = vpack.c.b16 %v5148, %v5140
    %v5933 = vpack.c.b16 %v5157, %v5149
    %v5934 = vpack.c.b16 %v5158, %v5150
    %v5935 = vpack.c.b16 %v5159, %v5151
    %v5936 = vpack.c.b16 %v5160, %v5152
    %v5937 = vpack.c.b16 %v5161, %v5153
    %v5938 = vpack.c.b16 %v5162, %v5154
    %v5939 = vpack.c.b16 %v5163, %v5155
    %v5940 = vpack.c.b16 %v5164, %v5156
    %v5941 = vpack.c.b16 %v5173, %v5165
    %v5942 = vpack.c.b16 %v5174, %v5166
    %v5943 = vpack.c.b16 %v5175, %v5167
    %v5944 = vpack.c.b16 %v5176, %v5168
    %v5945 = vpack.c.b16 %v5177, %v5169
    %v5946 = vpack.c.b16 %v5178, %v5170
    %v5947 = vpack.c.b16 %v5179, %v5171
    %v5948 = vpack.c.b16 %v5180, %v5172
    %v5949 = vpack.c.b16 %v5189, %v5181
    %v5950 = vpack.c.b16 %v5190, %v5182
    %v5951 = vpack.c.b16 %v5191, %v5183
    %v5952 = vpack.c.b16 %v5192, %v5184
    %v5953 = vpack.c.b16 %v5193, %v5185
    %v5954 = vpack.c.b16 %v5194, %v5186
    %v5955 = vpack.c.b16 %v5195, %v5187
    %v5956 = vpack.c.b16 %v5196, %v5188
    %v5957 = vpack.c.b16 %v5205, %v5197
    %v5958 = vpack.c.b16 %v5206, %v5198
    %v5959 = vpack.c.b16 %v5207, %v5199
    %v5960 = vpack.c.b16 %v5208, %v5200
    %v5961 = vpack.c.b16 %v5209, %v5201
    %v5962 = vpack.c.b16 %v5210, %v5202
    %v5963 = vpack.c.b16 %v5211, %v5203
    %v5964 = vpack.c.b16 %v5212, %v5204
    %v5965 = vpack.c.b16 %v5221, %v5213
    %v5966 = vpack.c.b16 %v5222, %v5214
    %v5967 = vpack.c.b16 %v5223, %v5215
    %v5968 = vpack.c.b16 %v5224, %v5216
    %v5969 = vpack.c.b16 %v5225, %v5217
    %v5970 = vpack.c.b16 %v5226, %v5218
    %v5971 = vpack.c.b16 %v5227, %v5219
    %v5972 = vpack.c.b16 %v5228, %v5220
    %v5973 = vpack.c.b16 %v5237, %v5229
    %v5974 = vpack.c.b16 %v5238, %v5230
    %v5975 = vpack.c.b16 %v5239, %v5231
    %v5976 = vpack.c.b16 %v5240, %v5232
    %v5977 = vpack.c.b16 %v5241, %v5233
    %v5978 = vpack.c.b16 %v5242, %v5234
    %v5979 = vpack.c.b16 %v5243, %v5235
    %v5980 = vpack.c.b16 %v5244, %v5236
    %v5981 = vpack.c.b16 %v5253, %v5245
    %v5982 = vpack.c.b16 %v5254, %v5246
    %v5983 = vpack.c.b16 %v5255, %v5247
    %v5984 = vpack.c.b16 %v5256, %v5248
    %v5985 = vpack.c.b16 %v5257, %v5249
    %v5986 = vpack.c.b16 %v5258, %v5250
    %v5987 = vpack.c.b16 %v5259, %v5251
    %v5988 = vpack.c.b16 %v5260, %v5252
    %v5989 = vpack.c.b16 %v5269, %v5261
    %v5990 = vpack.c.b16 %v5270, %v5262
    %v5991 = vpack.c.b16 %v5271, %v5263
    %v5992 = vpack.c.b16 %v5272, %v5264
    %v5993 = vpack.c.b16 %v5273, %v5265
    %v5994 = vpack.c.b16 %v5274, %v5266
    %v5995 = vpack.c.b16 %v5275, %v5267
    %v5996 = vpack.c.b16 %v5276, %v5268
    %v5997 = vpack.c.b16 %v5285, %v5277
    %v5998 = vpack.c.b16 %v5286, %v5278
    %v5999 = vpack.c.b16 %v5287, %v5279
    %v6000 = vpack.c.b16 %v5288, %v5280
    %v6001 = vpack.c.b16 %v5289, %v5281
    %v6002 = vpack.c.b16 %v5290, %v5282
    %v6003 = vpack.c.b16 %v5291, %v5283
    %v6004 = vpack.c.b16 %v5292, %v5284
    %v6005 = vpack.c.b16 %v5301, %v5293
    %v6006 = vpack.c.b16 %v5302, %v5294
    %v6007 = vpack.c.b16 %v5303, %v5295
    %v6008 = vpack.c.b16 %v5304, %v5296
    %v6009 = vpack.c.b16 %v5305, %v5297
    %v6010 = vpack.c.b16 %v5306, %v5298
    %v6011 = vpack.c.b16 %v5307, %v5299
    %v6012 = vpack.c.b16 %v5308, %v5300
    %v6013 = vpack.c.b16 %v5317, %v5309
    %v6014 = vpack.c.b16 %v5318, %v5310
    %v6015 = vpack.c.b16 %v5319, %v5311
    %v6016 = vpack.c.b16 %v5320, %v5312
    %v6017 = vpack.c.b16 %v5321, %v5313
    %v6018 = vpack.c.b16 %v5322, %v5314
    %v6019 = vpack.c.b16 %v5323, %v5315
    %v6020 = vpack.c.b16 %v5324, %v5316
    %v6021 = vpack.c.b16 %v5333, %v5325
    %v6022 = vpack.c.b16 %v5334, %v5326
    %v6023 = vpack.c.b16 %v5335, %v5327
    %v6024 = vpack.c.b16 %v5336, %v5328
    %v6025 = vpack.c.b16 %v5337, %v5329
    %v6026 = vpack.c.b16 %v5338, %v5330
    %v6027 = vpack.c.b16 %v5339, %v5331
    %v6028 = vpack.c.b16 %v5340, %v5332
    %v6029 = vpack.c.b16 %v5349, %v5341
    %v6030 = vpack.c.b16 %v5350, %v5342
    %v6031 = vpack.c.b16 %v5351, %v5343
    %v6032 = vpack.c.b16 %v5352, %v5344
    %v6033 = vpack.c.b16 %v5353, %v5345
    %v6034 = vpack.c.b16 %v5354, %v5346
    %v6035 = vpack.c.b16 %v5355, %v5347
    %v6036 = vpack.c.b16 %v5356, %v5348
    %v6037 = vpack.c.b16 %v5365, %v5357
    %v6038 = vpack.c.b16 %v5366, %v5358
    %v6039 = vpack.c.b16 %v5367, %v5359
    %v6040 = vpack.c.b16 %v5368, %v5360
    %v6041 = vpack.c.b16 %v5369, %v5361
    %v6042 = vpack.c.b16 %v5370, %v5362
    %v6043 = vpack.c.b16 %v5371, %v5363
    %v6044 = vpack.c.b16 %v5372, %v5364
    %v6045 = vpack.c.b16 %v5381, %v5373
    %v6046 = vpack.c.b16 %v5382, %v5374
    %v6047 = vpack.c.b16 %v5383, %v5375
    %v6048 = vpack.c.b16 %v5384, %v5376
    %v6049 = vpack.c.b16 %v5385, %v5377
    %v6050 = vpack.c.b16 %v5386, %v5378
    %v6051 = vpack.c.b16 %v5387, %v5379
    %v6052 = vpack.c.b16 %v5388, %v5380
    %v6053 = vpack.c.b16 %v5397, %v5389
    %v6054 = vpack.c.b16 %v5398, %v5390
    %v6055 = vpack.c.b16 %v5399, %v5391
    %v6056 = vpack.c.b16 %v5400, %v5392
    %v6057 = vpack.c.b16 %v5401, %v5393
    %v6058 = vpack.c.b16 %v5402, %v5394
    %v6059 = vpack.c.b16 %v5403, %v5395
    %v6060 = vpack.c.b16 %v5404, %v5396
    %v6061 = vpack.c.b16 %v5413, %v5405
    %v6062 = vpack.c.b16 %v5414, %v5406
    %v6063 = vpack.c.b16 %v5415, %v5407
    %v6064 = vpack.c.b16 %v5416, %v5408
    %v6065 = vpack.c.b16 %v5417, %v5409
    %v6066 = vpack.c.b16 %v5418, %v5410
    %v6067 = vpack.c.b16 %v5419, %v5411
    %v6068 = vpack.c.b16 %v5420, %v5412
    %v6069 = vpack.c.b16 %v5429, %v5421
    %v6070 = vpack.c.b16 %v5430, %v5422
    %v6071 = vpack.c.b16 %v5431, %v5423
    %v6072 = vpack.c.b16 %v5432, %v5424
    %v6073 = vpack.c.b16 %v5433, %v5425
    %v6074 = vpack.c.b16 %v5434, %v5426
    %v6075 = vpack.c.b16 %v5435, %v5427
    %v6076 = vpack.c.b16 %v5436, %v5428
    %v6077 = vpack.c.b16 %v5445, %v5437
    %v6078 = vpack.c.b16 %v5446, %v5438
    %v6079 = vpack.c.b16 %v5447, %v5439
    %v6080 = vpack.c.b16 %v5448, %v5440
    %v6081 = vpack.c.b16 %v5449, %v5441
    %v6082 = vpack.c.b16 %v5450, %v5442
    %v6083 = vpack.c.b16 %v5451, %v5443
    %v6084 = vpack.c.b16 %v5452, %v5444
    %v6085 = vpack.c.b16 %v5461, %v5453
    %v6086 = vpack.c.b16 %v5462, %v5454
    %v6087 = vpack.c.b16 %v5463, %v5455
    %v6088 = vpack.c.b16 %v5464, %v5456
    %v6089 = vpack.c.b16 %v5465, %v5457
    %v6090 = vpack.c.b16 %v5466, %v5458
    %v6091 = vpack.c.b16 %v5467, %v5459
    %v6092 = vpack.c.b16 %v5468, %v5460
    %v6093 = vpack.c.b16 %v5477, %v5469
    %v6094 = vpack.c.b16 %v5478, %v5470
    %v6095 = vpack.c.b16 %v5479, %v5471
    %v6096 = vpack.c.b16 %v5480, %v5472
    %v6097 = vpack.c.b16 %v5481, %v5473
    %v6098 = vpack.c.b16 %v5482, %v5474
    %v6099 = vpack.c.b16 %v5483, %v5475
    %v6100 = vpack.c.b16 %v5484, %v5476
    %v6101 = vpack.c.b16 %v5493, %v5485
    %v6102 = vpack.c.b16 %v5494, %v5486
    %v6103 = vpack.c.b16 %v5495, %v5487
    %v6104 = vpack.c.b16 %v5496, %v5488
    %v6105 = vpack.c.b16 %v5497, %v5489
    %v6106 = vpack.c.b16 %v5498, %v5490
    %v6107 = vpack.c.b16 %v5499, %v5491
    %v6108 = vpack.c.b16 %v5500, %v5492
    %v6109 = vpack.c.b16 %v5509, %v5501
    %v6110 = vpack.c.b16 %v5510, %v5502
    %v6111 = vpack.c.b16 %v5511, %v5503
    %v6112 = vpack.c.b16 %v5512, %v5504
    %v6113 = vpack.c.b16 %v5513, %v5505
    %v6114 = vpack.c.b16 %v5514, %v5506
    %v6115 = vpack.c.b16 %v5515, %v5507
    %v6116 = vpack.c.b16 %v5516, %v5508
    %v6117 = vpack.c.b16 %v5525, %v5517
    %v6118 = vpack.c.b16 %v5526, %v5518
    %v6119 = vpack.c.b16 %v5527, %v5519
    %v6120 = vpack.c.b16 %v5528, %v5520
    %v6121 = vpack.c.b16 %v5529, %v5521
    %v6122 = vpack.c.b16 %v5530, %v5522
    %v6123 = vpack.c.b16 %v5531, %v5523
    %v6124 = vpack.c.b16 %v5532, %v5524
    %v6125 = vpack.c.b16 %v5541, %v5533
    %v6126 = vpack.c.b16 %v5542, %v5534
    %v6127 = vpack.c.b16 %v5543, %v5535
    %v6128 = vpack.c.b16 %v5544, %v5536
    %v6129 = vpack.c.b16 %v5545, %v5537
    %v6130 = vpack.c.b16 %v5546, %v5538
    %v6131 = vpack.c.b16 %v5547, %v5539
    %v6132 = vpack.c.b16 %v5548, %v5540
    %v6133 = vpack.c.b16 %v5557, %v5549
    %v6134 = vpack.c.b16 %v5558, %v5550
    %v6135 = vpack.c.b16 %v5559, %v5551
    %v6136 = vpack.c.b16 %v5560, %v5552
    %v6137 = vpack.c.b16 %v5561, %v5553
    %v6138 = vpack.c.b16 %v5562, %v5554
    %v6139 = vpack.c.b16 %v5563, %v5555
    %v6140 = vpack.c.b16 %v5564, %v5556
    %v6141 = vpack.c.b16 %v5573, %v5565
    %v6142 = vpack.c.b16 %v5574, %v5566
    %v6143 = vpack.c.b16 %v5575, %v5567
    %v6144 = vpack.c.b16 %v5576, %v5568
    %v6145 = vpack.c.b16 %v5577, %v5569
    %v6146 = vpack.c.b16 %v5578, %v5570
    %v6147 = vpack.c.b16 %v5579, %v5571
    %v6148 = vpack.c.b16 %v5580, %v5572
    %v6149 = vpack.c.b16 %v5589, %v5581
    %v6150 = vpack.c.b16 %v5590, %v5582
    %v6151 = vpack.c.b16 %v5591, %v5583
    %v6152 = vpack.c.b16 %v5592, %v5584
    %v6153 = vpack.c.b16 %v5593, %v5585
    %v6154 = vpack.c.b16 %v5594, %v5586
    %v6155 = vpack.c.b16 %v5595, %v5587
    %v6156 = vpack.c.b16 %v5596, %v5588
    %v6157 = vpack.c.b16 %v5605, %v5597
    %v6158 = vpack.c.b16 %v5606, %v5598
    %v6159 = vpack.c.b16 %v5607, %v5599
    %v6160 = vpack.c.b16 %v5608, %v5600
    %v6161 = vpack.c.b16 %v5609, %v5601
    %v6162 = vpack.c.b16 %v5610, %v5602
    %v6163 = vpack.c.b16 %v5611, %v5603
    %v6164 = vpack.c.b16 %v5612, %v5604
    %v6165 = vpack.c.b16 %v5621, %v5613
    %v6166 = vpack.c.b16 %v5622, %v5614
    %v6167 = vpack.c.b16 %v5623, %v5615
    %v6168 = vpack.c.b16 %v5624, %v5616
    %v6169 = vpack.c.b16 %v5625, %v5617
    %v6170 = vpack.c.b16 %v5626, %v5618
    %v6171 = vpack.c.b16 %v5627, %v5619
    %v6172 = vpack.c.b16 %v5628, %v5620
    %v6173 = vpack.c.b16 %v5637, %v5629
    %v6174 = vpack.c.b16 %v5638, %v5630
    %v6175 = vpack.c.b16 %v5639, %v5631
    %v6176 = vpack.c.b16 %v5640, %v5632
    %v6177 = vpack.c.b16 %v5641, %v5633
    %v6178 = vpack.c.b16 %v5642, %v5634
    %v6179 = vpack.c.b16 %v5643, %v5635
    %v6180 = vpack.c.b16 %v5644, %v5636
    %v6181 = vpack.c.b16 %v5653, %v5645
    %v6182 = vpack.c.b16 %v5654, %v5646
    %v6183 = vpack.c.b16 %v5655, %v5647
    %v6184 = vpack.c.b16 %v5656, %v5648
    %v6185 = vpack.c.b16 %v5657, %v5649
    %v6186 = vpack.c.b16 %v5658, %v5650
    %v6187 = vpack.c.b16 %v5659, %v5651
    %v6188 = vpack.c.b16 %v5660, %v5652
    %v6189 = vpack.c.b16 %v5669, %v5661
    %v6190 = vpack.c.b16 %v5670, %v5662
    %v6191 = vpack.c.b16 %v5671, %v5663
    %v6192 = vpack.c.b16 %v5672, %v5664
    %v6193 = vpack.c.b16 %v5673, %v5665
    %v6194 = vpack.c.b16 %v5674, %v5666
    %v6195 = vpack.c.b16 %v5675, %v5667
    %v6196 = vpack.c.b16 %v5676, %v5668
    %v6197 = vpack.c.b16 %v5685, %v5677
    %v6198 = vpack.c.b16 %v5686, %v5678
    %v6199 = vpack.c.b16 %v5687, %v5679
    %v6200 = vpack.c.b16 %v5688, %v5680
    %v6201 = vpack.c.b16 %v5689, %v5681
    %v6202 = vpack.c.b16 %v5690, %v5682
    %v6203 = vpack.c.b16 %v5691, %v5683
    %v6204 = vpack.c.b16 %v5692, %v5684
    %6717 = vmatprep.subr.bf16.mxu0 %v5694
    %6718 = vmatpush1.bf16.msra.mxu0 %v5693
    %6719 = vmatprep.subr.bf16.mxu0 %v5702
    %6720 = vmatpush1.bf16.msra.mxu0 %v5701
    %6721 = vmatprep.subr.bf16.mxu0 %v5710
    %6722 = vmatpush1.bf16.msra.mxu0 %v5709
    %6723 = vmatprep.subr.bf16.mxu0 %v5718
    %6724 = vmatpush1.bf16.msra.mxu0 %v5717
    %6725 = vmatprep.subr.bf16.mxu0 %v5726
    %6726 = vmatpush1.bf16.msra.mxu0 %v5725
    %6727 = vmatprep.subr.bf16.mxu0 %v5734
    %6728 = vmatpush1.bf16.msra.mxu0 %v5733
    %6729 = vmatprep.subr.bf16.mxu0 %v5742
    %6730 = vmatpush1.bf16.msra.mxu0 %v5741
    %6731 = vmatprep.subr.bf16.mxu0 %v5750
    %6732 = vmatpush1.bf16.msra.mxu0 %v5749
    %6733 = vmatprep.subr.bf16.mxu0 %v5758
    %6734 = vmatpush1.bf16.msra.mxu0 %v5757
    %6735 = vmatprep.subr.bf16.mxu0 %v5766
    %6736 = vmatpush1.bf16.msra.mxu0 %v5765
    %6737 = vmatprep.subr.bf16.mxu0 %v5774
    %6738 = vmatpush1.bf16.msra.mxu0 %v5773
    %6739 = vmatprep.subr.bf16.mxu0 %v5782
    %6740 = vmatpush1.bf16.msra.mxu0 %v5781
    %6741 = vmatprep.subr.bf16.mxu0 %v5790
    %6742 = vmatpush1.bf16.msra.mxu0 %v5789
    %6743 = vmatprep.subr.bf16.mxu0 %v5798
    %6744 = vmatpush1.bf16.msra.mxu0 %v5797
    %6745 = vmatprep.subr.bf16.mxu0 %v5806
    %6746 = vmatpush1.bf16.msra.mxu0 %v5805
    %6747 = vmatprep.subr.bf16.mxu0 %v5814
    %6748 = vmatpush1.bf16.msra.mxu0 %v5813
    %6749 = vmatprep.mubr.bf16.mxu0 %v3596
    %6750 = vmatmul.mubr.bf16.gmra.mrb[0].mxu0 %v3595
    %v6751 = vpop.f32.mrb[0].mxu0
    %v6752 = vadd.f32 %v4120, %v6751
    %v6753 = vpop.f32.mrb[0].mxu0
    %v6754 = vadd.f32 %v4124, %v6753
    %v6755 = vpop.f32.mrb[0].mxu0
    %v6756 = vadd.f32 %v4120, %v6755
    %v6757 = vpop.f32.mrb[0].mxu0
    %v6758 = vadd.f32 %v4124, %v6757
    %6759 = vdwg.mxu0
    %6760 = vmatprep.subr.bf16.mxu0 %v5822
    %6761 = vmatpush1.bf16.msra.mxu0 %v5821
    %6762 = vmatprep.subr.bf16.mxu0 %v5830
    %6763 = vmatpush1.bf16.msra.mxu0 %v5829
    %6764 = vmatprep.subr.bf16.mxu0 %v5838
    %6765 = vmatpush1.bf16.msra.mxu0 %v5837
    %6766 = vmatprep.subr.bf16.mxu0 %v5846
    %6767 = vmatpush1.bf16.msra.mxu0 %v5845
    %6768 = vmatprep.subr.bf16.mxu0 %v5854
    %6769 = vmatpush1.bf16.msra.mxu0 %v5853
    %6770 = vmatprep.subr.bf16.mxu0 %v5862
    %6771 = vmatpush1.bf16.msra.mxu0 %v5861
    %6772 = vmatprep.subr.bf16.mxu0 %v5870
    %6773 = vmatpush1.bf16.msra.mxu0 %v5869
    %6774 = vmatprep.subr.bf16.mxu0 %v5878
    %6775 = vmatpush1.bf16.msra.mxu0 %v5877
    %6776 = vmatprep.subr.bf16.mxu0 %v5886
    %6777 = vmatpush1.bf16.msra.mxu0 %v5885
    %6778 = vmatprep.subr.bf16.mxu0 %v5894
    %6779 = vmatpush1.bf16.msra.mxu0 %v5893
    %6780 = vmatprep.subr.bf16.mxu0 %v5902
    %6781 = vmatpush1.bf16.msra.mxu0 %v5901
    %6782 = vmatprep.subr.bf16.mxu0 %v5910
    %6783 = vmatpush1.bf16.msra.mxu0 %v5909
    %6784 = vmatprep.subr.bf16.mxu0 %v5918
    %6785 = vmatpush1.bf16.msra.mxu0 %v5917
    %6786 = vmatprep.subr.bf16.mxu0 %v5926
    %6787 = vmatpush1.bf16.msra.mxu0 %v5925
    %6788 = vmatprep.subr.bf16.mxu0 %v5934
    %6789 = vmatpush1.bf16.msra.mxu0 %v5933
    %6790 = vmatprep.subr.bf16.mxu0 %v5942
    %6791 = vmatpush1.bf16.msra.mxu0 %v5941
    %6792 = vmatprep.mubr.bf16.mxu0 %v3598
    %6793 = vmatmul.mubr.bf16.gmra.mrb[0].mxu0 %v3597
    %v6794 = vpop.f32.mrb[0].mxu0
    %v6795 = vadd.f32 %v6752, %v6794
    %v6796 = vpop.f32.mrb[0].mxu0
    %v6797 = vadd.f32 %v6754, %v6796
    %v6798 = vpop.f32.mrb[0].mxu0
    %v6799 = vadd.f32 %v6756, %v6798
    %v6800 = vpop.f32.mrb[0].mxu0
    %v6801 = vadd.f32 %v6758, %v6800
    %6802 = vdwg.mxu0
    %6803 = vmatprep.subr.bf16.mxu0 %v5950
    %6804 = vmatpush1.bf16.msra.mxu0 %v5949
    %6805 = vmatprep.subr.bf16.mxu0 %v5958
    %6806 = vmatpush1.bf16.msra.mxu0 %v5957
    %6807 = vmatprep.subr.bf16.mxu0 %v5966
    %6808 = vmatpush1.bf16.msra.mxu0 %v5965
    %6809 = vmatprep.subr.bf16.mxu0 %v5974
    %6810 = vmatpush1.bf16.msra.mxu0 %v5973
    %6811 = vmatprep.subr.bf16.mxu0 %v5982
    %6812 = vmatpush1.bf16.msra.mxu0 %v5981
    %6813 = vmatprep.subr.bf16.mxu0 %v5990
    %6814 = vmatpush1.bf16.msra.mxu0 %v5989
    %6815 = vmatprep.subr.bf16.mxu0 %v5998
    %6816 = vmatpush1.bf16.msra.mxu0 %v5997
    %6817 = vmatprep.subr.bf16.mxu0 %v6006
    %6818 = vmatpush1.bf16.msra.mxu0 %v6005
    %6819 = vmatprep.subr.bf16.mxu0 %v6014
    %6820 = vmatpush1.bf16.msra.mxu0 %v6013
    %6821 = vmatprep.subr.bf16.mxu0 %v6022
    %6822 = vmatpush1.bf16.msra.mxu0 %v6021
    %6823 = vmatprep.subr.bf16.mxu0 %v6030
    %6824 = vmatpush1.bf16.msra.mxu0 %v6029
    %6825 = vmatprep.subr.bf16.mxu0 %v6038
    %6826 = vmatpush1.bf16.msra.mxu0 %v6037
    %6827 = vmatprep.subr.bf16.mxu0 %v6046
    %6828 = vmatpush1.bf16.msra.mxu0 %v6045
    %6829 = vmatprep.subr.bf16.mxu0 %v6054
    %6830 = vmatpush1.bf16.msra.mxu0 %v6053
    %6831 = vmatprep.subr.bf16.mxu0 %v6062
    %6832 = vmatpush1.bf16.msra.mxu0 %v6061
    %6833 = vmatprep.subr.bf16.mxu0 %v6070
    %6834 = vmatpush1.bf16.msra.mxu0 %v6069
    %6835 = vmatprep.mubr.bf16.mxu0 %v3600
    %6836 = vmatmul.mubr.bf16.gmra.mrb[0].mxu0 %v3599
    %v6837 = vpop.f32.mrb[0].mxu0
    %v6838 = vadd.f32 %v6795, %v6837
    %v6839 = vpop.f32.mrb[0].mxu0
    %v6840 = vadd.f32 %v6797, %v6839
    %v6841 = vpop.f32.mrb[0].mxu0
    %v6842 = vadd.f32 %v6799, %v6841
    %v6843 = vpop.f32.mrb[0].mxu0
    %v6844 = vadd.f32 %v6801, %v6843
    %6845 = vdwg.mxu0
    %6846 = vmatprep.subr.bf16.mxu0 %v6078
    %6847 = vmatpush1.bf16.msra.mxu0 %v6077
    %6848 = vmatprep.subr.bf16.mxu0 %v6086
    %6849 = vmatpush1.bf16.msra.mxu0 %v6085
    %6850 = vmatprep.subr.bf16.mxu0 %v6094
    %6851 = vmatpush1.bf16.msra.mxu0 %v6093
    %6852 = vmatprep.subr.bf16.mxu0 %v6102
    %6853 = vmatpush1.bf16.msra.mxu0 %v6101
    %6854 = vmatprep.subr.bf16.mxu0 %v6110
    %6855 = vmatpush1.bf16.msra.mxu0 %v6109
    %6856 = vmatprep.subr.bf16.mxu0 %v6118
    %6857 = vmatpush1.bf16.msra.mxu0 %v6117
    %6858 = vmatprep.subr.bf16.mxu0 %v6126
    %6859 = vmatpush1.bf16.msra.mxu0 %v6125
    %6860 = vmatprep.subr.bf16.mxu0 %v6134
    %6861 = vmatpush1.bf16.msra.mxu0 %v6133
    %6862 = vmatprep.subr.bf16.mxu0 %v6142
    %6863 = vmatpush1.bf16.msra.mxu0 %v6141
    %6864 = vmatprep.subr.bf16.mxu0 %v6150
    %6865 = vmatpush1.bf16.msra.mxu0 %v6149
    %6866 = vmatprep.subr.bf16.mxu0 %v6158
    %6867 = vmatpush1.bf16.msra.mxu0 %v6157
    %6868 = vmatprep.subr.bf16.mxu0 %v6166
    %6869 = vmatpush1.bf16.msra.mxu0 %v6165
    %6870 = vmatprep.subr.bf16.mxu0 %v6174
    %6871 = vmatpush1.bf16.msra.mxu0 %v6173
    %6872 = vmatprep.subr.bf16.mxu0 %v6182
    %6873 = vmatpush1.bf16.msra.mxu0 %v6181
    %6874 = vmatprep.subr.bf16.mxu0 %v6190
    %6875 = vmatpush1.bf16.msra.mxu0 %v6189
    %6876 = vmatprep.subr.bf16.mxu0 %v6198
    %6877 = vmatpush1.bf16.msra.mxu0 %v6197
    %6878 = vmatprep.mubr.bf16.mxu0 %v3602
    %6879 = vmatmul.mubr.bf16.gmra.mrb[0].mxu0 %v3601
    %v6880 = vpop.f32.mrb[0].mxu0
    %v6881 = vadd.f32 %v6838, %v6880
    %v6882 = vpop.f32.mrb[0].mxu0
    %v6883 = vadd.f32 %v6840, %v6882
    %v6884 = vpop.f32.mrb[0].mxu0
    %v6885 = vadd.f32 %v6842, %v6884
    %v6886 = vpop.f32.mrb[0].mxu0
    %v6887 = vadd.f32 %v6844, %v6886
    %6888 = vdwg.mxu0
    %6889 = vmatprep.subr.bf16.mxu0 %v5696
    %6890 = vmatpush1.bf16.msra.mxu0 %v5695
    %6891 = vmatprep.subr.bf16.mxu0 %v5704
    %6892 = vmatpush1.bf16.msra.mxu0 %v5703
    %6893 = vmatprep.subr.bf16.mxu0 %v5712
    %6894 = vmatpush1.bf16.msra.mxu0 %v5711
    %6895 = vmatprep.subr.bf16.mxu0 %v5720
    %6896 = vmatpush1.bf16.msra.mxu0 %v5719
    %6897 = vmatprep.subr.bf16.mxu0 %v5728
    %6898 = vmatpush1.bf16.msra.mxu0 %v5727
    %6899 = vmatprep.subr.bf16.mxu0 %v5736
    %6900 = vmatpush1.bf16.msra.mxu0 %v5735
    %6901 = vmatprep.subr.bf16.mxu0 %v5744
    %6902 = vmatpush1.bf16.msra.mxu0 %v5743
    %6903 = vmatprep.subr.bf16.mxu0 %v5752
    %6904 = vmatpush1.bf16.msra.mxu0 %v5751
    %6905 = vmatprep.subr.bf16.mxu0 %v5760
    %6906 = vmatpush1.bf16.msra.mxu0 %v5759
    %6907 = vmatprep.subr.bf16.mxu0 %v5768
    %6908 = vmatpush1.bf16.msra.mxu0 %v5767
    %6909 = vmatprep.subr.bf16.mxu0 %v5776
    %6910 = vmatpush1.bf16.msra.mxu0 %v5775
    %6911 = vmatprep.subr.bf16.mxu0 %v5784
    %6912 = vmatpush1.bf16.msra.mxu0 %v5783
    %6913 = vmatprep.subr.bf16.mxu0 %v5792
    %6914 = vmatpush1.bf16.msra.mxu0 %v5791
    %6915 = vmatprep.subr.bf16.mxu0 %v5800
    %6916 = vmatpush1.bf16.msra.mxu0 %v5799
    %6917 = vmatprep.subr.bf16.mxu0 %v5808
    %6918 = vmatpush1.bf16.msra.mxu0 %v5807
    %6919 = vmatprep.subr.bf16.mxu0 %v5816
    %6920 = vmatpush1.bf16.msra.mxu0 %v5815
    %6921 = vmatprep.mubr.bf16.mxu0 %v3596
    %6922 = vmatmul.mubr.bf16.gmra.mrb[0].mxu0 %v3595
    %v6923 = vpop.f32.mrb[0].mxu0
    %v6924 = vadd.f32 %v4128, %v6923
    %v6925 = vpop.f32.mrb[0].mxu0
    %v6926 = vadd.f32 %v4132, %v6925
    %v6927 = vpop.f32.mrb[0].mxu0
    %v6928 = vadd.f32 %v4128, %v6927
    %v6929 = vpop.f32.mrb[0].mxu0
    %v6930 = vadd.f32 %v4132, %v6929
    %6931 = vdwg.mxu0
    %6932 = vmatprep.subr.bf16.mxu0 %v5824
    %6933 = vmatpush1.bf16.msra.mxu0 %v5823
    %6934 = vmatprep.subr.bf16.mxu0 %v5832
    %6935 = vmatpush1.bf16.msra.mxu0 %v5831
    %6936 = vmatprep.subr.bf16.mxu0 %v5840
    %6937 = vmatpush1.bf16.msra.mxu0 %v5839
    %6938 = vmatprep.subr.bf16.mxu0 %v5848
    %6939 = vmatpush1.bf16.msra.mxu0 %v5847
    %6940 = vmatprep.subr.bf16.mxu0 %v5856
    %6941 = vmatpush1.bf16.msra.mxu0 %v5855
    %6942 = vmatprep.subr.bf16.mxu0 %v5864
    %6943 = vmatpush1.bf16.msra.mxu0 %v5863
    %6944 = vmatprep.subr.bf16.mxu0 %v5872
    %6945 = vmatpush1.bf16.msra.mxu0 %v5871
    %6946 = vmatprep.subr.bf16.mxu0 %v5880
    %6947 = vmatpush1.bf16.msra.mxu0 %v5879
    %6948 = vmatprep.subr.bf16.mxu0 %v5888
    %6949 = vmatpush1.bf16.msra.mxu0 %v5887
    %6950 = vmatprep.subr.bf16.mxu0 %v5896
    %6951 = vmatpush1.bf16.msra.mxu0 %v5895
    %6952 = vmatprep.subr.bf16.mxu0 %v5904
    %6953 = vmatpush1.bf16.msra.mxu0 %v5903
    %6954 = vmatprep.subr.bf16.mxu0 %v5912
    %6955 = vmatpush1.bf16.msra.mxu0 %v5911
    %6956 = vmatprep.subr.bf16.mxu0 %v5920
    %6957 = vmatpush1.bf16.msra.mxu0 %v5919
    %6958 = vmatprep.subr.bf16.mxu0 %v5928
    %6959 = vmatpush1.bf16.msra.mxu0 %v5927
    %6960 = vmatprep.subr.bf16.mxu0 %v5936
    %6961 = vmatpush1.bf16.msra.mxu0 %v5935
    %6962 = vmatprep.subr.bf16.mxu0 %v5944
    %6963 = vmatpush1.bf16.msra.mxu0 %v5943
    %6964 = vmatprep.mubr.bf16.mxu0 %v3598
    %6965 = vmatmul.mubr.bf16.gmra.mrb[0].mxu0 %v3597
    %v6966 = vpop.f32.mrb[0].mxu0
    %v6967 = vadd.f32 %v6924, %v6966
    %v6968 = vpop.f32.mrb[0].mxu0
    %v6969 = vadd.f32 %v6926, %v6968
    %v6970 = vpop.f32.mrb[0].mxu0
    %v6971 = vadd.f32 %v6928, %v6970
    %v6972 = vpop.f32.mrb[0].mxu0
    %v6973 = vadd.f32 %v6930, %v6972
    %6974 = vdwg.mxu0
    %6975 = vmatprep.subr.bf16.mxu0 %v5952
    %6976 = vmatpush1.bf16.msra.mxu0 %v5951
    %6977 = vmatprep.subr.bf16.mxu0 %v5960
    %6978 = vmatpush1.bf16.msra.mxu0 %v5959
    %6979 = vmatprep.subr.bf16.mxu0 %v5968
    %6980 = vmatpush1.bf16.msra.mxu0 %v5967
    %6981 = vmatprep.subr.bf16.mxu0 %v5976
    %6982 = vmatpush1.bf16.msra.mxu0 %v5975
    %6983 = vmatprep.subr.bf16.mxu0 %v5984
    %6984 = vmatpush1.bf16.msra.mxu0 %v5983
    %6985 = vmatprep.subr.bf16.mxu0 %v5992
    %6986 = vmatpush1.bf16.msra.mxu0 %v5991
    %6987 = vmatprep.subr.bf16.mxu0 %v6000
    %6988 = vmatpush1.bf16.msra.mxu0 %v5999
    %6989 = vmatprep.subr.bf16.mxu0 %v6008
    %6990 = vmatpush1.bf16.msra.mxu0 %v6007
    %6991 = vmatprep.subr.bf16.mxu0 %v6016
    %6992 = vmatpush1.bf16.msra.mxu0 %v6015
    %6993 = vmatprep.subr.bf16.mxu0 %v6024
    %6994 = vmatpush1.bf16.msra.mxu0 %v6023
    %6995 = vmatprep.subr.bf16.mxu0 %v6032
    %6996 = vmatpush1.bf16.msra.mxu0 %v6031
    %6997 = vmatprep.subr.bf16.mxu0 %v6040
    %6998 = vmatpush1.bf16.msra.mxu0 %v6039
    %6999 = vmatprep.subr.bf16.mxu0 %v6048
    %7000 = vmatpush1.bf16.msra.mxu0 %v6047
    %7001 = vmatprep.subr.bf16.mxu0 %v6056
    %7002 = vmatpush1.bf16.msra.mxu0 %v6055
    %7003 = vmatprep.subr.bf16.mxu0 %v6064
    %7004 = vmatpush1.bf16.msra.mxu0 %v6063
    %7005 = vmatprep.subr.bf16.mxu0 %v6072
    %7006 = vmatpush1.bf16.msra.mxu0 %v6071
    %7007 = vmatprep.mubr.bf16.mxu0 %v3600
    %7008 = vmatmul.mubr.bf16.gmra.mrb[0].mxu0 %v3599
    %v7009 = vpop.f32.mrb[0].mxu0
    %v7010 = vadd.f32 %v6967, %v7009
    %v7011 = vpop.f32.mrb[0].mxu0
    %v7012 = vadd.f32 %v6969, %v7011
    %v7013 = vpop.f32.mrb[0].mxu0
    %v7014 = vadd.f32 %v6971, %v7013
    %v7015 = vpop.f32.mrb[0].mxu0
    %v7016 = vadd.f32 %v6973, %v7015
    %7017 = vdwg.mxu0
    %7018 = vmatprep.subr.bf16.mxu0 %v6080
    %7019 = vmatpush1.bf16.msra.mxu0 %v6079
    %7020 = vmatprep.subr.bf16.mxu0 %v6088
    %7021 = vmatpush1.bf16.msra.mxu0 %v6087
    %7022 = vmatprep.subr.bf16.mxu0 %v6096
    %7023 = vmatpush1.bf16.msra.mxu0 %v6095
    %7024 = vmatprep.subr.bf16.mxu0 %v6104
    %7025 = vmatpush1.bf16.msra.mxu0 %v6103
    %7026 = vmatprep.subr.bf16.mxu0 %v6112
    %7027 = vmatpush1.bf16.msra.mxu0 %v6111
    %7028 = vmatprep.subr.bf16.mxu0 %v6120
    %7029 = vmatpush1.bf16.msra.mxu0 %v6119
    %7030 = vmatprep.subr.bf16.mxu0 %v6128
    %7031 = vmatpush1.bf16.msra.mxu0 %v6127
    %7032 = vmatprep.subr.bf16.mxu0 %v6136
    %7033 = vmatpush1.bf16.msra.mxu0 %v6135
    %7034 = vmatprep.subr.bf16.mxu0 %v6144
    %7035 = vmatpush1.bf16.msra.mxu0 %v6143
    %7036 = vmatprep.subr.bf16.mxu0 %v6152
    %7037 = vmatpush1.bf16.msra.mxu0 %v6151
    %7038 = vmatprep.subr.bf16.mxu0 %v6160
    %7039 = vmatpush1.bf16.msra.mxu0 %v6159
    %7040 = vmatprep.subr.bf16.mxu0 %v6168
    %7041 = vmatpush1.bf16.msra.mxu0 %v6167
    %7042 = vmatprep.subr.bf16.mxu0 %v6176
    %7043 = vmatpush1.bf16.msra.mxu0 %v6175
    %7044 = vmatprep.subr.bf16.mxu0 %v6184
    %7045 = vmatpush1.bf16.msra.mxu0 %v6183
    %7046 = vmatprep.subr.bf16.mxu0 %v6192
    %7047 = vmatpush1.bf16.msra.mxu0 %v6191
    %7048 = vmatprep.subr.bf16.mxu0 %v6200
    %7049 = vmatpush1.bf16.msra.mxu0 %v6199
    %7050 = vmatprep.mubr.bf16.mxu0 %v3602
    %7051 = vmatmul.mubr.bf16.gmra.mrb[0].mxu0 %v3601
    %v7052 = vpop.f32.mrb[0].mxu0
    %v7053 = vadd.f32 %v7010, %v7052
    %v7054 = vpop.f32.mrb[0].mxu0
    %v7055 = vadd.f32 %v7012, %v7054
    %v7056 = vpop.f32.mrb[0].mxu0
    %v7057 = vadd.f32 %v7014, %v7056
    %v7058 = vpop.f32.mrb[0].mxu0
    %v7059 = vadd.f32 %v7016, %v7058
    %7060 = vdwg.mxu0
    %7061 = vmatprep.subr.bf16.mxu0 %v5698
    %7062 = vmatpush1.bf16.msra.mxu0 %v5697
    %7063 = vmatprep.subr.bf16.mxu0 %v5706
    %7064 = vmatpush1.bf16.msra.mxu0 %v5705
    %7065 = vmatprep.subr.bf16.mxu0 %v5714
    %7066 = vmatpush1.bf16.msra.mxu0 %v5713
    %7067 = vmatprep.subr.bf16.mxu0 %v5722
    %7068 = vmatpush1.bf16.msra.mxu0 %v5721
    %7069 = vmatprep.subr.bf16.mxu0 %v5730
    %7070 = vmatpush1.bf16.msra.mxu0 %v5729
    %7071 = vmatprep.subr.bf16.mxu0 %v5738
    %7072 = vmatpush1.bf16.msra.mxu0 %v5737
    %7073 = vmatprep.subr.bf16.mxu0 %v5746
    %7074 = vmatpush1.bf16.msra.mxu0 %v5745
    %7075 = vmatprep.subr.bf16.mxu0 %v5754
    %7076 = vmatpush1.bf16.msra.mxu0 %v5753
    %7077 = vmatprep.subr.bf16.mxu0 %v5762
    %7078 = vmatpush1.bf16.msra.mxu0 %v5761
    %7079 = vmatprep.subr.bf16.mxu0 %v5770
    %7080 = vmatpush1.bf16.msra.mxu0 %v5769
    %7081 = vmatprep.subr.bf16.mxu0 %v5778
    %7082 = vmatpush1.bf16.msra.mxu0 %v5777
    %7083 = vmatprep.subr.bf16.mxu0 %v5786
    %7084 = vmatpush1.bf16.msra.mxu0 %v5785
    %7085 = vmatprep.subr.bf16.mxu0 %v5794
    %7086 = vmatpush1.bf16.msra.mxu0 %v5793
    %7087 = vmatprep.subr.bf16.mxu0 %v5802
    %7088 = vmatpush1.bf16.msra.mxu0 %v5801
    %7089 = vmatprep.subr.bf16.mxu0 %v5810
    %7090 = vmatpush1.bf16.msra.mxu0 %v5809
    %7091 = vmatprep.subr.bf16.mxu0 %v5818
    %7092 = vmatpush1.bf16.msra.mxu0 %v5817
    %7093 = vmatprep.mubr.bf16.mxu0 %v3596
    %7094 = vmatmul.mubr.bf16.gmra.mrb[0].mxu0 %v3595
    %v7095 = vpop.f32.mrb[0].mxu0
    %v7096 = vadd.f32 %v4136, %v7095
    %v7097 = vpop.f32.mrb[0].mxu0
    %v7098 = vadd.f32 %v4140, %v7097
    %v7099 = vpop.f32.mrb[0].mxu0
    %v7100 = vadd.f32 %v4136, %v7099
    %v7101 = vpop.f32.mrb[0].mxu0
    %v7102 = vadd.f32 %v4140, %v7101
    %7103 = vdwg.mxu0
    %7104 = vmatprep.subr.bf16.mxu0 %v5826
    %7105 = vmatpush1.bf16.msra.mxu0 %v5825
    %7106 = vmatprep.subr.bf16.mxu0 %v5834
    %7107 = vmatpush1.bf16.msra.mxu0 %v5833
    %7108 = vmatprep.subr.bf16.mxu0 %v5842
    %7109 = vmatpush1.bf16.msra.mxu0 %v5841
    %7110 = vmatprep.subr.bf16.mxu0 %v5850
    %7111 = vmatpush1.bf16.msra.mxu0 %v5849
    %7112 = vmatprep.subr.bf16.mxu0 %v5858
    %7113 = vmatpush1.bf16.msra.mxu0 %v5857
    %7114 = vmatprep.subr.bf16.mxu0 %v5866
    %7115 = vmatpush1.bf16.msra.mxu0 %v5865
    %7116 = vmatprep.subr.bf16.mxu0 %v5874
    %7117 = vmatpush1.bf16.msra.mxu0 %v5873
    %7118 = vmatprep.subr.bf16.mxu0 %v5882
    %7119 = vmatpush1.bf16.msra.mxu0 %v5881
    %7120 = vmatprep.subr.bf16.mxu0 %v5890
    %7121 = vmatpush1.bf16.msra.mxu0 %v5889
    %7122 = vmatprep.subr.bf16.mxu0 %v5898
    %7123 = vmatpush1.bf16.msra.mxu0 %v5897
    %7124 = vmatprep.subr.bf16.mxu0 %v5906
    %7125 = vmatpush1.bf16.msra.mxu0 %v5905
    %7126 = vmatprep.subr.bf16.mxu0 %v5914
    %7127 = vmatpush1.bf16.msra.mxu0 %v5913
    %7128 = vmatprep.subr.bf16.mxu0 %v5922
    %7129 = vmatpush1.bf16.msra.mxu0 %v5921
    %7130 = vmatprep.subr.bf16.mxu0 %v5930
    %7131 = vmatpush1.bf16.msra.mxu0 %v5929
    %7132 = vmatprep.subr.bf16.mxu0 %v5938
    %7133 = vmatpush1.bf16.msra.mxu0 %v5937
    %7134 = vmatprep.subr.bf16.mxu0 %v5946
    %7135 = vmatpush1.bf16.msra.mxu0 %v5945
    %7136 = vmatprep.mubr.bf16.mxu0 %v3598
    %7137 = vmatmul.mubr.bf16.gmra.mrb[0].mxu0 %v3597
    %v7138 = vpop.f32.mrb[0].mxu0
    %v7139 = vadd.f32 %v7096, %v7138
    %v7140 = vpop.f32.mrb[0].mxu0
    %v7141 = vadd.f32 %v7098, %v7140
    %v7142 = vpop.f32.mrb[0].mxu0
    %v7143 = vadd.f32 %v7100, %v7142
    %v7144 = vpop.f32.mrb[0].mxu0
    %v7145 = vadd.f32 %v7102, %v7144
    %7146 = vdwg.mxu0
    %7147 = vmatprep.subr.bf16.mxu0 %v5954
    %7148 = vmatpush1.bf16.msra.mxu0 %v5953
    %7149 = vmatprep.subr.bf16.mxu0 %v5962
    %7150 = vmatpush1.bf16.msra.mxu0 %v5961
    %7151 = vmatprep.subr.bf16.mxu0 %v5970
    %7152 = vmatpush1.bf16.msra.mxu0 %v5969
    %7153 = vmatprep.subr.bf16.mxu0 %v5978
    %7154 = vmatpush1.bf16.msra.mxu0 %v5977
    %7155 = vmatprep.subr.bf16.mxu0 %v5986
    %7156 = vmatpush1.bf16.msra.mxu0 %v5985
    %7157 = vmatprep.subr.bf16.mxu0 %v5994
    %7158 = vmatpush1.bf16.msra.mxu0 %v5993
    %7159 = vmatprep.subr.bf16.mxu0 %v6002
    %7160 = vmatpush1.bf16.msra.mxu0 %v6001
    %7161 = vmatprep.subr.bf16.mxu0 %v6010
    %7162 = vmatpush1.bf16.msra.mxu0 %v6009
    %7163 = vmatprep.subr.bf16.mxu0 %v6018
    %7164 = vmatpush1.bf16.msra.mxu0 %v6017
    %7165 = vmatprep.subr.bf16.mxu0 %v6026
    %7166 = vmatpush1.bf16.msra.mxu0 %v6025
    %7167 = vmatprep.subr.bf16.mxu0 %v6034
    %7168 = vmatpush1.bf16.msra.mxu0 %v6033
    %7169 = vmatprep.subr.bf16.mxu0 %v6042
    %7170 = vmatpush1.bf16.msra.mxu0 %v6041
    %7171 = vmatprep.subr.bf16.mxu0 %v6050
    %7172 = vmatpush1.bf16.msra.mxu0 %v6049
    %7173 = vmatprep.subr.bf16.mxu0 %v6058
    %7174 = vmatpush1.bf16.msra.mxu0 %v6057
    %7175 = vmatprep.subr.bf16.mxu0 %v6066
    %7176 = vmatpush1.bf16.msra.mxu0 %v6065
    %7177 = vmatprep.subr.bf16.mxu0 %v6074
    %7178 = vmatpush1.bf16.msra.mxu0 %v6073
    %7179 = vmatprep.mubr.bf16.mxu0 %v3600
    %7180 = vmatmul.mubr.bf16.gmra.mrb[0].mxu0 %v3599
    %v7181 = vpop.f32.mrb[0].mxu0
    %v7182 = vadd.f32 %v7139, %v7181
    %v7183 = vpop.f32.mrb[0].mxu0
    %v7184 = vadd.f32 %v7141, %v7183
    %v7185 = vpop.f32.mrb[0].mxu0
    %v7186 = vadd.f32 %v7143, %v7185
    %v7187 = vpop.f32.mrb[0].mxu0
    %v7188 = vadd.f32 %v7145, %v7187
    %7189 = vdwg.mxu0
    %7190 = vmatprep.subr.bf16.mxu0 %v6082
    %7191 = vmatpush1.bf16.msra.mxu0 %v6081
    %7192 = vmatprep.subr.bf16.mxu0 %v6090
    %7193 = vmatpush1.bf16.msra.mxu0 %v6089
    %7194 = vmatprep.subr.bf16.mxu0 %v6098
    %7195 = vmatpush1.bf16.msra.mxu0 %v6097
    %7196 = vmatprep.subr.bf16.mxu0 %v6106
    %7197 = vmatpush1.bf16.msra.mxu0 %v6105
    %7198 = vmatprep.subr.bf16.mxu0 %v6114
    %7199 = vmatpush1.bf16.msra.mxu0 %v6113
    %7200 = vmatprep.subr.bf16.mxu0 %v6122
    %7201 = vmatpush1.bf16.msra.mxu0 %v6121
    %7202 = vmatprep.subr.bf16.mxu0 %v6130
    %7203 = vmatpush1.bf16.msra.mxu0 %v6129
    %7204 = vmatprep.subr.bf16.mxu0 %v6138
    %7205 = vmatpush1.bf16.msra.mxu0 %v6137
    %7206 = vmatprep.subr.bf16.mxu0 %v6146
    %7207 = vmatpush1.bf16.msra.mxu0 %v6145
    %7208 = vmatprep.subr.bf16.mxu0 %v6154
    %7209 = vmatpush1.bf16.msra.mxu0 %v6153
    %7210 = vmatprep.subr.bf16.mxu0 %v6162
    %7211 = vmatpush1.bf16.msra.mxu0 %v6161
    %7212 = vmatprep.subr.bf16.mxu0 %v6170
    %7213 = vmatpush1.bf16.msra.mxu0 %v6169
    %7214 = vmatprep.subr.bf16.mxu0 %v6178
    %7215 = vmatpush1.bf16.msra.mxu0 %v6177
    %7216 = vmatprep.subr.bf16.mxu0 %v6186
    %7217 = vmatpush1.bf16.msra.mxu0 %v6185
    %7218 = vmatprep.subr.bf16.mxu0 %v6194
    %7219 = vmatpush1.bf16.msra.mxu0 %v6193
    %7220 = vmatprep.subr.bf16.mxu0 %v6202
    %7221 = vmatpush1.bf16.msra.mxu0 %v6201
    %7222 = vmatprep.mubr.bf16.mxu0 %v3602
    %7223 = vmatmul.mubr.bf16.gmra.mrb[0].mxu0 %v3601
    %v7224 = vpop.f32.mrb[0].mxu0
    %v7225 = vadd.f32 %v7182, %v7224
    %v7226 = vpop.f32.mrb[0].mxu0
    %v7227 = vadd.f32 %v7184, %v7226
    %v7228 = vpop.f32.mrb[0].mxu0
    %v7229 = vadd.f32 %v7186, %v7228
    %v7230 = vpop.f32.mrb[0].mxu0
    %v7231 = vadd.f32 %v7188, %v7230
    %7232 = vdwg.mxu0
    %7233 = vmatprep.subr.bf16.mxu0 %v5700
    %7234 = vmatpush1.bf16.msra.mxu0 %v5699
    %7235 = vmatprep.subr.bf16.mxu0 %v5708
    %7236 = vmatpush1.bf16.msra.mxu0 %v5707
    %7237 = vmatprep.subr.bf16.mxu0 %v5716
    %7238 = vmatpush1.bf16.msra.mxu0 %v5715
    %7239 = vmatprep.subr.bf16.mxu0 %v5724
    %7240 = vmatpush1.bf16.msra.mxu0 %v5723
    %7241 = vmatprep.subr.bf16.mxu0 %v5732
    %7242 = vmatpush1.bf16.msra.mxu0 %v5731
    %7243 = vmatprep.subr.bf16.mxu0 %v5740
    %7244 = vmatpush1.bf16.msra.mxu0 %v5739
    %7245 = vmatprep.subr.bf16.mxu0 %v5748
    %7246 = vmatpush1.bf16.msra.mxu0 %v5747
    %7247 = vmatprep.subr.bf16.mxu0 %v5756
    %7248 = vmatpush1.bf16.msra.mxu0 %v5755
    %7249 = vmatprep.subr.bf16.mxu0 %v5764
    %7250 = vmatpush1.bf16.msra.mxu0 %v5763
    %7251 = vmatprep.subr.bf16.mxu0 %v5772
    %7252 = vmatpush1.bf16.msra.mxu0 %v5771
    %7253 = vmatprep.subr.bf16.mxu0 %v5780
    %7254 = vmatpush1.bf16.msra.mxu0 %v5779
    %7255 = vmatprep.subr.bf16.mxu0 %v5788
    %7256 = vmatpush1.bf16.msra.mxu0 %v5787
    %7257 = vmatprep.subr.bf16.mxu0 %v5796
    %7258 = vmatpush1.bf16.msra.mxu0 %v5795
    %7259 = vmatprep.subr.bf16.mxu0 %v5804
    %7260 = vmatpush1.bf16.msra.mxu0 %v5803
    %7261 = vmatprep.subr.bf16.mxu0 %v5812
    %7262 = vmatpush1.bf16.msra.mxu0 %v5811
    %7263 = vmatprep.subr.bf16.mxu0 %v5820
    %7264 = vmatpush1.bf16.msra.mxu0 %v5819
    %7265 = vmatprep.mubr.bf16.mxu0 %v3596
    %7266 = vmatmul.mubr.bf16.gmra.mrb[0].mxu0 %v3595
    %v7267 = vpop.f32.mrb[0].mxu0
    %v7268 = vadd.f32 %v4144, %v7267
    %v7269 = vpop.f32.mrb[0].mxu0
    %v7270 = vadd.f32 %v4148, %v7269
    %v7271 = vpop.f32.mrb[0].mxu0
    %v7272 = vadd.f32 %v4144, %v7271
    %v7273 = vpop.f32.mrb[0].mxu0
    %v7274 = vadd.f32 %v4148, %v7273
    %7275 = vdwg.mxu0
    %7276 = vmatprep.subr.bf16.mxu0 %v5828
    %7277 = vmatpush1.bf16.msra.mxu0 %v5827
    %7278 = vmatprep.subr.bf16.mxu0 %v5836
    %7279 = vmatpush1.bf16.msra.mxu0 %v5835
    %7280 = vmatprep.subr.bf16.mxu0 %v5844
    %7281 = vmatpush1.bf16.msra.mxu0 %v5843
    %7282 = vmatprep.subr.bf16.mxu0 %v5852
    %7283 = vmatpush1.bf16.msra.mxu0 %v5851
    %7284 = vmatprep.subr.bf16.mxu0 %v5860
    %7285 = vmatpush1.bf16.msra.mxu0 %v5859
    %7286 = vmatprep.subr.bf16.mxu0 %v5868
    %7287 = vmatpush1.bf16.msra.mxu0 %v5867
    %7288 = vmatprep.subr.bf16.mxu0 %v5876
    %7289 = vmatpush1.bf16.msra.mxu0 %v5875
    %7290 = vmatprep.subr.bf16.mxu0 %v5884
    %7291 = vmatpush1.bf16.msra.mxu0 %v5883
    %7292 = vmatprep.subr.bf16.mxu0 %v5892
    %7293 = vmatpush1.bf16.msra.mxu0 %v5891
    %7294 = vmatprep.subr.bf16.mxu0 %v5900
    %7295 = vmatpush1.bf16.msra.mxu0 %v5899
    %7296 = vmatprep.subr.bf16.mxu0 %v5908
    %7297 = vmatpush1.bf16.msra.mxu0 %v5907
    %7298 = vmatprep.subr.bf16.mxu0 %v5916
    %7299 = vmatpush1.bf16.msra.mxu0 %v5915
    %7300 = vmatprep.subr.bf16.mxu0 %v5924
    %7301 = vmatpush1.bf16.msra.mxu0 %v5923
    %7302 = vmatprep.subr.bf16.mxu0 %v5932
    %7303 = vmatpush1.bf16.msra.mxu0 %v5931
    %7304 = vmatprep.subr.bf16.mxu0 %v5940
    %7305 = vmatpush1.bf16.msra.mxu0 %v5939
    %7306 = vmatprep.subr.bf16.mxu0 %v5948
    %7307 = vmatpush1.bf16.msra.mxu0 %v5947
    %7308 = vmatprep.mubr.bf16.mxu0 %v3598
    %7309 = vmatmul.mubr.bf16.gmra.mrb[0].mxu0 %v3597
    %v7310 = vpop.f32.mrb[0].mxu0
    %v7311 = vadd.f32 %v7268, %v7310
    %v7312 = vpop.f32.mrb[0].mxu0
    %v7313 = vadd.f32 %v7270, %v7312
    %v7314 = vpop.f32.mrb[0].mxu0
    %v7315 = vadd.f32 %v7272, %v7314
    %v7316 = vpop.f32.mrb[0].mxu0
    %v7317 = vadd.f32 %v7274, %v7316
    %7318 = vdwg.mxu0
    %7319 = vmatprep.subr.bf16.mxu0 %v5956
    %7320 = vmatpush1.bf16.msra.mxu0 %v5955
    %7321 = vmatprep.subr.bf16.mxu0 %v5964
    %7322 = vmatpush1.bf16.msra.mxu0 %v5963
    %7323 = vmatprep.subr.bf16.mxu0 %v5972
    %7324 = vmatpush1.bf16.msra.mxu0 %v5971
    %7325 = vmatprep.subr.bf16.mxu0 %v5980
    %7326 = vmatpush1.bf16.msra.mxu0 %v5979
    %7327 = vmatprep.subr.bf16.mxu0 %v5988
    %7328 = vmatpush1.bf16.msra.mxu0 %v5987
    %7329 = vmatprep.subr.bf16.mxu0 %v5996
    %7330 = vmatpush1.bf16.msra.mxu0 %v5995
    %7331 = vmatprep.subr.bf16.mxu0 %v6004
    %7332 = vmatpush1.bf16.msra.mxu0 %v6003
    %7333 = vmatprep.subr.bf16.mxu0 %v6012
    %7334 = vmatpush1.bf16.msra.mxu0 %v6011
    %7335 = vmatprep.subr.bf16.mxu0 %v6020
    %7336 = vmatpush1.bf16.msra.mxu0 %v6019
    %7337 = vmatprep.subr.bf16.mxu0 %v6028
    %7338 = vmatpush1.bf16.msra.mxu0 %v6027
    %7339 = vmatprep.subr.bf16.mxu0 %v6036
    %7340 = vmatpush1.bf16.msra.mxu0 %v6035
    %7341 = vmatprep.subr.bf16.mxu0 %v6044
    %7342 = vmatpush1.bf16.msra.mxu0 %v6043
    %7343 = vmatprep.subr.bf16.mxu0 %v6052
    %7344 = vmatpush1.bf16.msra.mxu0 %v6051
    %7345 = vmatprep.subr.bf16.mxu0 %v6060
    %7346 = vmatpush1.bf16.msra.mxu0 %v6059
    %7347 = vmatprep.subr.bf16.mxu0 %v6068
    %7348 = vmatpush1.bf16.msra.mxu0 %v6067
    %7349 = vmatprep.subr.bf16.mxu0 %v6076
    %7350 = vmatpush1.bf16.msra.mxu0 %v6075
    %7351 = vmatprep.mubr.bf16.mxu0 %v3600
    %7352 = vmatmul.mubr.bf16.gmra.mrb[0].mxu0 %v3599
    %v7353 = vpop.f32.mrb[0].mxu0
    %v7354 = vadd.f32 %v7311, %v7353
    %v7355 = vpop.f32.mrb[0].mxu0
    %v7356 = vadd.f32 %v7313, %v7355
    %v7357 = vpop.f32.mrb[0].mxu0
    %v7358 = vadd.f32 %v7315, %v7357
    %v7359 = vpop.f32.mrb[0].mxu0
    %v7360 = vadd.f32 %v7317, %v7359
    %7361 = vdwg.mxu0
    %7362 = vmatprep.subr.bf16.mxu0 %v6084
    %7363 = vmatpush1.bf16.msra.mxu0 %v6083
    %7364 = vmatprep.subr.bf16.mxu0 %v6092
    %7365 = vmatpush1.bf16.msra.mxu0 %v6091
    %7366 = vmatprep.subr.bf16.mxu0 %v6100
    %7367 = vmatpush1.bf16.msra.mxu0 %v6099
    %7368 = vmatprep.subr.bf16.mxu0 %v6108
    %7369 = vmatpush1.bf16.msra.mxu0 %v6107
    %7370 = vmatprep.subr.bf16.mxu0 %v6116
    %7371 = vmatpush1.bf16.msra.mxu0 %v6115
    %7372 = vmatprep.subr.bf16.mxu0 %v6124
    %7373 = vmatpush1.bf16.msra.mxu0 %v6123
    %7374 = vmatprep.subr.bf16.mxu0 %v6132
    %7375 = vmatpush1.bf16.msra.mxu0 %v6131
    %7376 = vmatprep.subr.bf16.mxu0 %v6140
    %7377 = vmatpush1.bf16.msra.mxu0 %v6139
    %7378 = vmatprep.subr.bf16.mxu0 %v6148
    %7379 = vmatpush1.bf16.msra.mxu0 %v6147
    %7380 = vmatprep.subr.bf16.mxu0 %v6156
    %7381 = vmatpush1.bf16.msra.mxu0 %v6155
    %7382 = vmatprep.subr.bf16.mxu0 %v6164
    %7383 = vmatpush1.bf16.msra.mxu0 %v6163
    %7384 = vmatprep.subr.bf16.mxu0 %v6172
    %7385 = vmatpush1.bf16.msra.mxu0 %v6171
    %7386 = vmatprep.subr.bf16.mxu0 %v6180
    %7387 = vmatpush1.bf16.msra.mxu0 %v6179
    %7388 = vmatprep.subr.bf16.mxu0 %v6188
    %7389 = vmatpush1.bf16.msra.mxu0 %v6187
    %7390 = vmatprep.subr.bf16.mxu0 %v6196
    %7391 = vmatpush1.bf16.msra.mxu0 %v6195
    %7392 = vmatprep.subr.bf16.mxu0 %v6204
    %7393 = vmatpush1.bf16.msra.mxu0 %v6203
    %7394 = vmatprep.mubr.bf16.mxu0 %v3602
    %7395 = vmatmul.mubr.bf16.gmra.mrb[0].mxu0 %v3601
    %v7396 = vpop.f32.mrb[0].mxu0
    %v7397 = vadd.f32 %v7354, %v7396
    %v7398 = vpop.f32.mrb[0].mxu0
    %v7399 = vadd.f32 %v7356, %v7398
    %v7400 = vpop.f32.mrb[0].mxu0
    %v7401 = vadd.f32 %v7358, %v7400
    %v7402 = vpop.f32.mrb[0].mxu0
    %v7403 = vadd.f32 %v7360, %v7402
    %7404 = vdwg.mxu0
    %v7405 = vmax.f32 %v6881, 0.0
    %v7406 = vmax.f32 %v6883, 0.0
    %v7407 = vmax.f32 %v7053, 0.0
    %v7408 = vmax.f32 %v7055, 0.0
    %v7409 = vmax.f32 %v7225, 0.0
    %v7410 = vmax.f32 %v7227, 0.0
    %v7411 = vmax.f32 %v7397, 0.0
    %v7412 = vmax.f32 %v7399, 0.0
    %v7413 = vmax.f32 %v6885, 0.0
    %v7414 = vmax.f32 %v6887, 0.0
    %v7415 = vmax.f32 %v7057, 0.0
    %v7416 = vmax.f32 %v7059, 0.0
    %v7417 = vmax.f32 %v7229, 0.0
    %v7418 = vmax.f32 %v7231, 0.0
    %v7419 = vmax.f32 %v7401, 0.0
    %v7420 = vmax.f32 %v7403, 0.0
    %v7421 = vpack.c.bf16 %v7413, %v7405
    %v7422 = vpack.c.bf16 %v7414, %v7406
    %v7423 = vpack.c.bf16 %v7415, %v7407
    %v7424 = vpack.c.bf16 %v7416, %v7408
    %v7425 = vpack.c.bf16 %v7417, %v7409
    %v7426 = vpack.c.bf16 %v7418, %v7410
    %v7427 = vpack.c.bf16 %v7419, %v7411
    %v7428 = vpack.c.bf16 %v7420, %v7412
    %v7429 = vld [vmem:[#allocation11] sm:$0xf]
    %v7430 = vld [vmem:[#allocation11 + $0x4] sm:$0xf]
    %v7431 = vld [vmem:[#allocation11 + $0x8] sm:$0xf]
    %v7432 = vld [vmem:[#allocation11 + $0xc] sm:$0xf]
    %v7433 = vld [vmem:[#allocation11 + $0x10] sm:$0xf]
    %v7434 = vld [vmem:[#allocation11 + $0x14] sm:$0xf]
    %v7435 = vld [vmem:[#allocation11 + $0x18] sm:$0xf]
    %v7436 = vld [vmem:[#allocation11 + $0x1c] sm:$0xf]
    %v7437 = vld [vmem:[#allocation11 + $0x20] sm:$0xf]
    %v7438 = vld [vmem:[#allocation11 + $0x24] sm:$0xf]
    %v7439 = vld [vmem:[#allocation11 + $0x28] sm:$0xf]
    %v7440 = vld [vmem:[#allocation11 + $0x2c] sm:$0xf]
    %v7441 = vld [vmem:[#allocation11 + $0x30] sm:$0xf]
    %v7442 = vld [vmem:[#allocation11 + $0x34] sm:$0xf]
    %v7443 = vld [vmem:[#allocation11 + $0x38] sm:$0xf]
    %v7444 = vld [vmem:[#allocation11 + $0x3c] sm:$0xf]
    %v7445 = vld [vmem:[#allocation11 + $0x40] sm:$0xf]
    %v7446 = vld [vmem:[#allocation11 + $0x44] sm:$0xf]
    %v7447 = vld [vmem:[#allocation11 + $0x48] sm:$0xf]
    %v7448 = vld [vmem:[#allocation11 + $0x4c] sm:$0xf]
    %v7449 = vld [vmem:[#allocation11 + $0x50] sm:$0xf]
    %v7450 = vld [vmem:[#allocation11 + $0x54] sm:$0xf]
    %v7451 = vld [vmem:[#allocation11 + $0x58] sm:$0xf]
    %v7452 = vld [vmem:[#allocation11 + $0x5c] sm:$0xf]
    %v7453 = vld [vmem:[#allocation11 + $0x60] sm:$0xf]
    %v7454 = vld [vmem:[#allocation11 + $0x64] sm:$0xf]
    %v7455 = vld [vmem:[#allocation11 + $0x68] sm:$0xf]
    %v7456 = vld [vmem:[#allocation11 + $0x6c] sm:$0xf]
    %v7457 = vld [vmem:[#allocation11 + $0x70] sm:$0xf]
    %v7458 = vld [vmem:[#allocation11 + $0x74] sm:$0xf]
    %v7459 = vld [vmem:[#allocation11 + $0x78] sm:$0xf]
    %v7460 = vld [vmem:[#allocation11 + $0x7c] sm:$0xf]
    %v7461 = vld [vmem:[#allocation11 + $0x80] sm:$0xf]
    %v7462 = vld [vmem:[#allocation11 + $0x84] sm:$0xf]
    %v7463 = vld [vmem:[#allocation11 + $0x88] sm:$0xf]
    %v7464 = vld [vmem:[#allocation11 + $0x8c] sm:$0xf]
    %v7465 = vld [vmem:[#allocation11 + $0x90] sm:$0xf]
    %v7466 = vld [vmem:[#allocation11 + $0x94] sm:$0xf]
    %v7467 = vld [vmem:[#allocation11 + $0x98] sm:$0xf]
    %v7468 = vld [vmem:[#allocation11 + $0x9c] sm:$0xf]
    %v7469 = vld [vmem:[#allocation11 + $0xa0] sm:$0xf]
    %v7470 = vld [vmem:[#allocation11 + $0xa4] sm:$0xf]
    %v7471 = vld [vmem:[#allocation11 + $0xa8] sm:$0xf]
    %v7472 = vld [vmem:[#allocation11 + $0xac] sm:$0xf]
    %v7473 = vld [vmem:[#allocation11 + $0xb0] sm:$0xf]
    %v7474 = vld [vmem:[#allocation11 + $0xb4] sm:$0xf]
    %v7475 = vld [vmem:[#allocation11 + $0xb8] sm:$0xf]
    %v7476 = vld [vmem:[#allocation11 + $0xbc] sm:$0xf]
    %v7477 = vld [vmem:[#allocation11 + $0xc0] sm:$0xf]
    %v7478 = vld [vmem:[#allocation11 + $0xc4] sm:$0xf]
    %v7479 = vld [vmem:[#allocation11 + $0xc8] sm:$0xf]
    %v7480 = vld [vmem:[#allocation11 + $0xcc] sm:$0xf]
    %v7481 = vld [vmem:[#allocation11 + $0xd0] sm:$0xf]
    %v7482 = vld [vmem:[#allocation11 + $0xd4] sm:$0xf]
    %v7483 = vld [vmem:[#allocation11 + $0xd8] sm:$0xf]
    %v7484 = vld [vmem:[#allocation11 + $0xdc] sm:$0xf]
    %v7485 = vld [vmem:[#allocation11 + $0xe0] sm:$0xf]
    %v7486 = vld [vmem:[#allocation11 + $0xe4] sm:$0xf]
    %v7487 = vld [vmem:[#allocation11 + $0xe8] sm:$0xf]
    %v7488 = vld [vmem:[#allocation11 + $0xec] sm:$0xf]
    %v7489 = vld [vmem:[#allocation11 + $0xf0] sm:$0xf]
    %v7490 = vld [vmem:[#allocation11 + $0xf4] sm:$0xf]
    %v7491 = vld [vmem:[#allocation11 + $0xf8] sm:$0xf]
    %v7492 = vld [vmem:[#allocation11 + $0xfc] sm:$0xf]
    %v7493 = vld [vmem:[#allocation11 + $0x100] sm:$0xf]
    %v7494 = vld [vmem:[#allocation11 + $0x104] sm:$0xf]
    %v7495 = vld [vmem:[#allocation11 + $0x108] sm:$0xf]
    %v7496 = vld [vmem:[#allocation11 + $0x10c] sm:$0xf]
    %v7497 = vld [vmem:[#allocation11 + $0x110] sm:$0xf]
    %v7498 = vld [vmem:[#allocation11 + $0x114] sm:$0xf]
    %v7499 = vld [vmem:[#allocation11 + $0x118] sm:$0xf]
    %v7500 = vld [vmem:[#allocation11 + $0x11c] sm:$0xf]
    %v7501 = vld [vmem:[#allocation11 + $0x120] sm:$0xf]
    %v7502 = vld [vmem:[#allocation11 + $0x124] sm:$0xf]
    %v7503 = vld [vmem:[#allocation11 + $0x128] sm:$0xf]
    %v7504 = vld [vmem:[#allocation11 + $0x12c] sm:$0xf]
    %v7505 = vld [vmem:[#allocation11 + $0x130] sm:$0xf]
    %v7506 = vld [vmem:[#allocation11 + $0x134] sm:$0xf]
    %v7507 = vld [vmem:[#allocation11 + $0x138] sm:$0xf]
    %v7508 = vld [vmem:[#allocation11 + $0x13c] sm:$0xf]
    %v7509 = vld [vmem:[#allocation11 + $0x140] sm:$0xf]
    %v7510 = vld [vmem:[#allocation11 + $0x144] sm:$0xf]
    %v7511 = vld [vmem:[#allocation11 + $0x148] sm:$0xf]
    %v7512 = vld [vmem:[#allocation11 + $0x14c] sm:$0xf]
    %v7513 = vld [vmem:[#allocation11 + $0x150] sm:$0xf]
    %v7514 = vld [vmem:[#allocation11 + $0x154] sm:$0xf]
    %v7515 = vld [vmem:[#allocation11 + $0x158] sm:$0xf]
    %v7516 = vld [vmem:[#allocation11 + $0x15c] sm:$0xf]
    %v7517 = vld [vmem:[#allocation11 + $0x160] sm:$0xf]
    %v7518 = vld [vmem:[#allocation11 + $0x164] sm:$0xf]
    %v7519 = vld [vmem:[#allocation11 + $0x168] sm:$0xf]
    %v7520 = vld [vmem:[#allocation11 + $0x16c] sm:$0xf]
    %v7521 = vld [vmem:[#allocation11 + $0x170] sm:$0xf]
    %v7522 = vld [vmem:[#allocation11 + $0x174] sm:$0xf]
    %v7523 = vld [vmem:[#allocation11 + $0x178] sm:$0xf]
    %v7524 = vld [vmem:[#allocation11 + $0x17c] sm:$0xf]
    %v7525 = vld [vmem:[#allocation11 + $0x180] sm:$0xf]
    %v7526 = vld [vmem:[#allocation11 + $0x184] sm:$0xf]
    %v7527 = vld [vmem:[#allocation11 + $0x188] sm:$0xf]
    %v7528 = vld [vmem:[#allocation11 + $0x18c] sm:$0xf]
    %v7529 = vld [vmem:[#allocation11 + $0x190] sm:$0xf]
    %v7530 = vld [vmem:[#allocation11 + $0x194] sm:$0xf]
    %v7531 = vld [vmem:[#allocation11 + $0x198] sm:$0xf]
    %v7532 = vld [vmem:[#allocation11 + $0x19c] sm:$0xf]
    %v7533 = vld [vmem:[#allocation11 + $0x1a0] sm:$0xf]
    %v7534 = vld [vmem:[#allocation11 + $0x1a4] sm:$0xf]
    %v7535 = vld [vmem:[#allocation11 + $0x1a8] sm:$0xf]
    %v7536 = vld [vmem:[#allocation11 + $0x1ac] sm:$0xf]
    %v7537 = vld [vmem:[#allocation11 + $0x1b0] sm:$0xf]
    %v7538 = vld [vmem:[#allocation11 + $0x1b4] sm:$0xf]
    %v7539 = vld [vmem:[#allocation11 + $0x1b8] sm:$0xf]
    %v7540 = vld [vmem:[#allocation11 + $0x1bc] sm:$0xf]
    %v7541 = vld [vmem:[#allocation11 + $0x1c0] sm:$0xf]
    %v7542 = vld [vmem:[#allocation11 + $0x1c4] sm:$0xf]
    %v7543 = vld [vmem:[#allocation11 + $0x1c8] sm:$0xf]
    %v7544 = vld [vmem:[#allocation11 + $0x1cc] sm:$0xf]
    %v7545 = vld [vmem:[#allocation11 + $0x1d0] sm:$0xf]
    %v7546 = vld [vmem:[#allocation11 + $0x1d4] sm:$0xf]
    %v7547 = vld [vmem:[#allocation11 + $0x1d8] sm:$0xf]
    %v7548 = vld [vmem:[#allocation11 + $0x1dc] sm:$0xf]
    %v7549 = vld [vmem:[#allocation11 + $0x1e0] sm:$0xf]
    %v7550 = vld [vmem:[#allocation11 + $0x1e4] sm:$0xf]
    %v7551 = vld [vmem:[#allocation11 + $0x1e8] sm:$0xf]
    %v7552 = vld [vmem:[#allocation11 + $0x1ec] sm:$0xf]
    %v7553 = vld [vmem:[#allocation11 + $0x1f0] sm:$0xf]
    %v7554 = vld [vmem:[#allocation11 + $0x1f4] sm:$0xf]
    %v7555 = vld [vmem:[#allocation11 + $0x1f8] sm:$0xf]
    %v7556 = vld [vmem:[#allocation11 + $0x1fc] sm:$0xf]
    %v7557 = vld [vmem:[#allocation13] sm:$0x1]
    %v7559 = vlaneseq
    %v7560 = vshrl.u32 %v7559, 7
    %v7561 = vsub.s32 0, %v7560
    %v7562 = vrot.slane %v7557, %v7561
    %v7692 = vunpack.c.l.b16 %v7429
    %v7693 = vunpack.c.l.b16 %v7430
    %v7694 = vunpack.c.l.b16 %v7431
    %v7695 = vunpack.c.l.b16 %v7432
    %v7696 = vunpack.c.l.b16 %v7433
    %v7697 = vunpack.c.l.b16 %v7434
    %v7698 = vunpack.c.l.b16 %v7435
    %v7699 = vunpack.c.l.b16 %v7436
    %v7700 = vunpack.c.l.b16 %v7437
    %v7701 = vunpack.c.l.b16 %v7438
    %v7702 = vunpack.c.l.b16 %v7439
    %v7703 = vunpack.c.l.b16 %v7440
    %v7704 = vunpack.c.l.b16 %v7441
    %v7705 = vunpack.c.l.b16 %v7442
    %v7706 = vunpack.c.l.b16 %v7443
    %v7707 = vunpack.c.l.b16 %v7444
    %v7708 = vunpack.c.l.b16 %v7445
    %v7709 = vunpack.c.l.b16 %v7446
    %v7710 = vunpack.c.l.b16 %v7447
    %v7711 = vunpack.c.l.b16 %v7448
    %v7712 = vunpack.c.l.b16 %v7449
    %v7713 = vunpack.c.l.b16 %v7450
    %v7714 = vunpack.c.l.b16 %v7451
    %v7715 = vunpack.c.l.b16 %v7452
    %v7716 = vunpack.c.l.b16 %v7453
    %v7717 = vunpack.c.l.b16 %v7454
    %v7718 = vunpack.c.l.b16 %v7455
    %v7719 = vunpack.c.l.b16 %v7456
    %v7720 = vunpack.c.l.b16 %v7457
    %v7721 = vunpack.c.l.b16 %v7458
    %v7722 = vunpack.c.l.b16 %v7459
    %v7723 = vunpack.c.l.b16 %v7460
    %v7724 = vunpack.c.l.b16 %v7461
    %v7725 = vunpack.c.l.b16 %v7462
    %v7726 = vunpack.c.l.b16 %v7463
    %v7727 = vunpack.c.l.b16 %v7464
    %v7728 = vunpack.c.l.b16 %v7465
    %v7729 = vunpack.c.l.b16 %v7466
    %v7730 = vunpack.c.l.b16 %v7467
    %v7731 = vunpack.c.l.b16 %v7468
    %v7732 = vunpack.c.l.b16 %v7469
    %v7733 = vunpack.c.l.b16 %v7470
    %v7734 = vunpack.c.l.b16 %v7471
    %v7735 = vunpack.c.l.b16 %v7472
    %v7736 = vunpack.c.l.b16 %v7473
    %v7737 = vunpack.c.l.b16 %v7474
    %v7738 = vunpack.c.l.b16 %v7475
    %v7739 = vunpack.c.l.b16 %v7476
    %v7740 = vunpack.c.l.b16 %v7477
    %v7741 = vunpack.c.l.b16 %v7478
    %v7742 = vunpack.c.l.b16 %v7479
    %v7743 = vunpack.c.l.b16 %v7480
    %v7744 = vunpack.c.l.b16 %v7481
    %v7745 = vunpack.c.l.b16 %v7482
    %v7746 = vunpack.c.l.b16 %v7483
    %v7747 = vunpack.c.l.b16 %v7484
    %v7748 = vunpack.c.l.b16 %v7485
    %v7749 = vunpack.c.l.b16 %v7486
    %v7750 = vunpack.c.l.b16 %v7487
    %v7751 = vunpack.c.l.b16 %v7488
    %v7752 = vunpack.c.l.b16 %v7489
    %v7753 = vunpack.c.l.b16 %v7490
    %v7754 = vunpack.c.l.b16 %v7491
    %v7755 = vunpack.c.l.b16 %v7492
    %v7756 = vunpack.c.l.b16 %v7493
    %v7757 = vunpack.c.l.b16 %v7494
    %v7758 = vunpack.c.l.b16 %v7495
    %v7759 = vunpack.c.l.b16 %v7496
    %v7760 = vunpack.c.l.b16 %v7497
    %v7761 = vunpack.c.l.b16 %v7498
    %v7762 = vunpack.c.l.b16 %v7499
    %v7763 = vunpack.c.l.b16 %v7500
    %v7764 = vunpack.c.l.b16 %v7501
    %v7765 = vunpack.c.l.b16 %v7502
    %v7766 = vunpack.c.l.b16 %v7503
    %v7767 = vunpack.c.l.b16 %v7504
    %v7768 = vunpack.c.l.b16 %v7505
    %v7769 = vunpack.c.l.b16 %v7506
    %v7770 = vunpack.c.l.b16 %v7507
    %v7771 = vunpack.c.l.b16 %v7508
    %v7772 = vunpack.c.l.b16 %v7509
    %v7773 = vunpack.c.l.b16 %v7510
    %v7774 = vunpack.c.l.b16 %v7511
    %v7775 = vunpack.c.l.b16 %v7512
    %v7776 = vunpack.c.l.b16 %v7513
    %v7777 = vunpack.c.l.b16 %v7514
    %v7778 = vunpack.c.l.b16 %v7515
    %v7779 = vunpack.c.l.b16 %v7516
    %v7780 = vunpack.c.l.b16 %v7517
    %v7781 = vunpack.c.l.b16 %v7518
    %v7782 = vunpack.c.l.b16 %v7519
    %v7783 = vunpack.c.l.b16 %v7520
    %v7784 = vunpack.c.l.b16 %v7521
    %v7785 = vunpack.c.l.b16 %v7522
    %v7786 = vunpack.c.l.b16 %v7523
    %v7787 = vunpack.c.l.b16 %v7524
    %v7788 = vunpack.c.l.b16 %v7525
    %v7789 = vunpack.c.l.b16 %v7526
    %v7790 = vunpack.c.l.b16 %v7527
    %v7791 = vunpack.c.l.b16 %v7528
    %v7792 = vunpack.c.l.b16 %v7529
    %v7793 = vunpack.c.l.b16 %v7530
    %v7794 = vunpack.c.l.b16 %v7531
    %v7795 = vunpack.c.l.b16 %v7532
    %v7796 = vunpack.c.l.b16 %v7533
    %v7797 = vunpack.c.l.b16 %v7534
    %v7798 = vunpack.c.l.b16 %v7535
    %v7799 = vunpack.c.l.b16 %v7536
    %v7800 = vunpack.c.l.b16 %v7537
    %v7801 = vunpack.c.l.b16 %v7538
    %v7802 = vunpack.c.l.b16 %v7539
    %v7803 = vunpack.c.l.b16 %v7540
    %v7804 = vunpack.c.l.b16 %v7541
    %v7805 = vunpack.c.l.b16 %v7542
    %v7806 = vunpack.c.l.b16 %v7543
    %v7807 = vunpack.c.l.b16 %v7544
    %v7808 = vunpack.c.l.b16 %v7545
    %v7809 = vunpack.c.l.b16 %v7546
    %v7810 = vunpack.c.l.b16 %v7547
    %v7811 = vunpack.c.l.b16 %v7548
    %v7812 = vunpack.c.l.b16 %v7549
    %v7813 = vunpack.c.l.b16 %v7550
    %v7814 = vunpack.c.l.b16 %v7551
    %v7815 = vunpack.c.l.b16 %v7552
    %v7816 = vunpack.c.l.b16 %v7553
    %v7817 = vunpack.c.l.b16 %v7554
    %v7818 = vunpack.c.l.b16 %v7555
    %v7819 = vunpack.c.l.b16 %v7556
    %v7820 = vpack.c.b16 %v7693, %v7692
    %v7821 = vpack.c.b16 %v7695, %v7694
    %v7822 = vpack.c.b16 %v7697, %v7696
    %v7823 = vpack.c.b16 %v7699, %v7698
    %v7824 = vpack.c.b16 %v7701, %v7700
    %v7825 = vpack.c.b16 %v7703, %v7702
    %v7826 = vpack.c.b16 %v7705, %v7704
    %v7827 = vpack.c.b16 %v7707, %v7706
    %v7828 = vpack.c.b16 %v7709, %v7708
    %v7829 = vpack.c.b16 %v7711, %v7710
    %v7830 = vpack.c.b16 %v7713, %v7712
    %v7831 = vpack.c.b16 %v7715, %v7714
    %v7832 = vpack.c.b16 %v7717, %v7716
    %v7833 = vpack.c.b16 %v7719, %v7718
    %v7834 = vpack.c.b16 %v7721, %v7720
    %v7835 = vpack.c.b16 %v7723, %v7722
    %v7836 = vpack.c.b16 %v7725, %v7724
    %v7837 = vpack.c.b16 %v7727, %v7726
    %v7838 = vpack.c.b16 %v7729, %v7728
    %v7839 = vpack.c.b16 %v7731, %v7730
    %v7840 = vpack.c.b16 %v7733, %v7732
    %v7841 = vpack.c.b16 %v7735, %v7734
    %v7842 = vpack.c.b16 %v7737, %v7736
    %v7843 = vpack.c.b16 %v7739, %v7738
    %v7844 = vpack.c.b16 %v7741, %v7740
    %v7845 = vpack.c.b16 %v7743, %v7742
    %v7846 = vpack.c.b16 %v7745, %v7744
    %v7847 = vpack.c.b16 %v7747, %v7746
    %v7848 = vpack.c.b16 %v7749, %v7748
    %v7849 = vpack.c.b16 %v7751, %v7750
    %v7850 = vpack.c.b16 %v7753, %v7752
    %v7851 = vpack.c.b16 %v7755, %v7754
    %v7852 = vpack.c.b16 %v7757, %v7756
    %v7853 = vpack.c.b16 %v7759, %v7758
    %v7854 = vpack.c.b16 %v7761, %v7760
    %v7855 = vpack.c.b16 %v7763, %v7762
    %v7856 = vpack.c.b16 %v7765, %v7764
    %v7857 = vpack.c.b16 %v7767, %v7766
    %v7858 = vpack.c.b16 %v7769, %v7768
    %v7859 = vpack.c.b16 %v7771, %v7770
    %v7860 = vpack.c.b16 %v7773, %v7772
    %v7861 = vpack.c.b16 %v7775, %v7774
    %v7862 = vpack.c.b16 %v7777, %v7776
    %v7863 = vpack.c.b16 %v7779, %v7778
    %v7864 = vpack.c.b16 %v7781, %v7780
    %v7865 = vpack.c.b16 %v7783, %v7782
    %v7866 = vpack.c.b16 %v7785, %v7784
    %v7867 = vpack.c.b16 %v7787, %v7786
    %v7868 = vpack.c.b16 %v7789, %v7788
    %v7869 = vpack.c.b16 %v7791, %v7790
    %v7870 = vpack.c.b16 %v7793, %v7792
    %v7871 = vpack.c.b16 %v7795, %v7794
    %v7872 = vpack.c.b16 %v7797, %v7796
    %v7873 = vpack.c.b16 %v7799, %v7798
    %v7874 = vpack.c.b16 %v7801, %v7800
    %v7875 = vpack.c.b16 %v7803, %v7802
    %v7876 = vpack.c.b16 %v7805, %v7804
    %v7877 = vpack.c.b16 %v7807, %v7806
    %v7878 = vpack.c.b16 %v7809, %v7808
    %v7879 = vpack.c.b16 %v7811, %v7810
    %v7880 = vpack.c.b16 %v7813, %v7812
    %v7881 = vpack.c.b16 %v7815, %v7814
    %v7882 = vpack.c.b16 %v7817, %v7816
    %v7883 = vpack.c.b16 %v7819, %v7818
    %7948 = vmatprep.subr.bf16.mxu0 0
    %7949 = vmatpush1.bf16.msra.mxu0 %v7820
    %7950 = vmatprep.subr.bf16.mxu0 0
    %7951 = vmatpush1.bf16.msra.mxu0 %v7821
    %7952 = vmatprep.subr.bf16.mxu0 0
    %7953 = vmatpush1.bf16.msra.mxu0 %v7822
    %7954 = vmatprep.subr.bf16.mxu0 0
    %7955 = vmatpush1.bf16.msra.mxu0 %v7823
    %7956 = vmatprep.subr.bf16.mxu0 0
    %7957 = vmatpush1.bf16.msra.mxu0 %v7824
    %7958 = vmatprep.subr.bf16.mxu0 0
    %7959 = vmatpush1.bf16.msra.mxu0 %v7825
    %7960 = vmatprep.subr.bf16.mxu0 0
    %7961 = vmatpush1.bf16.msra.mxu0 %v7826
    %7962 = vmatprep.subr.bf16.mxu0 0
    %7963 = vmatpush1.bf16.msra.mxu0 %v7827
    %7964 = vmatprep.subr.bf16.mxu0 0
    %7965 = vmatpush1.bf16.msra.mxu0 %v7828
    %7966 = vmatprep.subr.bf16.mxu0 0
    %7967 = vmatpush1.bf16.msra.mxu0 %v7829
    %7968 = vmatprep.subr.bf16.mxu0 0
    %7969 = vmatpush1.bf16.msra.mxu0 %v7830
    %7970 = vmatprep.subr.bf16.mxu0 0
    %7971 = vmatpush1.bf16.msra.mxu0 %v7831
    %7972 = vmatprep.subr.bf16.mxu0 0
    %7973 = vmatpush1.bf16.msra.mxu0 %v7832
    %7974 = vmatprep.subr.bf16.mxu0 0
    %7975 = vmatpush1.bf16.msra.mxu0 %v7833
    %7976 = vmatprep.subr.bf16.mxu0 0
    %7977 = vmatpush1.bf16.msra.mxu0 %v7834
    %7978 = vmatprep.subr.bf16.mxu0 0
    %7979 = vmatpush1.bf16.msra.mxu0 %v7835
    %7980 = vmatprep.mubr.bf16.mxu0 %v7422
    %7981 = vmatmul.mubr.bf16.gmra.mrb[0].mxu0 %v7421
    %v7982 = vpop.f32.mrb[0].mxu0
    %v7983 = vadd.f32 %v7562, %v7982
    %v7984 = vpop.f32.mrb[0].mxu0
    %v7985 = vpop.f32.mrb[0].mxu0
    %v7986 = vadd.f32 %v7562, %v7985
    %v7987 = vpop.f32.mrb[0].mxu0
    %7988 = vdwg.mxu0
    %7989 = vmatprep.subr.bf16.mxu0 0
    %7990 = vmatpush1.bf16.msra.mxu0 %v7836
    %7991 = vmatprep.subr.bf16.mxu0 0
    %7992 = vmatpush1.bf16.msra.mxu0 %v7837
    %7993 = vmatprep.subr.bf16.mxu0 0
    %7994 = vmatpush1.bf16.msra.mxu0 %v7838
    %7995 = vmatprep.subr.bf16.mxu0 0
    %7996 = vmatpush1.bf16.msra.mxu0 %v7839
    %7997 = vmatprep.subr.bf16.mxu0 0
    %7998 = vmatpush1.bf16.msra.mxu0 %v7840
    %7999 = vmatprep.subr.bf16.mxu0 0
    %8000 = vmatpush1.bf16.msra.mxu0 %v7841
    %8001 = vmatprep.subr.bf16.mxu0 0
    %8002 = vmatpush1.bf16.msra.mxu0 %v7842
    %8003 = vmatprep.subr.bf16.mxu0 0
    %8004 = vmatpush1.bf16.msra.mxu0 %v7843
    %8005 = vmatprep.subr.bf16.mxu0 0
    %8006 = vmatpush1.bf16.msra.mxu0 %v7844
    %8007 = vmatprep.subr.bf16.mxu0 0
    %8008 = vmatpush1.bf16.msra.mxu0 %v7845
    %8009 = vmatprep.subr.bf16.mxu0 0
    %8010 = vmatpush1.bf16.msra.mxu0 %v7846
    %8011 = vmatprep.subr.bf16.mxu0 0
    %8012 = vmatpush1.bf16.msra.mxu0 %v7847
    %8013 = vmatprep.subr.bf16.mxu0 0
    %8014 = vmatpush1.bf16.msra.mxu0 %v7848
    %8015 = vmatprep.subr.bf16.mxu0 0
    %8016 = vmatpush1.bf16.msra.mxu0 %v7849
    %8017 = vmatprep.subr.bf16.mxu0 0
    %8018 = vmatpush1.bf16.msra.mxu0 %v7850
    %8019 = vmatprep.subr.bf16.mxu0 0
    %8020 = vmatpush1.bf16.msra.mxu0 %v7851
    %8021 = vmatprep.mubr.bf16.mxu0 %v7424
    %8022 = vmatmul.mubr.bf16.gmra.mrb[0].mxu0 %v7423
    %v8023 = vpop.f32.mrb[0].mxu0
    %v8024 = vadd.f32 %v7983, %v8023
    %v8025 = vpop.f32.mrb[0].mxu0
    %v8026 = vpop.f32.mrb[0].mxu0
    %v8027 = vadd.f32 %v7986, %v8026
    %v8028 = vpop.f32.mrb[0].mxu0
    %8029 = vdwg.mxu0
    %8030 = vmatprep.subr.bf16.mxu0 0
    %8031 = vmatpush1.bf16.msra.mxu0 %v7852
    %8032 = vmatprep.subr.bf16.mxu0 0
    %8033 = vmatpush1.bf16.msra.mxu0 %v7853
    %8034 = vmatprep.subr.bf16.mxu0 0
    %8035 = vmatpush1.bf16.msra.mxu0 %v7854
    %8036 = vmatprep.subr.bf16.mxu0 0
    %8037 = vmatpush1.bf16.msra.mxu0 %v7855
    %8038 = vmatprep.subr.bf16.mxu0 0
    %8039 = vmatpush1.bf16.msra.mxu0 %v7856
    %8040 = vmatprep.subr.bf16.mxu0 0
    %8041 = vmatpush1.bf16.msra.mxu0 %v7857
    %8042 = vmatprep.subr.bf16.mxu0 0
    %8043 = vmatpush1.bf16.msra.mxu0 %v7858
    %8044 = vmatprep.subr.bf16.mxu0 0
    %8045 = vmatpush1.bf16.msra.mxu0 %v7859
    %8046 = vmatprep.subr.bf16.mxu0 0
    %8047 = vmatpush1.bf16.msra.mxu0 %v7860
    %8048 = vmatprep.subr.bf16.mxu0 0
    %8049 = vmatpush1.bf16.msra.mxu0 %v7861
    %8050 = vmatprep.subr.bf16.mxu0 0
    %8051 = vmatpush1.bf16.msra.mxu0 %v7862
    %8052 = vmatprep.subr.bf16.mxu0 0
    %8053 = vmatpush1.bf16.msra.mxu0 %v7863
    %8054 = vmatprep.subr.bf16.mxu0 0
    %8055 = vmatpush1.bf16.msra.mxu0 %v7864
    %8056 = vmatprep.subr.bf16.mxu0 0
    %8057 = vmatpush1.bf16.msra.mxu0 %v7865
    %8058 = vmatprep.subr.bf16.mxu0 0
    %8059 = vmatpush1.bf16.msra.mxu0 %v7866
    %8060 = vmatprep.subr.bf16.mxu0 0
    %8061 = vmatpush1.bf16.msra.mxu0 %v7867
    %8062 = vmatprep.mubr.bf16.mxu0 %v7426
    %8063 = vmatmul.mubr.bf16.gmra.mrb[0].mxu0 %v7425
    %v8064 = vpop.f32.mrb[0].mxu0
    %v8065 = vadd.f32 %v8024, %v8064
    %v8066 = vpop.f32.mrb[0].mxu0
    %v8067 = vpop.f32.mrb[0].mxu0
    %v8068 = vadd.f32 %v8027, %v8067
    %v8069 = vpop.f32.mrb[0].mxu0
    %8070 = vdwg.mxu0
    %8071 = vmatprep.subr.bf16.mxu0 0
    %8072 = vmatpush1.bf16.msra.mxu0 %v7868
    %8073 = vmatprep.subr.bf16.mxu0 0
    %8074 = vmatpush1.bf16.msra.mxu0 %v7869
    %8075 = vmatprep.subr.bf16.mxu0 0
    %8076 = vmatpush1.bf16.msra.mxu0 %v7870
    %8077 = vmatprep.subr.bf16.mxu0 0
    %8078 = vmatpush1.bf16.msra.mxu0 %v7871
    %8079 = vmatprep.subr.bf16.mxu0 0
    %8080 = vmatpush1.bf16.msra.mxu0 %v7872
    %8081 = vmatprep.subr.bf16.mxu0 0
    %8082 = vmatpush1.bf16.msra.mxu0 %v7873
    %8083 = vmatprep.subr.bf16.mxu0 0
    %8084 = vmatpush1.bf16.msra.mxu0 %v7874
    %8085 = vmatprep.subr.bf16.mxu0 0
    %8086 = vmatpush1.bf16.msra.mxu0 %v7875
    %8087 = vmatprep.subr.bf16.mxu0 0
    %8088 = vmatpush1.bf16.msra.mxu0 %v7876
    %8089 = vmatprep.subr.bf16.mxu0 0
    %8090 = vmatpush1.bf16.msra.mxu0 %v7877
    %8091 = vmatprep.subr.bf16.mxu0 0
    %8092 = vmatpush1.bf16.msra.mxu0 %v7878
    %8093 = vmatprep.subr.bf16.mxu0 0
    %8094 = vmatpush1.bf16.msra.mxu0 %v7879
    %8095 = vmatprep.subr.bf16.mxu0 0
    %8096 = vmatpush1.bf16.msra.mxu0 %v7880
    %8097 = vmatprep.subr.bf16.mxu0 0
    %8098 = vmatpush1.bf16.msra.mxu0 %v7881
    %8099 = vmatprep.subr.bf16.mxu0 0
    %8100 = vmatpush1.bf16.msra.mxu0 %v7882
    %8101 = vmatprep.subr.bf16.mxu0 0
    %8102 = vmatpush1.bf16.msra.mxu0 %v7883
    %8103 = vmatprep.mubr.bf16.mxu0 %v7428
    %8104 = vmatmul.mubr.bf16.gmra.mrb[0].mxu0 %v7427
    %v8105 = vpop.f32.mrb[0].mxu0
    %v8106 = vadd.f32 %v8065, %v8105
    %v8107 = vpop.f32.mrb[0].mxu0
    %v8108 = vpop.f32.mrb[0].mxu0
    %v8109 = vadd.f32 %v8068, %v8108
    %v8110 = vpop.f32.mrb[0].mxu0
    %8111 = vdwg.mxu0
    %8112 = vst [vmem:[#allocation14] sm:$0xff] %v8106
    %8113 = vst [vmem:[#allocation14 + $0x8] sm:$0xff] %v8109
    // Predicated region
    $region58: #{tpu_custom_call.1} parent=1 // pred_check
      _
    $region59: #{tpu_custom_call.1} parent=1 // pred_check_branch
      %8115 = sbr.rel (0) target = $region61
    $region60: #{tpu_custom_call.1} parent=1 // pred_region
      %s8117 = ssub.s32 256, 256
      %8118 = vsyncadd [#allocation4], %s8117
      %s8119 = sshll.u32 [#allocation14], 4
      %s8120 = int_to_ptr.vmem [resolvable:$true] %s8119
      %8125 = dma.vmem_to_hbm [thread:$0]  %s8120, 256, %s7, [#allocation4], 128, 128, 8
    $region61: #{tpu_custom_call.1} parent=1 // pred_fallthru
      _
    // Predicated region
    $region62: #{tpu_custom_call.1} parent=1 // pred_check
      _
    $region63: #{tpu_custom_call.1} parent=1 // pred_check_branch
      %8127 = sbr.rel (0) target = $region65
    $region64: #{tpu_custom_call.1} parent=1 // pred_region
      %8128 = dma.done [#allocation4], 256
    $region65: #{tpu_custom_call.1} parent=1 // pred_fallthru
      _
    %8129 = vsyncpa [#allocation3], 1
    %8130 = vsyncpa [#allocation6], 1
    %8131 = vsyncpa [#allocation9], 1
    %8132 = vsyncpa [#allocation12], 1
    %8133 = vsyncpa [#allocation4], 1

</llo_original>
